<compile_context>
chip_gen: v7x
topology: tpu7x:2x2x1
jax: 0.10.0
libtpu: 0.0.40
codegen_flags: <defaults>
</compile_context>

<pallas_src>
import jax
import jax.numpy as jnp
from jax.experimental import pallas as pl
from jax.experimental.pallas import tpu as pltpu

EPS = 1e-5


# ---------------------------------------------------------------------------
# Spec / compiler-param helpers
# ---------------------------------------------------------------------------
def _bcast_spec(shape):
    """Full-array block, same block for every grid step (weights, stats, BN params)."""
    nd = len(shape)
    return pl.BlockSpec(tuple(shape), lambda n, _nd=nd: (0,) * _nd)


def _nblk_spec(shape):
    """Tile the leading (batch) axis by 1; keep the trailing dims whole."""
    nd = len(shape)
    blk = (1,) + tuple(shape[1:])
    return pl.BlockSpec(blk, lambda n, _nd=nd: (n,) + (0,) * (_nd - 1))


def _cparams():
    # One "parallel" grid axis over N -> megacore-shardable on v7x, pipelined on all.
    # Explicit VMEM cap leaves headroom on v7x's 64 MiB while allowing big tiles on
    # v5e/v6e (128 MiB physical).
    return pltpu.CompilerParams(
        dimension_semantics=("parallel",),
        vmem_limit_bytes=48 * 1024 * 1024,
    )


# ---------------------------------------------------------------------------
# In-kernel helpers (operate on loaded jnp values)
# ---------------------------------------------------------------------------
def _pad_hw1(x):
    """Zero-pad a (H, W, C) value by 1 on each side of H and W -> (H+2, W+2, C).
    Done on the loaded VMEM value so no padded copy ever hits HBM."""
    H, W, C = x.shape
    zr = jnp.zeros((1, W, C), x.dtype)
    xp = jnp.concatenate([zr, x, zr], axis=0)          # leading (non-tiled) dim: cheap
    zc = jnp.zeros((H + 2, 1, C), x.dtype)
    return jnp.concatenate([zc, xp, zc], axis=1)       # sublane dim


def _im2col_3x3(xp, H, W, Cin):
    """xp: (H+2, W+2, Cin) zero-padded plane -> (H*W, 9*Cin) bf16 im2col slab.
    Tap order (dy, dx, cin) matches w.reshape(9*Cin, Cout) of a (3,3,Cin,Cout) filter."""
    cols = [xp[dy:dy + H, dx:dx + W, :] for dy in range(3) for dx in range(3)]
    xcol = jnp.concatenate(cols, axis=-1)               # (H, W, 9*Cin)
    return xcol.reshape(H * W, 9 * Cin).astype(jnp.bfloat16)


def _partial_stats(y):
    """y: (rows, C) f32 -> (1, 2, C) partial [sum, sum-of-squares] over rows."""
    s = jnp.sum(y, axis=0, keepdims=True)
    q = jnp.sum(y * y, axis=0, keepdims=True)
    return jnp.concatenate([s, q], axis=0).reshape(1, 2, y.shape[-1])


def _bn_scale_shift(stats, gamma, beta, cnt):
    """Finalize training-mode BN from per-batch partial stats.
    stats: (N, 2, C); gamma/beta: (1, C).  Returns per-channel (scale, shift)."""
    s = jnp.sum(stats, axis=0)                           # (2, C)
    inv_cnt = 1.0 / float(cnt)
    mean = s[0:1, :] * inv_cnt
    var = jnp.maximum(s[1:2, :] * inv_cnt - mean * mean, 0.0)   # biased variance
    inv = jax.lax.rsqrt(var + EPS)
    scale = gamma * inv
    shift = beta - mean * scale
    return scale, shift                                  # each (1, C)


# ---------------------------------------------------------------------------
# K1: conv1 + shortcut-conv fused, one im2col matmul, + partial BN stats
# ---------------------------------------------------------------------------
def conv_dual_kernel(x_ref, w_ref, h1_ref, hs_ref, s1_ref, ss_ref):
    # x:    (1, H, W, Cin) unpadded input, one batch element per grid step.
    # w:    (9*Cin, 2*Cout) bf16 — conv1 filters in columns [:Cout], shortcut in [Cout:].
    _, H, W, Cin = x_ref.shape
    cout = w_ref.shape[-1] // 2

    xp = _pad_hw1(x_ref[0])                                             # (H+2, W+2, Cin)
    xcol = _im2col_3x3(xp, H, W, Cin)                                   # (HW, 9*Cin)
    y = jnp.dot(xcol, w_ref[...], preferred_element_type=jnp.float32)   # (HW, 2*Cout)

    y1 = y[:, :cout]
    ys = y[:, cout:]
    h1_ref[...] = y1.reshape(1, H, W, cout)
    hs_ref[...] = ys.reshape(1, H, W, cout)
    s1_ref[...] = _partial_stats(y1)
    ss_ref[...] = _partial_stats(ys)


def conv_dual(x, w_pair, cout):
    N, H, W, _ = x.shape
    return pl.pallas_call(
        conv_dual_kernel,
        out_shape=(jax.ShapeDtypeStruct((N, H, W, cout), jnp.float32),
                   jax.ShapeDtypeStruct((N, H, W, cout), jnp.float32),
                   jax.ShapeDtypeStruct((N, 2, cout), jnp.float32),
                   jax.ShapeDtypeStruct((N, 2, cout), jnp.float32)),
        grid=(N,),
        in_specs=[_nblk_spec(x.shape), _bcast_spec(w_pair.shape)],
        out_specs=(_nblk_spec((N, H, W, cout)), _nblk_spec((N, H, W, cout)),
                   _nblk_spec((N, 2, cout)), _nblk_spec((N, 2, cout))),
        compiler_params=_cparams(),
    )(x, w_pair)


# ---------------------------------------------------------------------------
# K2: inline BN+ReLU of the producer conv -> zero-pad -> 3x3 conv + stats
# ---------------------------------------------------------------------------
def conv_bnrelu_kernel(h_ref, stats_ref, w_ref, gamma_ref, beta_ref, o_ref, so_ref):
    # h: (1, H, W, Cin) = PRE-BN output of the previous conv.
    # BN+ReLU is applied here (fused into this kernel's read), then the plane is
    # zero-padded because the reference pads with zeros AFTER the activation.
    _, H, W, Cin = h_ref.shape
    cout = w_ref.shape[-1]
    n_total = stats_ref.shape[0] * H * W

    scale, shift = _bn_scale_shift(stats_ref[...], gamma_ref[...], beta_ref[...],
                                   n_total)
    a = jnp.maximum(h_ref[0] * scale.reshape(1, 1, Cin) + shift.reshape(1, 1, Cin),
                    0.0)                                                # (H, W, Cin)
    xp = _pad_hw1(a)                                                    # pad post-ReLU

    xcol = _im2col_3x3(xp, H, W, Cin)
    y = jnp.dot(xcol, w_ref[...], preferred_element_type=jnp.float32)
    o_ref[...] = y.reshape(1, H, W, cout)
    so_ref[...] = _partial_stats(y)


def conv_bnrelu(h, stats, w, gamma, beta, cout):
    N, H, W, _ = h.shape
    return pl.pallas_call(
        conv_bnrelu_kernel,
        out_shape=(jax.ShapeDtypeStruct((N, H, W, cout), jnp.float32),
                   jax.ShapeDtypeStruct((N, 2, cout), jnp.float32)),
        grid=(N,),
        in_specs=[_nblk_spec(h.shape), _bcast_spec(stats.shape),
                  _bcast_spec(w.shape), _bcast_spec(gamma.shape),
                  _bcast_spec(beta.shape)],
        out_specs=(_nblk_spec((N, H, W, cout)), _nblk_spec((N, 2, cout))),
        compiler_params=_cparams(),
    )(h, stats, w, gamma, beta)


# ---------------------------------------------------------------------------
# K3: partial batch stats of ReLU(BN(h)) — feeds the attention BatchNorm
# ---------------------------------------------------------------------------
def act_stats_kernel(h_ref, stats_ref, gamma_ref, beta_ref, so_ref):
    _, H, W, C = h_ref.shape
    n_total = stats_ref.shape[0] * H * W
    scale, shift = _bn_scale_shift(stats_ref[...], gamma_ref[...], beta_ref[...],
                                   n_total)
    a = jnp.maximum(h_ref[0].reshape(H * W, C) * scale + shift, 0.0)
    so_ref[...] = _partial_stats(a)


def bnrelu_stats(h, stats, gamma, beta):
    N, H, W, C = h.shape
    return pl.pallas_call(
        act_stats_kernel,
        out_shape=jax.ShapeDtypeStruct((N, 2, C), jnp.float32),
        grid=(N,),
        in_specs=[_nblk_spec(h.shape), _bcast_spec(stats.shape),
                  _bcast_spec(gamma.shape), _bcast_spec(beta.shape)],
        out_specs=_nblk_spec((N, 2, C)),
        compiler_params=_cparams(),
    )(h, stats, gamma, beta)


# ---------------------------------------------------------------------------
# K4: attention + all epilogues fused (BN2+ReLU, attn norm, qkv, softmax,
#     out-proj, +attention residual, shortcut BN+ReLU, +shortcut residual)
# ---------------------------------------------------------------------------
def attention_epilogue_kernel(h2_ref, s2_ref, g2_ref, b2_ref,
                              s3_ref, g3_ref, b3_ref,
                              wqkv_ref, bqkv_ref, wout_ref, bout_ref,
                              hs_ref, ssc_ref, gsc_ref, bsc_ref,
                              o_ref):
    _, H, W, C = h2_ref.shape
    HW = H * W
    n_total = s2_ref.shape[0] * H * W

    sc2, sh2 = _bn_scale_shift(s2_ref[...], g2_ref[...], b2_ref[...], n_total)
    sc3, sh3 = _bn_scale_shift(s3_ref[...], g3_ref[...], b3_ref[...], n_total)
    scs, shs = _bn_scale_shift(ssc_ref[...], gsc_ref[...], bsc_ref[...], n_total)

    # conv-path output (attention input / residual) and its BatchNorm
    a = jnp.maximum(h2_ref[0].reshape(HW, C) * sc2 + sh2, 0.0)
    xn = a * sc3 + sh3

    # 1x1 qkv conv == single matmul (channels-last)
    qkv = jnp.dot(xn.astype(jnp.bfloat16), wqkv_ref[...],
                  preferred_element_type=jnp.float32) + bqkv_ref[...]
    q = qkv[:, 0:C]
    k = qkv[:, C:2 * C]
    v = qkv[:, 2 * C:3 * C]

    # TODO(synk): for production H*W, tile keys with an online-softmax (flash)
    # accumulator instead of materializing the full (HW, HW) score matrix.
    dots = jax.lax.dot_general(q.astype(jnp.bfloat16), k.astype(jnp.bfloat16),
                               (((1,), (1,)), ((), ())),
                               preferred_element_type=jnp.float32) * (C ** -0.5)
    m = jnp.max(dots, axis=-1, keepdims=True)
    e = jnp.exp(dots - m)
    attn = e / jnp.sum(e, axis=-1, keepdims=True)

    out = jnp.dot(attn.astype(jnp.bfloat16), v.astype(jnp.bfloat16),
                  preferred_element_type=jnp.float32)
    out = jnp.dot(out.astype(jnp.bfloat16), wout_ref[...],
                  preferred_element_type=jnp.float32) + bout_ref[...]

    # shortcut path: BN + ReLU applied here (its conv output arrives pre-BN)
    s = jnp.maximum(hs_ref[0].reshape(HW, C) * scs + shs, 0.0)

    o_ref[...] = (out + a + s).reshape(1, H, W, C)


def attention_fused(h2, st2, g2, b2, st3, g3, b3, wqkv, bqkv, wout, bout,
                    hs, stsc, gsc, bsc):
    N, H, W, C = h2.shape
    ins = (h2, st2, g2, b2, st3, g3, b3, wqkv, bqkv, wout, bout, hs, stsc, gsc, bsc)
    specs = [_nblk_spec(h2.shape), _bcast_spec(st2.shape), _bcast_spec(g2.shape),
             _bcast_spec(b2.shape), _bcast_spec(st3.shape), _bcast_spec(g3.shape),
             _bcast_spec(b3.shape), _bcast_spec(wqkv.shape), _bcast_spec(bqkv.shape),
             _bcast_spec(wout.shape), _bcast_spec(bout.shape), _nblk_spec(hs.shape),
             _bcast_spec(stsc.shape), _bcast_spec(gsc.shape), _bcast_spec(bsc.shape)]
    return pl.pallas_call(
        attention_epilogue_kernel,
        out_shape=jax.ShapeDtypeStruct((N, H, W, C), jnp.float32),
        grid=(N,),
        in_specs=specs,
        out_specs=_nblk_spec((N, H, W, C)),
        compiler_params=_cparams(),
    )(*ins)


# ---------------------------------------------------------------------------
# Parameter init + full ResBlk forward
# ---------------------------------------------------------------------------
def init_resblk_params(key, ch_in, ch_out):
    ks = jax.random.split(key, 16)

    def rnd(k, shape, scale=0.1):
        return scale * jax.random.normal(k, shape, dtype=jnp.float32)

    return dict(
        # conv path.  Conv biases exist for PyTorch parameter parity but are
        # mathematically cancelled by the following training-mode BatchNorm
        # (mean subtraction), so the kernels fold them out (bit-identical).
        conv1_w=rnd(ks[0], (3, 3, ch_in, ch_out)),
        conv1_b=rnd(ks[1], (1, ch_out)),
        bn1_g=1.0 + rnd(ks[2], (1, ch_out)),
        bn1_b=rnd(ks[3], (1, ch_out)),
        conv2_w=rnd(ks[4], (3, 3, ch_out, ch_out)),
        conv2_b=rnd(ks[5], (1, ch_out)),
        bn2_g=1.0 + rnd(ks[6], (1, ch_out)),
        bn2_b=rnd(ks[7], (1, ch_out)),
        # attention block
        attn_bn_g=1.0 + rnd(ks[8], (1, ch_out)),
        attn_bn_b=rnd(ks[9], (1, ch_out)),
        wqkv=rnd(ks[10], (ch_out, 3 * ch_out)),
        bqkv=rnd(ks[11], (1, 3 * ch_out)),
        wout=rnd(ks[12], (ch_out, ch_out)),
        bout=rnd(ks[13], (1, ch_out)),
        # shortcut (Conv3x3 + BN + ReLU, as in the reference ResBlk)
        sc_w=rnd(ks[14], (3, 3, ch_in, ch_out)),
        sc_b=rnd(ks[15], (1, ch_out)),
        sc_bn_g=jnp.ones((1, ch_out), jnp.float32),
        sc_bn_b=jnp.zeros((1, ch_out), jnp.float32),
    )


def resblk_forward(x_nchw, p):
    # NCHW (PyTorch) -> NHWC (channels on the lane axis) for the kernels.
    # NOTE: for production, pick channel counts that are multiples of 128 so the
    # output stores are lane-dense; the spec's ch_out=8 is intentionally tiny.
    x = jnp.transpose(x_nchw, (0, 2, 3, 1)).astype(jnp.float32)
    N, H, W, cin = x.shape
    cout = p['conv1_w'].shape[-1]

    # K1: conv1 & shortcut-conv fused (shared input read + shared im2col slab).
    # Padding happens in-kernel, so no padded copy of x is materialized in HBM.
    # TODO(synk): for large H/W, additionally tile rows with in-kernel halo DMA
    # (pl.ANY + make_async_copy) so a whole plane need not be VMEM-resident.
    w_pair = jnp.concatenate(
        [p['conv1_w'].reshape(9 * cin, cout), p['sc_w'].reshape(9 * cin, cout)],
        axis=1).astype(jnp.bfloat16)
    h1, hs, st1, stsc = conv_dual(x, w_pair, cout)

    # K2: BN1+ReLU fused into conv2's read -> in-kernel zero-pad -> conv2 + stats.
    w2 = p['conv2_w'].reshape(9 * cout, cout).astype(jnp.bfloat16)
    h2, st2 = conv_bnrelu(h1, st1, w2, p['bn1_g'], p['bn1_b'], cout)

    # K3: batch stats of ReLU(BN2(h2)) for the attention BatchNorm.
    st3 = bnrelu_stats(h2, st2, p['bn2_g'], p['bn2_b'])

    # K4: attention + all residual / shortcut epilogues fused.
    out = attention_fused(
        h2, st2, p['bn2_g'], p['bn2_b'],
        st3, p['attn_bn_g'], p['attn_bn_b'],
        p['wqkv'].astype(jnp.bfloat16), p['bqkv'],
        p['wout'].astype(jnp.bfloat16), p['bout'],
        hs, stsc, p['sc_bn_g'], p['sc_bn_b'])

    return jnp.transpose(out, (0, 3, 1, 2))


if __name__ == "__main__":
    key = jax.random.PRNGKey(0)
    k_x, k_p = jax.random.split(key)

    N, CH_IN, CH_OUT, H, W = 2, 4, 8, 16, 16
    x = jax.random.normal(k_x, (N, CH_IN, H, W), dtype=jnp.float32)   # NCHW like PyTorch
    params = init_resblk_params(k_p, CH_IN, CH_OUT)

    out = jax.jit(resblk_forward)(x, params)
    out = jax.block_until_ready(out)

    assert out.shape == (N, CH_OUT, H, W)
    assert bool(jnp.all(jnp.isfinite(out)))
    print("KERNEL_OK")
</pallas_src>

<mosaic_0001>
module attributes {stable_mosaic.version = 11 : i64} {
  func.func @attention_epilogue_kernel(%arg0: i32, %arg1: memref<1x16x16x8xf32, #tpu.memory_space<vmem>>, %arg2: memref<2x2x8xf32, #tpu.memory_space<vmem>>, %arg3: memref<1x8xf32, #tpu.memory_space<vmem>>, %arg4: memref<1x8xf32, #tpu.memory_space<vmem>>, %arg5: memref<2x2x8xf32, #tpu.memory_space<vmem>>, %arg6: memref<1x8xf32, #tpu.memory_space<vmem>>, %arg7: memref<1x8xf32, #tpu.memory_space<vmem>>, %arg8: memref<8x24xbf16, #tpu.memory_space<vmem>>, %arg9: memref<1x24xf32, #tpu.memory_space<vmem>>, %arg10: memref<8x8xbf16, #tpu.memory_space<vmem>>, %arg11: memref<1x8xf32, #tpu.memory_space<vmem>>, %arg12: memref<1x16x16x8xf32, #tpu.memory_space<vmem>>, %arg13: memref<2x2x8xf32, #tpu.memory_space<vmem>>, %arg14: memref<1x8xf32, #tpu.memory_space<vmem>>, %arg15: memref<1x8xf32, #tpu.memory_space<vmem>>, %arg16: memref<1x16x16x8xf32, #tpu.memory_space<vmem>>) attributes {dimension_semantics = [#tpu.dimension_semantics<parallel>], iteration_bounds = array<i64: 2>, scalar_prefetch = 0 : i64, scratch_operands = 0 : i64, tpu.core_type = #tpu.core_type<tc>, window_params = [{transform_indices = @transform_0, window_bounds = array<i64: 1, 16, 16, 8>}, {pipeline_mode = #tpu.pipeline_mode<synchronous>, transform_indices = @transform_1, window_bounds = array<i64: 2, 2, 8>}, {pipeline_mode = #tpu.pipeline_mode<synchronous>, transform_indices = @transform_2, window_bounds = array<i64: 1, 8>}, {pipeline_mode = #tpu.pipeline_mode<synchronous>, transform_indices = @transform_3, window_bounds = array<i64: 1, 8>}, {pipeline_mode = #tpu.pipeline_mode<synchronous>, transform_indices = @transform_4, window_bounds = array<i64: 2, 2, 8>}, {pipeline_mode = #tpu.pipeline_mode<synchronous>, transform_indices = @transform_5, window_bounds = array<i64: 1, 8>}, {pipeline_mode = #tpu.pipeline_mode<synchronous>, transform_indices = @transform_6, window_bounds = array<i64: 1, 8>}, {pipeline_mode = #tpu.pipeline_mode<synchronous>, transform_indices = @transform_7, window_bounds = array<i64: 8, 24>}, {pipeline_mode = #tpu.pipeline_mode<synchronous>, transform_indices = @transform_8, window_bounds = array<i64: 1, 24>}, {pipeline_mode = #tpu.pipeline_mode<synchronous>, transform_indices = @transform_9, window_bounds = array<i64: 8, 8>}, {pipeline_mode = #tpu.pipeline_mode<synchronous>, transform_indices = @transform_10, window_bounds = array<i64: 1, 8>}, {transform_indices = @transform_11, window_bounds = array<i64: 1, 16, 16, 8>}, {pipeline_mode = #tpu.pipeline_mode<synchronous>, transform_indices = @transform_12, window_bounds = array<i64: 2, 2, 8>}, {pipeline_mode = #tpu.pipeline_mode<synchronous>, transform_indices = @transform_13, window_bounds = array<i64: 1, 8>}, {pipeline_mode = #tpu.pipeline_mode<synchronous>, transform_indices = @transform_14, window_bounds = array<i64: 1, 8>}, {transform_indices = @transform_15, window_bounds = array<i64: 1, 16, 16, 8>}]} {
    %c0 = arith.constant 0 : index
    %c0_0 = arith.constant 0 : index
    %c0_1 = arith.constant 0 : index
    %0 = vector.load %arg2[%c0, %c0_0, %c0_1] : memref<2x2x8xf32, #tpu.memory_space<vmem>>, vector<2x2x8xf32>
    %c0_2 = arith.constant 0 : index
    %c0_3 = arith.constant 0 : index
    %1 = vector.load %arg3[%c0_2, %c0_3] : memref<1x8xf32, #tpu.memory_space<vmem>>, vector<1x8xf32>
    %c0_4 = arith.constant 0 : index
    %c0_5 = arith.constant 0 : index
    %2 = vector.load %arg4[%c0_4, %c0_5] : memref<1x8xf32, #tpu.memory_space<vmem>>, vector<1x8xf32>
    %cst = arith.constant dense<0.000000e+00> : vector<2x8xf32>
    %3 = vector.multi_reduction <add>, %0, %cst [0] : vector<2x2x8xf32> to vector<2x8xf32>
    %4 = vector.extract_strided_slice %3 {offsets = [0, 0], sizes = [1, 8], strides = [1, 1]} : vector<2x8xf32> to vector<1x8xf32>
    %cst_6 = arith.constant 0.001953125 : f32
    %5 = vector.broadcast %cst_6 : f32 to vector<1x8xf32>
    %6 = arith.mulf %4, %5 : vector<1x8xf32>
    %7 = vector.extract_strided_slice %3 {offsets = [1, 0], sizes = [1, 8], strides = [1, 1]} : vector<2x8xf32> to vector<1x8xf32>
    %cst_7 = arith.constant 0.001953125 : f32
    %8 = vector.broadcast %cst_7 : f32 to vector<1x8xf32>
    %9 = arith.mulf %7, %8 : vector<1x8xf32>
    %10 = arith.mulf %6, %6 : vector<1x8xf32>
    %11 = arith.subf %9, %10 : vector<1x8xf32>
    %cst_8 = arith.constant 0.000000e+00 : f32
    %12 = vector.broadcast %cst_8 : f32 to vector<1x8xf32>
    %13 = arith.maximumf %11, %12 : vector<1x8xf32>
    %cst_9 = arith.constant 9.99999974E-6 : f32
    %14 = vector.broadcast %cst_9 : f32 to vector<1x8xf32>
    %15 = arith.addf %13, %14 : vector<1x8xf32>
    %16 = math.rsqrt %15 : vector<1x8xf32>
    %17 = arith.mulf %1, %16 : vector<1x8xf32>
    %18 = arith.mulf %6, %17 : vector<1x8xf32>
    %19 = arith.subf %2, %18 : vector<1x8xf32>
    %c0_10 = arith.constant 0 : index
    %c0_11 = arith.constant 0 : index
    %c0_12 = arith.constant 0 : index
    %20 = vector.load %arg5[%c0_10, %c0_11, %c0_12] : memref<2x2x8xf32, #tpu.memory_space<vmem>>, vector<2x2x8xf32>
    %c0_13 = arith.constant 0 : index
    %c0_14 = arith.constant 0 : index
    %21 = vector.load %arg6[%c0_13, %c0_14] : memref<1x8xf32, #tpu.memory_space<vmem>>, vector<1x8xf32>
    %c0_15 = arith.constant 0 : index
    %c0_16 = arith.constant 0 : index
    %22 = vector.load %arg7[%c0_15, %c0_16] : memref<1x8xf32, #tpu.memory_space<vmem>>, vector<1x8xf32>
    %cst_17 = arith.constant dense<0.000000e+00> : vector<2x8xf32>
    %23 = vector.multi_reduction <add>, %20, %cst_17 [0] : vector<2x2x8xf32> to vector<2x8xf32>
    %24 = vector.extract_strided_slice %23 {offsets = [0, 0], sizes = [1, 8], strides = [1, 1]} : vector<2x8xf32> to vector<1x8xf32>
    %cst_18 = arith.constant 0.001953125 : f32
    %25 = vector.broadcast %cst_18 : f32 to vector<1x8xf32>
    %26 = arith.mulf %24, %25 : vector<1x8xf32>
    %27 = vector.extract_strided_slice %23 {offsets = [1, 0], sizes = [1, 8], strides = [1, 1]} : vector<2x8xf32> to vector<1x8xf32>
    %cst_19 = arith.constant 0.001953125 : f32
    %28 = vector.broadcast %cst_19 : f32 to vector<1x8xf32>
    %29 = arith.mulf %27, %28 : vector<1x8xf32>
    %30 = arith.mulf %26, %26 : vector<1x8xf32>
    %31 = arith.subf %29, %30 : vector<1x8xf32>
    %cst_20 = arith.constant 0.000000e+00 : f32
    %32 = vector.broadcast %cst_20 : f32 to vector<1x8xf32>
    %33 = arith.maximumf %31, %32 : vector<1x8xf32>
    %cst_21 = arith.constant 9.99999974E-6 : f32
    %34 = vector.broadcast %cst_21 : f32 to vector<1x8xf32>
    %35 = arith.addf %33, %34 : vector<1x8xf32>
    %36 = math.rsqrt %35 : vector<1x8xf32>
    %37 = arith.mulf %21, %36 : vector<1x8xf32>
    %38 = arith.mulf %26, %37 : vector<1x8xf32>
    %39 = arith.subf %22, %38 : vector<1x8xf32>
    %c0_22 = arith.constant 0 : index
    %c0_23 = arith.constant 0 : index
    %c0_24 = arith.constant 0 : index
    %40 = vector.load %arg13[%c0_22, %c0_23, %c0_24] : memref<2x2x8xf32, #tpu.memory_space<vmem>>, vector<2x2x8xf32>
    %c0_25 = arith.constant 0 : index
    %c0_26 = arith.constant 0 : index
    %41 = vector.load %arg14[%c0_25, %c0_26] : memref<1x8xf32, #tpu.memory_space<vmem>>, vector<1x8xf32>
    %c0_27 = arith.constant 0 : index
    %c0_28 = arith.constant 0 : index
    %42 = vector.load %arg15[%c0_27, %c0_28] : memref<1x8xf32, #tpu.memory_space<vmem>>, vector<1x8xf32>
    %cst_29 = arith.constant dense<0.000000e+00> : vector<2x8xf32>
    %43 = vector.multi_reduction <add>, %40, %cst_29 [0] : vector<2x2x8xf32> to vector<2x8xf32>
    %44 = vector.extract_strided_slice %43 {offsets = [0, 0], sizes = [1, 8], strides = [1, 1]} : vector<2x8xf32> to vector<1x8xf32>
    %cst_30 = arith.constant 0.001953125 : f32
    %45 = vector.broadcast %cst_30 : f32 to vector<1x8xf32>
    %46 = arith.mulf %44, %45 : vector<1x8xf32>
    %47 = vector.extract_strided_slice %43 {offsets = [1, 0], sizes = [1, 8], strides = [1, 1]} : vector<2x8xf32> to vector<1x8xf32>
    %cst_31 = arith.constant 0.001953125 : f32
    %48 = vector.broadcast %cst_31 : f32 to vector<1x8xf32>
    %49 = arith.mulf %47, %48 : vector<1x8xf32>
    %50 = arith.mulf %46, %46 : vector<1x8xf32>
    %51 = arith.subf %49, %50 : vector<1x8xf32>
    %cst_32 = arith.constant 0.000000e+00 : f32
    %52 = vector.broadcast %cst_32 : f32 to vector<1x8xf32>
    %53 = arith.maximumf %51, %52 : vector<1x8xf32>
    %cst_33 = arith.constant 9.99999974E-6 : f32
    %54 = vector.broadcast %cst_33 : f32 to vector<1x8xf32>
    %55 = arith.addf %53, %54 : vector<1x8xf32>
    %56 = math.rsqrt %55 : vector<1x8xf32>
    %57 = arith.mulf %41, %56 : vector<1x8xf32>
    %58 = arith.mulf %46, %57 : vector<1x8xf32>
    %59 = arith.subf %42, %58 : vector<1x8xf32>
    %c0_34 = arith.constant 0 : index
    %c0_35 = arith.constant 0 : index
    %c0_36 = arith.constant 0 : index
    %c0_37 = arith.constant 0 : index
    %60 = vector.load %arg1[%c0_34, %c0_35, %c0_36, %c0_37] : memref<1x16x16x8xf32, #tpu.memory_space<vmem>>, vector<1x16x16x8xf32>
    %61 = vector.shape_cast %60 : vector<1x16x16x8xf32> to vector<16x16x8xf32>
    %62 = vector.shape_cast %61 : vector<16x16x8xf32> to vector<256x8xf32>
    %63 = vector.broadcast %17 : vector<1x8xf32> to vector<256x8xf32>
    %64 = arith.mulf %62, %63 : vector<256x8xf32>
    %65 = vector.broadcast %19 : vector<1x8xf32> to vector<256x8xf32>
    %66 = arith.addf %64, %65 : vector<256x8xf32>
    %cst_38 = arith.constant 0.000000e+00 : f32
    %67 = vector.broadcast %cst_38 : f32 to vector<256x8xf32>
    %68 = arith.maximumf %66, %67 : vector<256x8xf32>
    %69 = vector.broadcast %37 : vector<1x8xf32> to vector<256x8xf32>
    %70 = arith.mulf %68, %69 : vector<256x8xf32>
    %71 = vector.broadcast %39 : vector<1x8xf32> to vector<256x8xf32>
    %72 = arith.addf %70, %71 : vector<256x8xf32>
    %73 = arith.truncf %72 : vector<256x8xf32> to vector<256x8xbf16>
    %c0_39 = arith.constant 0 : index
    %c0_40 = arith.constant 0 : index
    %74 = vector.load %arg8[%c0_39, %c0_40] : memref<8x24xbf16, #tpu.memory_space<vmem>>, vector<8x24xbf16>
    %cst_41 = arith.constant dense<0.000000e+00> : vector<256x24xf32>
    %75 = tpu.matmul %73, %74, %cst_41 {dimension_numbers = #tpu.dot_dimension_numbers<[1], [0], [0], [1], [0, 0, 1, 1], [], []>} : vector<256x8xbf16>, vector<8x24xbf16>, vector<256x24xf32> -> vector<256x24xf32>
    %c0_42 = arith.constant 0 : index
    %c0_43 = arith.constant 0 : index
    %76 = vector.load %arg9[%c0_42, %c0_43] : memref<1x24xf32, #tpu.memory_space<vmem>>, vector<1x24xf32>
    %77 = vector.broadcast %76 : vector<1x24xf32> to vector<256x24xf32>
    %78 = arith.addf %75, %77 : vector<256x24xf32>
    %79 = vector.extract_strided_slice %78 {offsets = [0, 0], sizes = [256, 8], strides = [1, 1]} : vector<256x24xf32> to vector<256x8xf32>
    %80 = vector.extract_strided_slice %78 {offsets = [0, 8], sizes = [256, 8], strides = [1, 1]} : vector<256x24xf32> to vector<256x8xf32>
    %81 = vector.extract_strided_slice %78 {offsets = [0, 16], sizes = [256, 8], strides = [1, 1]} : vector<256x24xf32> to vector<256x8xf32>
    %82 = arith.truncf %79 : vector<256x8xf32> to vector<256x8xbf16>
    %83 = arith.truncf %80 : vector<256x8xf32> to vector<256x8xbf16>
    %cst_44 = arith.constant dense<0.000000e+00> : vector<256x256xf32>
    %84 = tpu.matmul %82, %83, %cst_44 {dimension_numbers = #tpu.dot_dimension_numbers<[1], [1], [0], [0], [0, 0, 1, 0], [], []>} : vector<256x8xbf16>, vector<256x8xbf16>, vector<256x256xf32> -> vector<256x256xf32>
    %cst_45 = arith.constant 0.353553385 : f32
    %85 = vector.broadcast %cst_45 : f32 to vector<256x256xf32>
    %86 = arith.mulf %84, %85 : vector<256x256xf32>
    %cst_46 = arith.constant dense<0xFF800000> : vector<256xf32>
    %87 = vector.multi_reduction <maximumf>, %86, %cst_46 [1] : vector<256x256xf32> to vector<256xf32>
    %88 = vector.shape_cast %87 : vector<256xf32> to vector<256x1xf32>
    %89 = vector.broadcast %88 : vector<256x1xf32> to vector<256x256xf32>
    %90 = arith.subf %86, %89 : vector<256x256xf32>
    %91 = math.exp %90 : vector<256x256xf32>
    %cst_47 = arith.constant dense<0.000000e+00> : vector<256xf32>
    %92 = vector.multi_reduction <add>, %91, %cst_47 [1] : vector<256x256xf32> to vector<256xf32>
    %93 = vector.shape_cast %92 : vector<256xf32> to vector<256x1xf32>
    %94 = vector.broadcast %93 : vector<256x1xf32> to vector<256x256xf32>
    %95 = arith.divf %91, %94 : vector<256x256xf32>
    %96 = arith.truncf %95 : vector<256x256xf32> to vector<256x256xbf16>
    %97 = arith.truncf %81 : vector<256x8xf32> to vector<256x8xbf16>
    %cst_48 = arith.constant dense<0.000000e+00> : vector<256x8xf32>
    %98 = tpu.matmul %96, %97, %cst_48 {dimension_numbers = #tpu.dot_dimension_numbers<[1], [0], [0], [1], [0, 0, 1, 1], [], []>} : vector<256x256xbf16>, vector<256x8xbf16>, vector<256x8xf32> -> vector<256x8xf32>
    %99 = arith.truncf %98 : vector<256x8xf32> to vector<256x8xbf16>
    %c0_49 = arith.constant 0 : index
    %c0_50 = arith.constant 0 : index
    %100 = vector.load %arg10[%c0_49, %c0_50] : memref<8x8xbf16, #tpu.memory_space<vmem>>, vector<8x8xbf16>
    %cst_51 = arith.constant dense<0.000000e+00> : vector<256x8xf32>
    %101 = tpu.matmul %99, %100, %cst_51 {dimension_numbers = #tpu.dot_dimension_numbers<[1], [0], [0], [1], [0, 0, 1, 1], [], []>} : vector<256x8xbf16>, vector<8x8xbf16>, vector<256x8xf32> -> vector<256x8xf32>
    %c0_52 = arith.constant 0 : index
    %c0_53 = arith.constant 0 : index
    %102 = vector.load %arg11[%c0_52, %c0_53] : memref<1x8xf32, #tpu.memory_space<vmem>>, vector<1x8xf32>
    %103 = vector.broadcast %102 : vector<1x8xf32> to vector<256x8xf32>
    %104 = arith.addf %101, %103 : vector<256x8xf32>
    %c0_54 = arith.constant 0 : index
    %c0_55 = arith.constant 0 : index
    %c0_56 = arith.constant 0 : index
    %c0_57 = arith.constant 0 : index
    %105 = vector.load %arg12[%c0_54, %c0_55, %c0_56, %c0_57] : memref<1x16x16x8xf32, #tpu.memory_space<vmem>>, vector<1x16x16x8xf32>
    %106 = vector.shape_cast %105 : vector<1x16x16x8xf32> to vector<16x16x8xf32>
    %107 = vector.shape_cast %106 : vector<16x16x8xf32> to vector<256x8xf32>
    %108 = vector.broadcast %57 : vector<1x8xf32> to vector<256x8xf32>
    %109 = arith.mulf %107, %108 : vector<256x8xf32>
    %110 = vector.broadcast %59 : vector<1x8xf32> to vector<256x8xf32>
    %111 = arith.addf %109, %110 : vector<256x8xf32>
    %cst_58 = arith.constant 0.000000e+00 : f32
    %112 = vector.broadcast %cst_58 : f32 to vector<256x8xf32>
    %113 = arith.maximumf %111, %112 : vector<256x8xf32>
    %114 = arith.addf %104, %68 : vector<256x8xf32>
    %115 = arith.addf %114, %113 : vector<256x8xf32>
    %116 = vector.shape_cast %115 : vector<256x8xf32> to vector<1x16x16x8xf32>
    %c0_59 = arith.constant 0 : index
    %c0_60 = arith.constant 0 : index
    %c0_61 = arith.constant 0 : index
    %c0_62 = arith.constant 0 : index
    %117 = vector.load %arg16[%c0_59, %c0_60, %c0_61, %c0_62] : memref<1x16x16x8xf32, #tpu.memory_space<vmem>>, vector<1x16x16x8xf32>
    tpu.vector_store %arg16[%c0_59, %c0_60, %c0_61, %c0_62], %116 {strides = array<i32>} : memref<1x16x16x8xf32, #tpu.memory_space<vmem>>, vector<1x16x16x8xf32>,
    return
  }
  func.func @transform_0(%arg0: i32) -> (i32, i32, i32, i32) {
    %c0_i32 = arith.constant 0 : i32
    %c0_i32_0 = arith.constant 0 : i32
    %c0_i32_1 = arith.constant 0 : i32
    %c0_i32_2 = arith.constant 0 : i32
    return %arg0, %c0_i32, %c0_i32_0, %c0_i32_1 : i32, i32, i32, i32
  }
  func.func @transform_1(%arg0: i32) -> (i32, i32, i32) {
    %c0_i32 = arith.constant 0 : i32
    %c0_i32_0 = arith.constant 0 : i32
    %c0_i32_1 = arith.constant 0 : i32
    %c0_i32_2 = arith.constant 0 : i32
    return %c0_i32, %c0_i32_0, %c0_i32_1 : i32, i32, i32
  }
  func.func @transform_2(%arg0: i32) -> (i32, i32) {
    %c0_i32 = arith.constant 0 : i32
    %c0_i32_0 = arith.constant 0 : i32
    %c0_i32_1 = arith.constant 0 : i32
    return %c0_i32, %c0_i32_0 : i32, i32
  }
  func.func @transform_3(%arg0: i32) -> (i32, i32) {
    %c0_i32 = arith.constant 0 : i32
    %c0_i32_0 = arith.constant 0 : i32
    %c0_i32_1 = arith.constant 0 : i32
    return %c0_i32, %c0_i32_0 : i32, i32
  }
  func.func @transform_4(%arg0: i32) -> (i32, i32, i32) {
    %c0_i32 = arith.constant 0 : i32
    %c0_i32_0 = arith.constant 0 : i32
    %c0_i32_1 = arith.constant 0 : i32
    %c0_i32_2 = arith.constant 0 : i32
    return %c0_i32, %c0_i32_0, %c0_i32_1 : i32, i32, i32
  }
  func.func @transform_5(%arg0: i32) -> (i32, i32) {
    %c0_i32 = arith.constant 0 : i32
    %c0_i32_0 = arith.constant 0 : i32
    %c0_i32_1 = arith.constant 0 : i32
    return %c0_i32, %c0_i32_0 : i32, i32
  }
  func.func @transform_6(%arg0: i32) -> (i32, i32) {
    %c0_i32 = arith.constant 0 : i32
    %c0_i32_0 = arith.constant 0 : i32
    %c0_i32_1 = arith.constant 0 : i32
    return %c0_i32, %c0_i32_0 : i32, i32
  }
  func.func @transform_7(%arg0: i32) -> (i32, i32) {
    %c0_i32 = arith.constant 0 : i32
    %c0_i32_0 = arith.constant 0 : i32
    %c0_i32_1 = arith.constant 0 : i32
    return %c0_i32, %c0_i32_0 : i32, i32
  }
  func.func @transform_8(%arg0: i32) -> (i32, i32) {
    %c0_i32 = arith.constant 0 : i32
    %c0_i32_0 = arith.constant 0 : i32
    %c0_i32_1 = arith.constant 0 : i32
    return %c0_i32, %c0_i32_0 : i32, i32
  }
  func.func @transform_9(%arg0: i32) -> (i32, i32) {
    %c0_i32 = arith.constant 0 : i32
    %c0_i32_0 = arith.constant 0 : i32
    %c0_i32_1 = arith.constant 0 : i32
    return %c0_i32, %c0_i32_0 : i32, i32
  }
  func.func @transform_10(%arg0: i32) -> (i32, i32) {
    %c0_i32 = arith.constant 0 : i32
    %c0_i32_0 = arith.constant 0 : i32
    %c0_i32_1 = arith.constant 0 : i32
    return %c0_i32, %c0_i32_0 : i32, i32
  }
  func.func @transform_11(%arg0: i32) -> (i32, i32, i32, i32) {
    %c0_i32 = arith.constant 0 : i32
    %c0_i32_0 = arith.constant 0 : i32
    %c0_i32_1 = arith.constant 0 : i32
    %c0_i32_2 = arith.constant 0 : i32
    return %arg0, %c0_i32, %c0_i32_0, %c0_i32_1 : i32, i32, i32, i32
  }
  func.func @transform_12(%arg0: i32) -> (i32, i32, i32) {
    %c0_i32 = arith.constant 0 : i32
    %c0_i32_0 = arith.constant 0 : i32
    %c0_i32_1 = arith.constant 0 : i32
    %c0_i32_2 = arith.constant 0 : i32
    return %c0_i32, %c0_i32_0, %c0_i32_1 : i32, i32, i32
  }
  func.func @transform_13(%arg0: i32) -> (i32, i32) {
    %c0_i32 = arith.constant 0 : i32
    %c0_i32_0 = arith.constant 0 : i32
    %c0_i32_1 = arith.constant 0 : i32
    return %c0_i32, %c0_i32_0 : i32, i32
  }
  func.func @transform_14(%arg0: i32) -> (i32, i32) {
    %c0_i32 = arith.constant 0 : i32
    %c0_i32_0 = arith.constant 0 : i32
    %c0_i32_1 = arith.constant 0 : i32
    return %c0_i32, %c0_i32_0 : i32, i32
  }
  func.func @transform_15(%arg0: i32) -> (i32, i32, i32, i32) {
    %c0_i32 = arith.constant 0 : i32
    %c0_i32_0 = arith.constant 0 : i32
    %c0_i32_1 = arith.constant 0 : i32
    %c0_i32_2 = arith.constant 0 : i32
    return %arg0, %c0_i32, %c0_i32_0, %c0_i32_1 : i32, i32, i32, i32
  }
}

module attributes {stable_mosaic.version = 11 : i64} {
  func.func @conv_bnrelu_kernel(%arg0: i32, %arg1: memref<1x16x16x8xf32, #tpu.memory_space<vmem>>, %arg2: memref<2x2x8xf32, #tpu.memory_space<vmem>>, %arg3: memref<72x8xbf16, #tpu.memory_space<vmem>>, %arg4: memref<1x8xf32, #tpu.memory_space<vmem>>, %arg5: memref<1x8xf32, #tpu.memory_space<vmem>>, %arg6: memref<1x16x16x8xf32, #tpu.memory_space<vmem>>, %arg7: memref<1x2x8xf32, #tpu.memory_space<vmem>>) attributes {dimension_semantics = [#tpu.dimension_semantics<parallel>], iteration_bounds = array<i64: 2>, scalar_prefetch = 0 : i64, scratch_operands = 0 : i64, tpu.core_type = #tpu.core_type<tc>, window_params = [{transform_indices = @transform_0, window_bounds = array<i64: 1, 16, 16, 8>}, {pipeline_mode = #tpu.pipeline_mode<synchronous>, transform_indices = @transform_1, window_bounds = array<i64: 2, 2, 8>}, {pipeline_mode = #tpu.pipeline_mode<synchronous>, transform_indices = @transform_2, window_bounds = array<i64: 72, 8>}, {pipeline_mode = #tpu.pipeline_mode<synchronous>, transform_indices = @transform_3, window_bounds = array<i64: 1, 8>}, {pipeline_mode = #tpu.pipeline_mode<synchronous>, transform_indices = @transform_4, window_bounds = array<i64: 1, 8>}, {transform_indices = @transform_5, window_bounds = array<i64: 1, 16, 16, 8>}, {transform_indices = @transform_6, window_bounds = array<i64: 1, 2, 8>}]} {
    %c0 = arith.constant 0 : index
    %c0_0 = arith.constant 0 : index
    %c0_1 = arith.constant 0 : index
    %0 = vector.load %arg2[%c0, %c0_0, %c0_1] : memref<2x2x8xf32, #tpu.memory_space<vmem>>, vector<2x2x8xf32>
    %c0_2 = arith.constant 0 : index
    %c0_3 = arith.constant 0 : index
    %1 = vector.load %arg4[%c0_2, %c0_3] : memref<1x8xf32, #tpu.memory_space<vmem>>, vector<1x8xf32>
    %c0_4 = arith.constant 0 : index
    %c0_5 = arith.constant 0 : index
    %2 = vector.load %arg5[%c0_4, %c0_5] : memref<1x8xf32, #tpu.memory_space<vmem>>, vector<1x8xf32>
    %cst = arith.constant dense<0.000000e+00> : vector<2x8xf32>
    %3 = vector.multi_reduction <add>, %0, %cst [0] : vector<2x2x8xf32> to vector<2x8xf32>
    %4 = vector.extract_strided_slice %3 {offsets = [0, 0], sizes = [1, 8], strides = [1, 1]} : vector<2x8xf32> to vector<1x8xf32>
    %cst_6 = arith.constant 0.001953125 : f32
    %5 = vector.broadcast %cst_6 : f32 to vector<1x8xf32>
    %6 = arith.mulf %4, %5 : vector<1x8xf32>
    %7 = vector.extract_strided_slice %3 {offsets = [1, 0], sizes = [1, 8], strides = [1, 1]} : vector<2x8xf32> to vector<1x8xf32>
    %cst_7 = arith.constant 0.001953125 : f32
    %8 = vector.broadcast %cst_7 : f32 to vector<1x8xf32>
    %9 = arith.mulf %7, %8 : vector<1x8xf32>
    %10 = arith.mulf %6, %6 : vector<1x8xf32>
    %11 = arith.subf %9, %10 : vector<1x8xf32>
    %cst_8 = arith.constant 0.000000e+00 : f32
    %12 = vector.broadcast %cst_8 : f32 to vector<1x8xf32>
    %13 = arith.maximumf %11, %12 : vector<1x8xf32>
    %cst_9 = arith.constant 9.99999974E-6 : f32
    %14 = vector.broadcast %cst_9 : f32 to vector<1x8xf32>
    %15 = arith.addf %13, %14 : vector<1x8xf32>
    %16 = math.rsqrt %15 : vector<1x8xf32>
    %17 = arith.mulf %1, %16 : vector<1x8xf32>
    %18 = arith.mulf %6, %17 : vector<1x8xf32>
    %19 = arith.subf %2, %18 : vector<1x8xf32>
    %c0_10 = arith.constant 0 : index
    %c0_11 = arith.constant 0 : index
    %c0_12 = arith.constant 0 : index
    %c0_13 = arith.constant 0 : index
    %20 = vector.load %arg1[%c0_10, %c0_11, %c0_12, %c0_13] : memref<1x16x16x8xf32, #tpu.memory_space<vmem>>, vector<1x16x16x8xf32>
    %21 = vector.shape_cast %20 : vector<1x16x16x8xf32> to vector<16x16x8xf32>
    %22 = vector.shape_cast %17 : vector<1x8xf32> to vector<1x1x8xf32>
    %23 = vector.broadcast %22 : vector<1x1x8xf32> to vector<16x16x8xf32>
    %24 = arith.mulf %21, %23 : vector<16x16x8xf32>
    %25 = vector.shape_cast %19 : vector<1x8xf32> to vector<1x1x8xf32>
    %26 = vector.broadcast %25 : vector<1x1x8xf32> to vector<16x16x8xf32>
    %27 = arith.addf %24, %26 : vector<16x16x8xf32>
    %cst_14 = arith.constant 0.000000e+00 : f32
    %28 = vector.broadcast %cst_14 : f32 to vector<16x16x8xf32>
    %29 = arith.maximumf %27, %28 : vector<16x16x8xf32>
    %cst_15 = arith.constant 0.000000e+00 : f32
    %30 = vector.broadcast %cst_15 : f32 to vector<1x16x8xf32>
    %31 = tpu.concatenate %30, %29, %30 in 0 : vector<1x16x8xf32>, vector<16x16x8xf32>, vector<1x16x8xf32> -> vector<18x16x8xf32>
    %cst_16 = arith.constant 0.000000e+00 : f32
    %32 = vector.broadcast %cst_16 : f32 to vector<18x1x8xf32>
    %33 = tpu.concatenate %32, %31, %32 in 1 : vector<18x1x8xf32>, vector<18x16x8xf32>, vector<18x1x8xf32> -> vector<18x18x8xf32>
    %34 = vector.extract_strided_slice %33 {offsets = [0, 0, 0], sizes = [16, 16, 8], strides = [1, 1, 1]} : vector<18x18x8xf32> to vector<16x16x8xf32>
    %35 = vector.extract_strided_slice %33 {offsets = [0, 1, 0], sizes = [16, 16, 8], strides = [1, 1, 1]} : vector<18x18x8xf32> to vector<16x16x8xf32>
    %36 = vector.extract_strided_slice %33 {offsets = [0, 2, 0], sizes = [16, 16, 8], strides = [1, 1, 1]} : vector<18x18x8xf32> to vector<16x16x8xf32>
    %37 = vector.extract_strided_slice %33 {offsets = [1, 0, 0], sizes = [16, 16, 8], strides = [1, 1, 1]} : vector<18x18x8xf32> to vector<16x16x8xf32>
    %38 = vector.extract_strided_slice %33 {offsets = [1, 1, 0], sizes = [16, 16, 8], strides = [1, 1, 1]} : vector<18x18x8xf32> to vector<16x16x8xf32>
    %39 = vector.extract_strided_slice %33 {offsets = [1, 2, 0], sizes = [16, 16, 8], strides = [1, 1, 1]} : vector<18x18x8xf32> to vector<16x16x8xf32>
    %40 = vector.extract_strided_slice %33 {offsets = [2, 0, 0], sizes = [16, 16, 8], strides = [1, 1, 1]} : vector<18x18x8xf32> to vector<16x16x8xf32>
    %41 = vector.extract_strided_slice %33 {offsets = [2, 1, 0], sizes = [16, 16, 8], strides = [1, 1, 1]} : vector<18x18x8xf32> to vector<16x16x8xf32>
    %42 = vector.extract_strided_slice %33 {offsets = [2, 2, 0], sizes = [16, 16, 8], strides = [1, 1, 1]} : vector<18x18x8xf32> to vector<16x16x8xf32>
    %43 = tpu.concatenate %34, %35, %36, %37, %38, %39, %40, %41, %42 in 2 : vector<16x16x8xf32>, vector<16x16x8xf32>, vector<16x16x8xf32>, vector<16x16x8xf32>, vector<16x16x8xf32>, vector<16x16x8xf32>, vector<16x16x8xf32>, vector<16x16x8xf32>, vector<16x16x8xf32> -> vector<16x16x72xf32>
    %44 = vector.shape_cast %43 : vector<16x16x72xf32> to vector<256x72xf32>
    %45 = arith.truncf %44 : vector<256x72xf32> to vector<256x72xbf16>
    %c0_17 = arith.constant 0 : index
    %c0_18 = arith.constant 0 : index
    %46 = vector.load %arg3[%c0_17, %c0_18] : memref<72x8xbf16, #tpu.memory_space<vmem>>, vector<72x8xbf16>
    %cst_19 = arith.constant dense<0.000000e+00> : vector<256x8xf32>
    %47 = tpu.matmul %45, %46, %cst_19 {dimension_numbers = #tpu.dot_dimension_numbers<[1], [0], [0], [1], [0, 0, 1, 1], [], []>} : vector<256x72xbf16>, vector<72x8xbf16>, vector<256x8xf32> -> vector<256x8xf32>
    %48 = vector.shape_cast %47 : vector<256x8xf32> to vector<1x16x16x8xf32>
    %c0_20 = arith.constant 0 : index
    %c0_21 = arith.constant 0 : index
    %c0_22 = arith.constant 0 : index
    %c0_23 = arith.constant 0 : index
    %49 = vector.load %arg6[%c0_20, %c0_21, %c0_22, %c0_23] : memref<1x16x16x8xf32, #tpu.memory_space<vmem>>, vector<1x16x16x8xf32>
    tpu.vector_store %arg6[%c0_20, %c0_21, %c0_22, %c0_23], %48 {strides = array<i32>} : memref<1x16x16x8xf32, #tpu.memory_space<vmem>>, vector<1x16x16x8xf32>,
    %cst_24 = arith.constant dense<0.000000e+00> : vector<8xf32>
    %50 = vector.multi_reduction <add>, %47, %cst_24 [0] : vector<256x8xf32> to vector<8xf32>
    %51 = vector.shape_cast %50 : vector<8xf32> to vector<1x8xf32>
    %52 = arith.mulf %47, %47 : vector<256x8xf32>
    %cst_25 = arith.constant dense<0.000000e+00> : vector<8xf32>
    %53 = vector.multi_reduction <add>, %52, %cst_25 [0] : vector<256x8xf32> to vector<8xf32>
    %54 = vector.shape_cast %53 : vector<8xf32> to vector<1x8xf32>
    %55 = tpu.concatenate %51, %54 in 0 : vector<1x8xf32>, vector<1x8xf32> -> vector<2x8xf32>
    %56 = vector.shape_cast %55 : vector<2x8xf32> to vector<1x2x8xf32>
    %c0_26 = arith.constant 0 : index
    %c0_27 = arith.constant 0 : index
    %c0_28 = arith.constant 0 : index
    %57 = vector.load %arg7[%c0_26, %c0_27, %c0_28] : memref<1x2x8xf32, #tpu.memory_space<vmem>>, vector<1x2x8xf32>
    tpu.vector_store %arg7[%c0_26, %c0_27, %c0_28], %56 {strides = array<i32>} : memref<1x2x8xf32, #tpu.memory_space<vmem>>, vector<1x2x8xf32>,
    return
  }
  func.func @transform_0(%arg0: i32) -> (i32, i32, i32, i32) {
    %c0_i32 = arith.constant 0 : i32
    %c0_i32_0 = arith.constant 0 : i32
    %c0_i32_1 = arith.constant 0 : i32
    %c0_i32_2 = arith.constant 0 : i32
    return %arg0, %c0_i32, %c0_i32_0, %c0_i32_1 : i32, i32, i32, i32
  }
  func.func @transform_1(%arg0: i32) -> (i32, i32, i32) {
    %c0_i32 = arith.constant 0 : i32
    %c0_i32_0 = arith.constant 0 : i32
    %c0_i32_1 = arith.constant 0 : i32
    %c0_i32_2 = arith.constant 0 : i32
    return %c0_i32, %c0_i32_0, %c0_i32_1 : i32, i32, i32
  }
  func.func @transform_2(%arg0: i32) -> (i32, i32) {
    %c0_i32 = arith.constant 0 : i32
    %c0_i32_0 = arith.constant 0 : i32
    %c0_i32_1 = arith.constant 0 : i32
    return %c0_i32, %c0_i32_0 : i32, i32
  }
  func.func @transform_3(%arg0: i32) -> (i32, i32) {
    %c0_i32 = arith.constant 0 : i32
    %c0_i32_0 = arith.constant 0 : i32
    %c0_i32_1 = arith.constant 0 : i32
    return %c0_i32, %c0_i32_0 : i32, i32
  }
  func.func @transform_4(%arg0: i32) -> (i32, i32) {
    %c0_i32 = arith.constant 0 : i32
    %c0_i32_0 = arith.constant 0 : i32
    %c0_i32_1 = arith.constant 0 : i32
    return %c0_i32, %c0_i32_0 : i32, i32
  }
  func.func @transform_5(%arg0: i32) -> (i32, i32, i32, i32) {
    %c0_i32 = arith.constant 0 : i32
    %c0_i32_0 = arith.constant 0 : i32
    %c0_i32_1 = arith.constant 0 : i32
    %c0_i32_2 = arith.constant 0 : i32
    return %arg0, %c0_i32, %c0_i32_0, %c0_i32_1 : i32, i32, i32, i32
  }
  func.func @transform_6(%arg0: i32) -> (i32, i32, i32) {
    %c0_i32 = arith.constant 0 : i32
    %c0_i32_0 = arith.constant 0 : i32
    %c0_i32_1 = arith.constant 0 : i32
    return %arg0, %c0_i32, %c0_i32_0 : i32, i32, i32
  }
}

module attributes {stable_mosaic.version = 11 : i64} {
  func.func @conv_dual_kernel(%arg0: i32, %arg1: memref<1x16x16x4xf32, #tpu.memory_space<vmem>>, %arg2: memref<36x16xbf16, #tpu.memory_space<vmem>>, %arg3: memref<1x16x16x8xf32, #tpu.memory_space<vmem>>, %arg4: memref<1x16x16x8xf32, #tpu.memory_space<vmem>>, %arg5: memref<1x2x8xf32, #tpu.memory_space<vmem>>, %arg6: memref<1x2x8xf32, #tpu.memory_space<vmem>>) attributes {dimension_semantics = [#tpu.dimension_semantics<parallel>], iteration_bounds = array<i64: 2>, scalar_prefetch = 0 : i64, scratch_operands = 0 : i64, tpu.core_type = #tpu.core_type<tc>, window_params = [{transform_indices = @transform_0, window_bounds = array<i64: 1, 16, 16, 4>}, {pipeline_mode = #tpu.pipeline_mode<synchronous>, transform_indices = @transform_1, window_bounds = array<i64: 36, 16>}, {transform_indices = @transform_2, window_bounds = array<i64: 1, 16, 16, 8>}, {transform_indices = @transform_3, window_bounds = array<i64: 1, 16, 16, 8>}, {transform_indices = @transform_4, window_bounds = array<i64: 1, 2, 8>}, {transform_indices = @transform_5, window_bounds = array<i64: 1, 2, 8>}]} {
    %c0 = arith.constant 0 : index
    %c0_0 = arith.constant 0 : index
    %c0_1 = arith.constant 0 : index
    %c0_2 = arith.constant 0 : index
    %0 = vector.load %arg1[%c0, %c0_0, %c0_1, %c0_2] : memref<1x16x16x4xf32, #tpu.memory_space<vmem>>, vector<1x16x16x4xf32>
    %1 = vector.shape_cast %0 : vector<1x16x16x4xf32> to vector<16x16x4xf32>
    %cst = arith.constant 0.000000e+00 : f32
    %2 = vector.broadcast %cst : f32 to vector<1x16x4xf32>
    %3 = tpu.concatenate %2, %1, %2 in 0 : vector<1x16x4xf32>, vector<16x16x4xf32>, vector<1x16x4xf32> -> vector<18x16x4xf32>
    %cst_3 = arith.constant 0.000000e+00 : f32
    %4 = vector.broadcast %cst_3 : f32 to vector<18x1x4xf32>
    %5 = tpu.concatenate %4, %3, %4 in 1 : vector<18x1x4xf32>, vector<18x16x4xf32>, vector<18x1x4xf32> -> vector<18x18x4xf32>
    %6 = vector.extract_strided_slice %5 {offsets = [0, 0, 0], sizes = [16, 16, 4], strides = [1, 1, 1]} : vector<18x18x4xf32> to vector<16x16x4xf32>
    %7 = vector.extract_strided_slice %5 {offsets = [0, 1, 0], sizes = [16, 16, 4], strides = [1, 1, 1]} : vector<18x18x4xf32> to vector<16x16x4xf32>
    %8 = vector.extract_strided_slice %5 {offsets = [0, 2, 0], sizes = [16, 16, 4], strides = [1, 1, 1]} : vector<18x18x4xf32> to vector<16x16x4xf32>
    %9 = vector.extract_strided_slice %5 {offsets = [1, 0, 0], sizes = [16, 16, 4], strides = [1, 1, 1]} : vector<18x18x4xf32> to vector<16x16x4xf32>
    %10 = vector.extract_strided_slice %5 {offsets = [1, 1, 0], sizes = [16, 16, 4], strides = [1, 1, 1]} : vector<18x18x4xf32> to vector<16x16x4xf32>
    %11 = vector.extract_strided_slice %5 {offsets = [1, 2, 0], sizes = [16, 16, 4], strides = [1, 1, 1]} : vector<18x18x4xf32> to vector<16x16x4xf32>
    %12 = vector.extract_strided_slice %5 {offsets = [2, 0, 0], sizes = [16, 16, 4], strides = [1, 1, 1]} : vector<18x18x4xf32> to vector<16x16x4xf32>
    %13 = vector.extract_strided_slice %5 {offsets = [2, 1, 0], sizes = [16, 16, 4], strides = [1, 1, 1]} : vector<18x18x4xf32> to vector<16x16x4xf32>
    %14 = vector.extract_strided_slice %5 {offsets = [2, 2, 0], sizes = [16, 16, 4], strides = [1, 1, 1]} : vector<18x18x4xf32> to vector<16x16x4xf32>
    %15 = tpu.concatenate %6, %7, %8, %9, %10, %11, %12, %13, %14 in 2 : vector<16x16x4xf32>, vector<16x16x4xf32>, vector<16x16x4xf32>, vector<16x16x4xf32>, vector<16x16x4xf32>, vector<16x16x4xf32>, vector<16x16x4xf32>, vector<16x16x4xf32>, vector<16x16x4xf32> -> vector<16x16x36xf32>
    %16 = vector.shape_cast %15 : vector<16x16x36xf32> to vector<256x36xf32>
    %17 = arith.truncf %16 : vector<256x36xf32> to vector<256x36xbf16>
    %c0_4 = arith.constant 0 : index
    %c0_5 = arith.constant 0 : index
    %18 = vector.load %arg2[%c0_4, %c0_5] : memref<36x16xbf16, #tpu.memory_space<vmem>>, vector<36x16xbf16>
    %cst_6 = arith.constant dense<0.000000e+00> : vector<256x16xf32>
    %19 = tpu.matmul %17, %18, %cst_6 {dimension_numbers = #tpu.dot_dimension_numbers<[1], [0], [0], [1], [0, 0, 1, 1], [], []>} : vector<256x36xbf16>, vector<36x16xbf16>, vector<256x16xf32> -> vector<256x16xf32>
    %20 = vector.extract_strided_slice %19 {offsets = [0, 0], sizes = [256, 8], strides = [1, 1]} : vector<256x16xf32> to vector<256x8xf32>
    %21 = vector.extract_strided_slice %19 {offsets = [0, 8], sizes = [256, 8], strides = [1, 1]} : vector<256x16xf32> to vector<256x8xf32>
    %22 = vector.shape_cast %20 : vector<256x8xf32> to vector<1x16x16x8xf32>
    %c0_7 = arith.constant 0 : index
    %c0_8 = arith.constant 0 : index
    %c0_9 = arith.constant 0 : index
    %c0_10 = arith.constant 0 : index
    %23 = vector.load %arg3[%c0_7, %c0_8, %c0_9, %c0_10] : memref<1x16x16x8xf32, #tpu.memory_space<vmem>>, vector<1x16x16x8xf32>
    tpu.vector_store %arg3[%c0_7, %c0_8, %c0_9, %c0_10], %22 {strides = array<i32>} : memref<1x16x16x8xf32, #tpu.memory_space<vmem>>, vector<1x16x16x8xf32>,
    %24 = vector.shape_cast %21 : vector<256x8xf32> to vector<1x16x16x8xf32>
    %c0_11 = arith.constant 0 : index
    %c0_12 = arith.constant 0 : index
    %c0_13 = arith.constant 0 : index
    %c0_14 = arith.constant 0 : index
    %25 = vector.load %arg4[%c0_11, %c0_12, %c0_13, %c0_14] : memref<1x16x16x8xf32, #tpu.memory_space<vmem>>, vector<1x16x16x8xf32>
    tpu.vector_store %arg4[%c0_11, %c0_12, %c0_13, %c0_14], %24 {strides = array<i32>} : memref<1x16x16x8xf32, #tpu.memory_space<vmem>>, vector<1x16x16x8xf32>,
    %cst_15 = arith.constant dense<0.000000e+00> : vector<8xf32>
    %26 = vector.multi_reduction <add>, %20, %cst_15 [0] : vector<256x8xf32> to vector<8xf32>
    %27 = vector.shape_cast %26 : vector<8xf32> to vector<1x8xf32>
    %28 = arith.mulf %20, %20 : vector<256x8xf32>
    %cst_16 = arith.constant dense<0.000000e+00> : vector<8xf32>
    %29 = vector.multi_reduction <add>, %28, %cst_16 [0] : vector<256x8xf32> to vector<8xf32>
    %30 = vector.shape_cast %29 : vector<8xf32> to vector<1x8xf32>
    %31 = tpu.concatenate %27, %30 in 0 : vector<1x8xf32>, vector<1x8xf32> -> vector<2x8xf32>
    %32 = vector.shape_cast %31 : vector<2x8xf32> to vector<1x2x8xf32>
    %c0_17 = arith.constant 0 : index
    %c0_18 = arith.constant 0 : index
    %c0_19 = arith.constant 0 : index
    %33 = vector.load %arg5[%c0_17, %c0_18, %c0_19] : memref<1x2x8xf32, #tpu.memory_space<vmem>>, vector<1x2x8xf32>
    tpu.vector_store %arg5[%c0_17, %c0_18, %c0_19], %32 {strides = array<i32>} : memref<1x2x8xf32, #tpu.memory_space<vmem>>, vector<1x2x8xf32>,
    %cst_20 = arith.constant dense<0.000000e+00> : vector<8xf32>
    %34 = vector.multi_reduction <add>, %21, %cst_20 [0] : vector<256x8xf32> to vector<8xf32>
    %35 = vector.shape_cast %34 : vector<8xf32> to vector<1x8xf32>
    %36 = arith.mulf %21, %21 : vector<256x8xf32>
    %cst_21 = arith.constant dense<0.000000e+00> : vector<8xf32>
    %37 = vector.multi_reduction <add>, %36, %cst_21 [0] : vector<256x8xf32> to vector<8xf32>
    %38 = vector.shape_cast %37 : vector<8xf32> to vector<1x8xf32>
    %39 = tpu.concatenate %35, %38 in 0 : vector<1x8xf32>, vector<1x8xf32> -> vector<2x8xf32>
    %40 = vector.shape_cast %39 : vector<2x8xf32> to vector<1x2x8xf32>
    %c0_22 = arith.constant 0 : index
    %c0_23 = arith.constant 0 : index
    %c0_24 = arith.constant 0 : index
    %41 = vector.load %arg6[%c0_22, %c0_23, %c0_24] : memref<1x2x8xf32, #tpu.memory_space<vmem>>, vector<1x2x8xf32>
    tpu.vector_store %arg6[%c0_22, %c0_23, %c0_24], %40 {strides = array<i32>} : memref<1x2x8xf32, #tpu.memory_space<vmem>>, vector<1x2x8xf32>,
    return
  }
  func.func @transform_0(%arg0: i32) -> (i32, i32, i32, i32) {
    %c0_i32 = arith.constant 0 : i32
    %c0_i32_0 = arith.constant 0 : i32
    %c0_i32_1 = arith.constant 0 : i32
    %c0_i32_2 = arith.constant 0 : i32
    return %arg0, %c0_i32, %c0_i32_0, %c0_i32_1 : i32, i32, i32, i32
  }
  func.func @transform_1(%arg0: i32) -> (i32, i32) {
    %c0_i32 = arith.constant 0 : i32
    %c0_i32_0 = arith.constant 0 : i32
    %c0_i32_1 = arith.constant 0 : i32
    return %c0_i32, %c0_i32_0 : i32, i32
  }
  func.func @transform_2(%arg0: i32) -> (i32, i32, i32, i32) {
    %c0_i32 = arith.constant 0 : i32
    %c0_i32_0 = arith.constant 0 : i32
    %c0_i32_1 = arith.constant 0 : i32
    %c0_i32_2 = arith.constant 0 : i32
    return %arg0, %c0_i32, %c0_i32_0, %c0_i32_1 : i32, i32, i32, i32
  }
  func.func @transform_3(%arg0: i32) -> (i32, i32, i32, i32) {
    %c0_i32 = arith.constant 0 : i32
    %c0_i32_0 = arith.constant 0 : i32
    %c0_i32_1 = arith.constant 0 : i32
    %c0_i32_2 = arith.constant 0 : i32
    return %arg0, %c0_i32, %c0_i32_0, %c0_i32_1 : i32, i32, i32, i32
  }
  func.func @transform_4(%arg0: i32) -> (i32, i32, i32) {
    %c0_i32 = arith.constant 0 : i32
    %c0_i32_0 = arith.constant 0 : i32
    %c0_i32_1 = arith.constant 0 : i32
    return %arg0, %c0_i32, %c0_i32_0 : i32, i32, i32
  }
  func.func @transform_5(%arg0: i32) -> (i32, i32, i32) {
    %c0_i32 = arith.constant 0 : i32
    %c0_i32_0 = arith.constant 0 : i32
    %c0_i32_1 = arith.constant 0 : i32
    return %arg0, %c0_i32, %c0_i32_0 : i32, i32, i32
  }
}

module attributes {stable_mosaic.version = 11 : i64} {
  func.func @act_stats_kernel(%arg0: i32, %arg1: memref<1x16x16x8xf32, #tpu.memory_space<vmem>>, %arg2: memref<2x2x8xf32, #tpu.memory_space<vmem>>, %arg3: memref<1x8xf32, #tpu.memory_space<vmem>>, %arg4: memref<1x8xf32, #tpu.memory_space<vmem>>, %arg5: memref<1x2x8xf32, #tpu.memory_space<vmem>>) attributes {dimension_semantics = [#tpu.dimension_semantics<parallel>], iteration_bounds = array<i64: 2>, scalar_prefetch = 0 : i64, scratch_operands = 0 : i64, tpu.core_type = #tpu.core_type<tc>, window_params = [{transform_indices = @transform_0, window_bounds = array<i64: 1, 16, 16, 8>}, {pipeline_mode = #tpu.pipeline_mode<synchronous>, transform_indices = @transform_1, window_bounds = array<i64: 2, 2, 8>}, {pipeline_mode = #tpu.pipeline_mode<synchronous>, transform_indices = @transform_2, window_bounds = array<i64: 1, 8>}, {pipeline_mode = #tpu.pipeline_mode<synchronous>, transform_indices = @transform_3, window_bounds = array<i64: 1, 8>}, {transform_indices = @transform_4, window_bounds = array<i64: 1, 2, 8>}]} {
    %c0 = arith.constant 0 : index
    %c0_0 = arith.constant 0 : index
    %c0_1 = arith.constant 0 : index
    %0 = vector.load %arg2[%c0, %c0_0, %c0_1] : memref<2x2x8xf32, #tpu.memory_space<vmem>>, vector<2x2x8xf32>
    %c0_2 = arith.constant 0 : index
    %c0_3 = arith.constant 0 : index
    %1 = vector.load %arg3[%c0_2, %c0_3] : memref<1x8xf32, #tpu.memory_space<vmem>>, vector<1x8xf32>
    %c0_4 = arith.constant 0 : index
    %c0_5 = arith.constant 0 : index
    %2 = vector.load %arg4[%c0_4, %c0_5] : memref<1x8xf32, #tpu.memory_space<vmem>>, vector<1x8xf32>
    %cst = arith.constant dense<0.000000e+00> : vector<2x8xf32>
    %3 = vector.multi_reduction <add>, %0, %cst [0] : vector<2x2x8xf32> to vector<2x8xf32>
    %4 = vector.extract_strided_slice %3 {offsets = [0, 0], sizes = [1, 8], strides = [1, 1]} : vector<2x8xf32> to vector<1x8xf32>
    %cst_6 = arith.constant 0.001953125 : f32
    %5 = vector.broadcast %cst_6 : f32 to vector<1x8xf32>
    %6 = arith.mulf %4, %5 : vector<1x8xf32>
    %7 = vector.extract_strided_slice %3 {offsets = [1, 0], sizes = [1, 8], strides = [1, 1]} : vector<2x8xf32> to vector<1x8xf32>
    %cst_7 = arith.constant 0.001953125 : f32
    %8 = vector.broadcast %cst_7 : f32 to vector<1x8xf32>
    %9 = arith.mulf %7, %8 : vector<1x8xf32>
    %10 = arith.mulf %6, %6 : vector<1x8xf32>
    %11 = arith.subf %9, %10 : vector<1x8xf32>
    %cst_8 = arith.constant 0.000000e+00 : f32
    %12 = vector.broadcast %cst_8 : f32 to vector<1x8xf32>
    %13 = arith.maximumf %11, %12 : vector<1x8xf32>
    %cst_9 = arith.constant 9.99999974E-6 : f32
    %14 = vector.broadcast %cst_9 : f32 to vector<1x8xf32>
    %15 = arith.addf %13, %14 : vector<1x8xf32>
    %16 = math.rsqrt %15 : vector<1x8xf32>
    %17 = arith.mulf %1, %16 : vector<1x8xf32>
    %18 = arith.mulf %6, %17 : vector<1x8xf32>
    %19 = arith.subf %2, %18 : vector<1x8xf32>
    %c0_10 = arith.constant 0 : index
    %c0_11 = arith.constant 0 : index
    %c0_12 = arith.constant 0 : index
    %c0_13 = arith.constant 0 : index
    %20 = vector.load %arg1[%c0_10, %c0_11, %c0_12, %c0_13] : memref<1x16x16x8xf32, #tpu.memory_space<vmem>>, vector<1x16x16x8xf32>
    %21 = vector.shape_cast %20 : vector<1x16x16x8xf32> to vector<16x16x8xf32>
    %22 = vector.shape_cast %21 : vector<16x16x8xf32> to vector<256x8xf32>
    %23 = vector.broadcast %17 : vector<1x8xf32> to vector<256x8xf32>
    %24 = arith.mulf %22, %23 : vector<256x8xf32>
    %25 = vector.broadcast %19 : vector<1x8xf32> to vector<256x8xf32>
    %26 = arith.addf %24, %25 : vector<256x8xf32>
    %cst_14 = arith.constant 0.000000e+00 : f32
    %27 = vector.broadcast %cst_14 : f32 to vector<256x8xf32>
    %28 = arith.maximumf %26, %27 : vector<256x8xf32>
    %cst_15 = arith.constant dense<0.000000e+00> : vector<8xf32>
    %29 = vector.multi_reduction <add>, %28, %cst_15 [0] : vector<256x8xf32> to vector<8xf32>
    %30 = vector.shape_cast %29 : vector<8xf32> to vector<1x8xf32>
    %31 = arith.mulf %28, %28 : vector<256x8xf32>
    %cst_16 = arith.constant dense<0.000000e+00> : vector<8xf32>
    %32 = vector.multi_reduction <add>, %31, %cst_16 [0] : vector<256x8xf32> to vector<8xf32>
    %33 = vector.shape_cast %32 : vector<8xf32> to vector<1x8xf32>
    %34 = tpu.concatenate %30, %33 in 0 : vector<1x8xf32>, vector<1x8xf32> -> vector<2x8xf32>
    %35 = vector.shape_cast %34 : vector<2x8xf32> to vector<1x2x8xf32>
    %c0_17 = arith.constant 0 : index
    %c0_18 = arith.constant 0 : index
    %c0_19 = arith.constant 0 : index
    %36 = vector.load %arg5[%c0_17, %c0_18, %c0_19] : memref<1x2x8xf32, #tpu.memory_space<vmem>>, vector<1x2x8xf32>
    tpu.vector_store %arg5[%c0_17, %c0_18, %c0_19], %35 {strides = array<i32>} : memref<1x2x8xf32, #tpu.memory_space<vmem>>, vector<1x2x8xf32>,
    return
  }
  func.func @transform_0(%arg0: i32) -> (i32, i32, i32, i32) {
    %c0_i32 = arith.constant 0 : i32
    %c0_i32_0 = arith.constant 0 : i32
    %c0_i32_1 = arith.constant 0 : i32
    %c0_i32_2 = arith.constant 0 : i32
    return %arg0, %c0_i32, %c0_i32_0, %c0_i32_1 : i32, i32, i32, i32
  }
  func.func @transform_1(%arg0: i32) -> (i32, i32, i32) {
    %c0_i32 = arith.constant 0 : i32
    %c0_i32_0 = arith.constant 0 : i32
    %c0_i32_1 = arith.constant 0 : i32
    %c0_i32_2 = arith.constant 0 : i32
    return %c0_i32, %c0_i32_0, %c0_i32_1 : i32, i32, i32
  }
  func.func @transform_2(%arg0: i32) -> (i32, i32) {
    %c0_i32 = arith.constant 0 : i32
    %c0_i32_0 = arith.constant 0 : i32
    %c0_i32_1 = arith.constant 0 : i32
    return %c0_i32, %c0_i32_0 : i32, i32
  }
  func.func @transform_3(%arg0: i32) -> (i32, i32) {
    %c0_i32 = arith.constant 0 : i32
    %c0_i32_0 = arith.constant 0 : i32
    %c0_i32_1 = arith.constant 0 : i32
    return %c0_i32, %c0_i32_0 : i32, i32
  }
  func.func @transform_4(%arg0: i32) -> (i32, i32, i32) {
    %c0_i32 = arith.constant 0 : i32
    %c0_i32_0 = arith.constant 0 : i32
    %c0_i32_1 = arith.constant 0 : i32
    return %arg0, %c0_i32, %c0_i32_0 : i32, i32, i32
  }
}

</mosaic_0001>

<llo_original>
// kernel: resblk_forward.6
$region0: #{resblk_forward.6}
  #allocation0 [shape = 'u32[]', space=smem, size = 0x4, offset = 0x4, fixed_abs, tag = 'smem constant byte address 0x4 - core index']
  #allocation1 [shape = 'u32[144,128]{1,0:T(1,128)}', space=vmem, size = 0x12000, scoped, tag = 'internal scratch']
  %s0 = inlined_call_operand.vmem [shape: f32[2,16,16,8], index: 0, kind: input, shape index: {}]
  %s1 = inlined_call_operand.vmem [shape: f32[2,2,8], index: 1, kind: input, shape index: {}]
  %s2 = inlined_call_operand.vmem [shape: f32[1,8], index: 2, kind: input, shape index: {}]
  %s3 = inlined_call_operand.vmem [shape: f32[1,8], index: 3, kind: input, shape index: {}]
  %s4 = inlined_call_operand.vmem [shape: f32[2,2,8], index: 4, kind: output, shape index: {}]
  %s5 = sld [smem:[#allocation0]]
  $region49: #{resblk_forward.6} parent=0
    _
  %s7 = ssub.s32 1, %s5
  %s8 = scalar_select 0, %s7, %s5
  loop: start=0, step=1, limit=4
  $region2: #{resblk_forward.6} parent=0 // loop_pre_header
    _
  $region3: #{resblk_forward.6} parent=0 // loop_header
    %s10 = sphi 0, %s14
    %p11 = scmp.ge.s32.totalorder %s10, 4
    %s20 = sphi 0, %s22
    %s23 = sphi 0, %s20
    %s24 = sphi 0, %s23
    %s40 = sphi 0, %s24
    %s44 = sphi 0, %s44
    %s46 = sphi 0, %s44
    %s47 = sphi 0, %s46
    %s61 = sphi 0, %s47
    %s65 = sphi 0, %s65
    %s67 = sphi 0, %s65
    %s68 = sphi 0, %s67
    %s82 = sphi 0, %s68
    %s86 = sphi 0, %s86
    %s88 = sphi 0, %s86
    %s89 = sphi 0, %s88
    %s103 = sphi 0, %s89
    %s109 = sphi 0, %s111
    %s112 = sphi 0, %s109
    %s113 = sphi 0, %s112
    %s129 = sphi 0, %s113
  $region4: #{resblk_forward.6} parent=0 // loop_header_branch
    %13 = sbr.rel (%p11) target = $region8
  $region5: #{resblk_forward.6} parent=0 // loop_body
    %s15 = ssub.s32 %s10, 1
    %s16 = ssub.s32 %s10, 2
    %s17 = sadd.s32 %s10, 1
    %s18 = ssub.s32 %s10, %s17
    %p19 = scmp.eq.s32.totalorder %s18, 0
    %s21 = sadd.s32 %s20, 1
    %s22 = scalar_select %p19, %s20, %s21
    %p25 = pneg %p19
    %p26 = scmp.eq.s32.totalorder %s10, 1
    %p27 = por %p25, %p26
    %p28 = scmp.ne.s32.totalorder %s20, %s23
    %p29 = scmp.eq.s32.totalorder %s10, 0
    %p30 = por %p28, %p29
    %p31 = scmp.ne.s32.totalorder %s20, %s23
    %p32 = scmp.eq.s32.totalorder %s15, 1
    %p33 = por %p31, %p32
    %p34 = scmp.ne.s32.totalorder %s23, %s24
    %p35 = scmp.eq.s32.totalorder %s15, 0
    %p36 = por %p34, %p35
    %p37 = scmp.ne.s32.totalorder %s23, %s24
    %p38 = scmp.eq.s32.totalorder %s16, 1
    %p39 = por %p37, %p38
    %p41 = scmp.ne.s32.totalorder %s24, %s40
    %p42 = scmp.eq.s32.totalorder %s16, 0
    %p43 = por %p41, %p42
    %s45 = sadd.s32 %s44, 1
    %p48 = scmp.eq.s32.totalorder %s10, 1
    %p49 = scmp.ne.s32.totalorder %s44, %s46
    %p50 = scmp.eq.s32.totalorder %s10, 0
    %p51 = por %p49, %p50
    %p52 = scmp.ne.s32.totalorder %s44, %s46
    %p53 = scmp.eq.s32.totalorder %s15, 1
    %p54 = por %p52, %p53
    %p55 = scmp.ne.s32.totalorder %s46, %s47
    %p56 = scmp.eq.s32.totalorder %s15, 0
    %p57 = por %p55, %p56
    %p58 = scmp.ne.s32.totalorder %s46, %s47
    %p59 = scmp.eq.s32.totalorder %s16, 1
    %p60 = por %p58, %p59
    %p62 = scmp.ne.s32.totalorder %s47, %s61
    %p63 = scmp.eq.s32.totalorder %s16, 0
    %p64 = por %p62, %p63
    %s66 = sadd.s32 %s65, 1
    %p69 = scmp.eq.s32.totalorder %s10, 1
    %p70 = scmp.ne.s32.totalorder %s65, %s67
    %p71 = scmp.eq.s32.totalorder %s10, 0
    %p72 = por %p70, %p71
    %p73 = scmp.ne.s32.totalorder %s65, %s67
    %p74 = scmp.eq.s32.totalorder %s15, 1
    %p75 = por %p73, %p74
    %p76 = scmp.ne.s32.totalorder %s67, %s68
    %p77 = scmp.eq.s32.totalorder %s15, 0
    %p78 = por %p76, %p77
    %p79 = scmp.ne.s32.totalorder %s67, %s68
    %p80 = scmp.eq.s32.totalorder %s16, 1
    %p81 = por %p79, %p80
    %p83 = scmp.ne.s32.totalorder %s68, %s82
    %p84 = scmp.eq.s32.totalorder %s16, 0
    %p85 = por %p83, %p84
    %s87 = sadd.s32 %s86, 1
    %p90 = scmp.eq.s32.totalorder %s10, 1
    %p91 = scmp.ne.s32.totalorder %s86, %s88
    %p92 = scmp.eq.s32.totalorder %s10, 0
    %p93 = por %p91, %p92
    %p94 = scmp.ne.s32.totalorder %s86, %s88
    %p95 = scmp.eq.s32.totalorder %s15, 1
    %p96 = por %p94, %p95
    %p97 = scmp.ne.s32.totalorder %s88, %s89
    %p98 = scmp.eq.s32.totalorder %s15, 0
    %p99 = por %p97, %p98
    %p100 = scmp.ne.s32.totalorder %s88, %s89
    %p101 = scmp.eq.s32.totalorder %s16, 1
    %p102 = por %p100, %p101
    %p104 = scmp.ne.s32.totalorder %s89, %s103
    %p105 = scmp.eq.s32.totalorder %s16, 0
    %p106 = por %p104, %p105
    %s107 = ssub.s32 %s10, %s17
    %p108 = scmp.eq.s32.totalorder %s107, 0
    %s110 = sadd.s32 %s109, 1
    %s111 = scalar_select %p108, %s109, %s110
    %p114 = pneg %p108
    %p115 = scmp.eq.s32.totalorder %s10, 1
    %p116 = por %p114, %p115
    %p117 = scmp.ne.s32.totalorder %s109, %s112
    %p118 = scmp.eq.s32.totalorder %s10, 0
    %p119 = por %p117, %p118
    %p120 = scmp.ne.s32.totalorder %s109, %s112
    %p121 = scmp.eq.s32.totalorder %s15, 1
    %p122 = por %p120, %p121
    %p123 = scmp.ne.s32.totalorder %s112, %s113
    %p124 = scmp.eq.s32.totalorder %s15, 0
    %p125 = por %p123, %p124
    %p126 = scmp.ne.s32.totalorder %s112, %s113
    %p127 = scmp.eq.s32.totalorder %s16, 1
    %p128 = por %p126, %p127
    %p130 = scmp.ne.s32.totalorder %s113, %s129
    %p131 = scmp.eq.s32.totalorder %s16, 0
    %p132 = por %p130, %p131
    %p133 = scmp.le.s32.totalorder 1, %s10
    %p134 = scmp.lt.s32.totalorder %s10, 3
    %p135 = pnand %p133, %p134
    %p136 = pneg %p135
    // Predicated region
    $region9: #{resblk_forward.6} parent=5 // pred_check
      _
    $region10: #{resblk_forward.6} parent=5 // pred_check_branch
      %138 = sbr.rel (%p135) target = $region12
    $region11: #{resblk_forward.6} parent=5 // pred_region
      %s139 = ssub.s32 %s10, 1
      // Predicated region
      $region13: #{resblk_forward.6} parent=11 // pred_check
        %p140 = pneg %p57
      $region14: #{resblk_forward.6} parent=11 // pred_check_branch
        %142 = sbr.rel (%p140) target = $region16
      $region15: #{resblk_forward.6} parent=11 // pred_region
        _
      $region16: #{resblk_forward.6} parent=11 // pred_fallthru
        _
      // Predicated region
      $region17: #{resblk_forward.6} parent=11 // pred_check
        %p143 = pneg %p78
      $region18: #{resblk_forward.6} parent=11 // pred_check_branch
        %145 = sbr.rel (%p143) target = $region20
      $region19: #{resblk_forward.6} parent=11 // pred_region
        _
      $region20: #{resblk_forward.6} parent=11 // pred_fallthru
        _
      // Predicated region
      $region21: #{resblk_forward.6} parent=11 // pred_check
        %p146 = pneg %p99
      $region22: #{resblk_forward.6} parent=11 // pred_check_branch
        %148 = sbr.rel (%p146) target = $region24
      $region23: #{resblk_forward.6} parent=11 // pred_region
        _
      $region24: #{resblk_forward.6} parent=11 // pred_fallthru
        _
    $region12: #{resblk_forward.6} parent=5 // pred_fallthru
      _
    %p149 = scmp.lt.s32.totalorder %s10, 2
    // Predicated region
    $region25: #{resblk_forward.6} parent=5 // pred_check
      %p150 = pneg %p149
    $region26: #{resblk_forward.6} parent=5 // pred_check_branch
      %152 = sbr.rel (%p150) target = $region28
    $region27: #{resblk_forward.6} parent=5 // pred_region
      // Predicated region
      $region29: #{resblk_forward.6} parent=27 // pred_check
        %p153 = pneg %p30
      $region30: #{resblk_forward.6} parent=27 // pred_check_branch
        %155 = sbr.rel (%p153) target = $region32
      $region31: #{resblk_forward.6} parent=27 // pred_region
        %p156 = scmp.lt.s32.totalorder %s10, 1
        %s157 = scalar_select %p156, %s10, 1
        %s158 = smul.addr %s157, 32
        %s159 = smul.addr %s158, 8
        %s160 = scalar_lea.vmem %s0, %s159
      $region32: #{resblk_forward.6} parent=27 // pred_fallthru
        _
    $region28: #{resblk_forward.6} parent=5 // pred_fallthru
      _
    %p161 = scmp.le.s32.totalorder 1, %s10
    %p162 = scmp.lt.s32.totalorder %s10, 3
    %p163 = pnand %p161, %p162
    %p164 = pneg %p163
    // Predicated region
    $region33: #{resblk_forward.6} parent=5 // pred_check
      _
    $region34: #{resblk_forward.6} parent=5 // pred_check_branch
      %166 = sbr.rel (%p163) target = $region36
    $region35: #{resblk_forward.6} parent=5 // pred_region
      %s167 = ssub.s32 %s10, 1
      %p168 = scmp.lt.s32.totalorder %s15, 1
      %s169 = scalar_select %p168, %s15, 1
      %s170 = smul.addr %s169, 32
      %s171 = smul.addr %s170, 8
      %s172 = scalar_lea.vmem %s0, %s171
      %p173 = pneg %p36
      %p174 = pneg %p33
      %p175 = pneg %p57
      %p176 = pneg %p54
      %p177 = pneg %p78
      %p178 = pneg %p75
      %p179 = pneg %p99
      %p180 = pneg %p96
      %p181 = pneg %p125
      %p182 = pneg %p122
      %p183 = scmp.lt.s32.totalorder %s15, 1
      %s184 = scalar_select %p183, %s15, 1
      %s185 = smul.addr %s184, 2
      %s186 = scalar_lea.vmem %s4, %s185
      %p187 = scmp.lt.s32.totalorder %s15, 1
      %s188 = scalar_select %p187, %s15, 1
      %s189 = smul.addr %s188, 32
      %s190 = smul.addr %s189, 8
      %s191 = scalar_lea.vmem %s0, %s190
      %p192 = scmp.lt.s32.totalorder %s15, 1
      %s193 = scalar_select %p192, %s15, 1
      %s194 = smul.addr %s193, 2
      %s195 = scalar_lea.vmem %s4, %s194
      %v196 = vld [vmem:[%s1] sm:$0x3]
      %v197 = vld [vmem:[%s1 + $0x2] sm:$0x3]
      %v198 = vld [vmem:[%s2] sm:$0x1]
      %v199 = vld [vmem:[%s3] sm:$0x1]
      %vm200 = vcmask 58368
      %v201 = vsel %vm200, %v196, 0.0
      %v202 = vsel %vm200, %v197, 0.0
      %v203 = vadd.f32 %v201, %v202
      %v204 = vmul.f32 %v203, 0.001953125
      %v205 = vmul.f32 %v204, %v204
      %v207 = vrot.slane %v205, 7
      %v209 = vsub.f32 %v204, %v207
      %v210 = vmax.f32 %v209, 0.0
      %v211 = vadd.f32 %v210, 1e-05
      %v212 = vrsqrt.pop %v211
      %v215 = vunpack.c.l.s4 1966171168
      %v216 = vunpack.c.0.s8 %v215
      %v217 = vlaneseq
      %v218 = vshrl.u32 %v217, 7
      %v219 = vsub.s32 %v216, %v218
      %v220 = vrot.slane %v212, %v219
      %v221 = vcombine.high %v220, %v220
      %v223 = vunpack.c.l.s4 1966171168
      %v224 = vunpack.c.0.s8 %v223
      %v225 = vlaneseq
      %v226 = vshrl.u32 %v225, 7
      %v227 = vsub.s32 %v224, %v226
      %v228 = vrot.slane %v221, %v227
      %v230 = vmul.f32 %v198, %v228
      %v231 = vmul.f32 %v204, %v230
      %v232 = vsub.f32 %v199, %v231
      %v233 = vld [vmem:[%s191] sm:$0xff]
      %v234 = vld [vmem:[%s191 + $0x8] sm:$0xff]
      %v235 = vld [vmem:[%s191 + $0x10] sm:$0xff]
      %v236 = vld [vmem:[%s191 + $0x18] sm:$0xff]
      %v237 = vld [vmem:[%s191 + $0x20] sm:$0xff]
      %v238 = vld [vmem:[%s191 + $0x28] sm:$0xff]
      %v239 = vld [vmem:[%s191 + $0x30] sm:$0xff]
      %v240 = vld [vmem:[%s191 + $0x38] sm:$0xff]
      %v241 = vld [vmem:[%s191 + $0x40] sm:$0xff]
      %v242 = vld [vmem:[%s191 + $0x48] sm:$0xff]
      %v243 = vld [vmem:[%s191 + $0x50] sm:$0xff]
      %v244 = vld [vmem:[%s191 + $0x58] sm:$0xff]
      %v245 = vld [vmem:[%s191 + $0x60] sm:$0xff]
      %v246 = vld [vmem:[%s191 + $0x68] sm:$0xff]
      %v247 = vld [vmem:[%s191 + $0x70] sm:$0xff]
      %v248 = vld [vmem:[%s191 + $0x78] sm:$0xff]
      %v249 = vld [vmem:[%s191 + $0x80] sm:$0xff]
      %v250 = vld [vmem:[%s191 + $0x88] sm:$0xff]
      %v251 = vld [vmem:[%s191 + $0x90] sm:$0xff]
      %v252 = vld [vmem:[%s191 + $0x98] sm:$0xff]
      %v253 = vld [vmem:[%s191 + $0xa0] sm:$0xff]
      %v254 = vld [vmem:[%s191 + $0xa8] sm:$0xff]
      %v255 = vld [vmem:[%s191 + $0xb0] sm:$0xff]
      %v256 = vld [vmem:[%s191 + $0xb8] sm:$0xff]
      %v257 = vld [vmem:[%s191 + $0xc0] sm:$0xff]
      %v258 = vld [vmem:[%s191 + $0xc8] sm:$0xff]
      %v259 = vld [vmem:[%s191 + $0xd0] sm:$0xff]
      %v260 = vld [vmem:[%s191 + $0xd8] sm:$0xff]
      %v261 = vld [vmem:[%s191 + $0xe0] sm:$0xff]
      %v262 = vld [vmem:[%s191 + $0xe8] sm:$0xff]
      %v263 = vld [vmem:[%s191 + $0xf0] sm:$0xff]
      %v264 = vld [vmem:[%s191 + $0xf8] sm:$0xff]
      %v266 = vlaneseq
      %v267 = vshrl.u32 %v266, 7
      %v268 = vsub.s32 0, %v267
      %v269 = vrot.slane %v230, %v268
      %v271 = vmul.f32 %v233, %v269
      %v272 = vmul.f32 %v234, %v269
      %v273 = vmul.f32 %v235, %v269
      %v274 = vmul.f32 %v236, %v269
      %v275 = vmul.f32 %v237, %v269
      %v276 = vmul.f32 %v238, %v269
      %v277 = vmul.f32 %v239, %v269
      %v278 = vmul.f32 %v240, %v269
      %v279 = vmul.f32 %v241, %v269
      %v280 = vmul.f32 %v242, %v269
      %v281 = vmul.f32 %v243, %v269
      %v282 = vmul.f32 %v244, %v269
      %v283 = vmul.f32 %v245, %v269
      %v284 = vmul.f32 %v246, %v269
      %v285 = vmul.f32 %v247, %v269
      %v286 = vmul.f32 %v248, %v269
      %v287 = vmul.f32 %v249, %v269
      %v288 = vmul.f32 %v250, %v269
      %v289 = vmul.f32 %v251, %v269
      %v290 = vmul.f32 %v252, %v269
      %v291 = vmul.f32 %v253, %v269
      %v292 = vmul.f32 %v254, %v269
      %v293 = vmul.f32 %v255, %v269
      %v294 = vmul.f32 %v256, %v269
      %v295 = vmul.f32 %v257, %v269
      %v296 = vmul.f32 %v258, %v269
      %v297 = vmul.f32 %v259, %v269
      %v298 = vmul.f32 %v260, %v269
      %v299 = vmul.f32 %v261, %v269
      %v300 = vmul.f32 %v262, %v269
      %v301 = vmul.f32 %v263, %v269
      %v302 = vmul.f32 %v264, %v269
      %v304 = vlaneseq
      %v305 = vshrl.u32 %v304, 7
      %v306 = vsub.s32 0, %v305
      %v307 = vrot.slane %v232, %v306
      %v309 = vadd.f32 %v271, %v307
      %v310 = vadd.f32 %v272, %v307
      %v311 = vadd.f32 %v273, %v307
      %v312 = vadd.f32 %v274, %v307
      %v313 = vadd.f32 %v275, %v307
      %v314 = vadd.f32 %v276, %v307
      %v315 = vadd.f32 %v277, %v307
      %v316 = vadd.f32 %v278, %v307
      %v317 = vadd.f32 %v279, %v307
      %v318 = vadd.f32 %v280, %v307
      %v319 = vadd.f32 %v281, %v307
      %v320 = vadd.f32 %v282, %v307
      %v321 = vadd.f32 %v283, %v307
      %v322 = vadd.f32 %v284, %v307
      %v323 = vadd.f32 %v285, %v307
      %v324 = vadd.f32 %v286, %v307
      %v325 = vadd.f32 %v287, %v307
      %v326 = vadd.f32 %v288, %v307
      %v327 = vadd.f32 %v289, %v307
      %v328 = vadd.f32 %v290, %v307
      %v329 = vadd.f32 %v291, %v307
      %v330 = vadd.f32 %v292, %v307
      %v331 = vadd.f32 %v293, %v307
      %v332 = vadd.f32 %v294, %v307
      %v333 = vadd.f32 %v295, %v307
      %v334 = vadd.f32 %v296, %v307
      %v335 = vadd.f32 %v297, %v307
      %v336 = vadd.f32 %v298, %v307
      %v337 = vadd.f32 %v299, %v307
      %v338 = vadd.f32 %v300, %v307
      %v339 = vadd.f32 %v301, %v307
      %v340 = vadd.f32 %v302, %v307
      %v341 = vmax.f32 %v309, 0.0
      %v342 = vmax.f32 %v310, 0.0
      %v343 = vmax.f32 %v311, 0.0
      %v344 = vmax.f32 %v312, 0.0
      %v345 = vmax.f32 %v313, 0.0
      %v346 = vmax.f32 %v314, 0.0
      %v347 = vmax.f32 %v315, 0.0
      %v348 = vmax.f32 %v316, 0.0
      %v349 = vmax.f32 %v317, 0.0
      %v350 = vmax.f32 %v318, 0.0
      %v351 = vmax.f32 %v319, 0.0
      %v352 = vmax.f32 %v320, 0.0
      %v353 = vmax.f32 %v321, 0.0
      %v354 = vmax.f32 %v322, 0.0
      %v355 = vmax.f32 %v323, 0.0
      %v356 = vmax.f32 %v324, 0.0
      %v357 = vmax.f32 %v325, 0.0
      %v358 = vmax.f32 %v326, 0.0
      %v359 = vmax.f32 %v327, 0.0
      %v360 = vmax.f32 %v328, 0.0
      %v361 = vmax.f32 %v329, 0.0
      %v362 = vmax.f32 %v330, 0.0
      %v363 = vmax.f32 %v331, 0.0
      %v364 = vmax.f32 %v332, 0.0
      %v365 = vmax.f32 %v333, 0.0
      %v366 = vmax.f32 %v334, 0.0
      %v367 = vmax.f32 %v335, 0.0
      %v368 = vmax.f32 %v336, 0.0
      %v369 = vmax.f32 %v337, 0.0
      %v370 = vmax.f32 %v338, 0.0
      %v371 = vmax.f32 %v339, 0.0
      %v372 = vmax.f32 %v340, 0.0
      %vm373 = vcmask 64512
      %v374 = vsel %vm373, %v341, 0.0
      %v375 = vsel %vm373, %v342, 0.0
      %v376 = vadd.f32 %v374, %v375
      %v377 = vsel %vm373, %v343, 0.0
      %v378 = vadd.f32 %v376, %v377
      %v379 = vsel %vm373, %v344, 0.0
      %v380 = vadd.f32 %v378, %v379
      %v381 = vsel %vm373, %v345, 0.0
      %v382 = vadd.f32 %v380, %v381
      %v383 = vsel %vm373, %v346, 0.0
      %v384 = vadd.f32 %v382, %v383
      %v385 = vsel %vm373, %v347, 0.0
      %v386 = vadd.f32 %v384, %v385
      %v387 = vsel %vm373, %v348, 0.0
      %v388 = vadd.f32 %v386, %v387
      %v389 = vsel %vm373, %v349, 0.0
      %v390 = vadd.f32 %v388, %v389
      %v391 = vsel %vm373, %v350, 0.0
      %v392 = vadd.f32 %v390, %v391
      %v393 = vsel %vm373, %v351, 0.0
      %v394 = vadd.f32 %v392, %v393
      %v395 = vsel %vm373, %v352, 0.0
      %v396 = vadd.f32 %v394, %v395
      %v397 = vsel %vm373, %v353, 0.0
      %v398 = vadd.f32 %v396, %v397
      %v399 = vsel %vm373, %v354, 0.0
      %v400 = vadd.f32 %v398, %v399
      %v401 = vsel %vm373, %v355, 0.0
      %v402 = vadd.f32 %v400, %v401
      %v403 = vsel %vm373, %v356, 0.0
      %v404 = vadd.f32 %v402, %v403
      %v405 = vsel %vm373, %v357, 0.0
      %v406 = vadd.f32 %v404, %v405
      %v407 = vsel %vm373, %v358, 0.0
      %v408 = vadd.f32 %v406, %v407
      %v409 = vsel %vm373, %v359, 0.0
      %v410 = vadd.f32 %v408, %v409
      %v411 = vsel %vm373, %v360, 0.0
      %v412 = vadd.f32 %v410, %v411
      %v413 = vsel %vm373, %v361, 0.0
      %v414 = vadd.f32 %v412, %v413
      %v415 = vsel %vm373, %v362, 0.0
      %v416 = vadd.f32 %v414, %v415
      %v417 = vsel %vm373, %v363, 0.0
      %v418 = vadd.f32 %v416, %v417
      %v419 = vsel %vm373, %v364, 0.0
      %v420 = vadd.f32 %v418, %v419
      %v421 = vsel %vm373, %v365, 0.0
      %v422 = vadd.f32 %v420, %v421
      %v423 = vsel %vm373, %v366, 0.0
      %v424 = vadd.f32 %v422, %v423
      %v425 = vsel %vm373, %v367, 0.0
      %v426 = vadd.f32 %v424, %v425
      %v427 = vsel %vm373, %v368, 0.0
      %v428 = vadd.f32 %v426, %v427
      %v429 = vsel %vm373, %v369, 0.0
      %v430 = vadd.f32 %v428, %v429
      %v431 = vsel %vm373, %v370, 0.0
      %v432 = vadd.f32 %v430, %v431
      %v433 = vsel %vm373, %v371, 0.0
      %v434 = vadd.f32 %v432, %v433
      %v435 = vsel %vm373, %v372, 0.0
      %v436 = vadd.f32 %v434, %v435
      %v437 = vrot.slane %v436, 4
      %v438 = vadd.f32 %v436, %v437
      %v439 = vrot.slane %v438, 2
      %v440 = vadd.f32 %v438, %v439
      %v441 = vrot.slane %v440, 1
      %v442 = vadd.f32 %v440, %v441
      %v443 = vmul.f32 %v341, %v341
      %v444 = vmul.f32 %v342, %v342
      %v445 = vmul.f32 %v343, %v343
      %v446 = vmul.f32 %v344, %v344
      %v447 = vmul.f32 %v345, %v345
      %v448 = vmul.f32 %v346, %v346
      %v449 = vmul.f32 %v347, %v347
      %v450 = vmul.f32 %v348, %v348
      %v451 = vmul.f32 %v349, %v349
      %v452 = vmul.f32 %v350, %v350
      %v453 = vmul.f32 %v351, %v351
      %v454 = vmul.f32 %v352, %v352
      %v455 = vmul.f32 %v353, %v353
      %v456 = vmul.f32 %v354, %v354
      %v457 = vmul.f32 %v355, %v355
      %v458 = vmul.f32 %v356, %v356
      %v459 = vmul.f32 %v357, %v357
      %v460 = vmul.f32 %v358, %v358
      %v461 = vmul.f32 %v359, %v359
      %v462 = vmul.f32 %v360, %v360
      %v463 = vmul.f32 %v361, %v361
      %v464 = vmul.f32 %v362, %v362
      %v465 = vmul.f32 %v363, %v363
      %v466 = vmul.f32 %v364, %v364
      %v467 = vmul.f32 %v365, %v365
      %v468 = vmul.f32 %v366, %v366
      %v469 = vmul.f32 %v367, %v367
      %v470 = vmul.f32 %v368, %v368
      %v471 = vmul.f32 %v369, %v369
      %v472 = vmul.f32 %v370, %v370
      %v473 = vmul.f32 %v371, %v371
      %v474 = vmul.f32 %v372, %v372
      %v475 = vsel %vm373, %v443, 0.0
      %v476 = vsel %vm373, %v444, 0.0
      %v477 = vadd.f32 %v475, %v476
      %v478 = vsel %vm373, %v445, 0.0
      %v479 = vadd.f32 %v477, %v478
      %v480 = vsel %vm373, %v446, 0.0
      %v481 = vadd.f32 %v479, %v480
      %v482 = vsel %vm373, %v447, 0.0
      %v483 = vadd.f32 %v481, %v482
      %v484 = vsel %vm373, %v448, 0.0
      %v485 = vadd.f32 %v483, %v484
      %v486 = vsel %vm373, %v449, 0.0
      %v487 = vadd.f32 %v485, %v486
      %v488 = vsel %vm373, %v450, 0.0
      %v489 = vadd.f32 %v487, %v488
      %v490 = vsel %vm373, %v451, 0.0
      %v491 = vadd.f32 %v489, %v490
      %v492 = vsel %vm373, %v452, 0.0
      %v493 = vadd.f32 %v491, %v492
      %v494 = vsel %vm373, %v453, 0.0
      %v495 = vadd.f32 %v493, %v494
      %v496 = vsel %vm373, %v454, 0.0
      %v497 = vadd.f32 %v495, %v496
      %v498 = vsel %vm373, %v455, 0.0
      %v499 = vadd.f32 %v497, %v498
      %v500 = vsel %vm373, %v456, 0.0
      %v501 = vadd.f32 %v499, %v500
      %v502 = vsel %vm373, %v457, 0.0
      %v503 = vadd.f32 %v501, %v502
      %v504 = vsel %vm373, %v458, 0.0
      %v505 = vadd.f32 %v503, %v504
      %v506 = vsel %vm373, %v459, 0.0
      %v507 = vadd.f32 %v505, %v506
      %v508 = vsel %vm373, %v460, 0.0
      %v509 = vadd.f32 %v507, %v508
      %v510 = vsel %vm373, %v461, 0.0
      %v511 = vadd.f32 %v509, %v510
      %v512 = vsel %vm373, %v462, 0.0
      %v513 = vadd.f32 %v511, %v512
      %v514 = vsel %vm373, %v463, 0.0
      %v515 = vadd.f32 %v513, %v514
      %v516 = vsel %vm373, %v464, 0.0
      %v517 = vadd.f32 %v515, %v516
      %v518 = vsel %vm373, %v465, 0.0
      %v519 = vadd.f32 %v517, %v518
      %v520 = vsel %vm373, %v466, 0.0
      %v521 = vadd.f32 %v519, %v520
      %v522 = vsel %vm373, %v467, 0.0
      %v523 = vadd.f32 %v521, %v522
      %v524 = vsel %vm373, %v468, 0.0
      %v525 = vadd.f32 %v523, %v524
      %v526 = vsel %vm373, %v469, 0.0
      %v527 = vadd.f32 %v525, %v526
      %v528 = vsel %vm373, %v470, 0.0
      %v529 = vadd.f32 %v527, %v528
      %v530 = vsel %vm373, %v471, 0.0
      %v531 = vadd.f32 %v529, %v530
      %v532 = vsel %vm373, %v472, 0.0
      %v533 = vadd.f32 %v531, %v532
      %v534 = vsel %vm373, %v473, 0.0
      %v535 = vadd.f32 %v533, %v534
      %v536 = vsel %vm373, %v474, 0.0
      %v537 = vadd.f32 %v535, %v536
      %v538 = vrot.slane %v537, 4
      %v539 = vadd.f32 %v537, %v538
      %v540 = vrot.slane %v539, 2
      %v541 = vadd.f32 %v539, %v540
      %v542 = vrot.slane %v541, 1
      %v543 = vadd.f32 %v541, %v542
      %vm544 = vcmask 1040384
      %v545 = vsel %vm544, %v442, %v543
      %546 = vst.msk [vmem:[%s195] sm:$0x3] %vm200, %v545
      %p547 = scmp.lt.s32.totalorder %s15, 1
      %s548 = scalar_select %p547, %s15, 1
      %s549 = smul.addr %s548, 2
      %s550 = scalar_lea.vmem %s4, %s549
      // Predicated region
      $region37: #{resblk_forward.6} parent=35 // pred_check
        %p551 = pneg %p122
      $region38: #{resblk_forward.6} parent=35 // pred_check_branch
        %553 = sbr.rel (%p551) target = $region40
      $region39: #{resblk_forward.6} parent=35 // pred_region
        _
      $region40: #{resblk_forward.6} parent=35 // pred_fallthru
        _
    $region36: #{resblk_forward.6} parent=5 // pred_fallthru
      _
    %p554 = scmp.le.s32.totalorder 2, %s10
    // Predicated region
    $region41: #{resblk_forward.6} parent=5 // pred_check
      %p555 = pneg %p554
    $region42: #{resblk_forward.6} parent=5 // pred_check_branch
      %557 = sbr.rel (%p555) target = $region44
    $region43: #{resblk_forward.6} parent=5 // pred_region
      %s558 = ssub.s32 %s10, 2
      // Predicated region
      $region45: #{resblk_forward.6} parent=43 // pred_check
        %p559 = pneg %p128
      $region46: #{resblk_forward.6} parent=43 // pred_check_branch
        %561 = sbr.rel (%p559) target = $region48
      $region47: #{resblk_forward.6} parent=43 // pred_region
        %p562 = scmp.lt.s32.totalorder %s16, 1
        %s563 = scalar_select %p562, %s16, 1
        %s564 = smul.addr %s563, 2
        %s565 = scalar_lea.vmem %s4, %s564
      $region48: #{resblk_forward.6} parent=43 // pred_fallthru
        _
    $region44: #{resblk_forward.6} parent=5 // pred_fallthru
      _
  $region6: #{resblk_forward.6} parent=0 // loop_footer
    %s14 = sadd.s32 1, %s10
  $region7: #{resblk_forward.6} parent=0 // loop_footer_branch
    %9 = sbr.rel target = $region3
  $region8: #{resblk_forward.6} parent=0 // loop_exit
    _

// kernel: resblk_forward.7
$region0: #{resblk_forward.7}
  #allocation0 [shape = 'u32[]', space=smem, size = 0x4, offset = 0x4, fixed_abs, tag = 'smem constant byte address 0x4 - core index']
  #allocation1 [shape = 'u32[144,128]{1,0:T(1,128)}', space=vmem, size = 0x12000, scoped, tag = 'internal scratch']
  %s0 = inlined_call_operand.vmem [shape: f32[2,16,16,8], index: 0, kind: input, shape index: {}]
  %s1 = inlined_call_operand.vmem [shape: f32[2,2,8], index: 1, kind: input, shape index: {}]
  %s2 = inlined_call_operand.vmem [shape: f32[1,8], index: 2, kind: input, shape index: {}]
  %s3 = inlined_call_operand.vmem [shape: f32[1,8], index: 3, kind: input, shape index: {}]
  %s4 = inlined_call_operand.vmem [shape: f32[2,2,8], index: 4, kind: input, shape index: {}]
  %s5 = inlined_call_operand.vmem [shape: f32[1,8], index: 5, kind: input, shape index: {}]
  %s6 = inlined_call_operand.vmem [shape: f32[1,8], index: 6, kind: input, shape index: {}]
  %s7 = inlined_call_operand.vmem [shape: bf16[8,24], index: 7, kind: input, shape index: {}]
  %s8 = inlined_call_operand.vmem [shape: f32[1,24], index: 8, kind: input, shape index: {}]
  %s9 = inlined_call_operand.vmem [shape: bf16[8,8], index: 9, kind: input, shape index: {}]
  %s10 = inlined_call_operand.vmem [shape: f32[1,8], index: 10, kind: input, shape index: {}]
  %s11 = inlined_call_operand.vmem [shape: f32[2,16,16,8], index: 11, kind: input, shape index: {}]
  %s12 = inlined_call_operand.vmem [shape: f32[2,2,8], index: 12, kind: input, shape index: {}]
  %s13 = inlined_call_operand.vmem [shape: f32[1,8], index: 13, kind: input, shape index: {}]
  %s14 = inlined_call_operand.vmem [shape: f32[1,8], index: 14, kind: input, shape index: {}]
  %s15 = inlined_call_operand.vmem [shape: f32[2,16,16,8], index: 15, kind: output, shape index: {}]
  %s16 = sld [smem:[#allocation0]]
  $region93: #{resblk_forward.7} parent=0
    _
  %s18 = ssub.s32 1, %s16
  %s19 = scalar_select 0, %s18, %s16
  loop: start=0, step=1, limit=4
  $region2: #{resblk_forward.7} parent=0 // loop_pre_header
    _
  $region3: #{resblk_forward.7} parent=0 // loop_header
    %s21 = sphi 0, %s25
    %p22 = scmp.ge.s32.totalorder %s21, 4
    %s31 = sphi 0, %s33
    %s34 = sphi 0, %s31
    %s35 = sphi 0, %s34
    %s51 = sphi 0, %s35
    %s55 = sphi 0, %s55
    %s57 = sphi 0, %s55
    %s58 = sphi 0, %s57
    %s72 = sphi 0, %s58
    %s76 = sphi 0, %s76
    %s78 = sphi 0, %s76
    %s79 = sphi 0, %s78
    %s93 = sphi 0, %s79
    %s97 = sphi 0, %s97
    %s99 = sphi 0, %s97
    %s100 = sphi 0, %s99
    %s114 = sphi 0, %s100
    %s118 = sphi 0, %s118
    %s120 = sphi 0, %s118
    %s121 = sphi 0, %s120
    %s135 = sphi 0, %s121
    %s139 = sphi 0, %s139
    %s141 = sphi 0, %s139
    %s142 = sphi 0, %s141
    %s156 = sphi 0, %s142
    %s160 = sphi 0, %s160
    %s162 = sphi 0, %s160
    %s163 = sphi 0, %s162
    %s177 = sphi 0, %s163
    %s181 = sphi 0, %s181
    %s183 = sphi 0, %s181
    %s184 = sphi 0, %s183
    %s198 = sphi 0, %s184
    %s202 = sphi 0, %s202
    %s204 = sphi 0, %s202
    %s205 = sphi 0, %s204
    %s219 = sphi 0, %s205
    %s223 = sphi 0, %s223
    %s225 = sphi 0, %s223
    %s226 = sphi 0, %s225
    %s240 = sphi 0, %s226
    %s244 = sphi 0, %s244
    %s246 = sphi 0, %s244
    %s247 = sphi 0, %s246
    %s261 = sphi 0, %s247
    %s267 = sphi 0, %s269
    %s270 = sphi 0, %s267
    %s271 = sphi 0, %s270
    %s287 = sphi 0, %s271
    %s291 = sphi 0, %s291
    %s293 = sphi 0, %s291
    %s294 = sphi 0, %s293
    %s308 = sphi 0, %s294
    %s312 = sphi 0, %s312
    %s314 = sphi 0, %s312
    %s315 = sphi 0, %s314
    %s329 = sphi 0, %s315
    %s333 = sphi 0, %s333
    %s335 = sphi 0, %s333
    %s336 = sphi 0, %s335
    %s350 = sphi 0, %s336
    %s356 = sphi 0, %s358
    %s359 = sphi 0, %s356
    %s360 = sphi 0, %s359
    %s376 = sphi 0, %s360
  $region4: #{resblk_forward.7} parent=0 // loop_header_branch
    %24 = sbr.rel (%p22) target = $region8
  $region5: #{resblk_forward.7} parent=0 // loop_body
    %s26 = ssub.s32 %s21, 1
    %s27 = ssub.s32 %s21, 2
    %s28 = sadd.s32 %s21, 1
    %s29 = ssub.s32 %s21, %s28
    %p30 = scmp.eq.s32.totalorder %s29, 0
    %s32 = sadd.s32 %s31, 1
    %s33 = scalar_select %p30, %s31, %s32
    %p36 = pneg %p30
    %p37 = scmp.eq.s32.totalorder %s21, 1
    %p38 = por %p36, %p37
    %p39 = scmp.ne.s32.totalorder %s31, %s34
    %p40 = scmp.eq.s32.totalorder %s21, 0
    %p41 = por %p39, %p40
    %p42 = scmp.ne.s32.totalorder %s31, %s34
    %p43 = scmp.eq.s32.totalorder %s26, 1
    %p44 = por %p42, %p43
    %p45 = scmp.ne.s32.totalorder %s34, %s35
    %p46 = scmp.eq.s32.totalorder %s26, 0
    %p47 = por %p45, %p46
    %p48 = scmp.ne.s32.totalorder %s34, %s35
    %p49 = scmp.eq.s32.totalorder %s27, 1
    %p50 = por %p48, %p49
    %p52 = scmp.ne.s32.totalorder %s35, %s51
    %p53 = scmp.eq.s32.totalorder %s27, 0
    %p54 = por %p52, %p53
    %s56 = sadd.s32 %s55, 1
    %p59 = scmp.eq.s32.totalorder %s21, 1
    %p60 = scmp.ne.s32.totalorder %s55, %s57
    %p61 = scmp.eq.s32.totalorder %s21, 0
    %p62 = por %p60, %p61
    %p63 = scmp.ne.s32.totalorder %s55, %s57
    %p64 = scmp.eq.s32.totalorder %s26, 1
    %p65 = por %p63, %p64
    %p66 = scmp.ne.s32.totalorder %s57, %s58
    %p67 = scmp.eq.s32.totalorder %s26, 0
    %p68 = por %p66, %p67
    %p69 = scmp.ne.s32.totalorder %s57, %s58
    %p70 = scmp.eq.s32.totalorder %s27, 1
    %p71 = por %p69, %p70
    %p73 = scmp.ne.s32.totalorder %s58, %s72
    %p74 = scmp.eq.s32.totalorder %s27, 0
    %p75 = por %p73, %p74
    %s77 = sadd.s32 %s76, 1
    %p80 = scmp.eq.s32.totalorder %s21, 1
    %p81 = scmp.ne.s32.totalorder %s76, %s78
    %p82 = scmp.eq.s32.totalorder %s21, 0
    %p83 = por %p81, %p82
    %p84 = scmp.ne.s32.totalorder %s76, %s78
    %p85 = scmp.eq.s32.totalorder %s26, 1
    %p86 = por %p84, %p85
    %p87 = scmp.ne.s32.totalorder %s78, %s79
    %p88 = scmp.eq.s32.totalorder %s26, 0
    %p89 = por %p87, %p88
    %p90 = scmp.ne.s32.totalorder %s78, %s79
    %p91 = scmp.eq.s32.totalorder %s27, 1
    %p92 = por %p90, %p91
    %p94 = scmp.ne.s32.totalorder %s79, %s93
    %p95 = scmp.eq.s32.totalorder %s27, 0
    %p96 = por %p94, %p95
    %s98 = sadd.s32 %s97, 1
    %p101 = scmp.eq.s32.totalorder %s21, 1
    %p102 = scmp.ne.s32.totalorder %s97, %s99
    %p103 = scmp.eq.s32.totalorder %s21, 0
    %p104 = por %p102, %p103
    %p105 = scmp.ne.s32.totalorder %s97, %s99
    %p106 = scmp.eq.s32.totalorder %s26, 1
    %p107 = por %p105, %p106
    %p108 = scmp.ne.s32.totalorder %s99, %s100
    %p109 = scmp.eq.s32.totalorder %s26, 0
    %p110 = por %p108, %p109
    %p111 = scmp.ne.s32.totalorder %s99, %s100
    %p112 = scmp.eq.s32.totalorder %s27, 1
    %p113 = por %p111, %p112
    %p115 = scmp.ne.s32.totalorder %s100, %s114
    %p116 = scmp.eq.s32.totalorder %s27, 0
    %p117 = por %p115, %p116
    %s119 = sadd.s32 %s118, 1
    %p122 = scmp.eq.s32.totalorder %s21, 1
    %p123 = scmp.ne.s32.totalorder %s118, %s120
    %p124 = scmp.eq.s32.totalorder %s21, 0
    %p125 = por %p123, %p124
    %p126 = scmp.ne.s32.totalorder %s118, %s120
    %p127 = scmp.eq.s32.totalorder %s26, 1
    %p128 = por %p126, %p127
    %p129 = scmp.ne.s32.totalorder %s120, %s121
    %p130 = scmp.eq.s32.totalorder %s26, 0
    %p131 = por %p129, %p130
    %p132 = scmp.ne.s32.totalorder %s120, %s121
    %p133 = scmp.eq.s32.totalorder %s27, 1
    %p134 = por %p132, %p133
    %p136 = scmp.ne.s32.totalorder %s121, %s135
    %p137 = scmp.eq.s32.totalorder %s27, 0
    %p138 = por %p136, %p137
    %s140 = sadd.s32 %s139, 1
    %p143 = scmp.eq.s32.totalorder %s21, 1
    %p144 = scmp.ne.s32.totalorder %s139, %s141
    %p145 = scmp.eq.s32.totalorder %s21, 0
    %p146 = por %p144, %p145
    %p147 = scmp.ne.s32.totalorder %s139, %s141
    %p148 = scmp.eq.s32.totalorder %s26, 1
    %p149 = por %p147, %p148
    %p150 = scmp.ne.s32.totalorder %s141, %s142
    %p151 = scmp.eq.s32.totalorder %s26, 0
    %p152 = por %p150, %p151
    %p153 = scmp.ne.s32.totalorder %s141, %s142
    %p154 = scmp.eq.s32.totalorder %s27, 1
    %p155 = por %p153, %p154
    %p157 = scmp.ne.s32.totalorder %s142, %s156
    %p158 = scmp.eq.s32.totalorder %s27, 0
    %p159 = por %p157, %p158
    %s161 = sadd.s32 %s160, 1
    %p164 = scmp.eq.s32.totalorder %s21, 1
    %p165 = scmp.ne.s32.totalorder %s160, %s162
    %p166 = scmp.eq.s32.totalorder %s21, 0
    %p167 = por %p165, %p166
    %p168 = scmp.ne.s32.totalorder %s160, %s162
    %p169 = scmp.eq.s32.totalorder %s26, 1
    %p170 = por %p168, %p169
    %p171 = scmp.ne.s32.totalorder %s162, %s163
    %p172 = scmp.eq.s32.totalorder %s26, 0
    %p173 = por %p171, %p172
    %p174 = scmp.ne.s32.totalorder %s162, %s163
    %p175 = scmp.eq.s32.totalorder %s27, 1
    %p176 = por %p174, %p175
    %p178 = scmp.ne.s32.totalorder %s163, %s177
    %p179 = scmp.eq.s32.totalorder %s27, 0
    %p180 = por %p178, %p179
    %s182 = sadd.s32 %s181, 1
    %p185 = scmp.eq.s32.totalorder %s21, 1
    %p186 = scmp.ne.s32.totalorder %s181, %s183
    %p187 = scmp.eq.s32.totalorder %s21, 0
    %p188 = por %p186, %p187
    %p189 = scmp.ne.s32.totalorder %s181, %s183
    %p190 = scmp.eq.s32.totalorder %s26, 1
    %p191 = por %p189, %p190
    %p192 = scmp.ne.s32.totalorder %s183, %s184
    %p193 = scmp.eq.s32.totalorder %s26, 0
    %p194 = por %p192, %p193
    %p195 = scmp.ne.s32.totalorder %s183, %s184
    %p196 = scmp.eq.s32.totalorder %s27, 1
    %p197 = por %p195, %p196
    %p199 = scmp.ne.s32.totalorder %s184, %s198
    %p200 = scmp.eq.s32.totalorder %s27, 0
    %p201 = por %p199, %p200
    %s203 = sadd.s32 %s202, 1
    %p206 = scmp.eq.s32.totalorder %s21, 1
    %p207 = scmp.ne.s32.totalorder %s202, %s204
    %p208 = scmp.eq.s32.totalorder %s21, 0
    %p209 = por %p207, %p208
    %p210 = scmp.ne.s32.totalorder %s202, %s204
    %p211 = scmp.eq.s32.totalorder %s26, 1
    %p212 = por %p210, %p211
    %p213 = scmp.ne.s32.totalorder %s204, %s205
    %p214 = scmp.eq.s32.totalorder %s26, 0
    %p215 = por %p213, %p214
    %p216 = scmp.ne.s32.totalorder %s204, %s205
    %p217 = scmp.eq.s32.totalorder %s27, 1
    %p218 = por %p216, %p217
    %p220 = scmp.ne.s32.totalorder %s205, %s219
    %p221 = scmp.eq.s32.totalorder %s27, 0
    %p222 = por %p220, %p221
    %s224 = sadd.s32 %s223, 1
    %p227 = scmp.eq.s32.totalorder %s21, 1
    %p228 = scmp.ne.s32.totalorder %s223, %s225
    %p229 = scmp.eq.s32.totalorder %s21, 0
    %p230 = por %p228, %p229
    %p231 = scmp.ne.s32.totalorder %s223, %s225
    %p232 = scmp.eq.s32.totalorder %s26, 1
    %p233 = por %p231, %p232
    %p234 = scmp.ne.s32.totalorder %s225, %s226
    %p235 = scmp.eq.s32.totalorder %s26, 0
    %p236 = por %p234, %p235
    %p237 = scmp.ne.s32.totalorder %s225, %s226
    %p238 = scmp.eq.s32.totalorder %s27, 1
    %p239 = por %p237, %p238
    %p241 = scmp.ne.s32.totalorder %s226, %s240
    %p242 = scmp.eq.s32.totalorder %s27, 0
    %p243 = por %p241, %p242
    %s245 = sadd.s32 %s244, 1
    %p248 = scmp.eq.s32.totalorder %s21, 1
    %p249 = scmp.ne.s32.totalorder %s244, %s246
    %p250 = scmp.eq.s32.totalorder %s21, 0
    %p251 = por %p249, %p250
    %p252 = scmp.ne.s32.totalorder %s244, %s246
    %p253 = scmp.eq.s32.totalorder %s26, 1
    %p254 = por %p252, %p253
    %p255 = scmp.ne.s32.totalorder %s246, %s247
    %p256 = scmp.eq.s32.totalorder %s26, 0
    %p257 = por %p255, %p256
    %p258 = scmp.ne.s32.totalorder %s246, %s247
    %p259 = scmp.eq.s32.totalorder %s27, 1
    %p260 = por %p258, %p259
    %p262 = scmp.ne.s32.totalorder %s247, %s261
    %p263 = scmp.eq.s32.totalorder %s27, 0
    %p264 = por %p262, %p263
    %s265 = ssub.s32 %s21, %s28
    %p266 = scmp.eq.s32.totalorder %s265, 0
    %s268 = sadd.s32 %s267, 1
    %s269 = scalar_select %p266, %s267, %s268
    %p272 = pneg %p266
    %p273 = scmp.eq.s32.totalorder %s21, 1
    %p274 = por %p272, %p273
    %p275 = scmp.ne.s32.totalorder %s267, %s270
    %p276 = scmp.eq.s32.totalorder %s21, 0
    %p277 = por %p275, %p276
    %p278 = scmp.ne.s32.totalorder %s267, %s270
    %p279 = scmp.eq.s32.totalorder %s26, 1
    %p280 = por %p278, %p279
    %p281 = scmp.ne.s32.totalorder %s270, %s271
    %p282 = scmp.eq.s32.totalorder %s26, 0
    %p283 = por %p281, %p282
    %p284 = scmp.ne.s32.totalorder %s270, %s271
    %p285 = scmp.eq.s32.totalorder %s27, 1
    %p286 = por %p284, %p285
    %p288 = scmp.ne.s32.totalorder %s271, %s287
    %p289 = scmp.eq.s32.totalorder %s27, 0
    %p290 = por %p288, %p289
    %s292 = sadd.s32 %s291, 1
    %p295 = scmp.eq.s32.totalorder %s21, 1
    %p296 = scmp.ne.s32.totalorder %s291, %s293
    %p297 = scmp.eq.s32.totalorder %s21, 0
    %p298 = por %p296, %p297
    %p299 = scmp.ne.s32.totalorder %s291, %s293
    %p300 = scmp.eq.s32.totalorder %s26, 1
    %p301 = por %p299, %p300
    %p302 = scmp.ne.s32.totalorder %s293, %s294
    %p303 = scmp.eq.s32.totalorder %s26, 0
    %p304 = por %p302, %p303
    %p305 = scmp.ne.s32.totalorder %s293, %s294
    %p306 = scmp.eq.s32.totalorder %s27, 1
    %p307 = por %p305, %p306
    %p309 = scmp.ne.s32.totalorder %s294, %s308
    %p310 = scmp.eq.s32.totalorder %s27, 0
    %p311 = por %p309, %p310
    %s313 = sadd.s32 %s312, 1
    %p316 = scmp.eq.s32.totalorder %s21, 1
    %p317 = scmp.ne.s32.totalorder %s312, %s314
    %p318 = scmp.eq.s32.totalorder %s21, 0
    %p319 = por %p317, %p318
    %p320 = scmp.ne.s32.totalorder %s312, %s314
    %p321 = scmp.eq.s32.totalorder %s26, 1
    %p322 = por %p320, %p321
    %p323 = scmp.ne.s32.totalorder %s314, %s315
    %p324 = scmp.eq.s32.totalorder %s26, 0
    %p325 = por %p323, %p324
    %p326 = scmp.ne.s32.totalorder %s314, %s315
    %p327 = scmp.eq.s32.totalorder %s27, 1
    %p328 = por %p326, %p327
    %p330 = scmp.ne.s32.totalorder %s315, %s329
    %p331 = scmp.eq.s32.totalorder %s27, 0
    %p332 = por %p330, %p331
    %s334 = sadd.s32 %s333, 1
    %p337 = scmp.eq.s32.totalorder %s21, 1
    %p338 = scmp.ne.s32.totalorder %s333, %s335
    %p339 = scmp.eq.s32.totalorder %s21, 0
    %p340 = por %p338, %p339
    %p341 = scmp.ne.s32.totalorder %s333, %s335
    %p342 = scmp.eq.s32.totalorder %s26, 1
    %p343 = por %p341, %p342
    %p344 = scmp.ne.s32.totalorder %s335, %s336
    %p345 = scmp.eq.s32.totalorder %s26, 0
    %p346 = por %p344, %p345
    %p347 = scmp.ne.s32.totalorder %s335, %s336
    %p348 = scmp.eq.s32.totalorder %s27, 1
    %p349 = por %p347, %p348
    %p351 = scmp.ne.s32.totalorder %s336, %s350
    %p352 = scmp.eq.s32.totalorder %s27, 0
    %p353 = por %p351, %p352
    %s354 = ssub.s32 %s21, %s28
    %p355 = scmp.eq.s32.totalorder %s354, 0
    %s357 = sadd.s32 %s356, 1
    %s358 = scalar_select %p355, %s356, %s357
    %p361 = pneg %p355
    %p362 = scmp.eq.s32.totalorder %s21, 1
    %p363 = por %p361, %p362
    %p364 = scmp.ne.s32.totalorder %s356, %s359
    %p365 = scmp.eq.s32.totalorder %s21, 0
    %p366 = por %p364, %p365
    %p367 = scmp.ne.s32.totalorder %s356, %s359
    %p368 = scmp.eq.s32.totalorder %s26, 1
    %p369 = por %p367, %p368
    %p370 = scmp.ne.s32.totalorder %s359, %s360
    %p371 = scmp.eq.s32.totalorder %s26, 0
    %p372 = por %p370, %p371
    %p373 = scmp.ne.s32.totalorder %s359, %s360
    %p374 = scmp.eq.s32.totalorder %s27, 1
    %p375 = por %p373, %p374
    %p377 = scmp.ne.s32.totalorder %s360, %s376
    %p378 = scmp.eq.s32.totalorder %s27, 0
    %p379 = por %p377, %p378
    %p380 = scmp.le.s32.totalorder 1, %s21
    %p381 = scmp.lt.s32.totalorder %s21, 3
    %p382 = pnand %p380, %p381
    %p383 = pneg %p382
    // Predicated region
    $region9: #{resblk_forward.7} parent=5 // pred_check
      _
    $region10: #{resblk_forward.7} parent=5 // pred_check_branch
      %385 = sbr.rel (%p382) target = $region12
    $region11: #{resblk_forward.7} parent=5 // pred_region
      %s386 = ssub.s32 %s21, 1
      // Predicated region
      $region13: #{resblk_forward.7} parent=11 // pred_check
        %p387 = pneg %p68
      $region14: #{resblk_forward.7} parent=11 // pred_check_branch
        %389 = sbr.rel (%p387) target = $region16
      $region15: #{resblk_forward.7} parent=11 // pred_region
        _
      $region16: #{resblk_forward.7} parent=11 // pred_fallthru
        _
      // Predicated region
      $region17: #{resblk_forward.7} parent=11 // pred_check
        %p390 = pneg %p89
      $region18: #{resblk_forward.7} parent=11 // pred_check_branch
        %392 = sbr.rel (%p390) target = $region20
      $region19: #{resblk_forward.7} parent=11 // pred_region
        _
      $region20: #{resblk_forward.7} parent=11 // pred_fallthru
        _
      // Predicated region
      $region21: #{resblk_forward.7} parent=11 // pred_check
        %p393 = pneg %p110
      $region22: #{resblk_forward.7} parent=11 // pred_check_branch
        %395 = sbr.rel (%p393) target = $region24
      $region23: #{resblk_forward.7} parent=11 // pred_region
        _
      $region24: #{resblk_forward.7} parent=11 // pred_fallthru
        _
      // Predicated region
      $region25: #{resblk_forward.7} parent=11 // pred_check
        %p396 = pneg %p131
      $region26: #{resblk_forward.7} parent=11 // pred_check_branch
        %398 = sbr.rel (%p396) target = $region28
      $region27: #{resblk_forward.7} parent=11 // pred_region
        _
      $region28: #{resblk_forward.7} parent=11 // pred_fallthru
        _
      // Predicated region
      $region29: #{resblk_forward.7} parent=11 // pred_check
        %p399 = pneg %p152
      $region30: #{resblk_forward.7} parent=11 // pred_check_branch
        %401 = sbr.rel (%p399) target = $region32
      $region31: #{resblk_forward.7} parent=11 // pred_region
        _
      $region32: #{resblk_forward.7} parent=11 // pred_fallthru
        _
      // Predicated region
      $region33: #{resblk_forward.7} parent=11 // pred_check
        %p402 = pneg %p173
      $region34: #{resblk_forward.7} parent=11 // pred_check_branch
        %404 = sbr.rel (%p402) target = $region36
      $region35: #{resblk_forward.7} parent=11 // pred_region
        _
      $region36: #{resblk_forward.7} parent=11 // pred_fallthru
        _
      // Predicated region
      $region37: #{resblk_forward.7} parent=11 // pred_check
        %p405 = pneg %p194
      $region38: #{resblk_forward.7} parent=11 // pred_check_branch
        %407 = sbr.rel (%p405) target = $region40
      $region39: #{resblk_forward.7} parent=11 // pred_region
        _
      $region40: #{resblk_forward.7} parent=11 // pred_fallthru
        _
      // Predicated region
      $region41: #{resblk_forward.7} parent=11 // pred_check
        %p408 = pneg %p215
      $region42: #{resblk_forward.7} parent=11 // pred_check_branch
        %410 = sbr.rel (%p408) target = $region44
      $region43: #{resblk_forward.7} parent=11 // pred_region
        _
      $region44: #{resblk_forward.7} parent=11 // pred_fallthru
        _
      // Predicated region
      $region45: #{resblk_forward.7} parent=11 // pred_check
        %p411 = pneg %p236
      $region46: #{resblk_forward.7} parent=11 // pred_check_branch
        %413 = sbr.rel (%p411) target = $region48
      $region47: #{resblk_forward.7} parent=11 // pred_region
        _
      $region48: #{resblk_forward.7} parent=11 // pred_fallthru
        _
      // Predicated region
      $region49: #{resblk_forward.7} parent=11 // pred_check
        %p414 = pneg %p257
      $region50: #{resblk_forward.7} parent=11 // pred_check_branch
        %416 = sbr.rel (%p414) target = $region52
      $region51: #{resblk_forward.7} parent=11 // pred_region
        _
      $region52: #{resblk_forward.7} parent=11 // pred_fallthru
        _
      // Predicated region
      $region53: #{resblk_forward.7} parent=11 // pred_check
        %p417 = pneg %p304
      $region54: #{resblk_forward.7} parent=11 // pred_check_branch
        %419 = sbr.rel (%p417) target = $region56
      $region55: #{resblk_forward.7} parent=11 // pred_region
        _
      $region56: #{resblk_forward.7} parent=11 // pred_fallthru
        _
      // Predicated region
      $region57: #{resblk_forward.7} parent=11 // pred_check
        %p420 = pneg %p325
      $region58: #{resblk_forward.7} parent=11 // pred_check_branch
        %422 = sbr.rel (%p420) target = $region60
      $region59: #{resblk_forward.7} parent=11 // pred_region
        _
      $region60: #{resblk_forward.7} parent=11 // pred_fallthru
        _
      // Predicated region
      $region61: #{resblk_forward.7} parent=11 // pred_check
        %p423 = pneg %p346
      $region62: #{resblk_forward.7} parent=11 // pred_check_branch
        %425 = sbr.rel (%p423) target = $region64
      $region63: #{resblk_forward.7} parent=11 // pred_region
        _
      $region64: #{resblk_forward.7} parent=11 // pred_fallthru
        _
    $region12: #{resblk_forward.7} parent=5 // pred_fallthru
      _
    %p426 = scmp.lt.s32.totalorder %s21, 2
    // Predicated region
    $region65: #{resblk_forward.7} parent=5 // pred_check
      %p427 = pneg %p426
    $region66: #{resblk_forward.7} parent=5 // pred_check_branch
      %429 = sbr.rel (%p427) target = $region68
    $region67: #{resblk_forward.7} parent=5 // pred_region
      // Predicated region
      $region69: #{resblk_forward.7} parent=67 // pred_check
        %p430 = pneg %p41
      $region70: #{resblk_forward.7} parent=67 // pred_check_branch
        %432 = sbr.rel (%p430) target = $region72
      $region71: #{resblk_forward.7} parent=67 // pred_region
        %p433 = scmp.lt.s32.totalorder %s21, 1
        %s434 = scalar_select %p433, %s21, 1
        %s435 = smul.addr %s434, 32
        %s436 = smul.addr %s435, 8
        %s437 = scalar_lea.vmem %s0, %s436
      $region72: #{resblk_forward.7} parent=67 // pred_fallthru
        _
      // Predicated region
      $region73: #{resblk_forward.7} parent=67 // pred_check
        %p438 = pneg %p277
      $region74: #{resblk_forward.7} parent=67 // pred_check_branch
        %440 = sbr.rel (%p438) target = $region76
      $region75: #{resblk_forward.7} parent=67 // pred_region
        %p441 = scmp.lt.s32.totalorder %s21, 1
        %s442 = scalar_select %p441, %s21, 1
        %s443 = smul.addr %s442, 32
        %s444 = smul.addr %s443, 8
        %s445 = scalar_lea.vmem %s11, %s444
      $region76: #{resblk_forward.7} parent=67 // pred_fallthru
        _
    $region68: #{resblk_forward.7} parent=5 // pred_fallthru
      _
    %p446 = scmp.le.s32.totalorder 1, %s21
    %p447 = scmp.lt.s32.totalorder %s21, 3
    %p448 = pnand %p446, %p447
    %p449 = pneg %p448
    // Predicated region
    $region77: #{resblk_forward.7} parent=5 // pred_check
      _
    $region78: #{resblk_forward.7} parent=5 // pred_check_branch
      %451 = sbr.rel (%p448) target = $region80
    $region79: #{resblk_forward.7} parent=5 // pred_region
      %s452 = ssub.s32 %s21, 1
      %p453 = scmp.lt.s32.totalorder %s26, 1
      %s454 = scalar_select %p453, %s26, 1
      %s455 = smul.addr %s454, 32
      %s456 = smul.addr %s455, 8
      %s457 = scalar_lea.vmem %s0, %s456
      %p458 = pneg %p47
      %p459 = pneg %p44
      %p460 = pneg %p68
      %p461 = pneg %p65
      %p462 = pneg %p89
      %p463 = pneg %p86
      %p464 = pneg %p110
      %p465 = pneg %p107
      %p466 = pneg %p131
      %p467 = pneg %p128
      %p468 = pneg %p152
      %p469 = pneg %p149
      %p470 = pneg %p173
      %p471 = pneg %p170
      %p472 = pneg %p194
      %p473 = pneg %p191
      %p474 = pneg %p215
      %p475 = pneg %p212
      %p476 = pneg %p236
      %p477 = pneg %p233
      %p478 = pneg %p257
      %p479 = pneg %p254
      %p480 = scmp.lt.s32.totalorder %s26, 1
      %s481 = scalar_select %p480, %s26, 1
      %s482 = smul.addr %s481, 32
      %s483 = smul.addr %s482, 8
      %s484 = scalar_lea.vmem %s11, %s483
      %p485 = pneg %p283
      %p486 = pneg %p280
      %p487 = pneg %p304
      %p488 = pneg %p301
      %p489 = pneg %p325
      %p490 = pneg %p322
      %p491 = pneg %p346
      %p492 = pneg %p343
      %p493 = pneg %p372
      %p494 = pneg %p369
      %p495 = scmp.lt.s32.totalorder %s26, 1
      %s496 = scalar_select %p495, %s26, 1
      %s497 = smul.addr %s496, 32
      %s498 = smul.addr %s497, 8
      %s499 = scalar_lea.vmem %s15, %s498
      %p500 = scmp.lt.s32.totalorder %s26, 1
      %s501 = scalar_select %p500, %s26, 1
      %s502 = smul.addr %s501, 32
      %s503 = smul.addr %s502, 8
      %s504 = scalar_lea.vmem %s0, %s503
      %p505 = scmp.lt.s32.totalorder %s26, 1
      %s506 = scalar_select %p505, %s26, 1
      %s507 = smul.addr %s506, 32
      %s508 = smul.addr %s507, 8
      %s509 = scalar_lea.vmem %s11, %s508
      %p510 = scmp.lt.s32.totalorder %s26, 1
      %s511 = scalar_select %p510, %s26, 1
      %s512 = smul.addr %s511, 32
      %s513 = smul.addr %s512, 8
      %s514 = scalar_lea.vmem %s15, %s513
      %v516 = vld [vmem:[%s1] sm:$0x3]
      %v517 = vld [vmem:[%s1 + $0x2] sm:$0x3]
      %v518 = vld [vmem:[%s2] sm:$0x1]
      %v519 = vld [vmem:[%s3] sm:$0x1]
      %vm520 = vcmask 58368
      %v521 = vsel %vm520, %v516, 0.0
      %v522 = vsel %vm520, %v517, 0.0
      %v523 = vadd.f32 %v521, %v522
      %v524 = vmul.f32 %v523, 0.001953125
      %v525 = vmul.f32 %v524, %v524
      %v527 = vrot.slane %v525, 7
      %v529 = vsub.f32 %v524, %v527
      %v530 = vmax.f32 %v529, 0.0
      %v531 = vadd.f32 %v530, 1e-05
      %v532 = vrsqrt.pop %v531
      %v535 = vunpack.c.l.s4 1966171168
      %v536 = vunpack.c.0.s8 %v535
      %v537 = vlaneseq
      %v538 = vshrl.u32 %v537, 7
      %v539 = vsub.s32 %v536, %v538
      %v540 = vrot.slane %v532, %v539
      %v541 = vcombine.high %v540, %v540
      %v543 = vunpack.c.l.s4 1966171168
      %v544 = vunpack.c.0.s8 %v543
      %v545 = vlaneseq
      %v546 = vshrl.u32 %v545, 7
      %v547 = vsub.s32 %v544, %v546
      %v548 = vrot.slane %v541, %v547
      %v550 = vmul.f32 %v518, %v548
      %v551 = vmul.f32 %v524, %v550
      %v552 = vsub.f32 %v519, %v551
      %v553 = vld [vmem:[%s4] sm:$0x3]
      %v554 = vld [vmem:[%s4 + $0x2] sm:$0x3]
      %v555 = vld [vmem:[%s5] sm:$0x1]
      %v556 = vld [vmem:[%s6] sm:$0x1]
      %v557 = vsel %vm520, %v553, 0.0
      %v558 = vsel %vm520, %v554, 0.0
      %v559 = vadd.f32 %v557, %v558
      %v560 = vmul.f32 %v559, 0.001953125
      %v561 = vmul.f32 %v560, %v560
      %v563 = vrot.slane %v561, 7
      %v565 = vsub.f32 %v560, %v563
      %v566 = vmax.f32 %v565, 0.0
      %v567 = vadd.f32 %v566, 1e-05
      %v568 = vrsqrt.pop %v567
      %v571 = vunpack.c.l.s4 1966171168
      %v572 = vunpack.c.0.s8 %v571
      %v573 = vlaneseq
      %v574 = vshrl.u32 %v573, 7
      %v575 = vsub.s32 %v572, %v574
      %v576 = vrot.slane %v568, %v575
      %v577 = vcombine.high %v576, %v576
      %v579 = vunpack.c.l.s4 1966171168
      %v580 = vunpack.c.0.s8 %v579
      %v581 = vlaneseq
      %v582 = vshrl.u32 %v581, 7
      %v583 = vsub.s32 %v580, %v582
      %v584 = vrot.slane %v577, %v583
      %v586 = vmul.f32 %v555, %v584
      %v587 = vmul.f32 %v560, %v586
      %v588 = vsub.f32 %v556, %v587
      %v589 = vld [vmem:[%s12] sm:$0x3]
      %v590 = vld [vmem:[%s12 + $0x2] sm:$0x3]
      %v591 = vld [vmem:[%s13] sm:$0x1]
      %v592 = vld [vmem:[%s14] sm:$0x1]
      %v593 = vsel %vm520, %v589, 0.0
      %v594 = vsel %vm520, %v590, 0.0
      %v595 = vadd.f32 %v593, %v594
      %v596 = vmul.f32 %v595, 0.001953125
      %v597 = vmul.f32 %v596, %v596
      %v599 = vrot.slane %v597, 7
      %v601 = vsub.f32 %v596, %v599
      %v602 = vmax.f32 %v601, 0.0
      %v603 = vadd.f32 %v602, 1e-05
      %v604 = vrsqrt.pop %v603
      %v607 = vunpack.c.l.s4 1966171168
      %v608 = vunpack.c.0.s8 %v607
      %v609 = vlaneseq
      %v610 = vshrl.u32 %v609, 7
      %v611 = vsub.s32 %v608, %v610
      %v612 = vrot.slane %v604, %v611
      %v613 = vcombine.high %v612, %v612
      %v615 = vunpack.c.l.s4 1966171168
      %v616 = vunpack.c.0.s8 %v615
      %v617 = vlaneseq
      %v618 = vshrl.u32 %v617, 7
      %v619 = vsub.s32 %v616, %v618
      %v620 = vrot.slane %v613, %v619
      %v622 = vmul.f32 %v591, %v620
      %v623 = vmul.f32 %v596, %v622
      %v624 = vsub.f32 %v592, %v623
      %v625 = vld [vmem:[%s504] sm:$0xff]
      %v626 = vld [vmem:[%s504 + $0x8] sm:$0xff]
      %v627 = vld [vmem:[%s504 + $0x10] sm:$0xff]
      %v628 = vld [vmem:[%s504 + $0x18] sm:$0xff]
      %v629 = vld [vmem:[%s504 + $0x20] sm:$0xff]
      %v630 = vld [vmem:[%s504 + $0x28] sm:$0xff]
      %v631 = vld [vmem:[%s504 + $0x30] sm:$0xff]
      %v632 = vld [vmem:[%s504 + $0x38] sm:$0xff]
      %v633 = vld [vmem:[%s504 + $0x40] sm:$0xff]
      %v634 = vld [vmem:[%s504 + $0x48] sm:$0xff]
      %v635 = vld [vmem:[%s504 + $0x50] sm:$0xff]
      %v636 = vld [vmem:[%s504 + $0x58] sm:$0xff]
      %v637 = vld [vmem:[%s504 + $0x60] sm:$0xff]
      %v638 = vld [vmem:[%s504 + $0x68] sm:$0xff]
      %v639 = vld [vmem:[%s504 + $0x70] sm:$0xff]
      %v640 = vld [vmem:[%s504 + $0x78] sm:$0xff]
      %v641 = vld [vmem:[%s504 + $0x80] sm:$0xff]
      %v642 = vld [vmem:[%s504 + $0x88] sm:$0xff]
      %v643 = vld [vmem:[%s504 + $0x90] sm:$0xff]
      %v644 = vld [vmem:[%s504 + $0x98] sm:$0xff]
      %v645 = vld [vmem:[%s504 + $0xa0] sm:$0xff]
      %v646 = vld [vmem:[%s504 + $0xa8] sm:$0xff]
      %v647 = vld [vmem:[%s504 + $0xb0] sm:$0xff]
      %v648 = vld [vmem:[%s504 + $0xb8] sm:$0xff]
      %v649 = vld [vmem:[%s504 + $0xc0] sm:$0xff]
      %v650 = vld [vmem:[%s504 + $0xc8] sm:$0xff]
      %v651 = vld [vmem:[%s504 + $0xd0] sm:$0xff]
      %v652 = vld [vmem:[%s504 + $0xd8] sm:$0xff]
      %v653 = vld [vmem:[%s504 + $0xe0] sm:$0xff]
      %v654 = vld [vmem:[%s504 + $0xe8] sm:$0xff]
      %v655 = vld [vmem:[%s504 + $0xf0] sm:$0xff]
      %v656 = vld [vmem:[%s504 + $0xf8] sm:$0xff]
      %v658 = vlaneseq
      %v659 = vshrl.u32 %v658, 7
      %v660 = vsub.s32 0, %v659
      %v661 = vrot.slane %v550, %v660
      %v663 = vmul.f32 %v625, %v661
      %v664 = vmul.f32 %v626, %v661
      %v665 = vmul.f32 %v627, %v661
      %v666 = vmul.f32 %v628, %v661
      %v667 = vmul.f32 %v629, %v661
      %v668 = vmul.f32 %v630, %v661
      %v669 = vmul.f32 %v631, %v661
      %v670 = vmul.f32 %v632, %v661
      %v671 = vmul.f32 %v633, %v661
      %v672 = vmul.f32 %v634, %v661
      %v673 = vmul.f32 %v635, %v661
      %v674 = vmul.f32 %v636, %v661
      %v675 = vmul.f32 %v637, %v661
      %v676 = vmul.f32 %v638, %v661
      %v677 = vmul.f32 %v639, %v661
      %v678 = vmul.f32 %v640, %v661
      %v679 = vmul.f32 %v641, %v661
      %v680 = vmul.f32 %v642, %v661
      %v681 = vmul.f32 %v643, %v661
      %v682 = vmul.f32 %v644, %v661
      %v683 = vmul.f32 %v645, %v661
      %v684 = vmul.f32 %v646, %v661
      %v685 = vmul.f32 %v647, %v661
      %v686 = vmul.f32 %v648, %v661
      %v687 = vmul.f32 %v649, %v661
      %v688 = vmul.f32 %v650, %v661
      %v689 = vmul.f32 %v651, %v661
      %v690 = vmul.f32 %v652, %v661
      %v691 = vmul.f32 %v653, %v661
      %v692 = vmul.f32 %v654, %v661
      %v693 = vmul.f32 %v655, %v661
      %v694 = vmul.f32 %v656, %v661
      %v696 = vlaneseq
      %v697 = vshrl.u32 %v696, 7
      %v698 = vsub.s32 0, %v697
      %v699 = vrot.slane %v552, %v698
      %v701 = vadd.f32 %v663, %v699
      %v702 = vadd.f32 %v664, %v699
      %v703 = vadd.f32 %v665, %v699
      %v704 = vadd.f32 %v666, %v699
      %v705 = vadd.f32 %v667, %v699
      %v706 = vadd.f32 %v668, %v699
      %v707 = vadd.f32 %v669, %v699
      %v708 = vadd.f32 %v670, %v699
      %v709 = vadd.f32 %v671, %v699
      %v710 = vadd.f32 %v672, %v699
      %v711 = vadd.f32 %v673, %v699
      %v712 = vadd.f32 %v674, %v699
      %v713 = vadd.f32 %v675, %v699
      %v714 = vadd.f32 %v676, %v699
      %v715 = vadd.f32 %v677, %v699
      %v716 = vadd.f32 %v678, %v699
      %v717 = vadd.f32 %v679, %v699
      %v718 = vadd.f32 %v680, %v699
      %v719 = vadd.f32 %v681, %v699
      %v720 = vadd.f32 %v682, %v699
      %v721 = vadd.f32 %v683, %v699
      %v722 = vadd.f32 %v684, %v699
      %v723 = vadd.f32 %v685, %v699
      %v724 = vadd.f32 %v686, %v699
      %v725 = vadd.f32 %v687, %v699
      %v726 = vadd.f32 %v688, %v699
      %v727 = vadd.f32 %v689, %v699
      %v728 = vadd.f32 %v690, %v699
      %v729 = vadd.f32 %v691, %v699
      %v730 = vadd.f32 %v692, %v699
      %v731 = vadd.f32 %v693, %v699
      %v732 = vadd.f32 %v694, %v699
      %v733 = vmax.f32 %v701, 0.0
      %v734 = vmax.f32 %v702, 0.0
      %v735 = vmax.f32 %v703, 0.0
      %v736 = vmax.f32 %v704, 0.0
      %v737 = vmax.f32 %v705, 0.0
      %v738 = vmax.f32 %v706, 0.0
      %v739 = vmax.f32 %v707, 0.0
      %v740 = vmax.f32 %v708, 0.0
      %v741 = vmax.f32 %v709, 0.0
      %v742 = vmax.f32 %v710, 0.0
      %v743 = vmax.f32 %v711, 0.0
      %v744 = vmax.f32 %v712, 0.0
      %v745 = vmax.f32 %v713, 0.0
      %v746 = vmax.f32 %v714, 0.0
      %v747 = vmax.f32 %v715, 0.0
      %v748 = vmax.f32 %v716, 0.0
      %v749 = vmax.f32 %v717, 0.0
      %v750 = vmax.f32 %v718, 0.0
      %v751 = vmax.f32 %v719, 0.0
      %v752 = vmax.f32 %v720, 0.0
      %v753 = vmax.f32 %v721, 0.0
      %v754 = vmax.f32 %v722, 0.0
      %v755 = vmax.f32 %v723, 0.0
      %v756 = vmax.f32 %v724, 0.0
      %v757 = vmax.f32 %v725, 0.0
      %v758 = vmax.f32 %v726, 0.0
      %v759 = vmax.f32 %v727, 0.0
      %v760 = vmax.f32 %v728, 0.0
      %v761 = vmax.f32 %v729, 0.0
      %v762 = vmax.f32 %v730, 0.0
      %v763 = vmax.f32 %v731, 0.0
      %v764 = vmax.f32 %v732, 0.0
      %v766 = vlaneseq
      %v767 = vshrl.u32 %v766, 7
      %v768 = vsub.s32 0, %v767
      %v769 = vrot.slane %v586, %v768
      %v771 = vmul.f32 %v733, %v769
      %v772 = vmul.f32 %v734, %v769
      %v773 = vmul.f32 %v735, %v769
      %v774 = vmul.f32 %v736, %v769
      %v775 = vmul.f32 %v737, %v769
      %v776 = vmul.f32 %v738, %v769
      %v777 = vmul.f32 %v739, %v769
      %v778 = vmul.f32 %v740, %v769
      %v779 = vmul.f32 %v741, %v769
      %v780 = vmul.f32 %v742, %v769
      %v781 = vmul.f32 %v743, %v769
      %v782 = vmul.f32 %v744, %v769
      %v783 = vmul.f32 %v745, %v769
      %v784 = vmul.f32 %v746, %v769
      %v785 = vmul.f32 %v747, %v769
      %v786 = vmul.f32 %v748, %v769
      %v787 = vmul.f32 %v749, %v769
      %v788 = vmul.f32 %v750, %v769
      %v789 = vmul.f32 %v751, %v769
      %v790 = vmul.f32 %v752, %v769
      %v791 = vmul.f32 %v753, %v769
      %v792 = vmul.f32 %v754, %v769
      %v793 = vmul.f32 %v755, %v769
      %v794 = vmul.f32 %v756, %v769
      %v795 = vmul.f32 %v757, %v769
      %v796 = vmul.f32 %v758, %v769
      %v797 = vmul.f32 %v759, %v769
      %v798 = vmul.f32 %v760, %v769
      %v799 = vmul.f32 %v761, %v769
      %v800 = vmul.f32 %v762, %v769
      %v801 = vmul.f32 %v763, %v769
      %v802 = vmul.f32 %v764, %v769
      %v804 = vlaneseq
      %v805 = vshrl.u32 %v804, 7
      %v806 = vsub.s32 0, %v805
      %v807 = vrot.slane %v588, %v806
      %v809 = vadd.f32 %v771, %v807
      %v810 = vadd.f32 %v772, %v807
      %v811 = vadd.f32 %v773, %v807
      %v812 = vadd.f32 %v774, %v807
      %v813 = vadd.f32 %v775, %v807
      %v814 = vadd.f32 %v776, %v807
      %v815 = vadd.f32 %v777, %v807
      %v816 = vadd.f32 %v778, %v807
      %v817 = vadd.f32 %v779, %v807
      %v818 = vadd.f32 %v780, %v807
      %v819 = vadd.f32 %v781, %v807
      %v820 = vadd.f32 %v782, %v807
      %v821 = vadd.f32 %v783, %v807
      %v822 = vadd.f32 %v784, %v807
      %v823 = vadd.f32 %v785, %v807
      %v824 = vadd.f32 %v786, %v807
      %v825 = vadd.f32 %v787, %v807
      %v826 = vadd.f32 %v788, %v807
      %v827 = vadd.f32 %v789, %v807
      %v828 = vadd.f32 %v790, %v807
      %v829 = vadd.f32 %v791, %v807
      %v830 = vadd.f32 %v792, %v807
      %v831 = vadd.f32 %v793, %v807
      %v832 = vadd.f32 %v794, %v807
      %v833 = vadd.f32 %v795, %v807
      %v834 = vadd.f32 %v796, %v807
      %v835 = vadd.f32 %v797, %v807
      %v836 = vadd.f32 %v798, %v807
      %v837 = vadd.f32 %v799, %v807
      %v838 = vadd.f32 %v800, %v807
      %v839 = vadd.f32 %v801, %v807
      %v840 = vadd.f32 %v802, %v807
      %v841 = vpack.c.bf16 %v810, %v809
      %v842 = vpack.c.bf16 %v812, %v811
      %v843 = vpack.c.bf16 %v814, %v813
      %v844 = vpack.c.bf16 %v816, %v815
      %v845 = vpack.c.bf16 %v818, %v817
      %v846 = vpack.c.bf16 %v820, %v819
      %v847 = vpack.c.bf16 %v822, %v821
      %v848 = vpack.c.bf16 %v824, %v823
      %v849 = vpack.c.bf16 %v826, %v825
      %v850 = vpack.c.bf16 %v828, %v827
      %v851 = vpack.c.bf16 %v830, %v829
      %v852 = vpack.c.bf16 %v832, %v831
      %v853 = vpack.c.bf16 %v834, %v833
      %v854 = vpack.c.bf16 %v836, %v835
      %v855 = vpack.c.bf16 %v838, %v837
      %v856 = vpack.c.bf16 %v840, %v839
      %v857 = vld [vmem:[%s7] sm:$0xf]
      %v858 = vld [vmem:[%s8] sm:$0x1]
      %v860 = vlaneseq
      %v861 = vshrl.u32 %v860, 7
      %v862 = vsub.s32 0, %v861
      %v863 = vrot.slane %v858, %v862
      %vm865 = vcmask 64512
      %v867 = vsel %vm865, %v841, 0
      %v870 = vsel %vm865, %v842, 0
      %v873 = vsel %vm865, %v843, 0
      %v876 = vsel %vm865, %v844, 0
      %v879 = vsel %vm865, %v845, 0
      %v882 = vsel %vm865, %v846, 0
      %v885 = vsel %vm865, %v847, 0
      %v888 = vsel %vm865, %v848, 0
      %v891 = vsel %vm865, %v849, 0
      %v894 = vsel %vm865, %v850, 0
      %v897 = vsel %vm865, %v851, 0
      %v900 = vsel %vm865, %v852, 0
      %v903 = vsel %vm865, %v853, 0
      %v906 = vsel %vm865, %v854, 0
      %v909 = vsel %vm865, %v855, 0
      %v912 = vsel %vm865, %v856, 0
      %vm914 = vcmask 1043456
      %v916 = vsel %vm914, %v857, 0
      %918 = vmatprep.subr.bf16.mxu0 0
      %919 = vmatpush1.bf16.msra.mxu0 %v916
      %920 = vmatprep.subr.bf16.mxu0 0
      %921 = vmatpush1.bf16.msra.mxu0 0
      %922 = vmatprep.subr.bf16.mxu0 0
      %923 = vmatpush1.bf16.msra.mxu0 0
      %924 = vmatprep.subr.bf16.mxu0 0
      %925 = vmatpush1.bf16.msra.mxu0 0
      %926 = vmatprep.subr.bf16.mxu0 0
      %927 = vmatpush1.bf16.msra.mxu0 0
      %928 = vmatprep.subr.bf16.mxu0 0
      %929 = vmatpush1.bf16.msra.mxu0 0
      %930 = vmatprep.subr.bf16.mxu0 0
      %931 = vmatpush1.bf16.msra.mxu0 0
      %932 = vmatprep.subr.bf16.mxu0 0
      %933 = vmatpush1.bf16.msra.mxu0 0
      %934 = vmatprep.subr.bf16.mxu0 0
      %935 = vmatpush1.bf16.msra.mxu0 0
      %936 = vmatprep.subr.bf16.mxu0 0
      %937 = vmatpush1.bf16.msra.mxu0 0
      %938 = vmatprep.subr.bf16.mxu0 0
      %939 = vmatpush1.bf16.msra.mxu0 0
      %940 = vmatprep.subr.bf16.mxu0 0
      %941 = vmatpush1.bf16.msra.mxu0 0
      %942 = vmatprep.subr.bf16.mxu0 0
      %943 = vmatpush1.bf16.msra.mxu0 0
      %944 = vmatprep.subr.bf16.mxu0 0
      %945 = vmatpush1.bf16.msra.mxu0 0
      %946 = vmatprep.subr.bf16.mxu0 0
      %947 = vmatpush1.bf16.msra.mxu0 0
      %948 = vmatprep.subr.bf16.mxu0 0
      %949 = vmatpush1.bf16.msra.mxu0 0
      %950 = vmatprep.mubr.bf16.mxu0 0
      %951 = vmatmul.mubr.bf16.gmra.mrb[0].mxu0 %v867
      %v952 = vpop.f32.mrb[0].mxu0
      %v953 = vadd.f32 %v863, %v952
      %v954 = vpop.f32.mrb[0].mxu0
      %v955 = vpop.f32.mrb[0].mxu0
      %v956 = vadd.f32 %v863, %v955
      %v957 = vpop.f32.mrb[0].mxu0
      %958 = vmatprep.mubr.bf16.mxu0 0
      %959 = vmatmul.mubr.bf16.gmra.mrb[0].mxu0 %v870
      %v960 = vpop.f32.mrb[0].mxu0
      %v961 = vadd.f32 %v863, %v960
      %v962 = vpop.f32.mrb[0].mxu0
      %v963 = vpop.f32.mrb[0].mxu0
      %v964 = vadd.f32 %v863, %v963
      %v965 = vpop.f32.mrb[0].mxu0
      %966 = vmatprep.mubr.bf16.mxu0 0
      %967 = vmatmul.mubr.bf16.gmra.mrb[0].mxu0 %v873
      %v968 = vpop.f32.mrb[0].mxu0
      %v969 = vadd.f32 %v863, %v968
      %v970 = vpop.f32.mrb[0].mxu0
      %v971 = vpop.f32.mrb[0].mxu0
      %v972 = vadd.f32 %v863, %v971
      %v973 = vpop.f32.mrb[0].mxu0
      %974 = vmatprep.mubr.bf16.mxu0 0
      %975 = vmatmul.mubr.bf16.gmra.mrb[0].mxu0 %v876
      %v976 = vpop.f32.mrb[0].mxu0
      %v977 = vadd.f32 %v863, %v976
      %v978 = vpop.f32.mrb[0].mxu0
      %v979 = vpop.f32.mrb[0].mxu0
      %v980 = vadd.f32 %v863, %v979
      %v981 = vpop.f32.mrb[0].mxu0
      %982 = vmatprep.mubr.bf16.mxu0 0
      %983 = vmatmul.mubr.bf16.gmra.mrb[0].mxu0 %v879
      %v984 = vpop.f32.mrb[0].mxu0
      %v985 = vadd.f32 %v863, %v984
      %v986 = vpop.f32.mrb[0].mxu0
      %v987 = vpop.f32.mrb[0].mxu0
      %v988 = vadd.f32 %v863, %v987
      %v989 = vpop.f32.mrb[0].mxu0
      %990 = vmatprep.mubr.bf16.mxu0 0
      %991 = vmatmul.mubr.bf16.gmra.mrb[0].mxu0 %v882
      %v992 = vpop.f32.mrb[0].mxu0
      %v993 = vadd.f32 %v863, %v992
      %v994 = vpop.f32.mrb[0].mxu0
      %v995 = vpop.f32.mrb[0].mxu0
      %v996 = vadd.f32 %v863, %v995
      %v997 = vpop.f32.mrb[0].mxu0
      %998 = vmatprep.mubr.bf16.mxu0 0
      %999 = vmatmul.mubr.bf16.gmra.mrb[0].mxu0 %v885
      %v1000 = vpop.f32.mrb[0].mxu0
      %v1001 = vadd.f32 %v863, %v1000
      %v1002 = vpop.f32.mrb[0].mxu0
      %v1003 = vpop.f32.mrb[0].mxu0
      %v1004 = vadd.f32 %v863, %v1003
      %v1005 = vpop.f32.mrb[0].mxu0
      %1006 = vmatprep.mubr.bf16.mxu0 0
      %1007 = vmatmul.mubr.bf16.gmra.mrb[0].mxu0 %v888
      %v1008 = vpop.f32.mrb[0].mxu0
      %v1009 = vadd.f32 %v863, %v1008
      %v1010 = vpop.f32.mrb[0].mxu0
      %v1011 = vpop.f32.mrb[0].mxu0
      %v1012 = vadd.f32 %v863, %v1011
      %v1013 = vpop.f32.mrb[0].mxu0
      %1014 = vmatprep.mubr.bf16.mxu0 0
      %1015 = vmatmul.mubr.bf16.gmra.mrb[0].mxu0 %v891
      %v1016 = vpop.f32.mrb[0].mxu0
      %v1017 = vadd.f32 %v863, %v1016
      %v1018 = vpop.f32.mrb[0].mxu0
      %v1019 = vpop.f32.mrb[0].mxu0
      %v1020 = vadd.f32 %v863, %v1019
      %v1021 = vpop.f32.mrb[0].mxu0
      %1022 = vmatprep.mubr.bf16.mxu0 0
      %1023 = vmatmul.mubr.bf16.gmra.mrb[0].mxu0 %v894
      %v1024 = vpop.f32.mrb[0].mxu0
      %v1025 = vadd.f32 %v863, %v1024
      %v1026 = vpop.f32.mrb[0].mxu0
      %v1027 = vpop.f32.mrb[0].mxu0
      %v1028 = vadd.f32 %v863, %v1027
      %v1029 = vpop.f32.mrb[0].mxu0
      %1030 = vmatprep.mubr.bf16.mxu0 0
      %1031 = vmatmul.mubr.bf16.gmra.mrb[0].mxu0 %v897
      %v1032 = vpop.f32.mrb[0].mxu0
      %v1033 = vadd.f32 %v863, %v1032
      %v1034 = vpop.f32.mrb[0].mxu0
      %v1035 = vpop.f32.mrb[0].mxu0
      %v1036 = vadd.f32 %v863, %v1035
      %v1037 = vpop.f32.mrb[0].mxu0
      %1038 = vmatprep.mubr.bf16.mxu0 0
      %1039 = vmatmul.mubr.bf16.gmra.mrb[0].mxu0 %v900
      %v1040 = vpop.f32.mrb[0].mxu0
      %v1041 = vadd.f32 %v863, %v1040
      %v1042 = vpop.f32.mrb[0].mxu0
      %v1043 = vpop.f32.mrb[0].mxu0
      %v1044 = vadd.f32 %v863, %v1043
      %v1045 = vpop.f32.mrb[0].mxu0
      %1046 = vmatprep.mubr.bf16.mxu0 0
      %1047 = vmatmul.mubr.bf16.gmra.mrb[0].mxu0 %v903
      %v1048 = vpop.f32.mrb[0].mxu0
      %v1049 = vadd.f32 %v863, %v1048
      %v1050 = vpop.f32.mrb[0].mxu0
      %v1051 = vpop.f32.mrb[0].mxu0
      %v1052 = vadd.f32 %v863, %v1051
      %v1053 = vpop.f32.mrb[0].mxu0
      %1054 = vmatprep.mubr.bf16.mxu0 0
      %1055 = vmatmul.mubr.bf16.gmra.mrb[0].mxu0 %v906
      %v1056 = vpop.f32.mrb[0].mxu0
      %v1057 = vadd.f32 %v863, %v1056
      %v1058 = vpop.f32.mrb[0].mxu0
      %v1059 = vpop.f32.mrb[0].mxu0
      %v1060 = vadd.f32 %v863, %v1059
      %v1061 = vpop.f32.mrb[0].mxu0
      %1062 = vmatprep.mubr.bf16.mxu0 0
      %1063 = vmatmul.mubr.bf16.gmra.mrb[0].mxu0 %v909
      %v1064 = vpop.f32.mrb[0].mxu0
      %v1065 = vadd.f32 %v863, %v1064
      %v1066 = vpop.f32.mrb[0].mxu0
      %v1067 = vpop.f32.mrb[0].mxu0
      %v1068 = vadd.f32 %v863, %v1067
      %v1069 = vpop.f32.mrb[0].mxu0
      %1070 = vmatprep.mubr.bf16.mxu0 0
      %1071 = vmatmul.mubr.bf16.gmra.mrb[0].mxu0 %v912
      %v1072 = vpop.f32.mrb[0].mxu0
      %v1073 = vadd.f32 %v863, %v1072
      %v1074 = vpop.f32.mrb[0].mxu0
      %v1075 = vpop.f32.mrb[0].mxu0
      %v1076 = vadd.f32 %v863, %v1075
      %v1077 = vpop.f32.mrb[0].mxu0
      %1078 = vdwg.mxu0
      %v1079 = vpack.c.bf16 %v956, %v953
      %v1080 = vpack.c.bf16 %v964, %v961
      %v1081 = vpack.c.bf16 %v972, %v969
      %v1082 = vpack.c.bf16 %v980, %v977
      %v1083 = vpack.c.bf16 %v988, %v985
      %v1084 = vpack.c.bf16 %v996, %v993
      %v1085 = vpack.c.bf16 %v1004, %v1001
      %v1086 = vpack.c.bf16 %v1012, %v1009
      %v1087 = vpack.c.bf16 %v1020, %v1017
      %v1088 = vpack.c.bf16 %v1028, %v1025
      %v1089 = vpack.c.bf16 %v1036, %v1033
      %v1090 = vpack.c.bf16 %v1044, %v1041
      %v1091 = vpack.c.bf16 %v1052, %v1049
      %v1092 = vpack.c.bf16 %v1060, %v1057
      %v1093 = vpack.c.bf16 %v1068, %v1065
      %v1094 = vpack.c.bf16 %v1076, %v1073
      %1111 = vrot.lane.b32.xlu0 %v1079, 120
      %v1112 = vpop.permute.xlu0 %1111
      %1113 = vrot.lane.b32.xlu0 %v1080, 120
      %v1114 = vpop.permute.xlu0 %1113
      %1115 = vrot.lane.b32.xlu0 %v1081, 120
      %v1116 = vpop.permute.xlu0 %1115
      %1117 = vrot.lane.b32.xlu0 %v1082, 120
      %v1118 = vpop.permute.xlu0 %1117
      %1119 = vrot.lane.b32.xlu0 %v1083, 120
      %v1120 = vpop.permute.xlu0 %1119
      %1121 = vrot.lane.b32.xlu0 %v1084, 120
      %v1122 = vpop.permute.xlu0 %1121
      %1123 = vrot.lane.b32.xlu0 %v1085, 120
      %v1124 = vpop.permute.xlu0 %1123
      %1125 = vrot.lane.b32.xlu0 %v1086, 120
      %v1126 = vpop.permute.xlu0 %1125
      %1127 = vrot.lane.b32.xlu0 %v1087, 120
      %v1128 = vpop.permute.xlu0 %1127
      %1129 = vrot.lane.b32.xlu0 %v1088, 120
      %v1130 = vpop.permute.xlu0 %1129
      %1131 = vrot.lane.b32.xlu0 %v1089, 120
      %v1132 = vpop.permute.xlu0 %1131
      %1133 = vrot.lane.b32.xlu0 %v1090, 120
      %v1134 = vpop.permute.xlu0 %1133
      %1135 = vrot.lane.b32.xlu0 %v1091, 120
      %v1136 = vpop.permute.xlu0 %1135
      %1137 = vrot.lane.b32.xlu0 %v1092, 120
      %v1138 = vpop.permute.xlu0 %1137
      %1139 = vrot.lane.b32.xlu0 %v1093, 120
      %v1140 = vpop.permute.xlu0 %1139
      %1141 = vrot.lane.b32.xlu0 %v1094, 120
      %v1142 = vpop.permute.xlu0 %1141
      %v1144 = vsel %vm865, %v1079, 0
      %v1147 = vsel %vm865, %v1080, 0
      %v1150 = vsel %vm865, %v1081, 0
      %v1153 = vsel %vm865, %v1082, 0
      %v1156 = vsel %vm865, %v1083, 0
      %v1159 = vsel %vm865, %v1084, 0
      %v1162 = vsel %vm865, %v1085, 0
      %v1165 = vsel %vm865, %v1086, 0
      %v1168 = vsel %vm865, %v1087, 0
      %v1171 = vsel %vm865, %v1088, 0
      %v1174 = vsel %vm865, %v1089, 0
      %v1177 = vsel %vm865, %v1090, 0
      %v1180 = vsel %vm865, %v1091, 0
      %v1183 = vsel %vm865, %v1092, 0
      %v1186 = vsel %vm865, %v1093, 0
      %v1189 = vsel %vm865, %v1094, 0
      %v1192 = vsel %vm865, %v1112, 0
      %v1195 = vsel %vm865, %v1114, 0
      %v1198 = vsel %vm865, %v1116, 0
      %v1201 = vsel %vm865, %v1118, 0
      %v1204 = vsel %vm865, %v1120, 0
      %v1207 = vsel %vm865, %v1122, 0
      %v1210 = vsel %vm865, %v1124, 0
      %v1213 = vsel %vm865, %v1126, 0
      %v1216 = vsel %vm865, %v1128, 0
      %v1219 = vsel %vm865, %v1130, 0
      %v1222 = vsel %vm865, %v1132, 0
      %v1225 = vsel %vm865, %v1134, 0
      %v1228 = vsel %vm865, %v1136, 0
      %v1231 = vsel %vm865, %v1138, 0
      %v1234 = vsel %vm865, %v1140, 0
      %v1237 = vsel %vm865, %v1142, 0
      %1239 = vmatprep.subr.bf16.mxu0 0
      %1240 = vmatpush1.bf16.xpose.msra.mxu0 %v1192
      %1241 = vmatprep.subr.bf16.mxu0 0
      %1242 = vmatpush1.bf16.xpose.msra.mxu0 %v1195
      %1243 = vmatprep.subr.bf16.mxu0 0
      %1244 = vmatpush1.bf16.xpose.msra.mxu0 %v1198
      %1245 = vmatprep.subr.bf16.mxu0 0
      %1246 = vmatpush1.bf16.xpose.msra.mxu0 %v1201
      %1247 = vmatprep.subr.bf16.mxu0 0
      %1248 = vmatpush1.bf16.xpose.msra.mxu0 %v1204
      %1249 = vmatprep.subr.bf16.mxu0 0
      %1250 = vmatpush1.bf16.xpose.msra.mxu0 %v1207
      %1251 = vmatprep.subr.bf16.mxu0 0
      %1252 = vmatpush1.bf16.xpose.msra.mxu0 %v1210
      %1253 = vmatprep.subr.bf16.mxu0 0
      %1254 = vmatpush1.bf16.xpose.msra.mxu0 %v1213
      %1255 = vmatprep.subr.bf16.mxu0 0
      %1256 = vmatpush1.bf16.xpose.msra.mxu0 %v1216
      %1257 = vmatprep.subr.bf16.mxu0 0
      %1258 = vmatpush1.bf16.xpose.msra.mxu0 %v1219
      %1259 = vmatprep.subr.bf16.mxu0 0
      %1260 = vmatpush1.bf16.xpose.msra.mxu0 %v1222
      %1261 = vmatprep.subr.bf16.mxu0 0
      %1262 = vmatpush1.bf16.xpose.msra.mxu0 %v1225
      %1263 = vmatprep.subr.bf16.mxu0 0
      %1264 = vmatpush1.bf16.xpose.msra.mxu0 %v1228
      %1265 = vmatprep.subr.bf16.mxu0 0
      %1266 = vmatpush1.bf16.xpose.msra.mxu0 %v1231
      %1267 = vmatprep.subr.bf16.mxu0 0
      %1268 = vmatpush1.bf16.xpose.msra.mxu0 %v1234
      %1269 = vmatprep.subr.bf16.mxu0 0
      %1270 = vmatpush1.bf16.xpose.msra.mxu0 %v1237
      %1271 = vmatprep.mubr.bf16.mxu0 0
      %1272 = vmatmul.mubr.bf16.gmra.mrb[0].mxu0 %v1144
      %v1273 = vpop.f32.mrb[0].mxu0
      %v1274 = vadd.f32 0.0, %v1273
      %v1275 = vpop.f32.mrb[0].mxu0
      %v1276 = vadd.f32 0.0, %v1275
      %v1277 = vpop.f32.mrb[0].mxu0
      %v1278 = vadd.f32 0.0, %v1277
      %v1279 = vpop.f32.mrb[0].mxu0
      %v1280 = vadd.f32 0.0, %v1279
      %1281 = vmatprep.mubr.bf16.mxu0 0
      %1282 = vmatmul.mubr.bf16.gmra.mrb[0].mxu0 %v1147
      %v1283 = vpop.f32.mrb[0].mxu0
      %v1284 = vadd.f32 0.0, %v1283
      %v1285 = vpop.f32.mrb[0].mxu0
      %v1286 = vadd.f32 0.0, %v1285
      %v1287 = vpop.f32.mrb[0].mxu0
      %v1288 = vadd.f32 0.0, %v1287
      %v1289 = vpop.f32.mrb[0].mxu0
      %v1290 = vadd.f32 0.0, %v1289
      %1291 = vmatprep.mubr.bf16.mxu0 0
      %1292 = vmatmul.mubr.bf16.gmra.mrb[0].mxu0 %v1150
      %v1293 = vpop.f32.mrb[0].mxu0
      %v1294 = vadd.f32 0.0, %v1293
      %v1295 = vpop.f32.mrb[0].mxu0
      %v1296 = vadd.f32 0.0, %v1295
      %v1297 = vpop.f32.mrb[0].mxu0
      %v1298 = vadd.f32 0.0, %v1297
      %v1299 = vpop.f32.mrb[0].mxu0
      %v1300 = vadd.f32 0.0, %v1299
      %1301 = vmatprep.mubr.bf16.mxu0 0
      %1302 = vmatmul.mubr.bf16.gmra.mrb[0].mxu0 %v1153
      %v1303 = vpop.f32.mrb[0].mxu0
      %v1304 = vadd.f32 0.0, %v1303
      %v1305 = vpop.f32.mrb[0].mxu0
      %v1306 = vadd.f32 0.0, %v1305
      %v1307 = vpop.f32.mrb[0].mxu0
      %v1308 = vadd.f32 0.0, %v1307
      %v1309 = vpop.f32.mrb[0].mxu0
      %v1310 = vadd.f32 0.0, %v1309
      %1311 = vmatprep.mubr.bf16.mxu0 0
      %1312 = vmatmul.mubr.bf16.gmra.mrb[0].mxu0 %v1156
      %v1313 = vpop.f32.mrb[0].mxu0
      %v1314 = vadd.f32 0.0, %v1313
      %v1315 = vpop.f32.mrb[0].mxu0
      %v1316 = vadd.f32 0.0, %v1315
      %v1317 = vpop.f32.mrb[0].mxu0
      %v1318 = vadd.f32 0.0, %v1317
      %v1319 = vpop.f32.mrb[0].mxu0
      %v1320 = vadd.f32 0.0, %v1319
      %1321 = vmatprep.mubr.bf16.mxu0 0
      %1322 = vmatmul.mubr.bf16.gmra.mrb[0].mxu0 %v1159
      %v1323 = vpop.f32.mrb[0].mxu0
      %v1324 = vadd.f32 0.0, %v1323
      %v1325 = vpop.f32.mrb[0].mxu0
      %v1326 = vadd.f32 0.0, %v1325
      %v1327 = vpop.f32.mrb[0].mxu0
      %v1328 = vadd.f32 0.0, %v1327
      %v1329 = vpop.f32.mrb[0].mxu0
      %v1330 = vadd.f32 0.0, %v1329
      %1331 = vmatprep.mubr.bf16.mxu0 0
      %1332 = vmatmul.mubr.bf16.gmra.mrb[0].mxu0 %v1162
      %v1333 = vpop.f32.mrb[0].mxu0
      %v1334 = vadd.f32 0.0, %v1333
      %v1335 = vpop.f32.mrb[0].mxu0
      %v1336 = vadd.f32 0.0, %v1335
      %v1337 = vpop.f32.mrb[0].mxu0
      %v1338 = vadd.f32 0.0, %v1337
      %v1339 = vpop.f32.mrb[0].mxu0
      %v1340 = vadd.f32 0.0, %v1339
      %1341 = vmatprep.mubr.bf16.mxu0 0
      %1342 = vmatmul.mubr.bf16.gmra.mrb[0].mxu0 %v1165
      %v1343 = vpop.f32.mrb[0].mxu0
      %v1344 = vadd.f32 0.0, %v1343
      %v1345 = vpop.f32.mrb[0].mxu0
      %v1346 = vadd.f32 0.0, %v1345
      %v1347 = vpop.f32.mrb[0].mxu0
      %v1348 = vadd.f32 0.0, %v1347
      %v1349 = vpop.f32.mrb[0].mxu0
      %v1350 = vadd.f32 0.0, %v1349
      %1351 = vmatprep.mubr.bf16.mxu0 0
      %1352 = vmatmul.mubr.bf16.gmra.mrb[0].mxu0 %v1168
      %v1353 = vpop.f32.mrb[0].mxu0
      %v1354 = vadd.f32 0.0, %v1353
      %v1355 = vpop.f32.mrb[0].mxu0
      %v1356 = vadd.f32 0.0, %v1355
      %v1357 = vpop.f32.mrb[0].mxu0
      %v1358 = vadd.f32 0.0, %v1357
      %v1359 = vpop.f32.mrb[0].mxu0
      %v1360 = vadd.f32 0.0, %v1359
      %1361 = vmatprep.mubr.bf16.mxu0 0
      %1362 = vmatmul.mubr.bf16.gmra.mrb[0].mxu0 %v1171
      %v1363 = vpop.f32.mrb[0].mxu0
      %v1364 = vadd.f32 0.0, %v1363
      %v1365 = vpop.f32.mrb[0].mxu0
      %v1366 = vadd.f32 0.0, %v1365
      %v1367 = vpop.f32.mrb[0].mxu0
      %v1368 = vadd.f32 0.0, %v1367
      %v1369 = vpop.f32.mrb[0].mxu0
      %v1370 = vadd.f32 0.0, %v1369
      %1371 = vmatprep.mubr.bf16.mxu0 0
      %1372 = vmatmul.mubr.bf16.gmra.mrb[0].mxu0 %v1174
      %v1373 = vpop.f32.mrb[0].mxu0
      %v1374 = vadd.f32 0.0, %v1373
      %v1375 = vpop.f32.mrb[0].mxu0
      %v1376 = vadd.f32 0.0, %v1375
      %v1377 = vpop.f32.mrb[0].mxu0
      %v1378 = vadd.f32 0.0, %v1377
      %v1379 = vpop.f32.mrb[0].mxu0
      %v1380 = vadd.f32 0.0, %v1379
      %1381 = vmatprep.mubr.bf16.mxu0 0
      %1382 = vmatmul.mubr.bf16.gmra.mrb[0].mxu0 %v1177
      %v1383 = vpop.f32.mrb[0].mxu0
      %v1384 = vadd.f32 0.0, %v1383
      %v1385 = vpop.f32.mrb[0].mxu0
      %v1386 = vadd.f32 0.0, %v1385
      %v1387 = vpop.f32.mrb[0].mxu0
      %v1388 = vadd.f32 0.0, %v1387
      %v1389 = vpop.f32.mrb[0].mxu0
      %v1390 = vadd.f32 0.0, %v1389
      %1391 = vmatprep.mubr.bf16.mxu0 0
      %1392 = vmatmul.mubr.bf16.gmra.mrb[0].mxu0 %v1180
      %v1393 = vpop.f32.mrb[0].mxu0
      %v1394 = vadd.f32 0.0, %v1393
      %v1395 = vpop.f32.mrb[0].mxu0
      %v1396 = vadd.f32 0.0, %v1395
      %v1397 = vpop.f32.mrb[0].mxu0
      %v1398 = vadd.f32 0.0, %v1397
      %v1399 = vpop.f32.mrb[0].mxu0
      %v1400 = vadd.f32 0.0, %v1399
      %1401 = vmatprep.mubr.bf16.mxu0 0
      %1402 = vmatmul.mubr.bf16.gmra.mrb[0].mxu0 %v1183
      %v1403 = vpop.f32.mrb[0].mxu0
      %v1404 = vadd.f32 0.0, %v1403
      %v1405 = vpop.f32.mrb[0].mxu0
      %v1406 = vadd.f32 0.0, %v1405
      %v1407 = vpop.f32.mrb[0].mxu0
      %v1408 = vadd.f32 0.0, %v1407
      %v1409 = vpop.f32.mrb[0].mxu0
      %v1410 = vadd.f32 0.0, %v1409
      %1411 = vmatprep.mubr.bf16.mxu0 0
      %1412 = vmatmul.mubr.bf16.gmra.mrb[0].mxu0 %v1186
      %v1413 = vpop.f32.mrb[0].mxu0
      %v1414 = vadd.f32 0.0, %v1413
      %v1415 = vpop.f32.mrb[0].mxu0
      %v1416 = vadd.f32 0.0, %v1415
      %v1417 = vpop.f32.mrb[0].mxu0
      %v1418 = vadd.f32 0.0, %v1417
      %v1419 = vpop.f32.mrb[0].mxu0
      %v1420 = vadd.f32 0.0, %v1419
      %1421 = vmatprep.mubr.bf16.mxu0 0
      %1422 = vmatmul.mubr.bf16.gmra.mrb[0].mxu0 %v1189
      %v1423 = vpop.f32.mrb[0].mxu0
      %v1424 = vadd.f32 0.0, %v1423
      %v1425 = vpop.f32.mrb[0].mxu0
      %v1426 = vadd.f32 0.0, %v1425
      %v1427 = vpop.f32.mrb[0].mxu0
      %v1428 = vadd.f32 0.0, %v1427
      %v1429 = vpop.f32.mrb[0].mxu0
      %v1430 = vadd.f32 0.0, %v1429
      %1431 = vdwg.mxu0
      %v1432 = vmul.f32 %v1274, 0.35355338
      %v1433 = vmul.f32 %v1276, 0.35355338
      %v1434 = vmul.f32 %v1278, 0.35355338
      %v1435 = vmul.f32 %v1280, 0.35355338
      %v1436 = vmul.f32 %v1284, 0.35355338
      %v1437 = vmul.f32 %v1286, 0.35355338
      %v1438 = vmul.f32 %v1288, 0.35355338
      %v1439 = vmul.f32 %v1290, 0.35355338
      %v1440 = vmul.f32 %v1294, 0.35355338
      %v1441 = vmul.f32 %v1296, 0.35355338
      %v1442 = vmul.f32 %v1298, 0.35355338
      %v1443 = vmul.f32 %v1300, 0.35355338
      %v1444 = vmul.f32 %v1304, 0.35355338
      %v1445 = vmul.f32 %v1306, 0.35355338
      %v1446 = vmul.f32 %v1308, 0.35355338
      %v1447 = vmul.f32 %v1310, 0.35355338
      %v1448 = vmul.f32 %v1314, 0.35355338
      %v1449 = vmul.f32 %v1316, 0.35355338
      %v1450 = vmul.f32 %v1318, 0.35355338
      %v1451 = vmul.f32 %v1320, 0.35355338
      %v1452 = vmul.f32 %v1324, 0.35355338
      %v1453 = vmul.f32 %v1326, 0.35355338
      %v1454 = vmul.f32 %v1328, 0.35355338
      %v1455 = vmul.f32 %v1330, 0.35355338
      %v1456 = vmul.f32 %v1334, 0.35355338
      %v1457 = vmul.f32 %v1336, 0.35355338
      %v1458 = vmul.f32 %v1338, 0.35355338
      %v1459 = vmul.f32 %v1340, 0.35355338
      %v1460 = vmul.f32 %v1344, 0.35355338
      %v1461 = vmul.f32 %v1346, 0.35355338
      %v1462 = vmul.f32 %v1348, 0.35355338
      %v1463 = vmul.f32 %v1350, 0.35355338
      %v1464 = vmul.f32 %v1354, 0.35355338
      %v1465 = vmul.f32 %v1356, 0.35355338
      %v1466 = vmul.f32 %v1358, 0.35355338
      %v1467 = vmul.f32 %v1360, 0.35355338
      %v1468 = vmul.f32 %v1364, 0.35355338
      %v1469 = vmul.f32 %v1366, 0.35355338
      %v1470 = vmul.f32 %v1368, 0.35355338
      %v1471 = vmul.f32 %v1370, 0.35355338
      %v1472 = vmul.f32 %v1374, 0.35355338
      %v1473 = vmul.f32 %v1376, 0.35355338
      %v1474 = vmul.f32 %v1378, 0.35355338
      %v1475 = vmul.f32 %v1380, 0.35355338
      %v1476 = vmul.f32 %v1384, 0.35355338
      %v1477 = vmul.f32 %v1386, 0.35355338
      %v1478 = vmul.f32 %v1388, 0.35355338
      %v1479 = vmul.f32 %v1390, 0.35355338
      %v1480 = vmul.f32 %v1394, 0.35355338
      %v1481 = vmul.f32 %v1396, 0.35355338
      %v1482 = vmul.f32 %v1398, 0.35355338
      %v1483 = vmul.f32 %v1400, 0.35355338
      %v1484 = vmul.f32 %v1404, 0.35355338
      %v1485 = vmul.f32 %v1406, 0.35355338
      %v1486 = vmul.f32 %v1408, 0.35355338
      %v1487 = vmul.f32 %v1410, 0.35355338
      %v1488 = vmul.f32 %v1414, 0.35355338
      %v1489 = vmul.f32 %v1416, 0.35355338
      %v1490 = vmul.f32 %v1418, 0.35355338
      %v1491 = vmul.f32 %v1420, 0.35355338
      %v1492 = vmul.f32 %v1424, 0.35355338
      %v1493 = vmul.f32 %v1426, 0.35355338
      %v1494 = vmul.f32 %v1428, 0.35355338
      %v1495 = vmul.f32 %v1430, 0.35355338
      %v1496 = vmax.f32 %v1432, %v1433
      %1497 = vmax.xlane.f32.xlu0 %v1496
      %v1498 = vpop.xlane.xlu0 %1497
      %v1499 = vmax.f32 %v1434, %v1435
      %1500 = vmax.xlane.f32.xlu0 %v1499
      %v1501 = vpop.xlane.xlu0 %1500
      %v1502 = vmax.f32 %v1436, %v1437
      %1503 = vmax.xlane.f32.xlu0 %v1502
      %v1504 = vpop.xlane.xlu0 %1503
      %v1505 = vmax.f32 %v1438, %v1439
      %1506 = vmax.xlane.f32.xlu0 %v1505
      %v1507 = vpop.xlane.xlu0 %1506
      %v1508 = vmax.f32 %v1440, %v1441
      %1509 = vmax.xlane.f32.xlu0 %v1508
      %v1510 = vpop.xlane.xlu0 %1509
      %v1511 = vmax.f32 %v1442, %v1443
      %1512 = vmax.xlane.f32.xlu0 %v1511
      %v1513 = vpop.xlane.xlu0 %1512
      %v1514 = vmax.f32 %v1444, %v1445
      %1515 = vmax.xlane.f32.xlu0 %v1514
      %v1516 = vpop.xlane.xlu0 %1515
      %v1517 = vmax.f32 %v1446, %v1447
      %1518 = vmax.xlane.f32.xlu0 %v1517
      %v1519 = vpop.xlane.xlu0 %1518
      %v1520 = vmax.f32 %v1448, %v1449
      %1521 = vmax.xlane.f32.xlu0 %v1520
      %v1522 = vpop.xlane.xlu0 %1521
      %v1523 = vmax.f32 %v1450, %v1451
      %1524 = vmax.xlane.f32.xlu0 %v1523
      %v1525 = vpop.xlane.xlu0 %1524
      %v1526 = vmax.f32 %v1452, %v1453
      %1527 = vmax.xlane.f32.xlu0 %v1526
      %v1528 = vpop.xlane.xlu0 %1527
      %v1529 = vmax.f32 %v1454, %v1455
      %1530 = vmax.xlane.f32.xlu0 %v1529
      %v1531 = vpop.xlane.xlu0 %1530
      %v1532 = vmax.f32 %v1456, %v1457
      %1533 = vmax.xlane.f32.xlu0 %v1532
      %v1534 = vpop.xlane.xlu0 %1533
      %v1535 = vmax.f32 %v1458, %v1459
      %1536 = vmax.xlane.f32.xlu0 %v1535
      %v1537 = vpop.xlane.xlu0 %1536
      %v1538 = vmax.f32 %v1460, %v1461
      %1539 = vmax.xlane.f32.xlu0 %v1538
      %v1540 = vpop.xlane.xlu0 %1539
      %v1541 = vmax.f32 %v1462, %v1463
      %1542 = vmax.xlane.f32.xlu0 %v1541
      %v1543 = vpop.xlane.xlu0 %1542
      %v1544 = vmax.f32 %v1464, %v1465
      %1545 = vmax.xlane.f32.xlu0 %v1544
      %v1546 = vpop.xlane.xlu0 %1545
      %v1547 = vmax.f32 %v1466, %v1467
      %1548 = vmax.xlane.f32.xlu0 %v1547
      %v1549 = vpop.xlane.xlu0 %1548
      %v1550 = vmax.f32 %v1468, %v1469
      %1551 = vmax.xlane.f32.xlu0 %v1550
      %v1552 = vpop.xlane.xlu0 %1551
      %v1553 = vmax.f32 %v1470, %v1471
      %1554 = vmax.xlane.f32.xlu0 %v1553
      %v1555 = vpop.xlane.xlu0 %1554
      %v1556 = vmax.f32 %v1472, %v1473
      %1557 = vmax.xlane.f32.xlu0 %v1556
      %v1558 = vpop.xlane.xlu0 %1557
      %v1559 = vmax.f32 %v1474, %v1475
      %1560 = vmax.xlane.f32.xlu0 %v1559
      %v1561 = vpop.xlane.xlu0 %1560
      %v1562 = vmax.f32 %v1476, %v1477
      %1563 = vmax.xlane.f32.xlu0 %v1562
      %v1564 = vpop.xlane.xlu0 %1563
      %v1565 = vmax.f32 %v1478, %v1479
      %1566 = vmax.xlane.f32.xlu0 %v1565
      %v1567 = vpop.xlane.xlu0 %1566
      %v1568 = vmax.f32 %v1480, %v1481
      %1569 = vmax.xlane.f32.xlu0 %v1568
      %v1570 = vpop.xlane.xlu0 %1569
      %v1571 = vmax.f32 %v1482, %v1483
      %1572 = vmax.xlane.f32.xlu0 %v1571
      %v1573 = vpop.xlane.xlu0 %1572
      %v1574 = vmax.f32 %v1484, %v1485
      %1575 = vmax.xlane.f32.xlu0 %v1574
      %v1576 = vpop.xlane.xlu0 %1575
      %v1577 = vmax.f32 %v1486, %v1487
      %1578 = vmax.xlane.f32.xlu0 %v1577
      %v1579 = vpop.xlane.xlu0 %1578
      %v1580 = vmax.f32 %v1488, %v1489
      %1581 = vmax.xlane.f32.xlu0 %v1580
      %v1582 = vpop.xlane.xlu0 %1581
      %v1583 = vmax.f32 %v1490, %v1491
      %1584 = vmax.xlane.f32.xlu0 %v1583
      %v1585 = vpop.xlane.xlu0 %1584
      %v1586 = vmax.f32 %v1492, %v1493
      %1587 = vmax.xlane.f32.xlu0 %v1586
      %v1588 = vpop.xlane.xlu0 %1587
      %v1589 = vmax.f32 %v1494, %v1495
      %1590 = vmax.xlane.f32.xlu0 %v1589
      %v1591 = vpop.xlane.xlu0 %1590
      %v1592 = vsub.f32 %v1432, %v1498
      %v1593 = vsub.f32 %v1433, %v1498
      %v1594 = vsub.f32 %v1434, %v1501
      %v1595 = vsub.f32 %v1435, %v1501
      %v1596 = vsub.f32 %v1436, %v1504
      %v1597 = vsub.f32 %v1437, %v1504
      %v1598 = vsub.f32 %v1438, %v1507
      %v1599 = vsub.f32 %v1439, %v1507
      %v1600 = vsub.f32 %v1440, %v1510
      %v1601 = vsub.f32 %v1441, %v1510
      %v1602 = vsub.f32 %v1442, %v1513
      %v1603 = vsub.f32 %v1443, %v1513
      %v1604 = vsub.f32 %v1444, %v1516
      %v1605 = vsub.f32 %v1445, %v1516
      %v1606 = vsub.f32 %v1446, %v1519
      %v1607 = vsub.f32 %v1447, %v1519
      %v1608 = vsub.f32 %v1448, %v1522
      %v1609 = vsub.f32 %v1449, %v1522
      %v1610 = vsub.f32 %v1450, %v1525
      %v1611 = vsub.f32 %v1451, %v1525
      %v1612 = vsub.f32 %v1452, %v1528
      %v1613 = vsub.f32 %v1453, %v1528
      %v1614 = vsub.f32 %v1454, %v1531
      %v1615 = vsub.f32 %v1455, %v1531
      %v1616 = vsub.f32 %v1456, %v1534
      %v1617 = vsub.f32 %v1457, %v1534
      %v1618 = vsub.f32 %v1458, %v1537
      %v1619 = vsub.f32 %v1459, %v1537
      %v1620 = vsub.f32 %v1460, %v1540
      %v1621 = vsub.f32 %v1461, %v1540
      %v1622 = vsub.f32 %v1462, %v1543
      %v1623 = vsub.f32 %v1463, %v1543
      %v1624 = vsub.f32 %v1464, %v1546
      %v1625 = vsub.f32 %v1465, %v1546
      %v1626 = vsub.f32 %v1466, %v1549
      %v1627 = vsub.f32 %v1467, %v1549
      %v1628 = vsub.f32 %v1468, %v1552
      %v1629 = vsub.f32 %v1469, %v1552
      %v1630 = vsub.f32 %v1470, %v1555
      %v1631 = vsub.f32 %v1471, %v1555
      %v1632 = vsub.f32 %v1472, %v1558
      %v1633 = vsub.f32 %v1473, %v1558
      %v1634 = vsub.f32 %v1474, %v1561
      %v1635 = vsub.f32 %v1475, %v1561
      %v1636 = vsub.f32 %v1476, %v1564
      %v1637 = vsub.f32 %v1477, %v1564
      %v1638 = vsub.f32 %v1478, %v1567
      %v1639 = vsub.f32 %v1479, %v1567
      %v1640 = vsub.f32 %v1480, %v1570
      %v1641 = vsub.f32 %v1481, %v1570
      %v1642 = vsub.f32 %v1482, %v1573
      %v1643 = vsub.f32 %v1483, %v1573
      %v1644 = vsub.f32 %v1484, %v1576
      %v1645 = vsub.f32 %v1485, %v1576
      %v1646 = vsub.f32 %v1486, %v1579
      %v1647 = vsub.f32 %v1487, %v1579
      %v1648 = vsub.f32 %v1488, %v1582
      %v1649 = vsub.f32 %v1489, %v1582
      %v1650 = vsub.f32 %v1490, %v1585
      %v1651 = vsub.f32 %v1491, %v1585
      %v1652 = vsub.f32 %v1492, %v1588
      %v1653 = vsub.f32 %v1493, %v1588
      %v1654 = vsub.f32 %v1494, %v1591
      %v1655 = vsub.f32 %v1495, %v1591
      %v1656 = vmul.f32 %v1592, 1.442695
      %v1657 = vpow.pop %v1656
      %v1658 = vmul.f32 %v1593, 1.442695
      %v1659 = vpow.pop %v1658
      %v1660 = vmul.f32 %v1594, 1.442695
      %v1661 = vpow.pop %v1660
      %v1662 = vmul.f32 %v1595, 1.442695
      %v1663 = vpow.pop %v1662
      %v1664 = vmul.f32 %v1596, 1.442695
      %v1665 = vpow.pop %v1664
      %v1666 = vmul.f32 %v1597, 1.442695
      %v1667 = vpow.pop %v1666
      %v1668 = vmul.f32 %v1598, 1.442695
      %v1669 = vpow.pop %v1668
      %v1670 = vmul.f32 %v1599, 1.442695
      %v1671 = vpow.pop %v1670
      %v1672 = vmul.f32 %v1600, 1.442695
      %v1673 = vpow.pop %v1672
      %v1674 = vmul.f32 %v1601, 1.442695
      %v1675 = vpow.pop %v1674
      %v1676 = vmul.f32 %v1602, 1.442695
      %v1677 = vpow.pop %v1676
      %v1678 = vmul.f32 %v1603, 1.442695
      %v1679 = vpow.pop %v1678
      %v1680 = vmul.f32 %v1604, 1.442695
      %v1681 = vpow.pop %v1680
      %v1682 = vmul.f32 %v1605, 1.442695
      %v1683 = vpow.pop %v1682
      %v1684 = vmul.f32 %v1606, 1.442695
      %v1685 = vpow.pop %v1684
      %v1686 = vmul.f32 %v1607, 1.442695
      %v1687 = vpow.pop %v1686
      %v1688 = vmul.f32 %v1608, 1.442695
      %v1689 = vpow.pop %v1688
      %v1690 = vmul.f32 %v1609, 1.442695
      %v1691 = vpow.pop %v1690
      %v1692 = vmul.f32 %v1610, 1.442695
      %v1693 = vpow.pop %v1692
      %v1694 = vmul.f32 %v1611, 1.442695
      %v1695 = vpow.pop %v1694
      %v1696 = vmul.f32 %v1612, 1.442695
      %v1697 = vpow.pop %v1696
      %v1698 = vmul.f32 %v1613, 1.442695
      %v1699 = vpow.pop %v1698
      %v1700 = vmul.f32 %v1614, 1.442695
      %v1701 = vpow.pop %v1700
      %v1702 = vmul.f32 %v1615, 1.442695
      %v1703 = vpow.pop %v1702
      %v1704 = vmul.f32 %v1616, 1.442695
      %v1705 = vpow.pop %v1704
      %v1706 = vmul.f32 %v1617, 1.442695
      %v1707 = vpow.pop %v1706
      %v1708 = vmul.f32 %v1618, 1.442695
      %v1709 = vpow.pop %v1708
      %v1710 = vmul.f32 %v1619, 1.442695
      %v1711 = vpow.pop %v1710
      %v1712 = vmul.f32 %v1620, 1.442695
      %v1713 = vpow.pop %v1712
      %v1714 = vmul.f32 %v1621, 1.442695
      %v1715 = vpow.pop %v1714
      %v1716 = vmul.f32 %v1622, 1.442695
      %v1717 = vpow.pop %v1716
      %v1718 = vmul.f32 %v1623, 1.442695
      %v1719 = vpow.pop %v1718
      %v1720 = vmul.f32 %v1624, 1.442695
      %v1721 = vpow.pop %v1720
      %v1722 = vmul.f32 %v1625, 1.442695
      %v1723 = vpow.pop %v1722
      %v1724 = vmul.f32 %v1626, 1.442695
      %v1725 = vpow.pop %v1724
      %v1726 = vmul.f32 %v1627, 1.442695
      %v1727 = vpow.pop %v1726
      %v1728 = vmul.f32 %v1628, 1.442695
      %v1729 = vpow.pop %v1728
      %v1730 = vmul.f32 %v1629, 1.442695
      %v1731 = vpow.pop %v1730
      %v1732 = vmul.f32 %v1630, 1.442695
      %v1733 = vpow.pop %v1732
      %v1734 = vmul.f32 %v1631, 1.442695
      %v1735 = vpow.pop %v1734
      %v1736 = vmul.f32 %v1632, 1.442695
      %v1737 = vpow.pop %v1736
      %v1738 = vmul.f32 %v1633, 1.442695
      %v1739 = vpow.pop %v1738
      %v1740 = vmul.f32 %v1634, 1.442695
      %v1741 = vpow.pop %v1740
      %v1742 = vmul.f32 %v1635, 1.442695
      %v1743 = vpow.pop %v1742
      %v1744 = vmul.f32 %v1636, 1.442695
      %v1745 = vpow.pop %v1744
      %v1746 = vmul.f32 %v1637, 1.442695
      %v1747 = vpow.pop %v1746
      %v1748 = vmul.f32 %v1638, 1.442695
      %v1749 = vpow.pop %v1748
      %v1750 = vmul.f32 %v1639, 1.442695
      %v1751 = vpow.pop %v1750
      %v1752 = vmul.f32 %v1640, 1.442695
      %v1753 = vpow.pop %v1752
      %v1754 = vmul.f32 %v1641, 1.442695
      %v1755 = vpow.pop %v1754
      %v1756 = vmul.f32 %v1642, 1.442695
      %v1757 = vpow.pop %v1756
      %v1758 = vmul.f32 %v1643, 1.442695
      %v1759 = vpow.pop %v1758
      %v1760 = vmul.f32 %v1644, 1.442695
      %v1761 = vpow.pop %v1760
      %v1762 = vmul.f32 %v1645, 1.442695
      %v1763 = vpow.pop %v1762
      %v1764 = vmul.f32 %v1646, 1.442695
      %v1765 = vpow.pop %v1764
      %v1766 = vmul.f32 %v1647, 1.442695
      %v1767 = vpow.pop %v1766
      %v1768 = vmul.f32 %v1648, 1.442695
      %v1769 = vpow.pop %v1768
      %v1770 = vmul.f32 %v1649, 1.442695
      %v1771 = vpow.pop %v1770
      %v1772 = vmul.f32 %v1650, 1.442695
      %v1773 = vpow.pop %v1772
      %v1774 = vmul.f32 %v1651, 1.442695
      %v1775 = vpow.pop %v1774
      %v1776 = vmul.f32 %v1652, 1.442695
      %v1777 = vpow.pop %v1776
      %v1778 = vmul.f32 %v1653, 1.442695
      %v1779 = vpow.pop %v1778
      %v1780 = vmul.f32 %v1654, 1.442695
      %v1781 = vpow.pop %v1780
      %v1782 = vmul.f32 %v1655, 1.442695
      %v1783 = vpow.pop %v1782
      %v1784 = vadd.f32 %v1657, %v1659
      %1785 = vadd.xlane.f32.xlu0 %v1784
      %v1786 = vpop.xlane.xlu0 %1785
      %v1787 = vadd.f32 %v1661, %v1663
      %1788 = vadd.xlane.f32.xlu0 %v1787
      %v1789 = vpop.xlane.xlu0 %1788
      %v1790 = vadd.f32 %v1665, %v1667
      %1791 = vadd.xlane.f32.xlu0 %v1790
      %v1792 = vpop.xlane.xlu0 %1791
      %v1793 = vadd.f32 %v1669, %v1671
      %1794 = vadd.xlane.f32.xlu0 %v1793
      %v1795 = vpop.xlane.xlu0 %1794
      %v1796 = vadd.f32 %v1673, %v1675
      %1797 = vadd.xlane.f32.xlu0 %v1796
      %v1798 = vpop.xlane.xlu0 %1797
      %v1799 = vadd.f32 %v1677, %v1679
      %1800 = vadd.xlane.f32.xlu0 %v1799
      %v1801 = vpop.xlane.xlu0 %1800
      %v1802 = vadd.f32 %v1681, %v1683
      %1803 = vadd.xlane.f32.xlu0 %v1802
      %v1804 = vpop.xlane.xlu0 %1803
      %v1805 = vadd.f32 %v1685, %v1687
      %1806 = vadd.xlane.f32.xlu0 %v1805
      %v1807 = vpop.xlane.xlu0 %1806
      %v1808 = vadd.f32 %v1689, %v1691
      %1809 = vadd.xlane.f32.xlu0 %v1808
      %v1810 = vpop.xlane.xlu0 %1809
      %v1811 = vadd.f32 %v1693, %v1695
      %1812 = vadd.xlane.f32.xlu0 %v1811
      %v1813 = vpop.xlane.xlu0 %1812
      %v1814 = vadd.f32 %v1697, %v1699
      %1815 = vadd.xlane.f32.xlu0 %v1814
      %v1816 = vpop.xlane.xlu0 %1815
      %v1817 = vadd.f32 %v1701, %v1703
      %1818 = vadd.xlane.f32.xlu0 %v1817
      %v1819 = vpop.xlane.xlu0 %1818
      %v1820 = vadd.f32 %v1705, %v1707
      %1821 = vadd.xlane.f32.xlu0 %v1820
      %v1822 = vpop.xlane.xlu0 %1821
      %v1823 = vadd.f32 %v1709, %v1711
      %1824 = vadd.xlane.f32.xlu0 %v1823
      %v1825 = vpop.xlane.xlu0 %1824
      %v1826 = vadd.f32 %v1713, %v1715
      %1827 = vadd.xlane.f32.xlu0 %v1826
      %v1828 = vpop.xlane.xlu0 %1827
      %v1829 = vadd.f32 %v1717, %v1719
      %1830 = vadd.xlane.f32.xlu0 %v1829
      %v1831 = vpop.xlane.xlu0 %1830
      %v1832 = vadd.f32 %v1721, %v1723
      %1833 = vadd.xlane.f32.xlu0 %v1832
      %v1834 = vpop.xlane.xlu0 %1833
      %v1835 = vadd.f32 %v1725, %v1727
      %1836 = vadd.xlane.f32.xlu0 %v1835
      %v1837 = vpop.xlane.xlu0 %1836
      %v1838 = vadd.f32 %v1729, %v1731
      %1839 = vadd.xlane.f32.xlu0 %v1838
      %v1840 = vpop.xlane.xlu0 %1839
      %v1841 = vadd.f32 %v1733, %v1735
      %1842 = vadd.xlane.f32.xlu0 %v1841
      %v1843 = vpop.xlane.xlu0 %1842
      %v1844 = vadd.f32 %v1737, %v1739
      %1845 = vadd.xlane.f32.xlu0 %v1844
      %v1846 = vpop.xlane.xlu0 %1845
      %v1847 = vadd.f32 %v1741, %v1743
      %1848 = vadd.xlane.f32.xlu0 %v1847
      %v1849 = vpop.xlane.xlu0 %1848
      %v1850 = vadd.f32 %v1745, %v1747
      %1851 = vadd.xlane.f32.xlu0 %v1850
      %v1852 = vpop.xlane.xlu0 %1851
      %v1853 = vadd.f32 %v1749, %v1751
      %1854 = vadd.xlane.f32.xlu0 %v1853
      %v1855 = vpop.xlane.xlu0 %1854
      %v1856 = vadd.f32 %v1753, %v1755
      %1857 = vadd.xlane.f32.xlu0 %v1856
      %v1858 = vpop.xlane.xlu0 %1857
      %v1859 = vadd.f32 %v1757, %v1759
      %1860 = vadd.xlane.f32.xlu0 %v1859
      %v1861 = vpop.xlane.xlu0 %1860
      %v1862 = vadd.f32 %v1761, %v1763
      %1863 = vadd.xlane.f32.xlu0 %v1862
      %v1864 = vpop.xlane.xlu0 %1863
      %v1865 = vadd.f32 %v1765, %v1767
      %1866 = vadd.xlane.f32.xlu0 %v1865
      %v1867 = vpop.xlane.xlu0 %1866
      %v1868 = vadd.f32 %v1769, %v1771
      %1869 = vadd.xlane.f32.xlu0 %v1868
      %v1870 = vpop.xlane.xlu0 %1869
      %v1871 = vadd.f32 %v1773, %v1775
      %1872 = vadd.xlane.f32.xlu0 %v1871
      %v1873 = vpop.xlane.xlu0 %1872
      %v1874 = vadd.f32 %v1777, %v1779
      %1875 = vadd.xlane.f32.xlu0 %v1874
      %v1876 = vpop.xlane.xlu0 %1875
      %v1877 = vadd.f32 %v1781, %v1783
      %1878 = vadd.xlane.f32.xlu0 %v1877
      %v1879 = vpop.xlane.xlu0 %1878
      %v1880 = vrcp.pop %v1786
      %v1881 = vmul.f32 %v1657, %v1880
      %v1882 = vmul.f32 %v1659, %v1880
      %v1883 = vrcp.pop %v1789
      %v1884 = vmul.f32 %v1661, %v1883
      %v1885 = vmul.f32 %v1663, %v1883
      %v1886 = vrcp.pop %v1792
      %v1887 = vmul.f32 %v1665, %v1886
      %v1888 = vmul.f32 %v1667, %v1886
      %v1889 = vrcp.pop %v1795
      %v1890 = vmul.f32 %v1669, %v1889
      %v1891 = vmul.f32 %v1671, %v1889
      %v1892 = vrcp.pop %v1798
      %v1893 = vmul.f32 %v1673, %v1892
      %v1894 = vmul.f32 %v1675, %v1892
      %v1895 = vrcp.pop %v1801
      %v1896 = vmul.f32 %v1677, %v1895
      %v1897 = vmul.f32 %v1679, %v1895
      %v1898 = vrcp.pop %v1804
      %v1899 = vmul.f32 %v1681, %v1898
      %v1900 = vmul.f32 %v1683, %v1898
      %v1901 = vrcp.pop %v1807
      %v1902 = vmul.f32 %v1685, %v1901
      %v1903 = vmul.f32 %v1687, %v1901
      %v1904 = vrcp.pop %v1810
      %v1905 = vmul.f32 %v1689, %v1904
      %v1906 = vmul.f32 %v1691, %v1904
      %v1907 = vrcp.pop %v1813
      %v1908 = vmul.f32 %v1693, %v1907
      %v1909 = vmul.f32 %v1695, %v1907
      %v1910 = vrcp.pop %v1816
      %v1911 = vmul.f32 %v1697, %v1910
      %v1912 = vmul.f32 %v1699, %v1910
      %v1913 = vrcp.pop %v1819
      %v1914 = vmul.f32 %v1701, %v1913
      %v1915 = vmul.f32 %v1703, %v1913
      %v1916 = vrcp.pop %v1822
      %v1917 = vmul.f32 %v1705, %v1916
      %v1918 = vmul.f32 %v1707, %v1916
      %v1919 = vrcp.pop %v1825
      %v1920 = vmul.f32 %v1709, %v1919
      %v1921 = vmul.f32 %v1711, %v1919
      %v1922 = vrcp.pop %v1828
      %v1923 = vmul.f32 %v1713, %v1922
      %v1924 = vmul.f32 %v1715, %v1922
      %v1925 = vrcp.pop %v1831
      %v1926 = vmul.f32 %v1717, %v1925
      %v1927 = vmul.f32 %v1719, %v1925
      %v1928 = vrcp.pop %v1834
      %v1929 = vmul.f32 %v1721, %v1928
      %v1930 = vmul.f32 %v1723, %v1928
      %v1931 = vrcp.pop %v1837
      %v1932 = vmul.f32 %v1725, %v1931
      %v1933 = vmul.f32 %v1727, %v1931
      %v1934 = vrcp.pop %v1840
      %v1935 = vmul.f32 %v1729, %v1934
      %v1936 = vmul.f32 %v1731, %v1934
      %v1937 = vrcp.pop %v1843
      %v1938 = vmul.f32 %v1733, %v1937
      %v1939 = vmul.f32 %v1735, %v1937
      %v1940 = vrcp.pop %v1846
      %v1941 = vmul.f32 %v1737, %v1940
      %v1942 = vmul.f32 %v1739, %v1940
      %v1943 = vrcp.pop %v1849
      %v1944 = vmul.f32 %v1741, %v1943
      %v1945 = vmul.f32 %v1743, %v1943
      %v1946 = vrcp.pop %v1852
      %v1947 = vmul.f32 %v1745, %v1946
      %v1948 = vmul.f32 %v1747, %v1946
      %v1949 = vrcp.pop %v1855
      %v1950 = vmul.f32 %v1749, %v1949
      %v1951 = vmul.f32 %v1751, %v1949
      %v1952 = vrcp.pop %v1858
      %v1953 = vmul.f32 %v1753, %v1952
      %v1954 = vmul.f32 %v1755, %v1952
      %v1955 = vrcp.pop %v1861
      %v1956 = vmul.f32 %v1757, %v1955
      %v1957 = vmul.f32 %v1759, %v1955
      %v1958 = vrcp.pop %v1864
      %v1959 = vmul.f32 %v1761, %v1958
      %v1960 = vmul.f32 %v1763, %v1958
      %v1961 = vrcp.pop %v1867
      %v1962 = vmul.f32 %v1765, %v1961
      %v1963 = vmul.f32 %v1767, %v1961
      %v1964 = vrcp.pop %v1870
      %v1965 = vmul.f32 %v1769, %v1964
      %v1966 = vmul.f32 %v1771, %v1964
      %v1967 = vrcp.pop %v1873
      %v1968 = vmul.f32 %v1773, %v1967
      %v1969 = vmul.f32 %v1775, %v1967
      %v1970 = vrcp.pop %v1876
      %v1971 = vmul.f32 %v1777, %v1970
      %v1972 = vmul.f32 %v1779, %v1970
      %v1973 = vrcp.pop %v1879
      %v1974 = vmul.f32 %v1781, %v1973
      %v1975 = vmul.f32 %v1783, %v1973
      %v1976 = vpack.c.bf16 %v1884, %v1881
      %v1977 = vpack.c.bf16 %v1885, %v1882
      %v1978 = vpack.c.bf16 %v1890, %v1887
      %v1979 = vpack.c.bf16 %v1891, %v1888
      %v1980 = vpack.c.bf16 %v1896, %v1893
      %v1981 = vpack.c.bf16 %v1897, %v1894
      %v1982 = vpack.c.bf16 %v1902, %v1899
      %v1983 = vpack.c.bf16 %v1903, %v1900
      %v1984 = vpack.c.bf16 %v1908, %v1905
      %v1985 = vpack.c.bf16 %v1909, %v1906
      %v1986 = vpack.c.bf16 %v1914, %v1911
      %v1987 = vpack.c.bf16 %v1915, %v1912
      %v1988 = vpack.c.bf16 %v1920, %v1917
      %v1989 = vpack.c.bf16 %v1921, %v1918
      %v1990 = vpack.c.bf16 %v1926, %v1923
      %v1991 = vpack.c.bf16 %v1927, %v1924
      %v1992 = vpack.c.bf16 %v1932, %v1929
      %v1993 = vpack.c.bf16 %v1933, %v1930
      %v1994 = vpack.c.bf16 %v1938, %v1935
      %v1995 = vpack.c.bf16 %v1939, %v1936
      %v1996 = vpack.c.bf16 %v1944, %v1941
      %v1997 = vpack.c.bf16 %v1945, %v1942
      %v1998 = vpack.c.bf16 %v1950, %v1947
      %v1999 = vpack.c.bf16 %v1951, %v1948
      %v2000 = vpack.c.bf16 %v1956, %v1953
      %v2001 = vpack.c.bf16 %v1957, %v1954
      %v2002 = vpack.c.bf16 %v1962, %v1959
      %v2003 = vpack.c.bf16 %v1963, %v1960
      %v2004 = vpack.c.bf16 %v1968, %v1965
      %v2005 = vpack.c.bf16 %v1969, %v1966
      %v2006 = vpack.c.bf16 %v1974, %v1971
      %v2007 = vpack.c.bf16 %v1975, %v1972
      %2008 = vrot.lane.b32.xlu0 %v1079, 112
      %v2009 = vpop.permute.xlu0 %2008
      %2010 = vrot.lane.b32.xlu0 %v1080, 112
      %v2011 = vpop.permute.xlu0 %2010
      %2012 = vrot.lane.b32.xlu0 %v1081, 112
      %v2013 = vpop.permute.xlu0 %2012
      %2014 = vrot.lane.b32.xlu0 %v1082, 112
      %v2015 = vpop.permute.xlu0 %2014
      %2016 = vrot.lane.b32.xlu0 %v1083, 112
      %v2017 = vpop.permute.xlu0 %2016
      %2018 = vrot.lane.b32.xlu0 %v1084, 112
      %v2019 = vpop.permute.xlu0 %2018
      %2020 = vrot.lane.b32.xlu0 %v1085, 112
      %v2021 = vpop.permute.xlu0 %2020
      %2022 = vrot.lane.b32.xlu0 %v1086, 112
      %v2023 = vpop.permute.xlu0 %2022
      %2024 = vrot.lane.b32.xlu0 %v1087, 112
      %v2025 = vpop.permute.xlu0 %2024
      %2026 = vrot.lane.b32.xlu0 %v1088, 112
      %v2027 = vpop.permute.xlu0 %2026
      %2028 = vrot.lane.b32.xlu0 %v1089, 112
      %v2029 = vpop.permute.xlu0 %2028
      %2030 = vrot.lane.b32.xlu0 %v1090, 112
      %v2031 = vpop.permute.xlu0 %2030
      %2032 = vrot.lane.b32.xlu0 %v1091, 112
      %v2033 = vpop.permute.xlu0 %2032
      %2034 = vrot.lane.b32.xlu0 %v1092, 112
      %v2035 = vpop.permute.xlu0 %2034
      %2036 = vrot.lane.b32.xlu0 %v1093, 112
      %v2037 = vpop.permute.xlu0 %2036
      %2038 = vrot.lane.b32.xlu0 %v1094, 112
      %v2039 = vpop.permute.xlu0 %2038
      %2056 = vmatprep.subr.bf16.mxu0 0
      %2057 = vmatpush1.bf16.msra.mxu0 %v2009
      %2058 = vmatprep.subr.bf16.mxu0 0
      %2059 = vmatpush1.bf16.msra.mxu0 %v2011
      %2060 = vmatprep.subr.bf16.mxu0 0
      %2061 = vmatpush1.bf16.msra.mxu0 %v2013
      %2062 = vmatprep.subr.bf16.mxu0 0
      %2063 = vmatpush1.bf16.msra.mxu0 %v2015
      %2064 = vmatprep.subr.bf16.mxu0 0
      %2065 = vmatpush1.bf16.msra.mxu0 %v2017
      %2066 = vmatprep.subr.bf16.mxu0 0
      %2067 = vmatpush1.bf16.msra.mxu0 %v2019
      %2068 = vmatprep.subr.bf16.mxu0 0
      %2069 = vmatpush1.bf16.msra.mxu0 %v2021
      %2070 = vmatprep.subr.bf16.mxu0 0
      %2071 = vmatpush1.bf16.msra.mxu0 %v2023
      %2072 = vmatprep.subr.bf16.mxu0 0
      %2073 = vmatpush1.bf16.msra.mxu0 %v2025
      %2074 = vmatprep.subr.bf16.mxu0 0
      %2075 = vmatpush1.bf16.msra.mxu0 %v2027
      %2076 = vmatprep.subr.bf16.mxu0 0
      %2077 = vmatpush1.bf16.msra.mxu0 %v2029
      %2078 = vmatprep.subr.bf16.mxu0 0
      %2079 = vmatpush1.bf16.msra.mxu0 %v2031
      %2080 = vmatprep.subr.bf16.mxu0 0
      %2081 = vmatpush1.bf16.msra.mxu0 %v2033
      %2082 = vmatprep.subr.bf16.mxu0 0
      %2083 = vmatpush1.bf16.msra.mxu0 %v2035
      %2084 = vmatprep.subr.bf16.mxu0 0
      %2085 = vmatpush1.bf16.msra.mxu0 %v2037
      %2086 = vmatprep.subr.bf16.mxu0 0
      %2087 = vmatpush1.bf16.msra.mxu0 %v2039
      %2088 = vmatprep.mubr.bf16.mxu0 %v1977
      %2089 = vmatmul.mubr.bf16.gmra.mrb[0].mxu0 %v1976
      %v2090 = vpop.f32.mrb[0].mxu0
      %v2091 = vadd.f32 0.0, %v2090
      %v2092 = vpop.f32.mrb[0].mxu0
      %v2093 = vpop.f32.mrb[0].mxu0
      %v2094 = vadd.f32 0.0, %v2093
      %v2095 = vpop.f32.mrb[0].mxu0
      %2096 = vmatprep.mubr.bf16.mxu0 %v1979
      %2097 = vmatmul.mubr.bf16.gmra.mrb[0].mxu0 %v1978
      %v2098 = vpop.f32.mrb[0].mxu0
      %v2099 = vadd.f32 0.0, %v2098
      %v2100 = vpop.f32.mrb[0].mxu0
      %v2101 = vpop.f32.mrb[0].mxu0
      %v2102 = vadd.f32 0.0, %v2101
      %v2103 = vpop.f32.mrb[0].mxu0
      %2104 = vmatprep.mubr.bf16.mxu0 %v1981
      %2105 = vmatmul.mubr.bf16.gmra.mrb[0].mxu0 %v1980
      %v2106 = vpop.f32.mrb[0].mxu0
      %v2107 = vadd.f32 0.0, %v2106
      %v2108 = vpop.f32.mrb[0].mxu0
      %v2109 = vpop.f32.mrb[0].mxu0
      %v2110 = vadd.f32 0.0, %v2109
      %v2111 = vpop.f32.mrb[0].mxu0
      %2112 = vmatprep.mubr.bf16.mxu0 %v1983
      %2113 = vmatmul.mubr.bf16.gmra.mrb[0].mxu0 %v1982
      %v2114 = vpop.f32.mrb[0].mxu0
      %v2115 = vadd.f32 0.0, %v2114
      %v2116 = vpop.f32.mrb[0].mxu0
      %v2117 = vpop.f32.mrb[0].mxu0
      %v2118 = vadd.f32 0.0, %v2117
      %v2119 = vpop.f32.mrb[0].mxu0
      %2120 = vmatprep.mubr.bf16.mxu0 %v1985
      %2121 = vmatmul.mubr.bf16.gmra.mrb[0].mxu0 %v1984
      %v2122 = vpop.f32.mrb[0].mxu0
      %v2123 = vadd.f32 0.0, %v2122
      %v2124 = vpop.f32.mrb[0].mxu0
      %v2125 = vpop.f32.mrb[0].mxu0
      %v2126 = vadd.f32 0.0, %v2125
      %v2127 = vpop.f32.mrb[0].mxu0
      %2128 = vmatprep.mubr.bf16.mxu0 %v1987
      %2129 = vmatmul.mubr.bf16.gmra.mrb[0].mxu0 %v1986
      %v2130 = vpop.f32.mrb[0].mxu0
      %v2131 = vadd.f32 0.0, %v2130
      %v2132 = vpop.f32.mrb[0].mxu0
      %v2133 = vpop.f32.mrb[0].mxu0
      %v2134 = vadd.f32 0.0, %v2133
      %v2135 = vpop.f32.mrb[0].mxu0
      %2136 = vmatprep.mubr.bf16.mxu0 %v1989
      %2137 = vmatmul.mubr.bf16.gmra.mrb[0].mxu0 %v1988
      %v2138 = vpop.f32.mrb[0].mxu0
      %v2139 = vadd.f32 0.0, %v2138
      %v2140 = vpop.f32.mrb[0].mxu0
      %v2141 = vpop.f32.mrb[0].mxu0
      %v2142 = vadd.f32 0.0, %v2141
      %v2143 = vpop.f32.mrb[0].mxu0
      %2144 = vmatprep.mubr.bf16.mxu0 %v1991
      %2145 = vmatmul.mubr.bf16.gmra.mrb[0].mxu0 %v1990
      %v2146 = vpop.f32.mrb[0].mxu0
      %v2147 = vadd.f32 0.0, %v2146
      %v2148 = vpop.f32.mrb[0].mxu0
      %v2149 = vpop.f32.mrb[0].mxu0
      %v2150 = vadd.f32 0.0, %v2149
      %v2151 = vpop.f32.mrb[0].mxu0
      %2152 = vmatprep.mubr.bf16.mxu0 %v1993
      %2153 = vmatmul.mubr.bf16.gmra.mrb[0].mxu0 %v1992
      %v2154 = vpop.f32.mrb[0].mxu0
      %v2155 = vadd.f32 0.0, %v2154
      %v2156 = vpop.f32.mrb[0].mxu0
      %v2157 = vpop.f32.mrb[0].mxu0
      %v2158 = vadd.f32 0.0, %v2157
      %v2159 = vpop.f32.mrb[0].mxu0
      %2160 = vmatprep.mubr.bf16.mxu0 %v1995
      %2161 = vmatmul.mubr.bf16.gmra.mrb[0].mxu0 %v1994
      %v2162 = vpop.f32.mrb[0].mxu0
      %v2163 = vadd.f32 0.0, %v2162
      %v2164 = vpop.f32.mrb[0].mxu0
      %v2165 = vpop.f32.mrb[0].mxu0
      %v2166 = vadd.f32 0.0, %v2165
      %v2167 = vpop.f32.mrb[0].mxu0
      %2168 = vmatprep.mubr.bf16.mxu0 %v1997
      %2169 = vmatmul.mubr.bf16.gmra.mrb[0].mxu0 %v1996
      %v2170 = vpop.f32.mrb[0].mxu0
      %v2171 = vadd.f32 0.0, %v2170
      %v2172 = vpop.f32.mrb[0].mxu0
      %v2173 = vpop.f32.mrb[0].mxu0
      %v2174 = vadd.f32 0.0, %v2173
      %v2175 = vpop.f32.mrb[0].mxu0
      %2176 = vmatprep.mubr.bf16.mxu0 %v1999
      %2177 = vmatmul.mubr.bf16.gmra.mrb[0].mxu0 %v1998
      %v2178 = vpop.f32.mrb[0].mxu0
      %v2179 = vadd.f32 0.0, %v2178
      %v2180 = vpop.f32.mrb[0].mxu0
      %v2181 = vpop.f32.mrb[0].mxu0
      %v2182 = vadd.f32 0.0, %v2181
      %v2183 = vpop.f32.mrb[0].mxu0
      %2184 = vmatprep.mubr.bf16.mxu0 %v2001
      %2185 = vmatmul.mubr.bf16.gmra.mrb[0].mxu0 %v2000
      %v2186 = vpop.f32.mrb[0].mxu0
      %v2187 = vadd.f32 0.0, %v2186
      %v2188 = vpop.f32.mrb[0].mxu0
      %v2189 = vpop.f32.mrb[0].mxu0
      %v2190 = vadd.f32 0.0, %v2189
      %v2191 = vpop.f32.mrb[0].mxu0
      %2192 = vmatprep.mubr.bf16.mxu0 %v2003
      %2193 = vmatmul.mubr.bf16.gmra.mrb[0].mxu0 %v2002
      %v2194 = vpop.f32.mrb[0].mxu0
      %v2195 = vadd.f32 0.0, %v2194
      %v2196 = vpop.f32.mrb[0].mxu0
      %v2197 = vpop.f32.mrb[0].mxu0
      %v2198 = vadd.f32 0.0, %v2197
      %v2199 = vpop.f32.mrb[0].mxu0
      %2200 = vmatprep.mubr.bf16.mxu0 %v2005
      %2201 = vmatmul.mubr.bf16.gmra.mrb[0].mxu0 %v2004
      %v2202 = vpop.f32.mrb[0].mxu0
      %v2203 = vadd.f32 0.0, %v2202
      %v2204 = vpop.f32.mrb[0].mxu0
      %v2205 = vpop.f32.mrb[0].mxu0
      %v2206 = vadd.f32 0.0, %v2205
      %v2207 = vpop.f32.mrb[0].mxu0
      %2208 = vmatprep.mubr.bf16.mxu0 %v2007
      %2209 = vmatmul.mubr.bf16.gmra.mrb[0].mxu0 %v2006
      %v2210 = vpop.f32.mrb[0].mxu0
      %v2211 = vadd.f32 0.0, %v2210
      %v2212 = vpop.f32.mrb[0].mxu0
      %v2213 = vpop.f32.mrb[0].mxu0
      %v2214 = vadd.f32 0.0, %v2213
      %v2215 = vpop.f32.mrb[0].mxu0
      %2216 = vdwg.mxu0
      %v2217 = vpack.c.bf16 %v2094, %v2091
      %v2218 = vpack.c.bf16 %v2102, %v2099
      %v2219 = vpack.c.bf16 %v2110, %v2107
      %v2220 = vpack.c.bf16 %v2118, %v2115
      %v2221 = vpack.c.bf16 %v2126, %v2123
      %v2222 = vpack.c.bf16 %v2134, %v2131
      %v2223 = vpack.c.bf16 %v2142, %v2139
      %v2224 = vpack.c.bf16 %v2150, %v2147
      %v2225 = vpack.c.bf16 %v2158, %v2155
      %v2226 = vpack.c.bf16 %v2166, %v2163
      %v2227 = vpack.c.bf16 %v2174, %v2171
      %v2228 = vpack.c.bf16 %v2182, %v2179
      %v2229 = vpack.c.bf16 %v2190, %v2187
      %v2230 = vpack.c.bf16 %v2198, %v2195
      %v2231 = vpack.c.bf16 %v2206, %v2203
      %v2232 = vpack.c.bf16 %v2214, %v2211
      %v2233 = vld [vmem:[%s9] sm:$0xf]
      %v2234 = vld [vmem:[%s10] sm:$0x1]
      %v2236 = vlaneseq
      %v2237 = vshrl.u32 %v2236, 7
      %v2238 = vsub.s32 0, %v2237
      %v2239 = vrot.slane %v2234, %v2238
      %v2242 = vsel %vm865, %v2217, 0
      %v2245 = vsel %vm865, %v2218, 0
      %v2248 = vsel %vm865, %v2219, 0
      %v2251 = vsel %vm865, %v2220, 0
      %v2254 = vsel %vm865, %v2221, 0
      %v2257 = vsel %vm865, %v2222, 0
      %v2260 = vsel %vm865, %v2223, 0
      %v2263 = vsel %vm865, %v2224, 0
      %v2266 = vsel %vm865, %v2225, 0
      %v2269 = vsel %vm865, %v2226, 0
      %v2272 = vsel %vm865, %v2227, 0
      %v2275 = vsel %vm865, %v2228, 0
      %v2278 = vsel %vm865, %v2229, 0
      %v2281 = vsel %vm865, %v2230, 0
      %v2284 = vsel %vm865, %v2231, 0
      %v2287 = vsel %vm865, %v2232, 0
      %v2290 = vsel %vm914, %v2233, 0
      %2292 = vmatprep.subr.bf16.mxu0 0
      %2293 = vmatpush1.bf16.msra.mxu0 %v2290
      %2294 = vmatprep.subr.bf16.mxu0 0
      %2295 = vmatpush1.bf16.msra.mxu0 0
      %2296 = vmatprep.subr.bf16.mxu0 0
      %2297 = vmatpush1.bf16.msra.mxu0 0
      %2298 = vmatprep.subr.bf16.mxu0 0
      %2299 = vmatpush1.bf16.msra.mxu0 0
      %2300 = vmatprep.subr.bf16.mxu0 0
      %2301 = vmatpush1.bf16.msra.mxu0 0
      %2302 = vmatprep.subr.bf16.mxu0 0
      %2303 = vmatpush1.bf16.msra.mxu0 0
      %2304 = vmatprep.subr.bf16.mxu0 0
      %2305 = vmatpush1.bf16.msra.mxu0 0
      %2306 = vmatprep.subr.bf16.mxu0 0
      %2307 = vmatpush1.bf16.msra.mxu0 0
      %2308 = vmatprep.subr.bf16.mxu0 0
      %2309 = vmatpush1.bf16.msra.mxu0 0
      %2310 = vmatprep.subr.bf16.mxu0 0
      %2311 = vmatpush1.bf16.msra.mxu0 0
      %2312 = vmatprep.subr.bf16.mxu0 0
      %2313 = vmatpush1.bf16.msra.mxu0 0
      %2314 = vmatprep.subr.bf16.mxu0 0
      %2315 = vmatpush1.bf16.msra.mxu0 0
      %2316 = vmatprep.subr.bf16.mxu0 0
      %2317 = vmatpush1.bf16.msra.mxu0 0
      %2318 = vmatprep.subr.bf16.mxu0 0
      %2319 = vmatpush1.bf16.msra.mxu0 0
      %2320 = vmatprep.subr.bf16.mxu0 0
      %2321 = vmatpush1.bf16.msra.mxu0 0
      %2322 = vmatprep.subr.bf16.mxu0 0
      %2323 = vmatpush1.bf16.msra.mxu0 0
      %2324 = vmatprep.mubr.bf16.mxu0 0
      %2325 = vmatmul.mubr.bf16.gmra.mrb[0].mxu0 %v2242
      %v2326 = vpop.f32.mrb[0].mxu0
      %v2327 = vadd.f32 %v2239, %v2326
      %v2328 = vpop.f32.mrb[0].mxu0
      %v2329 = vpop.f32.mrb[0].mxu0
      %v2330 = vadd.f32 %v2239, %v2329
      %v2331 = vpop.f32.mrb[0].mxu0
      %2332 = vmatprep.mubr.bf16.mxu0 0
      %2333 = vmatmul.mubr.bf16.gmra.mrb[0].mxu0 %v2245
      %v2334 = vpop.f32.mrb[0].mxu0
      %v2335 = vadd.f32 %v2239, %v2334
      %v2336 = vpop.f32.mrb[0].mxu0
      %v2337 = vpop.f32.mrb[0].mxu0
      %v2338 = vadd.f32 %v2239, %v2337
      %v2339 = vpop.f32.mrb[0].mxu0
      %2340 = vmatprep.mubr.bf16.mxu0 0
      %2341 = vmatmul.mubr.bf16.gmra.mrb[0].mxu0 %v2248
      %v2342 = vpop.f32.mrb[0].mxu0
      %v2343 = vadd.f32 %v2239, %v2342
      %v2344 = vpop.f32.mrb[0].mxu0
      %v2345 = vpop.f32.mrb[0].mxu0
      %v2346 = vadd.f32 %v2239, %v2345
      %v2347 = vpop.f32.mrb[0].mxu0
      %2348 = vmatprep.mubr.bf16.mxu0 0
      %2349 = vmatmul.mubr.bf16.gmra.mrb[0].mxu0 %v2251
      %v2350 = vpop.f32.mrb[0].mxu0
      %v2351 = vadd.f32 %v2239, %v2350
      %v2352 = vpop.f32.mrb[0].mxu0
      %v2353 = vpop.f32.mrb[0].mxu0
      %v2354 = vadd.f32 %v2239, %v2353
      %v2355 = vpop.f32.mrb[0].mxu0
      %2356 = vmatprep.mubr.bf16.mxu0 0
      %2357 = vmatmul.mubr.bf16.gmra.mrb[0].mxu0 %v2254
      %v2358 = vpop.f32.mrb[0].mxu0
      %v2359 = vadd.f32 %v2239, %v2358
      %v2360 = vpop.f32.mrb[0].mxu0
      %v2361 = vpop.f32.mrb[0].mxu0
      %v2362 = vadd.f32 %v2239, %v2361
      %v2363 = vpop.f32.mrb[0].mxu0
      %2364 = vmatprep.mubr.bf16.mxu0 0
      %2365 = vmatmul.mubr.bf16.gmra.mrb[0].mxu0 %v2257
      %v2366 = vpop.f32.mrb[0].mxu0
      %v2367 = vadd.f32 %v2239, %v2366
      %v2368 = vpop.f32.mrb[0].mxu0
      %v2369 = vpop.f32.mrb[0].mxu0
      %v2370 = vadd.f32 %v2239, %v2369
      %v2371 = vpop.f32.mrb[0].mxu0
      %2372 = vmatprep.mubr.bf16.mxu0 0
      %2373 = vmatmul.mubr.bf16.gmra.mrb[0].mxu0 %v2260
      %v2374 = vpop.f32.mrb[0].mxu0
      %v2375 = vadd.f32 %v2239, %v2374
      %v2376 = vpop.f32.mrb[0].mxu0
      %v2377 = vpop.f32.mrb[0].mxu0
      %v2378 = vadd.f32 %v2239, %v2377
      %v2379 = vpop.f32.mrb[0].mxu0
      %2380 = vmatprep.mubr.bf16.mxu0 0
      %2381 = vmatmul.mubr.bf16.gmra.mrb[0].mxu0 %v2263
      %v2382 = vpop.f32.mrb[0].mxu0
      %v2383 = vadd.f32 %v2239, %v2382
      %v2384 = vpop.f32.mrb[0].mxu0
      %v2385 = vpop.f32.mrb[0].mxu0
      %v2386 = vadd.f32 %v2239, %v2385
      %v2387 = vpop.f32.mrb[0].mxu0
      %2388 = vmatprep.mubr.bf16.mxu0 0
      %2389 = vmatmul.mubr.bf16.gmra.mrb[0].mxu0 %v2266
      %v2390 = vpop.f32.mrb[0].mxu0
      %v2391 = vadd.f32 %v2239, %v2390
      %v2392 = vpop.f32.mrb[0].mxu0
      %v2393 = vpop.f32.mrb[0].mxu0
      %v2394 = vadd.f32 %v2239, %v2393
      %v2395 = vpop.f32.mrb[0].mxu0
      %2396 = vmatprep.mubr.bf16.mxu0 0
      %2397 = vmatmul.mubr.bf16.gmra.mrb[0].mxu0 %v2269
      %v2398 = vpop.f32.mrb[0].mxu0
      %v2399 = vadd.f32 %v2239, %v2398
      %v2400 = vpop.f32.mrb[0].mxu0
      %v2401 = vpop.f32.mrb[0].mxu0
      %v2402 = vadd.f32 %v2239, %v2401
      %v2403 = vpop.f32.mrb[0].mxu0
      %2404 = vmatprep.mubr.bf16.mxu0 0
      %2405 = vmatmul.mubr.bf16.gmra.mrb[0].mxu0 %v2272
      %v2406 = vpop.f32.mrb[0].mxu0
      %v2407 = vadd.f32 %v2239, %v2406
      %v2408 = vpop.f32.mrb[0].mxu0
      %v2409 = vpop.f32.mrb[0].mxu0
      %v2410 = vadd.f32 %v2239, %v2409
      %v2411 = vpop.f32.mrb[0].mxu0
      %2412 = vmatprep.mubr.bf16.mxu0 0
      %2413 = vmatmul.mubr.bf16.gmra.mrb[0].mxu0 %v2275
      %v2414 = vpop.f32.mrb[0].mxu0
      %v2415 = vadd.f32 %v2239, %v2414
      %v2416 = vpop.f32.mrb[0].mxu0
      %v2417 = vpop.f32.mrb[0].mxu0
      %v2418 = vadd.f32 %v2239, %v2417
      %v2419 = vpop.f32.mrb[0].mxu0
      %2420 = vmatprep.mubr.bf16.mxu0 0
      %2421 = vmatmul.mubr.bf16.gmra.mrb[0].mxu0 %v2278
      %v2422 = vpop.f32.mrb[0].mxu0
      %v2423 = vadd.f32 %v2239, %v2422
      %v2424 = vpop.f32.mrb[0].mxu0
      %v2425 = vpop.f32.mrb[0].mxu0
      %v2426 = vadd.f32 %v2239, %v2425
      %v2427 = vpop.f32.mrb[0].mxu0
      %2428 = vmatprep.mubr.bf16.mxu0 0
      %2429 = vmatmul.mubr.bf16.gmra.mrb[0].mxu0 %v2281
      %v2430 = vpop.f32.mrb[0].mxu0
      %v2431 = vadd.f32 %v2239, %v2430
      %v2432 = vpop.f32.mrb[0].mxu0
      %v2433 = vpop.f32.mrb[0].mxu0
      %v2434 = vadd.f32 %v2239, %v2433
      %v2435 = vpop.f32.mrb[0].mxu0
      %2436 = vmatprep.mubr.bf16.mxu0 0
      %2437 = vmatmul.mubr.bf16.gmra.mrb[0].mxu0 %v2284
      %v2438 = vpop.f32.mrb[0].mxu0
      %v2439 = vadd.f32 %v2239, %v2438
      %v2440 = vpop.f32.mrb[0].mxu0
      %v2441 = vpop.f32.mrb[0].mxu0
      %v2442 = vadd.f32 %v2239, %v2441
      %v2443 = vpop.f32.mrb[0].mxu0
      %2444 = vmatprep.mubr.bf16.mxu0 0
      %2445 = vmatmul.mubr.bf16.gmra.mrb[0].mxu0 %v2287
      %v2446 = vpop.f32.mrb[0].mxu0
      %v2447 = vadd.f32 %v2239, %v2446
      %v2448 = vpop.f32.mrb[0].mxu0
      %v2449 = vpop.f32.mrb[0].mxu0
      %v2450 = vadd.f32 %v2239, %v2449
      %v2451 = vpop.f32.mrb[0].mxu0
      %2452 = vdwg.mxu0
      %v2453 = vld [vmem:[%s509] sm:$0xff]
      %v2454 = vld [vmem:[%s509 + $0x8] sm:$0xff]
      %v2455 = vld [vmem:[%s509 + $0x10] sm:$0xff]
      %v2456 = vld [vmem:[%s509 + $0x18] sm:$0xff]
      %v2457 = vld [vmem:[%s509 + $0x20] sm:$0xff]
      %v2458 = vld [vmem:[%s509 + $0x28] sm:$0xff]
      %v2459 = vld [vmem:[%s509 + $0x30] sm:$0xff]
      %v2460 = vld [vmem:[%s509 + $0x38] sm:$0xff]
      %v2461 = vld [vmem:[%s509 + $0x40] sm:$0xff]
      %v2462 = vld [vmem:[%s509 + $0x48] sm:$0xff]
      %v2463 = vld [vmem:[%s509 + $0x50] sm:$0xff]
      %v2464 = vld [vmem:[%s509 + $0x58] sm:$0xff]
      %v2465 = vld [vmem:[%s509 + $0x60] sm:$0xff]
      %v2466 = vld [vmem:[%s509 + $0x68] sm:$0xff]
      %v2467 = vld [vmem:[%s509 + $0x70] sm:$0xff]
      %v2468 = vld [vmem:[%s509 + $0x78] sm:$0xff]
      %v2469 = vld [vmem:[%s509 + $0x80] sm:$0xff]
      %v2470 = vld [vmem:[%s509 + $0x88] sm:$0xff]
      %v2471 = vld [vmem:[%s509 + $0x90] sm:$0xff]
      %v2472 = vld [vmem:[%s509 + $0x98] sm:$0xff]
      %v2473 = vld [vmem:[%s509 + $0xa0] sm:$0xff]
      %v2474 = vld [vmem:[%s509 + $0xa8] sm:$0xff]
      %v2475 = vld [vmem:[%s509 + $0xb0] sm:$0xff]
      %v2476 = vld [vmem:[%s509 + $0xb8] sm:$0xff]
      %v2477 = vld [vmem:[%s509 + $0xc0] sm:$0xff]
      %v2478 = vld [vmem:[%s509 + $0xc8] sm:$0xff]
      %v2479 = vld [vmem:[%s509 + $0xd0] sm:$0xff]
      %v2480 = vld [vmem:[%s509 + $0xd8] sm:$0xff]
      %v2481 = vld [vmem:[%s509 + $0xe0] sm:$0xff]
      %v2482 = vld [vmem:[%s509 + $0xe8] sm:$0xff]
      %v2483 = vld [vmem:[%s509 + $0xf0] sm:$0xff]
      %v2484 = vld [vmem:[%s509 + $0xf8] sm:$0xff]
      %v2486 = vlaneseq
      %v2487 = vshrl.u32 %v2486, 7
      %v2488 = vsub.s32 0, %v2487
      %v2489 = vrot.slane %v622, %v2488
      %v2491 = vmul.f32 %v2453, %v2489
      %v2492 = vmul.f32 %v2454, %v2489
      %v2493 = vmul.f32 %v2455, %v2489
      %v2494 = vmul.f32 %v2456, %v2489
      %v2495 = vmul.f32 %v2457, %v2489
      %v2496 = vmul.f32 %v2458, %v2489
      %v2497 = vmul.f32 %v2459, %v2489
      %v2498 = vmul.f32 %v2460, %v2489
      %v2499 = vmul.f32 %v2461, %v2489
      %v2500 = vmul.f32 %v2462, %v2489
      %v2501 = vmul.f32 %v2463, %v2489
      %v2502 = vmul.f32 %v2464, %v2489
      %v2503 = vmul.f32 %v2465, %v2489
      %v2504 = vmul.f32 %v2466, %v2489
      %v2505 = vmul.f32 %v2467, %v2489
      %v2506 = vmul.f32 %v2468, %v2489
      %v2507 = vmul.f32 %v2469, %v2489
      %v2508 = vmul.f32 %v2470, %v2489
      %v2509 = vmul.f32 %v2471, %v2489
      %v2510 = vmul.f32 %v2472, %v2489
      %v2511 = vmul.f32 %v2473, %v2489
      %v2512 = vmul.f32 %v2474, %v2489
      %v2513 = vmul.f32 %v2475, %v2489
      %v2514 = vmul.f32 %v2476, %v2489
      %v2515 = vmul.f32 %v2477, %v2489
      %v2516 = vmul.f32 %v2478, %v2489
      %v2517 = vmul.f32 %v2479, %v2489
      %v2518 = vmul.f32 %v2480, %v2489
      %v2519 = vmul.f32 %v2481, %v2489
      %v2520 = vmul.f32 %v2482, %v2489
      %v2521 = vmul.f32 %v2483, %v2489
      %v2522 = vmul.f32 %v2484, %v2489
      %v2524 = vlaneseq
      %v2525 = vshrl.u32 %v2524, 7
      %v2526 = vsub.s32 0, %v2525
      %v2527 = vrot.slane %v624, %v2526
      %v2529 = vadd.f32 %v2491, %v2527
      %v2530 = vadd.f32 %v2492, %v2527
      %v2531 = vadd.f32 %v2493, %v2527
      %v2532 = vadd.f32 %v2494, %v2527
      %v2533 = vadd.f32 %v2495, %v2527
      %v2534 = vadd.f32 %v2496, %v2527
      %v2535 = vadd.f32 %v2497, %v2527
      %v2536 = vadd.f32 %v2498, %v2527
      %v2537 = vadd.f32 %v2499, %v2527
      %v2538 = vadd.f32 %v2500, %v2527
      %v2539 = vadd.f32 %v2501, %v2527
      %v2540 = vadd.f32 %v2502, %v2527
      %v2541 = vadd.f32 %v2503, %v2527
      %v2542 = vadd.f32 %v2504, %v2527
      %v2543 = vadd.f32 %v2505, %v2527
      %v2544 = vadd.f32 %v2506, %v2527
      %v2545 = vadd.f32 %v2507, %v2527
      %v2546 = vadd.f32 %v2508, %v2527
      %v2547 = vadd.f32 %v2509, %v2527
      %v2548 = vadd.f32 %v2510, %v2527
      %v2549 = vadd.f32 %v2511, %v2527
      %v2550 = vadd.f32 %v2512, %v2527
      %v2551 = vadd.f32 %v2513, %v2527
      %v2552 = vadd.f32 %v2514, %v2527
      %v2553 = vadd.f32 %v2515, %v2527
      %v2554 = vadd.f32 %v2516, %v2527
      %v2555 = vadd.f32 %v2517, %v2527
      %v2556 = vadd.f32 %v2518, %v2527
      %v2557 = vadd.f32 %v2519, %v2527
      %v2558 = vadd.f32 %v2520, %v2527
      %v2559 = vadd.f32 %v2521, %v2527
      %v2560 = vadd.f32 %v2522, %v2527
      %v2561 = vmax.f32 %v2529, 0.0
      %v2562 = vmax.f32 %v2530, 0.0
      %v2563 = vmax.f32 %v2531, 0.0
      %v2564 = vmax.f32 %v2532, 0.0
      %v2565 = vmax.f32 %v2533, 0.0
      %v2566 = vmax.f32 %v2534, 0.0
      %v2567 = vmax.f32 %v2535, 0.0
      %v2568 = vmax.f32 %v2536, 0.0
      %v2569 = vmax.f32 %v2537, 0.0
      %v2570 = vmax.f32 %v2538, 0.0
      %v2571 = vmax.f32 %v2539, 0.0
      %v2572 = vmax.f32 %v2540, 0.0
      %v2573 = vmax.f32 %v2541, 0.0
      %v2574 = vmax.f32 %v2542, 0.0
      %v2575 = vmax.f32 %v2543, 0.0
      %v2576 = vmax.f32 %v2544, 0.0
      %v2577 = vmax.f32 %v2545, 0.0
      %v2578 = vmax.f32 %v2546, 0.0
      %v2579 = vmax.f32 %v2547, 0.0
      %v2580 = vmax.f32 %v2548, 0.0
      %v2581 = vmax.f32 %v2549, 0.0
      %v2582 = vmax.f32 %v2550, 0.0
      %v2583 = vmax.f32 %v2551, 0.0
      %v2584 = vmax.f32 %v2552, 0.0
      %v2585 = vmax.f32 %v2553, 0.0
      %v2586 = vmax.f32 %v2554, 0.0
      %v2587 = vmax.f32 %v2555, 0.0
      %v2588 = vmax.f32 %v2556, 0.0
      %v2589 = vmax.f32 %v2557, 0.0
      %v2590 = vmax.f32 %v2558, 0.0
      %v2591 = vmax.f32 %v2559, 0.0
      %v2592 = vmax.f32 %v2560, 0.0
      %v2593 = vadd.f32 %v2327, %v733
      %v2594 = vadd.f32 %v2330, %v734
      %v2595 = vadd.f32 %v2335, %v735
      %v2596 = vadd.f32 %v2338, %v736
      %v2597 = vadd.f32 %v2343, %v737
      %v2598 = vadd.f32 %v2346, %v738
      %v2599 = vadd.f32 %v2351, %v739
      %v2600 = vadd.f32 %v2354, %v740
      %v2601 = vadd.f32 %v2359, %v741
      %v2602 = vadd.f32 %v2362, %v742
      %v2603 = vadd.f32 %v2367, %v743
      %v2604 = vadd.f32 %v2370, %v744
      %v2605 = vadd.f32 %v2375, %v745
      %v2606 = vadd.f32 %v2378, %v746
      %v2607 = vadd.f32 %v2383, %v747
      %v2608 = vadd.f32 %v2386, %v748
      %v2609 = vadd.f32 %v2391, %v749
      %v2610 = vadd.f32 %v2394, %v750
      %v2611 = vadd.f32 %v2399, %v751
      %v2612 = vadd.f32 %v2402, %v752
      %v2613 = vadd.f32 %v2407, %v753
      %v2614 = vadd.f32 %v2410, %v754
      %v2615 = vadd.f32 %v2415, %v755
      %v2616 = vadd.f32 %v2418, %v756
      %v2617 = vadd.f32 %v2423, %v757
      %v2618 = vadd.f32 %v2426, %v758
      %v2619 = vadd.f32 %v2431, %v759
      %v2620 = vadd.f32 %v2434, %v760
      %v2621 = vadd.f32 %v2439, %v761
      %v2622 = vadd.f32 %v2442, %v762
      %v2623 = vadd.f32 %v2447, %v763
      %v2624 = vadd.f32 %v2450, %v764
      %v2625 = vadd.f32 %v2593, %v2561
      %v2626 = vadd.f32 %v2594, %v2562
      %v2627 = vadd.f32 %v2595, %v2563
      %v2628 = vadd.f32 %v2596, %v2564
      %v2629 = vadd.f32 %v2597, %v2565
      %v2630 = vadd.f32 %v2598, %v2566
      %v2631 = vadd.f32 %v2599, %v2567
      %v2632 = vadd.f32 %v2600, %v2568
      %v2633 = vadd.f32 %v2601, %v2569
      %v2634 = vadd.f32 %v2602, %v2570
      %v2635 = vadd.f32 %v2603, %v2571
      %v2636 = vadd.f32 %v2604, %v2572
      %v2637 = vadd.f32 %v2605, %v2573
      %v2638 = vadd.f32 %v2606, %v2574
      %v2639 = vadd.f32 %v2607, %v2575
      %v2640 = vadd.f32 %v2608, %v2576
      %v2641 = vadd.f32 %v2609, %v2577
      %v2642 = vadd.f32 %v2610, %v2578
      %v2643 = vadd.f32 %v2611, %v2579
      %v2644 = vadd.f32 %v2612, %v2580
      %v2645 = vadd.f32 %v2613, %v2581
      %v2646 = vadd.f32 %v2614, %v2582
      %v2647 = vadd.f32 %v2615, %v2583
      %v2648 = vadd.f32 %v2616, %v2584
      %v2649 = vadd.f32 %v2617, %v2585
      %v2650 = vadd.f32 %v2618, %v2586
      %v2651 = vadd.f32 %v2619, %v2587
      %v2652 = vadd.f32 %v2620, %v2588
      %v2653 = vadd.f32 %v2621, %v2589
      %v2654 = vadd.f32 %v2622, %v2590
      %v2655 = vadd.f32 %v2623, %v2591
      %v2656 = vadd.f32 %v2624, %v2592
      %2657 = vst.msk [vmem:[%s514] sm:$0xff] %vm865, %v2625
      %2658 = vst.msk [vmem:[%s514 + $0x8] sm:$0xff] %vm865, %v2626
      %2659 = vst.msk [vmem:[%s514 + $0x10] sm:$0xff] %vm865, %v2627
      %2660 = vst.msk [vmem:[%s514 + $0x18] sm:$0xff] %vm865, %v2628
      %2661 = vst.msk [vmem:[%s514 + $0x20] sm:$0xff] %vm865, %v2629
      %2662 = vst.msk [vmem:[%s514 + $0x28] sm:$0xff] %vm865, %v2630
      %2663 = vst.msk [vmem:[%s514 + $0x30] sm:$0xff] %vm865, %v2631
      %2664 = vst.msk [vmem:[%s514 + $0x38] sm:$0xff] %vm865, %v2632
      %2665 = vst.msk [vmem:[%s514 + $0x40] sm:$0xff] %vm865, %v2633
      %2666 = vst.msk [vmem:[%s514 + $0x48] sm:$0xff] %vm865, %v2634
      %2667 = vst.msk [vmem:[%s514 + $0x50] sm:$0xff] %vm865, %v2635
      %2668 = vst.msk [vmem:[%s514 + $0x58] sm:$0xff] %vm865, %v2636
      %2669 = vst.msk [vmem:[%s514 + $0x60] sm:$0xff] %vm865, %v2637
      %2670 = vst.msk [vmem:[%s514 + $0x68] sm:$0xff] %vm865, %v2638
      %2671 = vst.msk [vmem:[%s514 + $0x70] sm:$0xff] %vm865, %v2639
      %2672 = vst.msk [vmem:[%s514 + $0x78] sm:$0xff] %vm865, %v2640
      %2673 = vst.msk [vmem:[%s514 + $0x80] sm:$0xff] %vm865, %v2641
      %2674 = vst.msk [vmem:[%s514 + $0x88] sm:$0xff] %vm865, %v2642
      %2675 = vst.msk [vmem:[%s514 + $0x90] sm:$0xff] %vm865, %v2643
      %2676 = vst.msk [vmem:[%s514 + $0x98] sm:$0xff] %vm865, %v2644
      %2677 = vst.msk [vmem:[%s514 + $0xa0] sm:$0xff] %vm865, %v2645
      %2678 = vst.msk [vmem:[%s514 + $0xa8] sm:$0xff] %vm865, %v2646
      %2679 = vst.msk [vmem:[%s514 + $0xb0] sm:$0xff] %vm865, %v2647
      %2680 = vst.msk [vmem:[%s514 + $0xb8] sm:$0xff] %vm865, %v2648
      %2681 = vst.msk [vmem:[%s514 + $0xc0] sm:$0xff] %vm865, %v2649
      %2682 = vst.msk [vmem:[%s514 + $0xc8] sm:$0xff] %vm865, %v2650
      %2683 = vst.msk [vmem:[%s514 + $0xd0] sm:$0xff] %vm865, %v2651
      %2684 = vst.msk [vmem:[%s514 + $0xd8] sm:$0xff] %vm865, %v2652
      %2685 = vst.msk [vmem:[%s514 + $0xe0] sm:$0xff] %vm865, %v2653
      %2686 = vst.msk [vmem:[%s514 + $0xe8] sm:$0xff] %vm865, %v2654
      %2687 = vst.msk [vmem:[%s514 + $0xf0] sm:$0xff] %vm865, %v2655
      %2688 = vst.msk [vmem:[%s514 + $0xf8] sm:$0xff] %vm865, %v2656
      %p2689 = scmp.lt.s32.totalorder %s26, 1
      %s2690 = scalar_select %p2689, %s26, 1
      %s2691 = smul.addr %s2690, 32
      %s2692 = smul.addr %s2691, 8
      %s2693 = scalar_lea.vmem %s15, %s2692
      // Predicated region
      $region81: #{resblk_forward.7} parent=79 // pred_check
        %p2694 = pneg %p369
      $region82: #{resblk_forward.7} parent=79 // pred_check_branch
        %2696 = sbr.rel (%p2694) target = $region84
      $region83: #{resblk_forward.7} parent=79 // pred_region
        _
      $region84: #{resblk_forward.7} parent=79 // pred_fallthru
        _
    $region80: #{resblk_forward.7} parent=5 // pred_fallthru
      _
    %p2697 = scmp.le.s32.totalorder 2, %s21
    // Predicated region
    $region85: #{resblk_forward.7} parent=5 // pred_check
      %p2698 = pneg %p2697
    $region86: #{resblk_forward.7} parent=5 // pred_check_branch
      %2700 = sbr.rel (%p2698) target = $region88
    $region87: #{resblk_forward.7} parent=5 // pred_region
      %s2701 = ssub.s32 %s21, 2
      // Predicated region
      $region89: #{resblk_forward.7} parent=87 // pred_check
        %p2702 = pneg %p375
      $region90: #{resblk_forward.7} parent=87 // pred_check_branch
        %2704 = sbr.rel (%p2702) target = $region92
      $region91: #{resblk_forward.7} parent=87 // pred_region
        %p2705 = scmp.lt.s32.totalorder %s27, 1
        %s2706 = scalar_select %p2705, %s27, 1
        %s2707 = smul.addr %s2706, 32
        %s2708 = smul.addr %s2707, 8
        %s2709 = scalar_lea.vmem %s15, %s2708
      $region92: #{resblk_forward.7} parent=87 // pred_fallthru
        _
    $region88: #{resblk_forward.7} parent=5 // pred_fallthru
      _
  $region6: #{resblk_forward.7} parent=0 // loop_footer
    %s25 = sadd.s32 1, %s21
  $region7: #{resblk_forward.7} parent=0 // loop_footer_branch
    %20 = sbr.rel target = $region3
  $region8: #{resblk_forward.7} parent=0 // loop_exit
    _

// kernel: resblk_forward.5
$region0: #{resblk_forward.5}
  #allocation0 [shape = 'u32[]', space=smem, size = 0x4, offset = 0x4, fixed_abs, tag = 'smem constant byte address 0x4 - core index']
  #allocation1 [shape = 'u32[144,128]{1,0:T(1,128)}', space=vmem, size = 0x12000, scoped, tag = 'internal scratch']
  %s0 = inlined_call_operand.vmem [shape: f32[2,16,16,8], index: 0, kind: input, shape index: {}]
  %s1 = inlined_call_operand.vmem [shape: f32[2,2,8], index: 1, kind: input, shape index: {}]
  %s2 = inlined_call_operand.vmem [shape: bf16[72,8], index: 2, kind: input, shape index: {}]
  %s3 = inlined_call_operand.vmem [shape: f32[1,8], index: 3, kind: input, shape index: {}]
  %s4 = inlined_call_operand.vmem [shape: f32[1,8], index: 4, kind: input, shape index: {}]
  %s5 = inlined_call_operand.vmem [shape: f32[2,16,16,8], index: 5, kind: output, shape index: {0}]
  %s6 = inlined_call_operand.vmem [shape: f32[2,2,8], index: 6, kind: output, shape index: {1}]
  %7 = xla_tuple %s5, %s6
  %s8 = sld [smem:[#allocation0]]
  $region61: #{resblk_forward.5} parent=0
    _
  %s10 = ssub.s32 1, %s8
  %s11 = scalar_select 0, %s10, %s8
  loop: start=0, step=1, limit=4
  $region2: #{resblk_forward.5} parent=0 // loop_pre_header
    _
  $region3: #{resblk_forward.5} parent=0 // loop_header
    %s13 = sphi 0, %s17
    %p14 = scmp.ge.s32.totalorder %s13, 4
    %s23 = sphi 0, %s25
    %s26 = sphi 0, %s23
    %s27 = sphi 0, %s26
    %s43 = sphi 0, %s27
    %s47 = sphi 0, %s47
    %s49 = sphi 0, %s47
    %s50 = sphi 0, %s49
    %s64 = sphi 0, %s50
    %s68 = sphi 0, %s68
    %s70 = sphi 0, %s68
    %s71 = sphi 0, %s70
    %s85 = sphi 0, %s71
    %s89 = sphi 0, %s89
    %s91 = sphi 0, %s89
    %s92 = sphi 0, %s91
    %s106 = sphi 0, %s92
    %s110 = sphi 0, %s110
    %s112 = sphi 0, %s110
    %s113 = sphi 0, %s112
    %s127 = sphi 0, %s113
    %s133 = sphi 0, %s135
    %s136 = sphi 0, %s133
    %s137 = sphi 0, %s136
    %s153 = sphi 0, %s137
    %s159 = sphi 0, %s161
    %s162 = sphi 0, %s159
    %s163 = sphi 0, %s162
    %s179 = sphi 0, %s163
  $region4: #{resblk_forward.5} parent=0 // loop_header_branch
    %16 = sbr.rel (%p14) target = $region8
  $region5: #{resblk_forward.5} parent=0 // loop_body
    %s18 = ssub.s32 %s13, 1
    %s19 = ssub.s32 %s13, 2
    %s20 = sadd.s32 %s13, 1
    %s21 = ssub.s32 %s13, %s20
    %p22 = scmp.eq.s32.totalorder %s21, 0
    %s24 = sadd.s32 %s23, 1
    %s25 = scalar_select %p22, %s23, %s24
    %p28 = pneg %p22
    %p29 = scmp.eq.s32.totalorder %s13, 1
    %p30 = por %p28, %p29
    %p31 = scmp.ne.s32.totalorder %s23, %s26
    %p32 = scmp.eq.s32.totalorder %s13, 0
    %p33 = por %p31, %p32
    %p34 = scmp.ne.s32.totalorder %s23, %s26
    %p35 = scmp.eq.s32.totalorder %s18, 1
    %p36 = por %p34, %p35
    %p37 = scmp.ne.s32.totalorder %s26, %s27
    %p38 = scmp.eq.s32.totalorder %s18, 0
    %p39 = por %p37, %p38
    %p40 = scmp.ne.s32.totalorder %s26, %s27
    %p41 = scmp.eq.s32.totalorder %s19, 1
    %p42 = por %p40, %p41
    %p44 = scmp.ne.s32.totalorder %s27, %s43
    %p45 = scmp.eq.s32.totalorder %s19, 0
    %p46 = por %p44, %p45
    %s48 = sadd.s32 %s47, 1
    %p51 = scmp.eq.s32.totalorder %s13, 1
    %p52 = scmp.ne.s32.totalorder %s47, %s49
    %p53 = scmp.eq.s32.totalorder %s13, 0
    %p54 = por %p52, %p53
    %p55 = scmp.ne.s32.totalorder %s47, %s49
    %p56 = scmp.eq.s32.totalorder %s18, 1
    %p57 = por %p55, %p56
    %p58 = scmp.ne.s32.totalorder %s49, %s50
    %p59 = scmp.eq.s32.totalorder %s18, 0
    %p60 = por %p58, %p59
    %p61 = scmp.ne.s32.totalorder %s49, %s50
    %p62 = scmp.eq.s32.totalorder %s19, 1
    %p63 = por %p61, %p62
    %p65 = scmp.ne.s32.totalorder %s50, %s64
    %p66 = scmp.eq.s32.totalorder %s19, 0
    %p67 = por %p65, %p66
    %s69 = sadd.s32 %s68, 1
    %p72 = scmp.eq.s32.totalorder %s13, 1
    %p73 = scmp.ne.s32.totalorder %s68, %s70
    %p74 = scmp.eq.s32.totalorder %s13, 0
    %p75 = por %p73, %p74
    %p76 = scmp.ne.s32.totalorder %s68, %s70
    %p77 = scmp.eq.s32.totalorder %s18, 1
    %p78 = por %p76, %p77
    %p79 = scmp.ne.s32.totalorder %s70, %s71
    %p80 = scmp.eq.s32.totalorder %s18, 0
    %p81 = por %p79, %p80
    %p82 = scmp.ne.s32.totalorder %s70, %s71
    %p83 = scmp.eq.s32.totalorder %s19, 1
    %p84 = por %p82, %p83
    %p86 = scmp.ne.s32.totalorder %s71, %s85
    %p87 = scmp.eq.s32.totalorder %s19, 0
    %p88 = por %p86, %p87
    %s90 = sadd.s32 %s89, 1
    %p93 = scmp.eq.s32.totalorder %s13, 1
    %p94 = scmp.ne.s32.totalorder %s89, %s91
    %p95 = scmp.eq.s32.totalorder %s13, 0
    %p96 = por %p94, %p95
    %p97 = scmp.ne.s32.totalorder %s89, %s91
    %p98 = scmp.eq.s32.totalorder %s18, 1
    %p99 = por %p97, %p98
    %p100 = scmp.ne.s32.totalorder %s91, %s92
    %p101 = scmp.eq.s32.totalorder %s18, 0
    %p102 = por %p100, %p101
    %p103 = scmp.ne.s32.totalorder %s91, %s92
    %p104 = scmp.eq.s32.totalorder %s19, 1
    %p105 = por %p103, %p104
    %p107 = scmp.ne.s32.totalorder %s92, %s106
    %p108 = scmp.eq.s32.totalorder %s19, 0
    %p109 = por %p107, %p108
    %s111 = sadd.s32 %s110, 1
    %p114 = scmp.eq.s32.totalorder %s13, 1
    %p115 = scmp.ne.s32.totalorder %s110, %s112
    %p116 = scmp.eq.s32.totalorder %s13, 0
    %p117 = por %p115, %p116
    %p118 = scmp.ne.s32.totalorder %s110, %s112
    %p119 = scmp.eq.s32.totalorder %s18, 1
    %p120 = por %p118, %p119
    %p121 = scmp.ne.s32.totalorder %s112, %s113
    %p122 = scmp.eq.s32.totalorder %s18, 0
    %p123 = por %p121, %p122
    %p124 = scmp.ne.s32.totalorder %s112, %s113
    %p125 = scmp.eq.s32.totalorder %s19, 1
    %p126 = por %p124, %p125
    %p128 = scmp.ne.s32.totalorder %s113, %s127
    %p129 = scmp.eq.s32.totalorder %s19, 0
    %p130 = por %p128, %p129
    %s131 = ssub.s32 %s13, %s20
    %p132 = scmp.eq.s32.totalorder %s131, 0
    %s134 = sadd.s32 %s133, 1
    %s135 = scalar_select %p132, %s133, %s134
    %p138 = pneg %p132
    %p139 = scmp.eq.s32.totalorder %s13, 1
    %p140 = por %p138, %p139
    %p141 = scmp.ne.s32.totalorder %s133, %s136
    %p142 = scmp.eq.s32.totalorder %s13, 0
    %p143 = por %p141, %p142
    %p144 = scmp.ne.s32.totalorder %s133, %s136
    %p145 = scmp.eq.s32.totalorder %s18, 1
    %p146 = por %p144, %p145
    %p147 = scmp.ne.s32.totalorder %s136, %s137
    %p148 = scmp.eq.s32.totalorder %s18, 0
    %p149 = por %p147, %p148
    %p150 = scmp.ne.s32.totalorder %s136, %s137
    %p151 = scmp.eq.s32.totalorder %s19, 1
    %p152 = por %p150, %p151
    %p154 = scmp.ne.s32.totalorder %s137, %s153
    %p155 = scmp.eq.s32.totalorder %s19, 0
    %p156 = por %p154, %p155
    %s157 = ssub.s32 %s13, %s20
    %p158 = scmp.eq.s32.totalorder %s157, 0
    %s160 = sadd.s32 %s159, 1
    %s161 = scalar_select %p158, %s159, %s160
    %p164 = pneg %p158
    %p165 = scmp.eq.s32.totalorder %s13, 1
    %p166 = por %p164, %p165
    %p167 = scmp.ne.s32.totalorder %s159, %s162
    %p168 = scmp.eq.s32.totalorder %s13, 0
    %p169 = por %p167, %p168
    %p170 = scmp.ne.s32.totalorder %s159, %s162
    %p171 = scmp.eq.s32.totalorder %s18, 1
    %p172 = por %p170, %p171
    %p173 = scmp.ne.s32.totalorder %s162, %s163
    %p174 = scmp.eq.s32.totalorder %s18, 0
    %p175 = por %p173, %p174
    %p176 = scmp.ne.s32.totalorder %s162, %s163
    %p177 = scmp.eq.s32.totalorder %s19, 1
    %p178 = por %p176, %p177
    %p180 = scmp.ne.s32.totalorder %s163, %s179
    %p181 = scmp.eq.s32.totalorder %s19, 0
    %p182 = por %p180, %p181
    %p183 = scmp.le.s32.totalorder 1, %s13
    %p184 = scmp.lt.s32.totalorder %s13, 3
    %p185 = pnand %p183, %p184
    %p186 = pneg %p185
    // Predicated region
    $region9: #{resblk_forward.5} parent=5 // pred_check
      _
    $region10: #{resblk_forward.5} parent=5 // pred_check_branch
      %188 = sbr.rel (%p185) target = $region12
    $region11: #{resblk_forward.5} parent=5 // pred_region
      %s189 = ssub.s32 %s13, 1
      // Predicated region
      $region13: #{resblk_forward.5} parent=11 // pred_check
        %p190 = pneg %p60
      $region14: #{resblk_forward.5} parent=11 // pred_check_branch
        %192 = sbr.rel (%p190) target = $region16
      $region15: #{resblk_forward.5} parent=11 // pred_region
        _
      $region16: #{resblk_forward.5} parent=11 // pred_fallthru
        _
      // Predicated region
      $region17: #{resblk_forward.5} parent=11 // pred_check
        %p193 = pneg %p81
      $region18: #{resblk_forward.5} parent=11 // pred_check_branch
        %195 = sbr.rel (%p193) target = $region20
      $region19: #{resblk_forward.5} parent=11 // pred_region
        _
      $region20: #{resblk_forward.5} parent=11 // pred_fallthru
        _
      // Predicated region
      $region21: #{resblk_forward.5} parent=11 // pred_check
        %p196 = pneg %p102
      $region22: #{resblk_forward.5} parent=11 // pred_check_branch
        %198 = sbr.rel (%p196) target = $region24
      $region23: #{resblk_forward.5} parent=11 // pred_region
        _
      $region24: #{resblk_forward.5} parent=11 // pred_fallthru
        _
      // Predicated region
      $region25: #{resblk_forward.5} parent=11 // pred_check
        %p199 = pneg %p123
      $region26: #{resblk_forward.5} parent=11 // pred_check_branch
        %201 = sbr.rel (%p199) target = $region28
      $region27: #{resblk_forward.5} parent=11 // pred_region
        _
      $region28: #{resblk_forward.5} parent=11 // pred_fallthru
        _
    $region12: #{resblk_forward.5} parent=5 // pred_fallthru
      _
    %p202 = scmp.lt.s32.totalorder %s13, 2
    // Predicated region
    $region29: #{resblk_forward.5} parent=5 // pred_check
      %p203 = pneg %p202
    $region30: #{resblk_forward.5} parent=5 // pred_check_branch
      %205 = sbr.rel (%p203) target = $region32
    $region31: #{resblk_forward.5} parent=5 // pred_region
      // Predicated region
      $region33: #{resblk_forward.5} parent=31 // pred_check
        %p206 = pneg %p33
      $region34: #{resblk_forward.5} parent=31 // pred_check_branch
        %208 = sbr.rel (%p206) target = $region36
      $region35: #{resblk_forward.5} parent=31 // pred_region
        %p209 = scmp.lt.s32.totalorder %s13, 1
        %s210 = scalar_select %p209, %s13, 1
        %s211 = smul.addr %s210, 32
        %s212 = smul.addr %s211, 8
        %s213 = scalar_lea.vmem %s0, %s212
      $region36: #{resblk_forward.5} parent=31 // pred_fallthru
        _
    $region32: #{resblk_forward.5} parent=5 // pred_fallthru
      _
    %p214 = scmp.le.s32.totalorder 1, %s13
    %p215 = scmp.lt.s32.totalorder %s13, 3
    %p216 = pnand %p214, %p215
    %p217 = pneg %p216
    // Predicated region
    $region37: #{resblk_forward.5} parent=5 // pred_check
      _
    $region38: #{resblk_forward.5} parent=5 // pred_check_branch
      %219 = sbr.rel (%p216) target = $region40
    $region39: #{resblk_forward.5} parent=5 // pred_region
      %s220 = ssub.s32 %s13, 1
      %p221 = scmp.lt.s32.totalorder %s18, 1
      %s222 = scalar_select %p221, %s18, 1
      %s223 = smul.addr %s222, 32
      %s224 = smul.addr %s223, 8
      %s225 = scalar_lea.vmem %s0, %s224
      %p226 = pneg %p39
      %p227 = pneg %p36
      %p228 = pneg %p60
      %p229 = pneg %p57
      %p230 = pneg %p81
      %p231 = pneg %p78
      %p232 = pneg %p102
      %p233 = pneg %p99
      %p234 = pneg %p123
      %p235 = pneg %p120
      %p236 = pneg %p149
      %p237 = pneg %p146
      %p238 = scmp.lt.s32.totalorder %s18, 1
      %s239 = scalar_select %p238, %s18, 1
      %s240 = smul.addr %s239, 32
      %s241 = smul.addr %s240, 8
      %s242 = scalar_lea.vmem %s5, %s241
      %p243 = pneg %p175
      %p244 = pneg %p172
      %p245 = scmp.lt.s32.totalorder %s18, 1
      %s246 = scalar_select %p245, %s18, 1
      %s247 = smul.addr %s246, 2
      %s248 = scalar_lea.vmem %s6, %s247
      %p249 = scmp.lt.s32.totalorder %s18, 1
      %s250 = scalar_select %p249, %s18, 1
      %s251 = smul.addr %s250, 32
      %s252 = smul.addr %s251, 8
      %s253 = scalar_lea.vmem %s0, %s252
      %p254 = scmp.lt.s32.totalorder %s18, 1
      %s255 = scalar_select %p254, %s18, 1
      %s256 = smul.addr %s255, 32
      %s257 = smul.addr %s256, 8
      %s258 = scalar_lea.vmem %s5, %s257
      %p259 = scmp.lt.s32.totalorder %s18, 1
      %s260 = scalar_select %p259, %s18, 1
      %s261 = smul.addr %s260, 2
      %s262 = scalar_lea.vmem %s6, %s261
      %v264 = vld [vmem:[%s1] sm:$0x3]
      %v265 = vld [vmem:[%s1 + $0x2] sm:$0x3]
      %v266 = vld [vmem:[%s3] sm:$0x1]
      %v267 = vld [vmem:[%s4] sm:$0x1]
      %vm268 = vcmask 58368
      %v269 = vsel %vm268, %v264, 0.0
      %v270 = vsel %vm268, %v265, 0.0
      %v271 = vadd.f32 %v269, %v270
      %v272 = vmul.f32 %v271, 0.001953125
      %v273 = vmul.f32 %v272, %v272
      %v275 = vrot.slane %v273, 7
      %v277 = vsub.f32 %v272, %v275
      %v278 = vmax.f32 %v277, 0.0
      %v279 = vadd.f32 %v278, 1e-05
      %v280 = vrsqrt.pop %v279
      %v283 = vunpack.c.l.s4 1966171168
      %v284 = vunpack.c.0.s8 %v283
      %v285 = vlaneseq
      %v286 = vshrl.u32 %v285, 7
      %v287 = vsub.s32 %v284, %v286
      %v288 = vrot.slane %v280, %v287
      %v289 = vcombine.high %v288, %v288
      %v291 = vunpack.c.l.s4 1966171168
      %v292 = vunpack.c.0.s8 %v291
      %v293 = vlaneseq
      %v294 = vshrl.u32 %v293, 7
      %v295 = vsub.s32 %v292, %v294
      %v296 = vrot.slane %v289, %v295
      %v298 = vmul.f32 %v266, %v296
      %v299 = vmul.f32 %v272, %v298
      %v300 = vsub.f32 %v267, %v299
      %v301 = vld [vmem:[%s253] sm:$0xff]
      %v302 = vld [vmem:[%s253 + $0x8] sm:$0xff]
      %v303 = vld [vmem:[%s253 + $0x10] sm:$0xff]
      %v304 = vld [vmem:[%s253 + $0x18] sm:$0xff]
      %v305 = vld [vmem:[%s253 + $0x20] sm:$0xff]
      %v306 = vld [vmem:[%s253 + $0x28] sm:$0xff]
      %v307 = vld [vmem:[%s253 + $0x30] sm:$0xff]
      %v308 = vld [vmem:[%s253 + $0x38] sm:$0xff]
      %v309 = vld [vmem:[%s253 + $0x40] sm:$0xff]
      %v310 = vld [vmem:[%s253 + $0x48] sm:$0xff]
      %v311 = vld [vmem:[%s253 + $0x50] sm:$0xff]
      %v312 = vld [vmem:[%s253 + $0x58] sm:$0xff]
      %v313 = vld [vmem:[%s253 + $0x60] sm:$0xff]
      %v314 = vld [vmem:[%s253 + $0x68] sm:$0xff]
      %v315 = vld [vmem:[%s253 + $0x70] sm:$0xff]
      %v316 = vld [vmem:[%s253 + $0x78] sm:$0xff]
      %v317 = vld [vmem:[%s253 + $0x80] sm:$0xff]
      %v318 = vld [vmem:[%s253 + $0x88] sm:$0xff]
      %v319 = vld [vmem:[%s253 + $0x90] sm:$0xff]
      %v320 = vld [vmem:[%s253 + $0x98] sm:$0xff]
      %v321 = vld [vmem:[%s253 + $0xa0] sm:$0xff]
      %v322 = vld [vmem:[%s253 + $0xa8] sm:$0xff]
      %v323 = vld [vmem:[%s253 + $0xb0] sm:$0xff]
      %v324 = vld [vmem:[%s253 + $0xb8] sm:$0xff]
      %v325 = vld [vmem:[%s253 + $0xc0] sm:$0xff]
      %v326 = vld [vmem:[%s253 + $0xc8] sm:$0xff]
      %v327 = vld [vmem:[%s253 + $0xd0] sm:$0xff]
      %v328 = vld [vmem:[%s253 + $0xd8] sm:$0xff]
      %v329 = vld [vmem:[%s253 + $0xe0] sm:$0xff]
      %v330 = vld [vmem:[%s253 + $0xe8] sm:$0xff]
      %v331 = vld [vmem:[%s253 + $0xf0] sm:$0xff]
      %v332 = vld [vmem:[%s253 + $0xf8] sm:$0xff]
      %v334 = vlaneseq
      %v335 = vshrl.u32 %v334, 7
      %v336 = vsub.s32 0, %v335
      %v337 = vrot.slane %v298, %v336
      %v339 = vmul.f32 %v301, %v337
      %v340 = vmul.f32 %v302, %v337
      %v341 = vmul.f32 %v303, %v337
      %v342 = vmul.f32 %v304, %v337
      %v343 = vmul.f32 %v305, %v337
      %v344 = vmul.f32 %v306, %v337
      %v345 = vmul.f32 %v307, %v337
      %v346 = vmul.f32 %v308, %v337
      %v347 = vmul.f32 %v309, %v337
      %v348 = vmul.f32 %v310, %v337
      %v349 = vmul.f32 %v311, %v337
      %v350 = vmul.f32 %v312, %v337
      %v351 = vmul.f32 %v313, %v337
      %v352 = vmul.f32 %v314, %v337
      %v353 = vmul.f32 %v315, %v337
      %v354 = vmul.f32 %v316, %v337
      %v355 = vmul.f32 %v317, %v337
      %v356 = vmul.f32 %v318, %v337
      %v357 = vmul.f32 %v319, %v337
      %v358 = vmul.f32 %v320, %v337
      %v359 = vmul.f32 %v321, %v337
      %v360 = vmul.f32 %v322, %v337
      %v361 = vmul.f32 %v323, %v337
      %v362 = vmul.f32 %v324, %v337
      %v363 = vmul.f32 %v325, %v337
      %v364 = vmul.f32 %v326, %v337
      %v365 = vmul.f32 %v327, %v337
      %v366 = vmul.f32 %v328, %v337
      %v367 = vmul.f32 %v329, %v337
      %v368 = vmul.f32 %v330, %v337
      %v369 = vmul.f32 %v331, %v337
      %v370 = vmul.f32 %v332, %v337
      %v372 = vlaneseq
      %v373 = vshrl.u32 %v372, 7
      %v374 = vsub.s32 0, %v373
      %v375 = vrot.slane %v300, %v374
      %v377 = vadd.f32 %v339, %v375
      %v378 = vadd.f32 %v340, %v375
      %v379 = vadd.f32 %v341, %v375
      %v380 = vadd.f32 %v342, %v375
      %v381 = vadd.f32 %v343, %v375
      %v382 = vadd.f32 %v344, %v375
      %v383 = vadd.f32 %v345, %v375
      %v384 = vadd.f32 %v346, %v375
      %v385 = vadd.f32 %v347, %v375
      %v386 = vadd.f32 %v348, %v375
      %v387 = vadd.f32 %v349, %v375
      %v388 = vadd.f32 %v350, %v375
      %v389 = vadd.f32 %v351, %v375
      %v390 = vadd.f32 %v352, %v375
      %v391 = vadd.f32 %v353, %v375
      %v392 = vadd.f32 %v354, %v375
      %v393 = vadd.f32 %v355, %v375
      %v394 = vadd.f32 %v356, %v375
      %v395 = vadd.f32 %v357, %v375
      %v396 = vadd.f32 %v358, %v375
      %v397 = vadd.f32 %v359, %v375
      %v398 = vadd.f32 %v360, %v375
      %v399 = vadd.f32 %v361, %v375
      %v400 = vadd.f32 %v362, %v375
      %v401 = vadd.f32 %v363, %v375
      %v402 = vadd.f32 %v364, %v375
      %v403 = vadd.f32 %v365, %v375
      %v404 = vadd.f32 %v366, %v375
      %v405 = vadd.f32 %v367, %v375
      %v406 = vadd.f32 %v368, %v375
      %v407 = vadd.f32 %v369, %v375
      %v408 = vadd.f32 %v370, %v375
      %v409 = vmax.f32 %v377, 0.0
      %v410 = vmax.f32 %v378, 0.0
      %v411 = vmax.f32 %v379, 0.0
      %v412 = vmax.f32 %v380, 0.0
      %v413 = vmax.f32 %v381, 0.0
      %v414 = vmax.f32 %v382, 0.0
      %v415 = vmax.f32 %v383, 0.0
      %v416 = vmax.f32 %v384, 0.0
      %v417 = vmax.f32 %v385, 0.0
      %v418 = vmax.f32 %v386, 0.0
      %v419 = vmax.f32 %v387, 0.0
      %v420 = vmax.f32 %v388, 0.0
      %v421 = vmax.f32 %v389, 0.0
      %v422 = vmax.f32 %v390, 0.0
      %v423 = vmax.f32 %v391, 0.0
      %v424 = vmax.f32 %v392, 0.0
      %v425 = vmax.f32 %v393, 0.0
      %v426 = vmax.f32 %v394, 0.0
      %v427 = vmax.f32 %v395, 0.0
      %v428 = vmax.f32 %v396, 0.0
      %v429 = vmax.f32 %v397, 0.0
      %v430 = vmax.f32 %v398, 0.0
      %v431 = vmax.f32 %v399, 0.0
      %v432 = vmax.f32 %v400, 0.0
      %v433 = vmax.f32 %v401, 0.0
      %v434 = vmax.f32 %v402, 0.0
      %v435 = vmax.f32 %v403, 0.0
      %v436 = vmax.f32 %v404, 0.0
      %v437 = vmax.f32 %v405, 0.0
      %v438 = vmax.f32 %v406, 0.0
      %v439 = vmax.f32 %v407, 0.0
      %v440 = vmax.f32 %v408, 0.0
      %vm474 = vcmask 1040384
      %v475 = vrot.slane 0.0, 7
      %v476 = vsel %vm474, %v475, %v475
      %v477 = vrot.slane %v409, 7
      %v478 = vrot.slane %v410, 7
      %v479 = vsel %vm474, %v477, %v478
      %v480 = vrot.slane %v411, 7
      %v481 = vrot.slane %v412, 7
      %v482 = vsel %vm474, %v480, %v481
      %v483 = vrot.slane %v413, 7
      %v484 = vrot.slane %v414, 7
      %v485 = vsel %vm474, %v483, %v484
      %v486 = vrot.slane %v415, 7
      %v487 = vrot.slane %v416, 7
      %v488 = vsel %vm474, %v486, %v487
      %v489 = vrot.slane %v417, 7
      %v490 = vrot.slane %v418, 7
      %v491 = vsel %vm474, %v489, %v490
      %v492 = vrot.slane %v419, 7
      %v493 = vrot.slane %v420, 7
      %v494 = vsel %vm474, %v492, %v493
      %v495 = vrot.slane %v421, 7
      %v496 = vrot.slane %v422, 7
      %v497 = vsel %vm474, %v495, %v496
      %v498 = vrot.slane %v423, 7
      %v499 = vrot.slane %v424, 7
      %v500 = vsel %vm474, %v498, %v499
      %v501 = vrot.slane %v425, 7
      %v502 = vrot.slane %v426, 7
      %v503 = vsel %vm474, %v501, %v502
      %v504 = vrot.slane %v427, 7
      %v505 = vrot.slane %v428, 7
      %v506 = vsel %vm474, %v504, %v505
      %v507 = vrot.slane %v429, 7
      %v508 = vrot.slane %v430, 7
      %v509 = vsel %vm474, %v507, %v508
      %v510 = vrot.slane %v431, 7
      %v511 = vrot.slane %v432, 7
      %v512 = vsel %vm474, %v510, %v511
      %v513 = vrot.slane %v433, 7
      %v514 = vrot.slane %v434, 7
      %v515 = vsel %vm474, %v513, %v514
      %v516 = vrot.slane %v435, 7
      %v517 = vrot.slane %v436, 7
      %v518 = vsel %vm474, %v516, %v517
      %v519 = vrot.slane %v437, 7
      %v520 = vrot.slane %v438, 7
      %v521 = vsel %vm474, %v519, %v520
      %v522 = vrot.slane %v439, 7
      %v523 = vrot.slane %v440, 7
      %v524 = vsel %vm474, %v522, %v523
      %v574 = vsel %vm474, 0.0, %v475
      %v575 = vsel %vm474, 0.0, %v477
      %v576 = vsel %vm474, 0.0, %v480
      %v577 = vsel %vm474, 0.0, %v483
      %v578 = vsel %vm474, 0.0, %v486
      %v579 = vsel %vm474, 0.0, %v489
      %v580 = vsel %vm474, 0.0, %v492
      %v581 = vsel %vm474, 0.0, %v495
      %v582 = vsel %vm474, 0.0, %v498
      %v583 = vsel %vm474, 0.0, %v501
      %v584 = vsel %vm474, 0.0, %v504
      %v585 = vsel %vm474, 0.0, %v507
      %v586 = vsel %vm474, 0.0, %v510
      %v587 = vsel %vm474, 0.0, %v513
      %v588 = vsel %vm474, 0.0, %v516
      %v589 = vsel %vm474, 0.0, %v519
      %v590 = vsel %vm474, 0.0, %v522
      %v591 = vsel %vm474, %v475, 0.0
      %v592 = vsel %vm474, %v478, 0.0
      %v593 = vsel %vm474, %v481, 0.0
      %v594 = vsel %vm474, %v484, 0.0
      %v595 = vsel %vm474, %v487, 0.0
      %v596 = vsel %vm474, %v490, 0.0
      %v597 = vsel %vm474, %v493, 0.0
      %v598 = vsel %vm474, %v496, 0.0
      %v599 = vsel %vm474, %v499, 0.0
      %v600 = vsel %vm474, %v502, 0.0
      %v601 = vsel %vm474, %v505, 0.0
      %v602 = vsel %vm474, %v508, 0.0
      %v603 = vsel %vm474, %v511, 0.0
      %v604 = vsel %vm474, %v514, 0.0
      %v605 = vsel %vm474, %v517, 0.0
      %v606 = vsel %vm474, %v520, 0.0
      %v607 = vsel %vm474, %v523, 0.0
      %vm640 = vcmask 1046528
      %v641 = vrot.slane %v574, 1
      %v642 = vrot.slane %v476, 1
      %v643 = vsel %vm640, %v641, %v642
      %v644 = vrot.slane %v591, 1
      %v645 = vsel %vm640, %v642, %v644
      %v646 = vrot.slane %v575, 1
      %v647 = vrot.slane %v479, 1
      %v648 = vsel %vm640, %v646, %v647
      %v649 = vrot.slane %v592, 1
      %v650 = vsel %vm640, %v647, %v649
      %v651 = vrot.slane %v576, 1
      %v652 = vrot.slane %v482, 1
      %v653 = vsel %vm640, %v651, %v652
      %v654 = vrot.slane %v593, 1
      %v655 = vsel %vm640, %v652, %v654
      %v656 = vrot.slane %v577, 1
      %v657 = vrot.slane %v485, 1
      %v658 = vsel %vm640, %v656, %v657
      %v659 = vrot.slane %v594, 1
      %v660 = vsel %vm640, %v657, %v659
      %v661 = vrot.slane %v578, 1
      %v662 = vrot.slane %v488, 1
      %v663 = vsel %vm640, %v661, %v662
      %v664 = vrot.slane %v595, 1
      %v665 = vsel %vm640, %v662, %v664
      %v666 = vrot.slane %v579, 1
      %v667 = vrot.slane %v491, 1
      %v668 = vsel %vm640, %v666, %v667
      %v669 = vrot.slane %v596, 1
      %v670 = vsel %vm640, %v667, %v669
      %v671 = vrot.slane %v580, 1
      %v672 = vrot.slane %v494, 1
      %v673 = vsel %vm640, %v671, %v672
      %v674 = vrot.slane %v597, 1
      %v675 = vsel %vm640, %v672, %v674
      %v676 = vrot.slane %v581, 1
      %v677 = vrot.slane %v497, 1
      %v678 = vsel %vm640, %v676, %v677
      %v679 = vrot.slane %v598, 1
      %v680 = vsel %vm640, %v677, %v679
      %v681 = vrot.slane %v582, 1
      %v682 = vrot.slane %v500, 1
      %v683 = vsel %vm640, %v681, %v682
      %v684 = vrot.slane %v599, 1
      %v685 = vsel %vm640, %v682, %v684
      %v686 = vrot.slane %v583, 1
      %v687 = vrot.slane %v503, 1
      %v688 = vsel %vm640, %v686, %v687
      %v689 = vrot.slane %v600, 1
      %v690 = vsel %vm640, %v687, %v689
      %v691 = vrot.slane %v584, 1
      %v692 = vrot.slane %v506, 1
      %v693 = vsel %vm640, %v691, %v692
      %v694 = vrot.slane %v601, 1
      %v695 = vsel %vm640, %v692, %v694
      %v696 = vrot.slane %v585, 1
      %v697 = vrot.slane %v509, 1
      %v698 = vsel %vm640, %v696, %v697
      %v699 = vrot.slane %v602, 1
      %v700 = vsel %vm640, %v697, %v699
      %v701 = vrot.slane %v586, 1
      %v702 = vrot.slane %v512, 1
      %v703 = vsel %vm640, %v701, %v702
      %v704 = vrot.slane %v603, 1
      %v705 = vsel %vm640, %v702, %v704
      %v706 = vrot.slane %v587, 1
      %v707 = vrot.slane %v515, 1
      %v708 = vsel %vm640, %v706, %v707
      %v709 = vrot.slane %v604, 1
      %v710 = vsel %vm640, %v707, %v709
      %v711 = vrot.slane %v588, 1
      %v712 = vrot.slane %v518, 1
      %v713 = vsel %vm640, %v711, %v712
      %v714 = vrot.slane %v605, 1
      %v715 = vsel %vm640, %v712, %v714
      %v716 = vrot.slane %v589, 1
      %v717 = vrot.slane %v521, 1
      %v718 = vsel %vm640, %v716, %v717
      %v719 = vrot.slane %v606, 1
      %v720 = vsel %vm640, %v717, %v719
      %721 = vrot.lane.b32.xlu0 %v643, 8
      %v722 = vpop.permute.xlu0 %721
      %723 = vrot.lane.b32.xlu0 %v645, 8
      %v724 = vpop.permute.xlu0 %723
      %725 = vrot.lane.b32.xlu0 %v648, 8
      %v726 = vpop.permute.xlu0 %725
      %727 = vrot.lane.b32.xlu0 %v650, 8
      %v728 = vpop.permute.xlu0 %727
      %729 = vrot.lane.b32.xlu0 %v653, 8
      %v730 = vpop.permute.xlu0 %729
      %731 = vrot.lane.b32.xlu0 %v655, 8
      %v732 = vpop.permute.xlu0 %731
      %733 = vrot.lane.b32.xlu0 %v658, 8
      %v734 = vpop.permute.xlu0 %733
      %735 = vrot.lane.b32.xlu0 %v660, 8
      %v736 = vpop.permute.xlu0 %735
      %737 = vrot.lane.b32.xlu0 %v663, 8
      %v738 = vpop.permute.xlu0 %737
      %739 = vrot.lane.b32.xlu0 %v665, 8
      %v740 = vpop.permute.xlu0 %739
      %741 = vrot.lane.b32.xlu0 %v668, 8
      %v742 = vpop.permute.xlu0 %741
      %743 = vrot.lane.b32.xlu0 %v670, 8
      %v744 = vpop.permute.xlu0 %743
      %745 = vrot.lane.b32.xlu0 %v673, 8
      %v746 = vpop.permute.xlu0 %745
      %747 = vrot.lane.b32.xlu0 %v675, 8
      %v748 = vpop.permute.xlu0 %747
      %749 = vrot.lane.b32.xlu0 %v678, 8
      %v750 = vpop.permute.xlu0 %749
      %751 = vrot.lane.b32.xlu0 %v680, 8
      %v752 = vpop.permute.xlu0 %751
      %753 = vrot.lane.b32.xlu0 %v683, 8
      %v754 = vpop.permute.xlu0 %753
      %755 = vrot.lane.b32.xlu0 %v685, 8
      %v756 = vpop.permute.xlu0 %755
      %757 = vrot.lane.b32.xlu0 %v688, 8
      %v758 = vpop.permute.xlu0 %757
      %759 = vrot.lane.b32.xlu0 %v690, 8
      %v760 = vpop.permute.xlu0 %759
      %761 = vrot.lane.b32.xlu0 %v693, 8
      %v762 = vpop.permute.xlu0 %761
      %763 = vrot.lane.b32.xlu0 %v695, 8
      %v764 = vpop.permute.xlu0 %763
      %765 = vrot.lane.b32.xlu0 %v698, 8
      %v766 = vpop.permute.xlu0 %765
      %767 = vrot.lane.b32.xlu0 %v700, 8
      %v768 = vpop.permute.xlu0 %767
      %769 = vrot.lane.b32.xlu0 %v703, 8
      %v770 = vpop.permute.xlu0 %769
      %771 = vrot.lane.b32.xlu0 %v705, 8
      %v772 = vpop.permute.xlu0 %771
      %773 = vrot.lane.b32.xlu0 %v708, 8
      %v774 = vpop.permute.xlu0 %773
      %775 = vrot.lane.b32.xlu0 %v710, 8
      %v776 = vpop.permute.xlu0 %775
      %777 = vrot.lane.b32.xlu0 %v713, 8
      %v778 = vpop.permute.xlu0 %777
      %779 = vrot.lane.b32.xlu0 %v715, 8
      %v780 = vpop.permute.xlu0 %779
      %781 = vrot.lane.b32.xlu0 %v718, 8
      %v782 = vpop.permute.xlu0 %781
      %783 = vrot.lane.b32.xlu0 %v720, 8
      %v784 = vpop.permute.xlu0 %783
      %vm817 = vcmask 1045504
      %v818 = vrot.slane %v574, 2
      %v819 = vrot.slane %v476, 2
      %v820 = vsel %vm817, %v818, %v819
      %v821 = vrot.slane %v591, 2
      %v822 = vsel %vm817, %v819, %v821
      %v823 = vrot.slane %v575, 2
      %v824 = vrot.slane %v479, 2
      %v825 = vsel %vm817, %v823, %v824
      %v826 = vrot.slane %v592, 2
      %v827 = vsel %vm817, %v824, %v826
      %v828 = vrot.slane %v576, 2
      %v829 = vrot.slane %v482, 2
      %v830 = vsel %vm817, %v828, %v829
      %v831 = vrot.slane %v593, 2
      %v832 = vsel %vm817, %v829, %v831
      %v833 = vrot.slane %v577, 2
      %v834 = vrot.slane %v485, 2
      %v835 = vsel %vm817, %v833, %v834
      %v836 = vrot.slane %v594, 2
      %v837 = vsel %vm817, %v834, %v836
      %v838 = vrot.slane %v578, 2
      %v839 = vrot.slane %v488, 2
      %v840 = vsel %vm817, %v838, %v839
      %v841 = vrot.slane %v595, 2
      %v842 = vsel %vm817, %v839, %v841
      %v843 = vrot.slane %v579, 2
      %v844 = vrot.slane %v491, 2
      %v845 = vsel %vm817, %v843, %v844
      %v846 = vrot.slane %v596, 2
      %v847 = vsel %vm817, %v844, %v846
      %v848 = vrot.slane %v580, 2
      %v849 = vrot.slane %v494, 2
      %v850 = vsel %vm817, %v848, %v849
      %v851 = vrot.slane %v597, 2
      %v852 = vsel %vm817, %v849, %v851
      %v853 = vrot.slane %v581, 2
      %v854 = vrot.slane %v497, 2
      %v855 = vsel %vm817, %v853, %v854
      %v856 = vrot.slane %v598, 2
      %v857 = vsel %vm817, %v854, %v856
      %v858 = vrot.slane %v582, 2
      %v859 = vrot.slane %v500, 2
      %v860 = vsel %vm817, %v858, %v859
      %v861 = vrot.slane %v599, 2
      %v862 = vsel %vm817, %v859, %v861
      %v863 = vrot.slane %v583, 2
      %v864 = vrot.slane %v503, 2
      %v865 = vsel %vm817, %v863, %v864
      %v866 = vrot.slane %v600, 2
      %v867 = vsel %vm817, %v864, %v866
      %v868 = vrot.slane %v584, 2
      %v869 = vrot.slane %v506, 2
      %v870 = vsel %vm817, %v868, %v869
      %v871 = vrot.slane %v601, 2
      %v872 = vsel %vm817, %v869, %v871
      %v873 = vrot.slane %v585, 2
      %v874 = vrot.slane %v509, 2
      %v875 = vsel %vm817, %v873, %v874
      %v876 = vrot.slane %v602, 2
      %v877 = vsel %vm817, %v874, %v876
      %v878 = vrot.slane %v586, 2
      %v879 = vrot.slane %v512, 2
      %v880 = vsel %vm817, %v878, %v879
      %v881 = vrot.slane %v603, 2
      %v882 = vsel %vm817, %v879, %v881
      %v883 = vrot.slane %v587, 2
      %v884 = vrot.slane %v515, 2
      %v885 = vsel %vm817, %v883, %v884
      %v886 = vrot.slane %v604, 2
      %v887 = vsel %vm817, %v884, %v886
      %v888 = vrot.slane %v588, 2
      %v889 = vrot.slane %v518, 2
      %v890 = vsel %vm817, %v888, %v889
      %v891 = vrot.slane %v605, 2
      %v892 = vsel %vm817, %v889, %v891
      %v893 = vrot.slane %v589, 2
      %v894 = vrot.slane %v521, 2
      %v895 = vsel %vm817, %v893, %v894
      %v896 = vrot.slane %v606, 2
      %v897 = vsel %vm817, %v894, %v896
      %898 = vrot.lane.b32.xlu0 %v820, 16
      %v899 = vpop.permute.xlu0 %898
      %900 = vrot.lane.b32.xlu0 %v822, 16
      %v901 = vpop.permute.xlu0 %900
      %902 = vrot.lane.b32.xlu0 %v825, 16
      %v903 = vpop.permute.xlu0 %902
      %904 = vrot.lane.b32.xlu0 %v827, 16
      %v905 = vpop.permute.xlu0 %904
      %906 = vrot.lane.b32.xlu0 %v830, 16
      %v907 = vpop.permute.xlu0 %906
      %908 = vrot.lane.b32.xlu0 %v832, 16
      %v909 = vpop.permute.xlu0 %908
      %910 = vrot.lane.b32.xlu0 %v835, 16
      %v911 = vpop.permute.xlu0 %910
      %912 = vrot.lane.b32.xlu0 %v837, 16
      %v913 = vpop.permute.xlu0 %912
      %914 = vrot.lane.b32.xlu0 %v840, 16
      %v915 = vpop.permute.xlu0 %914
      %916 = vrot.lane.b32.xlu0 %v842, 16
      %v917 = vpop.permute.xlu0 %916
      %918 = vrot.lane.b32.xlu0 %v845, 16
      %v919 = vpop.permute.xlu0 %918
      %920 = vrot.lane.b32.xlu0 %v847, 16
      %v921 = vpop.permute.xlu0 %920
      %922 = vrot.lane.b32.xlu0 %v850, 16
      %v923 = vpop.permute.xlu0 %922
      %924 = vrot.lane.b32.xlu0 %v852, 16
      %v925 = vpop.permute.xlu0 %924
      %926 = vrot.lane.b32.xlu0 %v855, 16
      %v927 = vpop.permute.xlu0 %926
      %928 = vrot.lane.b32.xlu0 %v857, 16
      %v929 = vpop.permute.xlu0 %928
      %930 = vrot.lane.b32.xlu0 %v860, 16
      %v931 = vpop.permute.xlu0 %930
      %932 = vrot.lane.b32.xlu0 %v862, 16
      %v933 = vpop.permute.xlu0 %932
      %934 = vrot.lane.b32.xlu0 %v865, 16
      %v935 = vpop.permute.xlu0 %934
      %936 = vrot.lane.b32.xlu0 %v867, 16
      %v937 = vpop.permute.xlu0 %936
      %938 = vrot.lane.b32.xlu0 %v870, 16
      %v939 = vpop.permute.xlu0 %938
      %940 = vrot.lane.b32.xlu0 %v872, 16
      %v941 = vpop.permute.xlu0 %940
      %942 = vrot.lane.b32.xlu0 %v875, 16
      %v943 = vpop.permute.xlu0 %942
      %944 = vrot.lane.b32.xlu0 %v877, 16
      %v945 = vpop.permute.xlu0 %944
      %946 = vrot.lane.b32.xlu0 %v880, 16
      %v947 = vpop.permute.xlu0 %946
      %948 = vrot.lane.b32.xlu0 %v882, 16
      %v949 = vpop.permute.xlu0 %948
      %950 = vrot.lane.b32.xlu0 %v885, 16
      %v951 = vpop.permute.xlu0 %950
      %952 = vrot.lane.b32.xlu0 %v887, 16
      %v953 = vpop.permute.xlu0 %952
      %954 = vrot.lane.b32.xlu0 %v890, 16
      %v955 = vpop.permute.xlu0 %954
      %956 = vrot.lane.b32.xlu0 %v892, 16
      %v957 = vpop.permute.xlu0 %956
      %958 = vrot.lane.b32.xlu0 %v895, 16
      %v959 = vpop.permute.xlu0 %958
      %960 = vrot.lane.b32.xlu0 %v897, 16
      %v961 = vpop.permute.xlu0 %960
      %995 = vrot.lane.b32.xlu0 %v575, 24
      %v996 = vpop.permute.xlu0 %995
      %997 = vrot.lane.b32.xlu0 %v479, 24
      %v998 = vpop.permute.xlu0 %997
      %999 = vrot.lane.b32.xlu0 %v576, 24
      %v1000 = vpop.permute.xlu0 %999
      %1001 = vrot.lane.b32.xlu0 %v482, 24
      %v1002 = vpop.permute.xlu0 %1001
      %1003 = vrot.lane.b32.xlu0 %v577, 24
      %v1004 = vpop.permute.xlu0 %1003
      %1005 = vrot.lane.b32.xlu0 %v485, 24
      %v1006 = vpop.permute.xlu0 %1005
      %1007 = vrot.lane.b32.xlu0 %v578, 24
      %v1008 = vpop.permute.xlu0 %1007
      %1009 = vrot.lane.b32.xlu0 %v488, 24
      %v1010 = vpop.permute.xlu0 %1009
      %1011 = vrot.lane.b32.xlu0 %v579, 24
      %v1012 = vpop.permute.xlu0 %1011
      %1013 = vrot.lane.b32.xlu0 %v491, 24
      %v1014 = vpop.permute.xlu0 %1013
      %1015 = vrot.lane.b32.xlu0 %v580, 24
      %v1016 = vpop.permute.xlu0 %1015
      %1017 = vrot.lane.b32.xlu0 %v494, 24
      %v1018 = vpop.permute.xlu0 %1017
      %1019 = vrot.lane.b32.xlu0 %v581, 24
      %v1020 = vpop.permute.xlu0 %1019
      %1021 = vrot.lane.b32.xlu0 %v497, 24
      %v1022 = vpop.permute.xlu0 %1021
      %1023 = vrot.lane.b32.xlu0 %v582, 24
      %v1024 = vpop.permute.xlu0 %1023
      %1025 = vrot.lane.b32.xlu0 %v500, 24
      %v1026 = vpop.permute.xlu0 %1025
      %1027 = vrot.lane.b32.xlu0 %v583, 24
      %v1028 = vpop.permute.xlu0 %1027
      %1029 = vrot.lane.b32.xlu0 %v503, 24
      %v1030 = vpop.permute.xlu0 %1029
      %1031 = vrot.lane.b32.xlu0 %v584, 24
      %v1032 = vpop.permute.xlu0 %1031
      %1033 = vrot.lane.b32.xlu0 %v506, 24
      %v1034 = vpop.permute.xlu0 %1033
      %1035 = vrot.lane.b32.xlu0 %v585, 24
      %v1036 = vpop.permute.xlu0 %1035
      %1037 = vrot.lane.b32.xlu0 %v509, 24
      %v1038 = vpop.permute.xlu0 %1037
      %1039 = vrot.lane.b32.xlu0 %v586, 24
      %v1040 = vpop.permute.xlu0 %1039
      %1041 = vrot.lane.b32.xlu0 %v512, 24
      %v1042 = vpop.permute.xlu0 %1041
      %1043 = vrot.lane.b32.xlu0 %v587, 24
      %v1044 = vpop.permute.xlu0 %1043
      %1045 = vrot.lane.b32.xlu0 %v515, 24
      %v1046 = vpop.permute.xlu0 %1045
      %1047 = vrot.lane.b32.xlu0 %v588, 24
      %v1048 = vpop.permute.xlu0 %1047
      %1049 = vrot.lane.b32.xlu0 %v518, 24
      %v1050 = vpop.permute.xlu0 %1049
      %1051 = vrot.lane.b32.xlu0 %v589, 24
      %v1052 = vpop.permute.xlu0 %1051
      %1053 = vrot.lane.b32.xlu0 %v521, 24
      %v1054 = vpop.permute.xlu0 %1053
      %1055 = vrot.lane.b32.xlu0 %v590, 24
      %v1056 = vpop.permute.xlu0 %1055
      %1057 = vrot.lane.b32.xlu0 %v524, 24
      %v1058 = vpop.permute.xlu0 %1057
      %v1092 = vrot.slane %v590, 1
      %v1093 = vrot.slane %v524, 1
      %v1094 = vsel %vm640, %v1092, %v1093
      %v1095 = vrot.slane %v607, 1
      %v1096 = vsel %vm640, %v1093, %v1095
      %1097 = vrot.lane.b32.xlu0 %v648, 32
      %v1098 = vpop.permute.xlu0 %1097
      %1099 = vrot.lane.b32.xlu0 %v650, 32
      %v1100 = vpop.permute.xlu0 %1099
      %1101 = vrot.lane.b32.xlu0 %v653, 32
      %v1102 = vpop.permute.xlu0 %1101
      %1103 = vrot.lane.b32.xlu0 %v655, 32
      %v1104 = vpop.permute.xlu0 %1103
      %1105 = vrot.lane.b32.xlu0 %v658, 32
      %v1106 = vpop.permute.xlu0 %1105
      %1107 = vrot.lane.b32.xlu0 %v660, 32
      %v1108 = vpop.permute.xlu0 %1107
      %1109 = vrot.lane.b32.xlu0 %v663, 32
      %v1110 = vpop.permute.xlu0 %1109
      %1111 = vrot.lane.b32.xlu0 %v665, 32
      %v1112 = vpop.permute.xlu0 %1111
      %1113 = vrot.lane.b32.xlu0 %v668, 32
      %v1114 = vpop.permute.xlu0 %1113
      %1115 = vrot.lane.b32.xlu0 %v670, 32
      %v1116 = vpop.permute.xlu0 %1115
      %1117 = vrot.lane.b32.xlu0 %v673, 32
      %v1118 = vpop.permute.xlu0 %1117
      %1119 = vrot.lane.b32.xlu0 %v675, 32
      %v1120 = vpop.permute.xlu0 %1119
      %1121 = vrot.lane.b32.xlu0 %v678, 32
      %v1122 = vpop.permute.xlu0 %1121
      %1123 = vrot.lane.b32.xlu0 %v680, 32
      %v1124 = vpop.permute.xlu0 %1123
      %1125 = vrot.lane.b32.xlu0 %v683, 32
      %v1126 = vpop.permute.xlu0 %1125
      %1127 = vrot.lane.b32.xlu0 %v685, 32
      %v1128 = vpop.permute.xlu0 %1127
      %1129 = vrot.lane.b32.xlu0 %v688, 32
      %v1130 = vpop.permute.xlu0 %1129
      %1131 = vrot.lane.b32.xlu0 %v690, 32
      %v1132 = vpop.permute.xlu0 %1131
      %1133 = vrot.lane.b32.xlu0 %v693, 32
      %v1134 = vpop.permute.xlu0 %1133
      %1135 = vrot.lane.b32.xlu0 %v695, 32
      %v1136 = vpop.permute.xlu0 %1135
      %1137 = vrot.lane.b32.xlu0 %v698, 32
      %v1138 = vpop.permute.xlu0 %1137
      %1139 = vrot.lane.b32.xlu0 %v700, 32
      %v1140 = vpop.permute.xlu0 %1139
      %1141 = vrot.lane.b32.xlu0 %v703, 32
      %v1142 = vpop.permute.xlu0 %1141
      %1143 = vrot.lane.b32.xlu0 %v705, 32
      %v1144 = vpop.permute.xlu0 %1143
      %1145 = vrot.lane.b32.xlu0 %v708, 32
      %v1146 = vpop.permute.xlu0 %1145
      %1147 = vrot.lane.b32.xlu0 %v710, 32
      %v1148 = vpop.permute.xlu0 %1147
      %1149 = vrot.lane.b32.xlu0 %v713, 32
      %v1150 = vpop.permute.xlu0 %1149
      %1151 = vrot.lane.b32.xlu0 %v715, 32
      %v1152 = vpop.permute.xlu0 %1151
      %1153 = vrot.lane.b32.xlu0 %v718, 32
      %v1154 = vpop.permute.xlu0 %1153
      %1155 = vrot.lane.b32.xlu0 %v720, 32
      %v1156 = vpop.permute.xlu0 %1155
      %1157 = vrot.lane.b32.xlu0 %v1094, 32
      %v1158 = vpop.permute.xlu0 %1157
      %1159 = vrot.lane.b32.xlu0 %v1096, 32
      %v1160 = vpop.permute.xlu0 %1159
      %v1193 = vrot.slane %v590, 2
      %v1194 = vrot.slane %v524, 2
      %v1195 = vsel %vm817, %v1193, %v1194
      %v1196 = vrot.slane %v607, 2
      %v1197 = vsel %vm817, %v1194, %v1196
      %1198 = vrot.lane.b32.xlu0 %v825, 40
      %v1199 = vpop.permute.xlu0 %1198
      %1200 = vrot.lane.b32.xlu0 %v827, 40
      %v1201 = vpop.permute.xlu0 %1200
      %1202 = vrot.lane.b32.xlu0 %v830, 40
      %v1203 = vpop.permute.xlu0 %1202
      %1204 = vrot.lane.b32.xlu0 %v832, 40
      %v1205 = vpop.permute.xlu0 %1204
      %1206 = vrot.lane.b32.xlu0 %v835, 40
      %v1207 = vpop.permute.xlu0 %1206
      %1208 = vrot.lane.b32.xlu0 %v837, 40
      %v1209 = vpop.permute.xlu0 %1208
      %1210 = vrot.lane.b32.xlu0 %v840, 40
      %v1211 = vpop.permute.xlu0 %1210
      %1212 = vrot.lane.b32.xlu0 %v842, 40
      %v1213 = vpop.permute.xlu0 %1212
      %1214 = vrot.lane.b32.xlu0 %v845, 40
      %v1215 = vpop.permute.xlu0 %1214
      %1216 = vrot.lane.b32.xlu0 %v847, 40
      %v1217 = vpop.permute.xlu0 %1216
      %1218 = vrot.lane.b32.xlu0 %v850, 40
      %v1219 = vpop.permute.xlu0 %1218
      %1220 = vrot.lane.b32.xlu0 %v852, 40
      %v1221 = vpop.permute.xlu0 %1220
      %1222 = vrot.lane.b32.xlu0 %v855, 40
      %v1223 = vpop.permute.xlu0 %1222
      %1224 = vrot.lane.b32.xlu0 %v857, 40
      %v1225 = vpop.permute.xlu0 %1224
      %1226 = vrot.lane.b32.xlu0 %v860, 40
      %v1227 = vpop.permute.xlu0 %1226
      %1228 = vrot.lane.b32.xlu0 %v862, 40
      %v1229 = vpop.permute.xlu0 %1228
      %1230 = vrot.lane.b32.xlu0 %v865, 40
      %v1231 = vpop.permute.xlu0 %1230
      %1232 = vrot.lane.b32.xlu0 %v867, 40
      %v1233 = vpop.permute.xlu0 %1232
      %1234 = vrot.lane.b32.xlu0 %v870, 40
      %v1235 = vpop.permute.xlu0 %1234
      %1236 = vrot.lane.b32.xlu0 %v872, 40
      %v1237 = vpop.permute.xlu0 %1236
      %1238 = vrot.lane.b32.xlu0 %v875, 40
      %v1239 = vpop.permute.xlu0 %1238
      %1240 = vrot.lane.b32.xlu0 %v877, 40
      %v1241 = vpop.permute.xlu0 %1240
      %1242 = vrot.lane.b32.xlu0 %v880, 40
      %v1243 = vpop.permute.xlu0 %1242
      %1244 = vrot.lane.b32.xlu0 %v882, 40
      %v1245 = vpop.permute.xlu0 %1244
      %1246 = vrot.lane.b32.xlu0 %v885, 40
      %v1247 = vpop.permute.xlu0 %1246
      %1248 = vrot.lane.b32.xlu0 %v887, 40
      %v1249 = vpop.permute.xlu0 %1248
      %1250 = vrot.lane.b32.xlu0 %v890, 40
      %v1251 = vpop.permute.xlu0 %1250
      %1252 = vrot.lane.b32.xlu0 %v892, 40
      %v1253 = vpop.permute.xlu0 %1252
      %1254 = vrot.lane.b32.xlu0 %v895, 40
      %v1255 = vpop.permute.xlu0 %1254
      %1256 = vrot.lane.b32.xlu0 %v897, 40
      %v1257 = vpop.permute.xlu0 %1256
      %1258 = vrot.lane.b32.xlu0 %v1195, 40
      %v1259 = vpop.permute.xlu0 %1258
      %1260 = vrot.lane.b32.xlu0 %v1197, 40
      %v1261 = vpop.permute.xlu0 %1260
      %1294 = vrot.lane.b32.xlu0 %v576, 48
      %v1295 = vpop.permute.xlu0 %1294
      %1296 = vrot.lane.b32.xlu0 %v482, 48
      %v1297 = vpop.permute.xlu0 %1296
      %1298 = vrot.lane.b32.xlu0 %v577, 48
      %v1299 = vpop.permute.xlu0 %1298
      %1300 = vrot.lane.b32.xlu0 %v485, 48
      %v1301 = vpop.permute.xlu0 %1300
      %1302 = vrot.lane.b32.xlu0 %v578, 48
      %v1303 = vpop.permute.xlu0 %1302
      %1304 = vrot.lane.b32.xlu0 %v488, 48
      %v1305 = vpop.permute.xlu0 %1304
      %1306 = vrot.lane.b32.xlu0 %v579, 48
      %v1307 = vpop.permute.xlu0 %1306
      %1308 = vrot.lane.b32.xlu0 %v491, 48
      %v1309 = vpop.permute.xlu0 %1308
      %1310 = vrot.lane.b32.xlu0 %v580, 48
      %v1311 = vpop.permute.xlu0 %1310
      %1312 = vrot.lane.b32.xlu0 %v494, 48
      %v1313 = vpop.permute.xlu0 %1312
      %1314 = vrot.lane.b32.xlu0 %v581, 48
      %v1315 = vpop.permute.xlu0 %1314
      %1316 = vrot.lane.b32.xlu0 %v497, 48
      %v1317 = vpop.permute.xlu0 %1316
      %1318 = vrot.lane.b32.xlu0 %v582, 48
      %v1319 = vpop.permute.xlu0 %1318
      %1320 = vrot.lane.b32.xlu0 %v500, 48
      %v1321 = vpop.permute.xlu0 %1320
      %1322 = vrot.lane.b32.xlu0 %v583, 48
      %v1323 = vpop.permute.xlu0 %1322
      %1324 = vrot.lane.b32.xlu0 %v503, 48
      %v1325 = vpop.permute.xlu0 %1324
      %1326 = vrot.lane.b32.xlu0 %v584, 48
      %v1327 = vpop.permute.xlu0 %1326
      %1328 = vrot.lane.b32.xlu0 %v506, 48
      %v1329 = vpop.permute.xlu0 %1328
      %1330 = vrot.lane.b32.xlu0 %v585, 48
      %v1331 = vpop.permute.xlu0 %1330
      %1332 = vrot.lane.b32.xlu0 %v509, 48
      %v1333 = vpop.permute.xlu0 %1332
      %1334 = vrot.lane.b32.xlu0 %v586, 48
      %v1335 = vpop.permute.xlu0 %1334
      %1336 = vrot.lane.b32.xlu0 %v512, 48
      %v1337 = vpop.permute.xlu0 %1336
      %1338 = vrot.lane.b32.xlu0 %v587, 48
      %v1339 = vpop.permute.xlu0 %1338
      %1340 = vrot.lane.b32.xlu0 %v515, 48
      %v1341 = vpop.permute.xlu0 %1340
      %1342 = vrot.lane.b32.xlu0 %v588, 48
      %v1343 = vpop.permute.xlu0 %1342
      %1344 = vrot.lane.b32.xlu0 %v518, 48
      %v1345 = vpop.permute.xlu0 %1344
      %1346 = vrot.lane.b32.xlu0 %v589, 48
      %v1347 = vpop.permute.xlu0 %1346
      %1348 = vrot.lane.b32.xlu0 %v521, 48
      %v1349 = vpop.permute.xlu0 %1348
      %1350 = vrot.lane.b32.xlu0 %v590, 48
      %v1351 = vpop.permute.xlu0 %1350
      %1352 = vrot.lane.b32.xlu0 %v524, 48
      %v1353 = vpop.permute.xlu0 %1352
      %1354 = vrot.lane.b32.xlu0 %v574, 48
      %v1355 = vpop.permute.xlu0 %1354
      %1356 = vrot.lane.b32.xlu0 %v476, 48
      %v1357 = vpop.permute.xlu0 %1356
      %1390 = vrot.lane.b32.xlu0 %v653, 56
      %v1391 = vpop.permute.xlu0 %1390
      %1392 = vrot.lane.b32.xlu0 %v655, 56
      %v1393 = vpop.permute.xlu0 %1392
      %1394 = vrot.lane.b32.xlu0 %v658, 56
      %v1395 = vpop.permute.xlu0 %1394
      %1396 = vrot.lane.b32.xlu0 %v660, 56
      %v1397 = vpop.permute.xlu0 %1396
      %1398 = vrot.lane.b32.xlu0 %v663, 56
      %v1399 = vpop.permute.xlu0 %1398
      %1400 = vrot.lane.b32.xlu0 %v665, 56
      %v1401 = vpop.permute.xlu0 %1400
      %1402 = vrot.lane.b32.xlu0 %v668, 56
      %v1403 = vpop.permute.xlu0 %1402
      %1404 = vrot.lane.b32.xlu0 %v670, 56
      %v1405 = vpop.permute.xlu0 %1404
      %1406 = vrot.lane.b32.xlu0 %v673, 56
      %v1407 = vpop.permute.xlu0 %1406
      %1408 = vrot.lane.b32.xlu0 %v675, 56
      %v1409 = vpop.permute.xlu0 %1408
      %1410 = vrot.lane.b32.xlu0 %v678, 56
      %v1411 = vpop.permute.xlu0 %1410
      %1412 = vrot.lane.b32.xlu0 %v680, 56
      %v1413 = vpop.permute.xlu0 %1412
      %1414 = vrot.lane.b32.xlu0 %v683, 56
      %v1415 = vpop.permute.xlu0 %1414
      %1416 = vrot.lane.b32.xlu0 %v685, 56
      %v1417 = vpop.permute.xlu0 %1416
      %1418 = vrot.lane.b32.xlu0 %v688, 56
      %v1419 = vpop.permute.xlu0 %1418
      %1420 = vrot.lane.b32.xlu0 %v690, 56
      %v1421 = vpop.permute.xlu0 %1420
      %1422 = vrot.lane.b32.xlu0 %v693, 56
      %v1423 = vpop.permute.xlu0 %1422
      %1424 = vrot.lane.b32.xlu0 %v695, 56
      %v1425 = vpop.permute.xlu0 %1424
      %1426 = vrot.lane.b32.xlu0 %v698, 56
      %v1427 = vpop.permute.xlu0 %1426
      %1428 = vrot.lane.b32.xlu0 %v700, 56
      %v1429 = vpop.permute.xlu0 %1428
      %1430 = vrot.lane.b32.xlu0 %v703, 56
      %v1431 = vpop.permute.xlu0 %1430
      %1432 = vrot.lane.b32.xlu0 %v705, 56
      %v1433 = vpop.permute.xlu0 %1432
      %1434 = vrot.lane.b32.xlu0 %v708, 56
      %v1435 = vpop.permute.xlu0 %1434
      %1436 = vrot.lane.b32.xlu0 %v710, 56
      %v1437 = vpop.permute.xlu0 %1436
      %1438 = vrot.lane.b32.xlu0 %v713, 56
      %v1439 = vpop.permute.xlu0 %1438
      %1440 = vrot.lane.b32.xlu0 %v715, 56
      %v1441 = vpop.permute.xlu0 %1440
      %1442 = vrot.lane.b32.xlu0 %v718, 56
      %v1443 = vpop.permute.xlu0 %1442
      %1444 = vrot.lane.b32.xlu0 %v720, 56
      %v1445 = vpop.permute.xlu0 %1444
      %1446 = vrot.lane.b32.xlu0 %v1094, 56
      %v1447 = vpop.permute.xlu0 %1446
      %1448 = vrot.lane.b32.xlu0 %v1096, 56
      %v1449 = vpop.permute.xlu0 %1448
      %1450 = vrot.lane.b32.xlu0 %v643, 56
      %v1451 = vpop.permute.xlu0 %1450
      %1452 = vrot.lane.b32.xlu0 %v645, 56
      %v1453 = vpop.permute.xlu0 %1452
      %1486 = vrot.lane.b32.xlu0 %v830, 64
      %v1487 = vpop.permute.xlu0 %1486
      %1488 = vrot.lane.b32.xlu0 %v832, 64
      %v1489 = vpop.permute.xlu0 %1488
      %1490 = vrot.lane.b32.xlu0 %v835, 64
      %v1491 = vpop.permute.xlu0 %1490
      %1492 = vrot.lane.b32.xlu0 %v837, 64
      %v1493 = vpop.permute.xlu0 %1492
      %1494 = vrot.lane.b32.xlu0 %v840, 64
      %v1495 = vpop.permute.xlu0 %1494
      %1496 = vrot.lane.b32.xlu0 %v842, 64
      %v1497 = vpop.permute.xlu0 %1496
      %1498 = vrot.lane.b32.xlu0 %v845, 64
      %v1499 = vpop.permute.xlu0 %1498
      %1500 = vrot.lane.b32.xlu0 %v847, 64
      %v1501 = vpop.permute.xlu0 %1500
      %1502 = vrot.lane.b32.xlu0 %v850, 64
      %v1503 = vpop.permute.xlu0 %1502
      %1504 = vrot.lane.b32.xlu0 %v852, 64
      %v1505 = vpop.permute.xlu0 %1504
      %1506 = vrot.lane.b32.xlu0 %v855, 64
      %v1507 = vpop.permute.xlu0 %1506
      %1508 = vrot.lane.b32.xlu0 %v857, 64
      %v1509 = vpop.permute.xlu0 %1508
      %1510 = vrot.lane.b32.xlu0 %v860, 64
      %v1511 = vpop.permute.xlu0 %1510
      %1512 = vrot.lane.b32.xlu0 %v862, 64
      %v1513 = vpop.permute.xlu0 %1512
      %1514 = vrot.lane.b32.xlu0 %v865, 64
      %v1515 = vpop.permute.xlu0 %1514
      %1516 = vrot.lane.b32.xlu0 %v867, 64
      %v1517 = vpop.permute.xlu0 %1516
      %1518 = vrot.lane.b32.xlu0 %v870, 64
      %v1519 = vpop.permute.xlu0 %1518
      %1520 = vrot.lane.b32.xlu0 %v872, 64
      %v1521 = vpop.permute.xlu0 %1520
      %1522 = vrot.lane.b32.xlu0 %v875, 64
      %v1523 = vpop.permute.xlu0 %1522
      %1524 = vrot.lane.b32.xlu0 %v877, 64
      %v1525 = vpop.permute.xlu0 %1524
      %1526 = vrot.lane.b32.xlu0 %v880, 64
      %v1527 = vpop.permute.xlu0 %1526
      %1528 = vrot.lane.b32.xlu0 %v882, 64
      %v1529 = vpop.permute.xlu0 %1528
      %1530 = vrot.lane.b32.xlu0 %v885, 64
      %v1531 = vpop.permute.xlu0 %1530
      %1532 = vrot.lane.b32.xlu0 %v887, 64
      %v1533 = vpop.permute.xlu0 %1532
      %1534 = vrot.lane.b32.xlu0 %v890, 64
      %v1535 = vpop.permute.xlu0 %1534
      %1536 = vrot.lane.b32.xlu0 %v892, 64
      %v1537 = vpop.permute.xlu0 %1536
      %1538 = vrot.lane.b32.xlu0 %v895, 64
      %v1539 = vpop.permute.xlu0 %1538
      %1540 = vrot.lane.b32.xlu0 %v897, 64
      %v1541 = vpop.permute.xlu0 %1540
      %1542 = vrot.lane.b32.xlu0 %v1195, 64
      %v1543 = vpop.permute.xlu0 %1542
      %1544 = vrot.lane.b32.xlu0 %v1197, 64
      %v1545 = vpop.permute.xlu0 %1544
      %1546 = vrot.lane.b32.xlu0 %v820, 64
      %v1547 = vpop.permute.xlu0 %1546
      %1548 = vrot.lane.b32.xlu0 %v822, 64
      %v1549 = vpop.permute.xlu0 %1548
      %vm1582 = vcmask 64512
      %v1583 = vsel %vm1582, %v574, %v722
      %v1584 = vsel %vm1582, %v476, %v724
      %v1585 = vsel %vm1582, %v575, %v726
      %v1586 = vsel %vm1582, %v479, %v728
      %v1587 = vsel %vm1582, %v576, %v730
      %v1588 = vsel %vm1582, %v482, %v732
      %v1589 = vsel %vm1582, %v577, %v734
      %v1590 = vsel %vm1582, %v485, %v736
      %v1591 = vsel %vm1582, %v578, %v738
      %v1592 = vsel %vm1582, %v488, %v740
      %v1593 = vsel %vm1582, %v579, %v742
      %v1594 = vsel %vm1582, %v491, %v744
      %v1595 = vsel %vm1582, %v580, %v746
      %v1596 = vsel %vm1582, %v494, %v748
      %v1597 = vsel %vm1582, %v581, %v750
      %v1598 = vsel %vm1582, %v497, %v752
      %v1599 = vsel %vm1582, %v582, %v754
      %v1600 = vsel %vm1582, %v500, %v756
      %v1601 = vsel %vm1582, %v583, %v758
      %v1602 = vsel %vm1582, %v503, %v760
      %v1603 = vsel %vm1582, %v584, %v762
      %v1604 = vsel %vm1582, %v506, %v764
      %v1605 = vsel %vm1582, %v585, %v766
      %v1606 = vsel %vm1582, %v509, %v768
      %v1607 = vsel %vm1582, %v586, %v770
      %v1608 = vsel %vm1582, %v512, %v772
      %v1609 = vsel %vm1582, %v587, %v774
      %v1610 = vsel %vm1582, %v515, %v776
      %v1611 = vsel %vm1582, %v588, %v778
      %v1612 = vsel %vm1582, %v518, %v780
      %v1613 = vsel %vm1582, %v589, %v782
      %v1614 = vsel %vm1582, %v521, %v784
      %vm1615 = vcmask 130048
      %v1616 = vsel %vm1615, %v1583, %v899
      %v1617 = vsel %vm1615, %v1584, %v901
      %v1618 = vsel %vm1615, %v1585, %v903
      %v1619 = vsel %vm1615, %v1586, %v905
      %v1620 = vsel %vm1615, %v1587, %v907
      %v1621 = vsel %vm1615, %v1588, %v909
      %v1622 = vsel %vm1615, %v1589, %v911
      %v1623 = vsel %vm1615, %v1590, %v913
      %v1624 = vsel %vm1615, %v1591, %v915
      %v1625 = vsel %vm1615, %v1592, %v917
      %v1626 = vsel %vm1615, %v1593, %v919
      %v1627 = vsel %vm1615, %v1594, %v921
      %v1628 = vsel %vm1615, %v1595, %v923
      %v1629 = vsel %vm1615, %v1596, %v925
      %v1630 = vsel %vm1615, %v1597, %v927
      %v1631 = vsel %vm1615, %v1598, %v929
      %v1632 = vsel %vm1615, %v1599, %v931
      %v1633 = vsel %vm1615, %v1600, %v933
      %v1634 = vsel %vm1615, %v1601, %v935
      %v1635 = vsel %vm1615, %v1602, %v937
      %v1636 = vsel %vm1615, %v1603, %v939
      %v1637 = vsel %vm1615, %v1604, %v941
      %v1638 = vsel %vm1615, %v1605, %v943
      %v1639 = vsel %vm1615, %v1606, %v945
      %v1640 = vsel %vm1615, %v1607, %v947
      %v1641 = vsel %vm1615, %v1608, %v949
      %v1642 = vsel %vm1615, %v1609, %v951
      %v1643 = vsel %vm1615, %v1610, %v953
      %v1644 = vsel %vm1615, %v1611, %v955
      %v1645 = vsel %vm1615, %v1612, %v957
      %v1646 = vsel %vm1615, %v1613, %v959
      %v1647 = vsel %vm1615, %v1614, %v961
      %vm1648 = vcmask 195584
      %v1649 = vsel %vm1648, %v1616, %v996
      %v1650 = vsel %vm1648, %v1617, %v998
      %v1651 = vsel %vm1648, %v1618, %v1000
      %v1652 = vsel %vm1648, %v1619, %v1002
      %v1653 = vsel %vm1648, %v1620, %v1004
      %v1654 = vsel %vm1648, %v1621, %v1006
      %v1655 = vsel %vm1648, %v1622, %v1008
      %v1656 = vsel %vm1648, %v1623, %v1010
      %v1657 = vsel %vm1648, %v1624, %v1012
      %v1658 = vsel %vm1648, %v1625, %v1014
      %v1659 = vsel %vm1648, %v1626, %v1016
      %v1660 = vsel %vm1648, %v1627, %v1018
      %v1661 = vsel %vm1648, %v1628, %v1020
      %v1662 = vsel %vm1648, %v1629, %v1022
      %v1663 = vsel %vm1648, %v1630, %v1024
      %v1664 = vsel %vm1648, %v1631, %v1026
      %v1665 = vsel %vm1648, %v1632, %v1028
      %v1666 = vsel %vm1648, %v1633, %v1030
      %v1667 = vsel %vm1648, %v1634, %v1032
      %v1668 = vsel %vm1648, %v1635, %v1034
      %v1669 = vsel %vm1648, %v1636, %v1036
      %v1670 = vsel %vm1648, %v1637, %v1038
      %v1671 = vsel %vm1648, %v1638, %v1040
      %v1672 = vsel %vm1648, %v1639, %v1042
      %v1673 = vsel %vm1648, %v1640, %v1044
      %v1674 = vsel %vm1648, %v1641, %v1046
      %v1675 = vsel %vm1648, %v1642, %v1048
      %v1676 = vsel %vm1648, %v1643, %v1050
      %v1677 = vsel %vm1648, %v1644, %v1052
      %v1678 = vsel %vm1648, %v1645, %v1054
      %v1679 = vsel %vm1648, %v1646, %v1056
      %v1680 = vsel %vm1648, %v1647, %v1058
      %vm1681 = vcmask 261120
      %v1682 = vsel %vm1681, %v1649, %v1098
      %v1683 = vsel %vm1681, %v1650, %v1100
      %v1684 = vsel %vm1681, %v1651, %v1102
      %v1685 = vsel %vm1681, %v1652, %v1104
      %v1686 = vsel %vm1681, %v1653, %v1106
      %v1687 = vsel %vm1681, %v1654, %v1108
      %v1688 = vsel %vm1681, %v1655, %v1110
      %v1689 = vsel %vm1681, %v1656, %v1112
      %v1690 = vsel %vm1681, %v1657, %v1114
      %v1691 = vsel %vm1681, %v1658, %v1116
      %v1692 = vsel %vm1681, %v1659, %v1118
      %v1693 = vsel %vm1681, %v1660, %v1120
      %v1694 = vsel %vm1681, %v1661, %v1122
      %v1695 = vsel %vm1681, %v1662, %v1124
      %v1696 = vsel %vm1681, %v1663, %v1126
      %v1697 = vsel %vm1681, %v1664, %v1128
      %v1698 = vsel %vm1681, %v1665, %v1130
      %v1699 = vsel %vm1681, %v1666, %v1132
      %v1700 = vsel %vm1681, %v1667, %v1134
      %v1701 = vsel %vm1681, %v1668, %v1136
      %v1702 = vsel %vm1681, %v1669, %v1138
      %v1703 = vsel %vm1681, %v1670, %v1140
      %v1704 = vsel %vm1681, %v1671, %v1142
      %v1705 = vsel %vm1681, %v1672, %v1144
      %v1706 = vsel %vm1681, %v1673, %v1146
      %v1707 = vsel %vm1681, %v1674, %v1148
      %v1708 = vsel %vm1681, %v1675, %v1150
      %v1709 = vsel %vm1681, %v1676, %v1152
      %v1710 = vsel %vm1681, %v1677, %v1154
      %v1711 = vsel %vm1681, %v1678, %v1156
      %v1712 = vsel %vm1681, %v1679, %v1158
      %v1713 = vsel %vm1681, %v1680, %v1160
      %vm1714 = vcmask 326656
      %v1715 = vsel %vm1714, %v1682, %v1199
      %v1716 = vsel %vm1714, %v1683, %v1201
      %v1717 = vsel %vm1714, %v1684, %v1203
      %v1718 = vsel %vm1714, %v1685, %v1205
      %v1719 = vsel %vm1714, %v1686, %v1207
      %v1720 = vsel %vm1714, %v1687, %v1209
      %v1721 = vsel %vm1714, %v1688, %v1211
      %v1722 = vsel %vm1714, %v1689, %v1213
      %v1723 = vsel %vm1714, %v1690, %v1215
      %v1724 = vsel %vm1714, %v1691, %v1217
      %v1725 = vsel %vm1714, %v1692, %v1219
      %v1726 = vsel %vm1714, %v1693, %v1221
      %v1727 = vsel %vm1714, %v1694, %v1223
      %v1728 = vsel %vm1714, %v1695, %v1225
      %v1729 = vsel %vm1714, %v1696, %v1227
      %v1730 = vsel %vm1714, %v1697, %v1229
      %v1731 = vsel %vm1714, %v1698, %v1231
      %v1732 = vsel %vm1714, %v1699, %v1233
      %v1733 = vsel %vm1714, %v1700, %v1235
      %v1734 = vsel %vm1714, %v1701, %v1237
      %v1735 = vsel %vm1714, %v1702, %v1239
      %v1736 = vsel %vm1714, %v1703, %v1241
      %v1737 = vsel %vm1714, %v1704, %v1243
      %v1738 = vsel %vm1714, %v1705, %v1245
      %v1739 = vsel %vm1714, %v1706, %v1247
      %v1740 = vsel %vm1714, %v1707, %v1249
      %v1741 = vsel %vm1714, %v1708, %v1251
      %v1742 = vsel %vm1714, %v1709, %v1253
      %v1743 = vsel %vm1714, %v1710, %v1255
      %v1744 = vsel %vm1714, %v1711, %v1257
      %v1745 = vsel %vm1714, %v1712, %v1259
      %v1746 = vsel %vm1714, %v1713, %v1261
      %vm1747 = vcmask 392192
      %v1748 = vsel %vm1747, %v1715, %v1295
      %v1749 = vsel %vm1747, %v1716, %v1297
      %v1750 = vsel %vm1747, %v1717, %v1299
      %v1751 = vsel %vm1747, %v1718, %v1301
      %v1752 = vsel %vm1747, %v1719, %v1303
      %v1753 = vsel %vm1747, %v1720, %v1305
      %v1754 = vsel %vm1747, %v1721, %v1307
      %v1755 = vsel %vm1747, %v1722, %v1309
      %v1756 = vsel %vm1747, %v1723, %v1311
      %v1757 = vsel %vm1747, %v1724, %v1313
      %v1758 = vsel %vm1747, %v1725, %v1315
      %v1759 = vsel %vm1747, %v1726, %v1317
      %v1760 = vsel %vm1747, %v1727, %v1319
      %v1761 = vsel %vm1747, %v1728, %v1321
      %v1762 = vsel %vm1747, %v1729, %v1323
      %v1763 = vsel %vm1747, %v1730, %v1325
      %v1764 = vsel %vm1747, %v1731, %v1327
      %v1765 = vsel %vm1747, %v1732, %v1329
      %v1766 = vsel %vm1747, %v1733, %v1331
      %v1767 = vsel %vm1747, %v1734, %v1333
      %v1768 = vsel %vm1747, %v1735, %v1335
      %v1769 = vsel %vm1747, %v1736, %v1337
      %v1770 = vsel %vm1747, %v1737, %v1339
      %v1771 = vsel %vm1747, %v1738, %v1341
      %v1772 = vsel %vm1747, %v1739, %v1343
      %v1773 = vsel %vm1747, %v1740, %v1345
      %v1774 = vsel %vm1747, %v1741, %v1347
      %v1775 = vsel %vm1747, %v1742, %v1349
      %v1776 = vsel %vm1747, %v1743, %v1351
      %v1777 = vsel %vm1747, %v1744, %v1353
      %v1778 = vsel %vm1747, %v1745, %v1355
      %v1779 = vsel %vm1747, %v1746, %v1357
      %vm1780 = vcmask 457728
      %v1781 = vsel %vm1780, %v1748, %v1391
      %v1782 = vsel %vm1780, %v1749, %v1393
      %v1783 = vsel %vm1780, %v1750, %v1395
      %v1784 = vsel %vm1780, %v1751, %v1397
      %v1785 = vsel %vm1780, %v1752, %v1399
      %v1786 = vsel %vm1780, %v1753, %v1401
      %v1787 = vsel %vm1780, %v1754, %v1403
      %v1788 = vsel %vm1780, %v1755, %v1405
      %v1789 = vsel %vm1780, %v1756, %v1407
      %v1790 = vsel %vm1780, %v1757, %v1409
      %v1791 = vsel %vm1780, %v1758, %v1411
      %v1792 = vsel %vm1780, %v1759, %v1413
      %v1793 = vsel %vm1780, %v1760, %v1415
      %v1794 = vsel %vm1780, %v1761, %v1417
      %v1795 = vsel %vm1780, %v1762, %v1419
      %v1796 = vsel %vm1780, %v1763, %v1421
      %v1797 = vsel %vm1780, %v1764, %v1423
      %v1798 = vsel %vm1780, %v1765, %v1425
      %v1799 = vsel %vm1780, %v1766, %v1427
      %v1800 = vsel %vm1780, %v1767, %v1429
      %v1801 = vsel %vm1780, %v1768, %v1431
      %v1802 = vsel %vm1780, %v1769, %v1433
      %v1803 = vsel %vm1780, %v1770, %v1435
      %v1804 = vsel %vm1780, %v1771, %v1437
      %v1805 = vsel %vm1780, %v1772, %v1439
      %v1806 = vsel %vm1780, %v1773, %v1441
      %v1807 = vsel %vm1780, %v1774, %v1443
      %v1808 = vsel %vm1780, %v1775, %v1445
      %v1809 = vsel %vm1780, %v1776, %v1447
      %v1810 = vsel %vm1780, %v1777, %v1449
      %v1811 = vsel %vm1780, %v1778, %v1451
      %v1812 = vsel %vm1780, %v1779, %v1453
      %vm1813 = vcmask 523264
      %v1814 = vsel %vm1813, %v1781, %v1487
      %v1815 = vsel %vm1813, %v1782, %v1489
      %v1816 = vsel %vm1813, %v1783, %v1491
      %v1817 = vsel %vm1813, %v1784, %v1493
      %v1818 = vsel %vm1813, %v1785, %v1495
      %v1819 = vsel %vm1813, %v1786, %v1497
      %v1820 = vsel %vm1813, %v1787, %v1499
      %v1821 = vsel %vm1813, %v1788, %v1501
      %v1822 = vsel %vm1813, %v1789, %v1503
      %v1823 = vsel %vm1813, %v1790, %v1505
      %v1824 = vsel %vm1813, %v1791, %v1507
      %v1825 = vsel %vm1813, %v1792, %v1509
      %v1826 = vsel %vm1813, %v1793, %v1511
      %v1827 = vsel %vm1813, %v1794, %v1513
      %v1828 = vsel %vm1813, %v1795, %v1515
      %v1829 = vsel %vm1813, %v1796, %v1517
      %v1830 = vsel %vm1813, %v1797, %v1519
      %v1831 = vsel %vm1813, %v1798, %v1521
      %v1832 = vsel %vm1813, %v1799, %v1523
      %v1833 = vsel %vm1813, %v1800, %v1525
      %v1834 = vsel %vm1813, %v1801, %v1527
      %v1835 = vsel %vm1813, %v1802, %v1529
      %v1836 = vsel %vm1813, %v1803, %v1531
      %v1837 = vsel %vm1813, %v1804, %v1533
      %v1838 = vsel %vm1813, %v1805, %v1535
      %v1839 = vsel %vm1813, %v1806, %v1537
      %v1840 = vsel %vm1813, %v1807, %v1539
      %v1841 = vsel %vm1813, %v1808, %v1541
      %v1842 = vsel %vm1813, %v1809, %v1543
      %v1843 = vsel %vm1813, %v1810, %v1545
      %v1844 = vsel %vm1813, %v1811, %v1547
      %v1845 = vsel %vm1813, %v1812, %v1549
      %v1846 = vpack.c.bf16 %v1815, %v1814
      %v1847 = vpack.c.bf16 %v1817, %v1816
      %v1848 = vpack.c.bf16 %v1819, %v1818
      %v1849 = vpack.c.bf16 %v1821, %v1820
      %v1850 = vpack.c.bf16 %v1823, %v1822
      %v1851 = vpack.c.bf16 %v1825, %v1824
      %v1852 = vpack.c.bf16 %v1827, %v1826
      %v1853 = vpack.c.bf16 %v1829, %v1828
      %v1854 = vpack.c.bf16 %v1831, %v1830
      %v1855 = vpack.c.bf16 %v1833, %v1832
      %v1856 = vpack.c.bf16 %v1835, %v1834
      %v1857 = vpack.c.bf16 %v1837, %v1836
      %v1858 = vpack.c.bf16 %v1839, %v1838
      %v1859 = vpack.c.bf16 %v1841, %v1840
      %v1860 = vpack.c.bf16 %v1843, %v1842
      %v1861 = vpack.c.bf16 %v1845, %v1844
      %v1862 = vld [vmem:[%s2] sm:$0xf]
      %v1863 = vld [vmem:[%s2 + $0x4] sm:$0xf]
      %v1864 = vld [vmem:[%s2 + $0x8] sm:$0xf]
      %v1865 = vld [vmem:[%s2 + $0xc] sm:$0xf]
      %v1866 = vld [vmem:[%s2 + $0x10] sm:$0xf]
      %v1867 = vld [vmem:[%s2 + $0x14] sm:$0xf]
      %v1868 = vld [vmem:[%s2 + $0x18] sm:$0xf]
      %v1869 = vld [vmem:[%s2 + $0x1c] sm:$0xf]
      %v1870 = vld [vmem:[%s2 + $0x20] sm:$0xf]
      %v1880 = vunpack.c.l.b16 %v1862
      %v1881 = vunpack.c.l.b16 %v1863
      %v1882 = vunpack.c.l.b16 %v1864
      %v1883 = vunpack.c.l.b16 %v1865
      %v1884 = vunpack.c.l.b16 %v1866
      %v1885 = vunpack.c.l.b16 %v1867
      %v1886 = vunpack.c.l.b16 %v1868
      %v1887 = vunpack.c.l.b16 %v1869
      %v1888 = vunpack.c.l.b16 %v1870
      %v1889 = vpack.c.b16 %v1881, %v1880
      %v1890 = vpack.c.b16 %v1883, %v1882
      %v1891 = vpack.c.b16 %v1885, %v1884
      %v1892 = vpack.c.b16 %v1887, %v1886
      %v1893 = vpack.c.b16 %v1888, %v1888
      %vm1898 = vcmask 588800
      %v1900 = vsel %vm1898, %v1846, 0
      %v1903 = vsel %vm1898, %v1847, 0
      %v1906 = vsel %vm1898, %v1848, 0
      %v1909 = vsel %vm1898, %v1849, 0
      %v1912 = vsel %vm1898, %v1850, 0
      %v1915 = vsel %vm1898, %v1851, 0
      %v1918 = vsel %vm1898, %v1852, 0
      %v1921 = vsel %vm1898, %v1853, 0
      %v1924 = vsel %vm1898, %v1854, 0
      %v1927 = vsel %vm1898, %v1855, 0
      %v1930 = vsel %vm1898, %v1856, 0
      %v1933 = vsel %vm1898, %v1857, 0
      %v1936 = vsel %vm1898, %v1858, 0
      %v1939 = vsel %vm1898, %v1859, 0
      %v1942 = vsel %vm1898, %v1860, 0
      %v1945 = vsel %vm1898, %v1861, 0
      %vm1947 = vcmask 1043456
      %v1949 = vsel %vm1947, %v1893, 0
      %1951 = vmatprep.subr.bf16.mxu0 0
      %1952 = vmatpush1.bf16.msra.mxu0 %v1889
      %1953 = vmatprep.subr.bf16.mxu0 0
      %1954 = vmatpush1.bf16.msra.mxu0 %v1890
      %1955 = vmatprep.subr.bf16.mxu0 0
      %1956 = vmatpush1.bf16.msra.mxu0 %v1891
      %1957 = vmatprep.subr.bf16.mxu0 0
      %1958 = vmatpush1.bf16.msra.mxu0 %v1892
      %1959 = vmatprep.subr.bf16.mxu0 0
      %1960 = vmatpush1.bf16.msra.mxu0 %v1949
      %1961 = vmatprep.subr.bf16.mxu0 0
      %1962 = vmatpush1.bf16.msra.mxu0 0
      %1963 = vmatprep.subr.bf16.mxu0 0
      %1964 = vmatpush1.bf16.msra.mxu0 0
      %1965 = vmatprep.subr.bf16.mxu0 0
      %1966 = vmatpush1.bf16.msra.mxu0 0
      %1967 = vmatprep.subr.bf16.mxu0 0
      %1968 = vmatpush1.bf16.msra.mxu0 0
      %1969 = vmatprep.subr.bf16.mxu0 0
      %1970 = vmatpush1.bf16.msra.mxu0 0
      %1971 = vmatprep.subr.bf16.mxu0 0
      %1972 = vmatpush1.bf16.msra.mxu0 0
      %1973 = vmatprep.subr.bf16.mxu0 0
      %1974 = vmatpush1.bf16.msra.mxu0 0
      %1975 = vmatprep.subr.bf16.mxu0 0
      %1976 = vmatpush1.bf16.msra.mxu0 0
      %1977 = vmatprep.subr.bf16.mxu0 0
      %1978 = vmatpush1.bf16.msra.mxu0 0
      %1979 = vmatprep.subr.bf16.mxu0 0
      %1980 = vmatpush1.bf16.msra.mxu0 0
      %1981 = vmatprep.subr.bf16.mxu0 0
      %1982 = vmatpush1.bf16.msra.mxu0 0
      %1983 = vmatprep.mubr.bf16.mxu0 0
      %1984 = vmatmul.mubr.bf16.gmra.mrb[0].mxu0 %v1900
      %v1985 = vpop.f32.mrb[0].mxu0
      %v1986 = vadd.f32 0.0, %v1985
      %v1987 = vpop.f32.mrb[0].mxu0
      %v1988 = vpop.f32.mrb[0].mxu0
      %v1989 = vadd.f32 0.0, %v1988
      %v1990 = vpop.f32.mrb[0].mxu0
      %1991 = vmatprep.mubr.bf16.mxu0 0
      %1992 = vmatmul.mubr.bf16.gmra.mrb[0].mxu0 %v1903
      %v1993 = vpop.f32.mrb[0].mxu0
      %v1994 = vadd.f32 0.0, %v1993
      %v1995 = vpop.f32.mrb[0].mxu0
      %v1996 = vpop.f32.mrb[0].mxu0
      %v1997 = vadd.f32 0.0, %v1996
      %v1998 = vpop.f32.mrb[0].mxu0
      %1999 = vmatprep.mubr.bf16.mxu0 0
      %2000 = vmatmul.mubr.bf16.gmra.mrb[0].mxu0 %v1906
      %v2001 = vpop.f32.mrb[0].mxu0
      %v2002 = vadd.f32 0.0, %v2001
      %v2003 = vpop.f32.mrb[0].mxu0
      %v2004 = vpop.f32.mrb[0].mxu0
      %v2005 = vadd.f32 0.0, %v2004
      %v2006 = vpop.f32.mrb[0].mxu0
      %2007 = vmatprep.mubr.bf16.mxu0 0
      %2008 = vmatmul.mubr.bf16.gmra.mrb[0].mxu0 %v1909
      %v2009 = vpop.f32.mrb[0].mxu0
      %v2010 = vadd.f32 0.0, %v2009
      %v2011 = vpop.f32.mrb[0].mxu0
      %v2012 = vpop.f32.mrb[0].mxu0
      %v2013 = vadd.f32 0.0, %v2012
      %v2014 = vpop.f32.mrb[0].mxu0
      %2015 = vmatprep.mubr.bf16.mxu0 0
      %2016 = vmatmul.mubr.bf16.gmra.mrb[0].mxu0 %v1912
      %v2017 = vpop.f32.mrb[0].mxu0
      %v2018 = vadd.f32 0.0, %v2017
      %v2019 = vpop.f32.mrb[0].mxu0
      %v2020 = vpop.f32.mrb[0].mxu0
      %v2021 = vadd.f32 0.0, %v2020
      %v2022 = vpop.f32.mrb[0].mxu0
      %2023 = vmatprep.mubr.bf16.mxu0 0
      %2024 = vmatmul.mubr.bf16.gmra.mrb[0].mxu0 %v1915
      %v2025 = vpop.f32.mrb[0].mxu0
      %v2026 = vadd.f32 0.0, %v2025
      %v2027 = vpop.f32.mrb[0].mxu0
      %v2028 = vpop.f32.mrb[0].mxu0
      %v2029 = vadd.f32 0.0, %v2028
      %v2030 = vpop.f32.mrb[0].mxu0
      %2031 = vmatprep.mubr.bf16.mxu0 0
      %2032 = vmatmul.mubr.bf16.gmra.mrb[0].mxu0 %v1918
      %v2033 = vpop.f32.mrb[0].mxu0
      %v2034 = vadd.f32 0.0, %v2033
      %v2035 = vpop.f32.mrb[0].mxu0
      %v2036 = vpop.f32.mrb[0].mxu0
      %v2037 = vadd.f32 0.0, %v2036
      %v2038 = vpop.f32.mrb[0].mxu0
      %2039 = vmatprep.mubr.bf16.mxu0 0
      %2040 = vmatmul.mubr.bf16.gmra.mrb[0].mxu0 %v1921
      %v2041 = vpop.f32.mrb[0].mxu0
      %v2042 = vadd.f32 0.0, %v2041
      %v2043 = vpop.f32.mrb[0].mxu0
      %v2044 = vpop.f32.mrb[0].mxu0
      %v2045 = vadd.f32 0.0, %v2044
      %v2046 = vpop.f32.mrb[0].mxu0
      %2047 = vmatprep.mubr.bf16.mxu0 0
      %2048 = vmatmul.mubr.bf16.gmra.mrb[0].mxu0 %v1924
      %v2049 = vpop.f32.mrb[0].mxu0
      %v2050 = vadd.f32 0.0, %v2049
      %v2051 = vpop.f32.mrb[0].mxu0
      %v2052 = vpop.f32.mrb[0].mxu0
      %v2053 = vadd.f32 0.0, %v2052
      %v2054 = vpop.f32.mrb[0].mxu0
      %2055 = vmatprep.mubr.bf16.mxu0 0
      %2056 = vmatmul.mubr.bf16.gmra.mrb[0].mxu0 %v1927
      %v2057 = vpop.f32.mrb[0].mxu0
      %v2058 = vadd.f32 0.0, %v2057
      %v2059 = vpop.f32.mrb[0].mxu0
      %v2060 = vpop.f32.mrb[0].mxu0
      %v2061 = vadd.f32 0.0, %v2060
      %v2062 = vpop.f32.mrb[0].mxu0
      %2063 = vmatprep.mubr.bf16.mxu0 0
      %2064 = vmatmul.mubr.bf16.gmra.mrb[0].mxu0 %v1930
      %v2065 = vpop.f32.mrb[0].mxu0
      %v2066 = vadd.f32 0.0, %v2065
      %v2067 = vpop.f32.mrb[0].mxu0
      %v2068 = vpop.f32.mrb[0].mxu0
      %v2069 = vadd.f32 0.0, %v2068
      %v2070 = vpop.f32.mrb[0].mxu0
      %2071 = vmatprep.mubr.bf16.mxu0 0
      %2072 = vmatmul.mubr.bf16.gmra.mrb[0].mxu0 %v1933
      %v2073 = vpop.f32.mrb[0].mxu0
      %v2074 = vadd.f32 0.0, %v2073
      %v2075 = vpop.f32.mrb[0].mxu0
      %v2076 = vpop.f32.mrb[0].mxu0
      %v2077 = vadd.f32 0.0, %v2076
      %v2078 = vpop.f32.mrb[0].mxu0
      %2079 = vmatprep.mubr.bf16.mxu0 0
      %2080 = vmatmul.mubr.bf16.gmra.mrb[0].mxu0 %v1936
      %v2081 = vpop.f32.mrb[0].mxu0
      %v2082 = vadd.f32 0.0, %v2081
      %v2083 = vpop.f32.mrb[0].mxu0
      %v2084 = vpop.f32.mrb[0].mxu0
      %v2085 = vadd.f32 0.0, %v2084
      %v2086 = vpop.f32.mrb[0].mxu0
      %2087 = vmatprep.mubr.bf16.mxu0 0
      %2088 = vmatmul.mubr.bf16.gmra.mrb[0].mxu0 %v1939
      %v2089 = vpop.f32.mrb[0].mxu0
      %v2090 = vadd.f32 0.0, %v2089
      %v2091 = vpop.f32.mrb[0].mxu0
      %v2092 = vpop.f32.mrb[0].mxu0
      %v2093 = vadd.f32 0.0, %v2092
      %v2094 = vpop.f32.mrb[0].mxu0
      %2095 = vmatprep.mubr.bf16.mxu0 0
      %2096 = vmatmul.mubr.bf16.gmra.mrb[0].mxu0 %v1942
      %v2097 = vpop.f32.mrb[0].mxu0
      %v2098 = vadd.f32 0.0, %v2097
      %v2099 = vpop.f32.mrb[0].mxu0
      %v2100 = vpop.f32.mrb[0].mxu0
      %v2101 = vadd.f32 0.0, %v2100
      %v2102 = vpop.f32.mrb[0].mxu0
      %2103 = vmatprep.mubr.bf16.mxu0 0
      %2104 = vmatmul.mubr.bf16.gmra.mrb[0].mxu0 %v1945
      %v2105 = vpop.f32.mrb[0].mxu0
      %v2106 = vadd.f32 0.0, %v2105
      %v2107 = vpop.f32.mrb[0].mxu0
      %v2108 = vpop.f32.mrb[0].mxu0
      %v2109 = vadd.f32 0.0, %v2108
      %v2110 = vpop.f32.mrb[0].mxu0
      %2111 = vdwg.mxu0
      %2112 = vst.msk [vmem:[%s258] sm:$0xff] %vm1582, %v1986
      %2113 = vst.msk [vmem:[%s258 + $0x8] sm:$0xff] %vm1582, %v1989
      %2114 = vst.msk [vmem:[%s258 + $0x10] sm:$0xff] %vm1582, %v1994
      %2115 = vst.msk [vmem:[%s258 + $0x18] sm:$0xff] %vm1582, %v1997
      %2116 = vst.msk [vmem:[%s258 + $0x20] sm:$0xff] %vm1582, %v2002
      %2117 = vst.msk [vmem:[%s258 + $0x28] sm:$0xff] %vm1582, %v2005
      %2118 = vst.msk [vmem:[%s258 + $0x30] sm:$0xff] %vm1582, %v2010
      %2119 = vst.msk [vmem:[%s258 + $0x38] sm:$0xff] %vm1582, %v2013
      %2120 = vst.msk [vmem:[%s258 + $0x40] sm:$0xff] %vm1582, %v2018
      %2121 = vst.msk [vmem:[%s258 + $0x48] sm:$0xff] %vm1582, %v2021
      %2122 = vst.msk [vmem:[%s258 + $0x50] sm:$0xff] %vm1582, %v2026
      %2123 = vst.msk [vmem:[%s258 + $0x58] sm:$0xff] %vm1582, %v2029
      %2124 = vst.msk [vmem:[%s258 + $0x60] sm:$0xff] %vm1582, %v2034
      %2125 = vst.msk [vmem:[%s258 + $0x68] sm:$0xff] %vm1582, %v2037
      %2126 = vst.msk [vmem:[%s258 + $0x70] sm:$0xff] %vm1582, %v2042
      %2127 = vst.msk [vmem:[%s258 + $0x78] sm:$0xff] %vm1582, %v2045
      %2128 = vst.msk [vmem:[%s258 + $0x80] sm:$0xff] %vm1582, %v2050
      %2129 = vst.msk [vmem:[%s258 + $0x88] sm:$0xff] %vm1582, %v2053
      %2130 = vst.msk [vmem:[%s258 + $0x90] sm:$0xff] %vm1582, %v2058
      %2131 = vst.msk [vmem:[%s258 + $0x98] sm:$0xff] %vm1582, %v2061
      %2132 = vst.msk [vmem:[%s258 + $0xa0] sm:$0xff] %vm1582, %v2066
      %2133 = vst.msk [vmem:[%s258 + $0xa8] sm:$0xff] %vm1582, %v2069
      %2134 = vst.msk [vmem:[%s258 + $0xb0] sm:$0xff] %vm1582, %v2074
      %2135 = vst.msk [vmem:[%s258 + $0xb8] sm:$0xff] %vm1582, %v2077
      %2136 = vst.msk [vmem:[%s258 + $0xc0] sm:$0xff] %vm1582, %v2082
      %2137 = vst.msk [vmem:[%s258 + $0xc8] sm:$0xff] %vm1582, %v2085
      %2138 = vst.msk [vmem:[%s258 + $0xd0] sm:$0xff] %vm1582, %v2090
      %2139 = vst.msk [vmem:[%s258 + $0xd8] sm:$0xff] %vm1582, %v2093
      %2140 = vst.msk [vmem:[%s258 + $0xe0] sm:$0xff] %vm1582, %v2098
      %2141 = vst.msk [vmem:[%s258 + $0xe8] sm:$0xff] %vm1582, %v2101
      %2142 = vst.msk [vmem:[%s258 + $0xf0] sm:$0xff] %vm1582, %v2106
      %2143 = vst.msk [vmem:[%s258 + $0xf8] sm:$0xff] %vm1582, %v2109
      %v2144 = vsel %vm1582, %v1986, 0.0
      %v2145 = vsel %vm1582, %v1989, 0.0
      %v2146 = vadd.f32 %v2144, %v2145
      %v2147 = vsel %vm1582, %v1994, 0.0
      %v2148 = vadd.f32 %v2146, %v2147
      %v2149 = vsel %vm1582, %v1997, 0.0
      %v2150 = vadd.f32 %v2148, %v2149
      %v2151 = vsel %vm1582, %v2002, 0.0
      %v2152 = vadd.f32 %v2150, %v2151
      %v2153 = vsel %vm1582, %v2005, 0.0
      %v2154 = vadd.f32 %v2152, %v2153
      %v2155 = vsel %vm1582, %v2010, 0.0
      %v2156 = vadd.f32 %v2154, %v2155
      %v2157 = vsel %vm1582, %v2013, 0.0
      %v2158 = vadd.f32 %v2156, %v2157
      %v2159 = vsel %vm1582, %v2018, 0.0
      %v2160 = vadd.f32 %v2158, %v2159
      %v2161 = vsel %vm1582, %v2021, 0.0
      %v2162 = vadd.f32 %v2160, %v2161
      %v2163 = vsel %vm1582, %v2026, 0.0
      %v2164 = vadd.f32 %v2162, %v2163
      %v2165 = vsel %vm1582, %v2029, 0.0
      %v2166 = vadd.f32 %v2164, %v2165
      %v2167 = vsel %vm1582, %v2034, 0.0
      %v2168 = vadd.f32 %v2166, %v2167
      %v2169 = vsel %vm1582, %v2037, 0.0
      %v2170 = vadd.f32 %v2168, %v2169
      %v2171 = vsel %vm1582, %v2042, 0.0
      %v2172 = vadd.f32 %v2170, %v2171
      %v2173 = vsel %vm1582, %v2045, 0.0
      %v2174 = vadd.f32 %v2172, %v2173
      %v2175 = vsel %vm1582, %v2050, 0.0
      %v2176 = vadd.f32 %v2174, %v2175
      %v2177 = vsel %vm1582, %v2053, 0.0
      %v2178 = vadd.f32 %v2176, %v2177
      %v2179 = vsel %vm1582, %v2058, 0.0
      %v2180 = vadd.f32 %v2178, %v2179
      %v2181 = vsel %vm1582, %v2061, 0.0
      %v2182 = vadd.f32 %v2180, %v2181
      %v2183 = vsel %vm1582, %v2066, 0.0
      %v2184 = vadd.f32 %v2182, %v2183
      %v2185 = vsel %vm1582, %v2069, 0.0
      %v2186 = vadd.f32 %v2184, %v2185
      %v2187 = vsel %vm1582, %v2074, 0.0
      %v2188 = vadd.f32 %v2186, %v2187
      %v2189 = vsel %vm1582, %v2077, 0.0
      %v2190 = vadd.f32 %v2188, %v2189
      %v2191 = vsel %vm1582, %v2082, 0.0
      %v2192 = vadd.f32 %v2190, %v2191
      %v2193 = vsel %vm1582, %v2085, 0.0
      %v2194 = vadd.f32 %v2192, %v2193
      %v2195 = vsel %vm1582, %v2090, 0.0
      %v2196 = vadd.f32 %v2194, %v2195
      %v2197 = vsel %vm1582, %v2093, 0.0
      %v2198 = vadd.f32 %v2196, %v2197
      %v2199 = vsel %vm1582, %v2098, 0.0
      %v2200 = vadd.f32 %v2198, %v2199
      %v2201 = vsel %vm1582, %v2101, 0.0
      %v2202 = vadd.f32 %v2200, %v2201
      %v2203 = vsel %vm1582, %v2106, 0.0
      %v2204 = vadd.f32 %v2202, %v2203
      %v2205 = vsel %vm1582, %v2109, 0.0
      %v2206 = vadd.f32 %v2204, %v2205
      %v2207 = vrot.slane %v2206, 4
      %v2208 = vadd.f32 %v2206, %v2207
      %v2209 = vrot.slane %v2208, 2
      %v2210 = vadd.f32 %v2208, %v2209
      %v2211 = vrot.slane %v2210, 1
      %v2212 = vadd.f32 %v2210, %v2211
      %v2213 = vmul.f32 %v1986, %v1986
      %v2214 = vmul.f32 %v1989, %v1989
      %v2215 = vmul.f32 %v1994, %v1994
      %v2216 = vmul.f32 %v1997, %v1997
      %v2217 = vmul.f32 %v2002, %v2002
      %v2218 = vmul.f32 %v2005, %v2005
      %v2219 = vmul.f32 %v2010, %v2010
      %v2220 = vmul.f32 %v2013, %v2013
      %v2221 = vmul.f32 %v2018, %v2018
      %v2222 = vmul.f32 %v2021, %v2021
      %v2223 = vmul.f32 %v2026, %v2026
      %v2224 = vmul.f32 %v2029, %v2029
      %v2225 = vmul.f32 %v2034, %v2034
      %v2226 = vmul.f32 %v2037, %v2037
      %v2227 = vmul.f32 %v2042, %v2042
      %v2228 = vmul.f32 %v2045, %v2045
      %v2229 = vmul.f32 %v2050, %v2050
      %v2230 = vmul.f32 %v2053, %v2053
      %v2231 = vmul.f32 %v2058, %v2058
      %v2232 = vmul.f32 %v2061, %v2061
      %v2233 = vmul.f32 %v2066, %v2066
      %v2234 = vmul.f32 %v2069, %v2069
      %v2235 = vmul.f32 %v2074, %v2074
      %v2236 = vmul.f32 %v2077, %v2077
      %v2237 = vmul.f32 %v2082, %v2082
      %v2238 = vmul.f32 %v2085, %v2085
      %v2239 = vmul.f32 %v2090, %v2090
      %v2240 = vmul.f32 %v2093, %v2093
      %v2241 = vmul.f32 %v2098, %v2098
      %v2242 = vmul.f32 %v2101, %v2101
      %v2243 = vmul.f32 %v2106, %v2106
      %v2244 = vmul.f32 %v2109, %v2109
      %v2245 = vsel %vm1582, %v2213, 0.0
      %v2246 = vsel %vm1582, %v2214, 0.0
      %v2247 = vadd.f32 %v2245, %v2246
      %v2248 = vsel %vm1582, %v2215, 0.0
      %v2249 = vadd.f32 %v2247, %v2248
      %v2250 = vsel %vm1582, %v2216, 0.0
      %v2251 = vadd.f32 %v2249, %v2250
      %v2252 = vsel %vm1582, %v2217, 0.0
      %v2253 = vadd.f32 %v2251, %v2252
      %v2254 = vsel %vm1582, %v2218, 0.0
      %v2255 = vadd.f32 %v2253, %v2254
      %v2256 = vsel %vm1582, %v2219, 0.0
      %v2257 = vadd.f32 %v2255, %v2256
      %v2258 = vsel %vm1582, %v2220, 0.0
      %v2259 = vadd.f32 %v2257, %v2258
      %v2260 = vsel %vm1582, %v2221, 0.0
      %v2261 = vadd.f32 %v2259, %v2260
      %v2262 = vsel %vm1582, %v2222, 0.0
      %v2263 = vadd.f32 %v2261, %v2262
      %v2264 = vsel %vm1582, %v2223, 0.0
      %v2265 = vadd.f32 %v2263, %v2264
      %v2266 = vsel %vm1582, %v2224, 0.0
      %v2267 = vadd.f32 %v2265, %v2266
      %v2268 = vsel %vm1582, %v2225, 0.0
      %v2269 = vadd.f32 %v2267, %v2268
      %v2270 = vsel %vm1582, %v2226, 0.0
      %v2271 = vadd.f32 %v2269, %v2270
      %v2272 = vsel %vm1582, %v2227, 0.0
      %v2273 = vadd.f32 %v2271, %v2272
      %v2274 = vsel %vm1582, %v2228, 0.0
      %v2275 = vadd.f32 %v2273, %v2274
      %v2276 = vsel %vm1582, %v2229, 0.0
      %v2277 = vadd.f32 %v2275, %v2276
      %v2278 = vsel %vm1582, %v2230, 0.0
      %v2279 = vadd.f32 %v2277, %v2278
      %v2280 = vsel %vm1582, %v2231, 0.0
      %v2281 = vadd.f32 %v2279, %v2280
      %v2282 = vsel %vm1582, %v2232, 0.0
      %v2283 = vadd.f32 %v2281, %v2282
      %v2284 = vsel %vm1582, %v2233, 0.0
      %v2285 = vadd.f32 %v2283, %v2284
      %v2286 = vsel %vm1582, %v2234, 0.0
      %v2287 = vadd.f32 %v2285, %v2286
      %v2288 = vsel %vm1582, %v2235, 0.0
      %v2289 = vadd.f32 %v2287, %v2288
      %v2290 = vsel %vm1582, %v2236, 0.0
      %v2291 = vadd.f32 %v2289, %v2290
      %v2292 = vsel %vm1582, %v2237, 0.0
      %v2293 = vadd.f32 %v2291, %v2292
      %v2294 = vsel %vm1582, %v2238, 0.0
      %v2295 = vadd.f32 %v2293, %v2294
      %v2296 = vsel %vm1582, %v2239, 0.0
      %v2297 = vadd.f32 %v2295, %v2296
      %v2298 = vsel %vm1582, %v2240, 0.0
      %v2299 = vadd.f32 %v2297, %v2298
      %v2300 = vsel %vm1582, %v2241, 0.0
      %v2301 = vadd.f32 %v2299, %v2300
      %v2302 = vsel %vm1582, %v2242, 0.0
      %v2303 = vadd.f32 %v2301, %v2302
      %v2304 = vsel %vm1582, %v2243, 0.0
      %v2305 = vadd.f32 %v2303, %v2304
      %v2306 = vsel %vm1582, %v2244, 0.0
      %v2307 = vadd.f32 %v2305, %v2306
      %v2308 = vrot.slane %v2307, 4
      %v2309 = vadd.f32 %v2307, %v2308
      %v2310 = vrot.slane %v2309, 2
      %v2311 = vadd.f32 %v2309, %v2310
      %v2312 = vrot.slane %v2311, 1
      %v2313 = vadd.f32 %v2311, %v2312
      %v2314 = vsel %vm474, %v2212, %v2313
      %2315 = vst.msk [vmem:[%s262] sm:$0x3] %vm268, %v2314
      %p2316 = scmp.lt.s32.totalorder %s18, 1
      %s2317 = scalar_select %p2316, %s18, 1
      %s2318 = smul.addr %s2317, 32
      %s2319 = smul.addr %s2318, 8
      %s2320 = scalar_lea.vmem %s5, %s2319
      %p2321 = scmp.lt.s32.totalorder %s18, 1
      %s2322 = scalar_select %p2321, %s18, 1
      %s2323 = smul.addr %s2322, 2
      %s2324 = scalar_lea.vmem %s6, %s2323
      // Predicated region
      $region41: #{resblk_forward.5} parent=39 // pred_check
        %p2325 = pneg %p146
      $region42: #{resblk_forward.5} parent=39 // pred_check_branch
        %2327 = sbr.rel (%p2325) target = $region44
      $region43: #{resblk_forward.5} parent=39 // pred_region
        _
      $region44: #{resblk_forward.5} parent=39 // pred_fallthru
        _
      // Predicated region
      $region45: #{resblk_forward.5} parent=39 // pred_check
        %p2328 = pneg %p172
      $region46: #{resblk_forward.5} parent=39 // pred_check_branch
        %2330 = sbr.rel (%p2328) target = $region48
      $region47: #{resblk_forward.5} parent=39 // pred_region
        _
      $region48: #{resblk_forward.5} parent=39 // pred_fallthru
        _
    $region40: #{resblk_forward.5} parent=5 // pred_fallthru
      _
    %p2331 = scmp.le.s32.totalorder 2, %s13
    // Predicated region
    $region49: #{resblk_forward.5} parent=5 // pred_check
      %p2332 = pneg %p2331
    $region50: #{resblk_forward.5} parent=5 // pred_check_branch
      %2334 = sbr.rel (%p2332) target = $region52
    $region51: #{resblk_forward.5} parent=5 // pred_region
      %s2335 = ssub.s32 %s13, 2
      // Predicated region
      $region53: #{resblk_forward.5} parent=51 // pred_check
        %p2336 = pneg %p152
      $region54: #{resblk_forward.5} parent=51 // pred_check_branch
        %2338 = sbr.rel (%p2336) target = $region56
      $region55: #{resblk_forward.5} parent=51 // pred_region
        %p2339 = scmp.lt.s32.totalorder %s19, 1
        %s2340 = scalar_select %p2339, %s19, 1
        %s2341 = smul.addr %s2340, 32
        %s2342 = smul.addr %s2341, 8
        %s2343 = scalar_lea.vmem %s5, %s2342
      $region56: #{resblk_forward.5} parent=51 // pred_fallthru
        _
      // Predicated region
      $region57: #{resblk_forward.5} parent=51 // pred_check
        %p2344 = pneg %p178
      $region58: #{resblk_forward.5} parent=51 // pred_check_branch
        %2346 = sbr.rel (%p2344) target = $region60
      $region59: #{resblk_forward.5} parent=51 // pred_region
        %p2347 = scmp.lt.s32.totalorder %s19, 1
        %s2348 = scalar_select %p2347, %s19, 1
        %s2349 = smul.addr %s2348, 2
        %s2350 = scalar_lea.vmem %s6, %s2349
      $region60: #{resblk_forward.5} parent=51 // pred_fallthru
        _
    $region52: #{resblk_forward.5} parent=5 // pred_fallthru
      _
  $region6: #{resblk_forward.5} parent=0 // loop_footer
    %s17 = sadd.s32 1, %s13
  $region7: #{resblk_forward.5} parent=0 // loop_footer_branch
    %12 = sbr.rel target = $region3
  $region8: #{resblk_forward.5} parent=0 // loop_exit
    _

// kernel: resblk_forward.4
$region0: #{resblk_forward.4}
  #allocation0 [shape = 'u32[]', space=smem, size = 0x4, offset = 0x4, fixed_abs, tag = 'smem constant byte address 0x4 - core index']
  #allocation1 [shape = 'u32[144,128]{1,0:T(1,128)}', space=vmem, size = 0x12000, scoped, tag = 'internal scratch']
  %s0 = inlined_call_operand.vmem [shape: f32[2,16,16,4], index: 0, kind: input, shape index: {}]
  %s1 = inlined_call_operand.vmem [shape: bf16[36,16], index: 1, kind: input, shape index: {}]
  %s2 = inlined_call_operand.vmem [shape: f32[2,16,16,8], index: 2, kind: output, shape index: {0}]
  %s3 = inlined_call_operand.vmem [shape: f32[2,16,16,8], index: 3, kind: output, shape index: {1}]
  %s4 = inlined_call_operand.vmem [shape: f32[2,2,8], index: 4, kind: output, shape index: {2}]
  %s5 = inlined_call_operand.vmem [shape: f32[2,2,8], index: 5, kind: output, shape index: {3}]
  %6 = xla_tuple %s2, %s3, %s4, %s5
  %s7 = sld [smem:[#allocation0]]
  $region65: #{resblk_forward.4} parent=0
    _
  %s9 = ssub.s32 1, %s7
  %s10 = scalar_select 0, %s9, %s7
  loop: start=0, step=1, limit=4
  $region2: #{resblk_forward.4} parent=0 // loop_pre_header
    _
  $region3: #{resblk_forward.4} parent=0 // loop_header
    %s12 = sphi 0, %s16
    %p13 = scmp.ge.s32.totalorder %s12, 4
    %s22 = sphi 0, %s24
    %s25 = sphi 0, %s22
    %s26 = sphi 0, %s25
    %s42 = sphi 0, %s26
    %s46 = sphi 0, %s46
    %s48 = sphi 0, %s46
    %s49 = sphi 0, %s48
    %s63 = sphi 0, %s49
    %s69 = sphi 0, %s71
    %s72 = sphi 0, %s69
    %s73 = sphi 0, %s72
    %s89 = sphi 0, %s73
    %s95 = sphi 0, %s97
    %s98 = sphi 0, %s95
    %s99 = sphi 0, %s98
    %s115 = sphi 0, %s99
    %s121 = sphi 0, %s123
    %s124 = sphi 0, %s121
    %s125 = sphi 0, %s124
    %s141 = sphi 0, %s125
    %s147 = sphi 0, %s149
    %s150 = sphi 0, %s147
    %s151 = sphi 0, %s150
    %s167 = sphi 0, %s151
  $region4: #{resblk_forward.4} parent=0 // loop_header_branch
    %15 = sbr.rel (%p13) target = $region8
  $region5: #{resblk_forward.4} parent=0 // loop_body
    %s17 = ssub.s32 %s12, 1
    %s18 = ssub.s32 %s12, 2
    %s19 = sadd.s32 %s12, 1
    %s20 = ssub.s32 %s12, %s19
    %p21 = scmp.eq.s32.totalorder %s20, 0
    %s23 = sadd.s32 %s22, 1
    %s24 = scalar_select %p21, %s22, %s23
    %p27 = pneg %p21
    %p28 = scmp.eq.s32.totalorder %s12, 1
    %p29 = por %p27, %p28
    %p30 = scmp.ne.s32.totalorder %s22, %s25
    %p31 = scmp.eq.s32.totalorder %s12, 0
    %p32 = por %p30, %p31
    %p33 = scmp.ne.s32.totalorder %s22, %s25
    %p34 = scmp.eq.s32.totalorder %s17, 1
    %p35 = por %p33, %p34
    %p36 = scmp.ne.s32.totalorder %s25, %s26
    %p37 = scmp.eq.s32.totalorder %s17, 0
    %p38 = por %p36, %p37
    %p39 = scmp.ne.s32.totalorder %s25, %s26
    %p40 = scmp.eq.s32.totalorder %s18, 1
    %p41 = por %p39, %p40
    %p43 = scmp.ne.s32.totalorder %s26, %s42
    %p44 = scmp.eq.s32.totalorder %s18, 0
    %p45 = por %p43, %p44
    %s47 = sadd.s32 %s46, 1
    %p50 = scmp.eq.s32.totalorder %s12, 1
    %p51 = scmp.ne.s32.totalorder %s46, %s48
    %p52 = scmp.eq.s32.totalorder %s12, 0
    %p53 = por %p51, %p52
    %p54 = scmp.ne.s32.totalorder %s46, %s48
    %p55 = scmp.eq.s32.totalorder %s17, 1
    %p56 = por %p54, %p55
    %p57 = scmp.ne.s32.totalorder %s48, %s49
    %p58 = scmp.eq.s32.totalorder %s17, 0
    %p59 = por %p57, %p58
    %p60 = scmp.ne.s32.totalorder %s48, %s49
    %p61 = scmp.eq.s32.totalorder %s18, 1
    %p62 = por %p60, %p61
    %p64 = scmp.ne.s32.totalorder %s49, %s63
    %p65 = scmp.eq.s32.totalorder %s18, 0
    %p66 = por %p64, %p65
    %s67 = ssub.s32 %s12, %s19
    %p68 = scmp.eq.s32.totalorder %s67, 0
    %s70 = sadd.s32 %s69, 1
    %s71 = scalar_select %p68, %s69, %s70
    %p74 = pneg %p68
    %p75 = scmp.eq.s32.totalorder %s12, 1
    %p76 = por %p74, %p75
    %p77 = scmp.ne.s32.totalorder %s69, %s72
    %p78 = scmp.eq.s32.totalorder %s12, 0
    %p79 = por %p77, %p78
    %p80 = scmp.ne.s32.totalorder %s69, %s72
    %p81 = scmp.eq.s32.totalorder %s17, 1
    %p82 = por %p80, %p81
    %p83 = scmp.ne.s32.totalorder %s72, %s73
    %p84 = scmp.eq.s32.totalorder %s17, 0
    %p85 = por %p83, %p84
    %p86 = scmp.ne.s32.totalorder %s72, %s73
    %p87 = scmp.eq.s32.totalorder %s18, 1
    %p88 = por %p86, %p87
    %p90 = scmp.ne.s32.totalorder %s73, %s89
    %p91 = scmp.eq.s32.totalorder %s18, 0
    %p92 = por %p90, %p91
    %s93 = ssub.s32 %s12, %s19
    %p94 = scmp.eq.s32.totalorder %s93, 0
    %s96 = sadd.s32 %s95, 1
    %s97 = scalar_select %p94, %s95, %s96
    %p100 = pneg %p94
    %p101 = scmp.eq.s32.totalorder %s12, 1
    %p102 = por %p100, %p101
    %p103 = scmp.ne.s32.totalorder %s95, %s98
    %p104 = scmp.eq.s32.totalorder %s12, 0
    %p105 = por %p103, %p104
    %p106 = scmp.ne.s32.totalorder %s95, %s98
    %p107 = scmp.eq.s32.totalorder %s17, 1
    %p108 = por %p106, %p107
    %p109 = scmp.ne.s32.totalorder %s98, %s99
    %p110 = scmp.eq.s32.totalorder %s17, 0
    %p111 = por %p109, %p110
    %p112 = scmp.ne.s32.totalorder %s98, %s99
    %p113 = scmp.eq.s32.totalorder %s18, 1
    %p114 = por %p112, %p113
    %p116 = scmp.ne.s32.totalorder %s99, %s115
    %p117 = scmp.eq.s32.totalorder %s18, 0
    %p118 = por %p116, %p117
    %s119 = ssub.s32 %s12, %s19
    %p120 = scmp.eq.s32.totalorder %s119, 0
    %s122 = sadd.s32 %s121, 1
    %s123 = scalar_select %p120, %s121, %s122
    %p126 = pneg %p120
    %p127 = scmp.eq.s32.totalorder %s12, 1
    %p128 = por %p126, %p127
    %p129 = scmp.ne.s32.totalorder %s121, %s124
    %p130 = scmp.eq.s32.totalorder %s12, 0
    %p131 = por %p129, %p130
    %p132 = scmp.ne.s32.totalorder %s121, %s124
    %p133 = scmp.eq.s32.totalorder %s17, 1
    %p134 = por %p132, %p133
    %p135 = scmp.ne.s32.totalorder %s124, %s125
    %p136 = scmp.eq.s32.totalorder %s17, 0
    %p137 = por %p135, %p136
    %p138 = scmp.ne.s32.totalorder %s124, %s125
    %p139 = scmp.eq.s32.totalorder %s18, 1
    %p140 = por %p138, %p139
    %p142 = scmp.ne.s32.totalorder %s125, %s141
    %p143 = scmp.eq.s32.totalorder %s18, 0
    %p144 = por %p142, %p143
    %s145 = ssub.s32 %s12, %s19
    %p146 = scmp.eq.s32.totalorder %s145, 0
    %s148 = sadd.s32 %s147, 1
    %s149 = scalar_select %p146, %s147, %s148
    %p152 = pneg %p146
    %p153 = scmp.eq.s32.totalorder %s12, 1
    %p154 = por %p152, %p153
    %p155 = scmp.ne.s32.totalorder %s147, %s150
    %p156 = scmp.eq.s32.totalorder %s12, 0
    %p157 = por %p155, %p156
    %p158 = scmp.ne.s32.totalorder %s147, %s150
    %p159 = scmp.eq.s32.totalorder %s17, 1
    %p160 = por %p158, %p159
    %p161 = scmp.ne.s32.totalorder %s150, %s151
    %p162 = scmp.eq.s32.totalorder %s17, 0
    %p163 = por %p161, %p162
    %p164 = scmp.ne.s32.totalorder %s150, %s151
    %p165 = scmp.eq.s32.totalorder %s18, 1
    %p166 = por %p164, %p165
    %p168 = scmp.ne.s32.totalorder %s151, %s167
    %p169 = scmp.eq.s32.totalorder %s18, 0
    %p170 = por %p168, %p169
    %p171 = scmp.le.s32.totalorder 1, %s12
    %p172 = scmp.lt.s32.totalorder %s12, 3
    %p173 = pnand %p171, %p172
    %p174 = pneg %p173
    // Predicated region
    $region9: #{resblk_forward.4} parent=5 // pred_check
      _
    $region10: #{resblk_forward.4} parent=5 // pred_check_branch
      %176 = sbr.rel (%p173) target = $region12
    $region11: #{resblk_forward.4} parent=5 // pred_region
      %s177 = ssub.s32 %s12, 1
      // Predicated region
      $region13: #{resblk_forward.4} parent=11 // pred_check
        %p178 = pneg %p59
      $region14: #{resblk_forward.4} parent=11 // pred_check_branch
        %180 = sbr.rel (%p178) target = $region16
      $region15: #{resblk_forward.4} parent=11 // pred_region
        _
      $region16: #{resblk_forward.4} parent=11 // pred_fallthru
        _
    $region12: #{resblk_forward.4} parent=5 // pred_fallthru
      _
    %p181 = scmp.lt.s32.totalorder %s12, 2
    // Predicated region
    $region17: #{resblk_forward.4} parent=5 // pred_check
      %p182 = pneg %p181
    $region18: #{resblk_forward.4} parent=5 // pred_check_branch
      %184 = sbr.rel (%p182) target = $region20
    $region19: #{resblk_forward.4} parent=5 // pred_region
      // Predicated region
      $region21: #{resblk_forward.4} parent=19 // pred_check
        %p185 = pneg %p32
      $region22: #{resblk_forward.4} parent=19 // pred_check_branch
        %187 = sbr.rel (%p185) target = $region24
      $region23: #{resblk_forward.4} parent=19 // pred_region
        %p188 = scmp.lt.s32.totalorder %s12, 1
        %s189 = scalar_select %p188, %s12, 1
        %s190 = smul.addr %s189, 32
        %s191 = smul.addr %s190, 8
        %s192 = scalar_lea.vmem %s0, %s191
      $region24: #{resblk_forward.4} parent=19 // pred_fallthru
        _
    $region20: #{resblk_forward.4} parent=5 // pred_fallthru
      _
    %p193 = scmp.le.s32.totalorder 1, %s12
    %p194 = scmp.lt.s32.totalorder %s12, 3
    %p195 = pnand %p193, %p194
    %p196 = pneg %p195
    // Predicated region
    $region25: #{resblk_forward.4} parent=5 // pred_check
      _
    $region26: #{resblk_forward.4} parent=5 // pred_check_branch
      %198 = sbr.rel (%p195) target = $region28
    $region27: #{resblk_forward.4} parent=5 // pred_region
      %s199 = ssub.s32 %s12, 1
      %p200 = scmp.lt.s32.totalorder %s17, 1
      %s201 = scalar_select %p200, %s17, 1
      %s202 = smul.addr %s201, 32
      %s203 = smul.addr %s202, 8
      %s204 = scalar_lea.vmem %s0, %s203
      %p205 = pneg %p38
      %p206 = pneg %p35
      %p207 = pneg %p59
      %p208 = pneg %p56
      %p209 = pneg %p85
      %p210 = pneg %p82
      %p211 = scmp.lt.s32.totalorder %s17, 1
      %s212 = scalar_select %p211, %s17, 1
      %s213 = smul.addr %s212, 32
      %s214 = smul.addr %s213, 8
      %s215 = scalar_lea.vmem %s2, %s214
      %p216 = pneg %p111
      %p217 = pneg %p108
      %p218 = scmp.lt.s32.totalorder %s17, 1
      %s219 = scalar_select %p218, %s17, 1
      %s220 = smul.addr %s219, 32
      %s221 = smul.addr %s220, 8
      %s222 = scalar_lea.vmem %s3, %s221
      %p223 = pneg %p137
      %p224 = pneg %p134
      %p225 = scmp.lt.s32.totalorder %s17, 1
      %s226 = scalar_select %p225, %s17, 1
      %s227 = smul.addr %s226, 2
      %s228 = scalar_lea.vmem %s4, %s227
      %p229 = pneg %p163
      %p230 = pneg %p160
      %p231 = scmp.lt.s32.totalorder %s17, 1
      %s232 = scalar_select %p231, %s17, 1
      %s233 = smul.addr %s232, 2
      %s234 = scalar_lea.vmem %s5, %s233
      %p235 = scmp.lt.s32.totalorder %s17, 1
      %s236 = scalar_select %p235, %s17, 1
      %s237 = smul.addr %s236, 32
      %s238 = smul.addr %s237, 8
      %s239 = scalar_lea.vmem %s0, %s238
      %p240 = scmp.lt.s32.totalorder %s17, 1
      %s241 = scalar_select %p240, %s17, 1
      %s242 = smul.addr %s241, 32
      %s243 = smul.addr %s242, 8
      %s244 = scalar_lea.vmem %s2, %s243
      %p245 = scmp.lt.s32.totalorder %s17, 1
      %s246 = scalar_select %p245, %s17, 1
      %s247 = smul.addr %s246, 32
      %s248 = smul.addr %s247, 8
      %s249 = scalar_lea.vmem %s3, %s248
      %p250 = scmp.lt.s32.totalorder %s17, 1
      %s251 = scalar_select %p250, %s17, 1
      %s252 = smul.addr %s251, 2
      %s253 = scalar_lea.vmem %s4, %s252
      %p254 = scmp.lt.s32.totalorder %s17, 1
      %s255 = scalar_select %p254, %s17, 1
      %s256 = smul.addr %s255, 2
      %s257 = scalar_lea.vmem %s5, %s256
      %v259 = vld [vmem:[%s239] sm:$0xff]
      %v260 = vld [vmem:[%s239 + $0x8] sm:$0xff]
      %v261 = vld [vmem:[%s239 + $0x10] sm:$0xff]
      %v262 = vld [vmem:[%s239 + $0x18] sm:$0xff]
      %v263 = vld [vmem:[%s239 + $0x20] sm:$0xff]
      %v264 = vld [vmem:[%s239 + $0x28] sm:$0xff]
      %v265 = vld [vmem:[%s239 + $0x30] sm:$0xff]
      %v266 = vld [vmem:[%s239 + $0x38] sm:$0xff]
      %v267 = vld [vmem:[%s239 + $0x40] sm:$0xff]
      %v268 = vld [vmem:[%s239 + $0x48] sm:$0xff]
      %v269 = vld [vmem:[%s239 + $0x50] sm:$0xff]
      %v270 = vld [vmem:[%s239 + $0x58] sm:$0xff]
      %v271 = vld [vmem:[%s239 + $0x60] sm:$0xff]
      %v272 = vld [vmem:[%s239 + $0x68] sm:$0xff]
      %v273 = vld [vmem:[%s239 + $0x70] sm:$0xff]
      %v274 = vld [vmem:[%s239 + $0x78] sm:$0xff]
      %v275 = vld [vmem:[%s239 + $0x80] sm:$0xff]
      %v276 = vld [vmem:[%s239 + $0x88] sm:$0xff]
      %v277 = vld [vmem:[%s239 + $0x90] sm:$0xff]
      %v278 = vld [vmem:[%s239 + $0x98] sm:$0xff]
      %v279 = vld [vmem:[%s239 + $0xa0] sm:$0xff]
      %v280 = vld [vmem:[%s239 + $0xa8] sm:$0xff]
      %v281 = vld [vmem:[%s239 + $0xb0] sm:$0xff]
      %v282 = vld [vmem:[%s239 + $0xb8] sm:$0xff]
      %v283 = vld [vmem:[%s239 + $0xc0] sm:$0xff]
      %v284 = vld [vmem:[%s239 + $0xc8] sm:$0xff]
      %v285 = vld [vmem:[%s239 + $0xd0] sm:$0xff]
      %v286 = vld [vmem:[%s239 + $0xd8] sm:$0xff]
      %v287 = vld [vmem:[%s239 + $0xe0] sm:$0xff]
      %v288 = vld [vmem:[%s239 + $0xe8] sm:$0xff]
      %v289 = vld [vmem:[%s239 + $0xf0] sm:$0xff]
      %v290 = vld [vmem:[%s239 + $0xf8] sm:$0xff]
      %vm324 = vcmask 1040384
      %v325 = vrot.slane 0.0, 7
      %v326 = vsel %vm324, %v325, %v325
      %v327 = vrot.slane %v259, 7
      %v328 = vrot.slane %v260, 7
      %v329 = vsel %vm324, %v327, %v328
      %v330 = vrot.slane %v261, 7
      %v331 = vrot.slane %v262, 7
      %v332 = vsel %vm324, %v330, %v331
      %v333 = vrot.slane %v263, 7
      %v334 = vrot.slane %v264, 7
      %v335 = vsel %vm324, %v333, %v334
      %v336 = vrot.slane %v265, 7
      %v337 = vrot.slane %v266, 7
      %v338 = vsel %vm324, %v336, %v337
      %v339 = vrot.slane %v267, 7
      %v340 = vrot.slane %v268, 7
      %v341 = vsel %vm324, %v339, %v340
      %v342 = vrot.slane %v269, 7
      %v343 = vrot.slane %v270, 7
      %v344 = vsel %vm324, %v342, %v343
      %v345 = vrot.slane %v271, 7
      %v346 = vrot.slane %v272, 7
      %v347 = vsel %vm324, %v345, %v346
      %v348 = vrot.slane %v273, 7
      %v349 = vrot.slane %v274, 7
      %v350 = vsel %vm324, %v348, %v349
      %v351 = vrot.slane %v275, 7
      %v352 = vrot.slane %v276, 7
      %v353 = vsel %vm324, %v351, %v352
      %v354 = vrot.slane %v277, 7
      %v355 = vrot.slane %v278, 7
      %v356 = vsel %vm324, %v354, %v355
      %v357 = vrot.slane %v279, 7
      %v358 = vrot.slane %v280, 7
      %v359 = vsel %vm324, %v357, %v358
      %v360 = vrot.slane %v281, 7
      %v361 = vrot.slane %v282, 7
      %v362 = vsel %vm324, %v360, %v361
      %v363 = vrot.slane %v283, 7
      %v364 = vrot.slane %v284, 7
      %v365 = vsel %vm324, %v363, %v364
      %v366 = vrot.slane %v285, 7
      %v367 = vrot.slane %v286, 7
      %v368 = vsel %vm324, %v366, %v367
      %v369 = vrot.slane %v287, 7
      %v370 = vrot.slane %v288, 7
      %v371 = vsel %vm324, %v369, %v370
      %v372 = vrot.slane %v289, 7
      %v373 = vrot.slane %v290, 7
      %v374 = vsel %vm324, %v372, %v373
      %v424 = vsel %vm324, 0.0, %v325
      %v425 = vsel %vm324, 0.0, %v327
      %v426 = vsel %vm324, 0.0, %v330
      %v427 = vsel %vm324, 0.0, %v333
      %v428 = vsel %vm324, 0.0, %v336
      %v429 = vsel %vm324, 0.0, %v339
      %v430 = vsel %vm324, 0.0, %v342
      %v431 = vsel %vm324, 0.0, %v345
      %v432 = vsel %vm324, 0.0, %v348
      %v433 = vsel %vm324, 0.0, %v351
      %v434 = vsel %vm324, 0.0, %v354
      %v435 = vsel %vm324, 0.0, %v357
      %v436 = vsel %vm324, 0.0, %v360
      %v437 = vsel %vm324, 0.0, %v363
      %v438 = vsel %vm324, 0.0, %v366
      %v439 = vsel %vm324, 0.0, %v369
      %v440 = vsel %vm324, 0.0, %v372
      %v441 = vsel %vm324, %v325, 0.0
      %v442 = vsel %vm324, %v328, 0.0
      %v443 = vsel %vm324, %v331, 0.0
      %v444 = vsel %vm324, %v334, 0.0
      %v445 = vsel %vm324, %v337, 0.0
      %v446 = vsel %vm324, %v340, 0.0
      %v447 = vsel %vm324, %v343, 0.0
      %v448 = vsel %vm324, %v346, 0.0
      %v449 = vsel %vm324, %v349, 0.0
      %v450 = vsel %vm324, %v352, 0.0
      %v451 = vsel %vm324, %v355, 0.0
      %v452 = vsel %vm324, %v358, 0.0
      %v453 = vsel %vm324, %v361, 0.0
      %v454 = vsel %vm324, %v364, 0.0
      %v455 = vsel %vm324, %v367, 0.0
      %v456 = vsel %vm324, %v370, 0.0
      %v457 = vsel %vm324, %v373, 0.0
      %vm490 = vcmask 1046528
      %v491 = vrot.slane %v424, 1
      %v492 = vrot.slane %v326, 1
      %v493 = vsel %vm490, %v491, %v492
      %v494 = vrot.slane %v441, 1
      %v495 = vsel %vm490, %v492, %v494
      %v496 = vrot.slane %v425, 1
      %v497 = vrot.slane %v329, 1
      %v498 = vsel %vm490, %v496, %v497
      %v499 = vrot.slane %v442, 1
      %v500 = vsel %vm490, %v497, %v499
      %v501 = vrot.slane %v426, 1
      %v502 = vrot.slane %v332, 1
      %v503 = vsel %vm490, %v501, %v502
      %v504 = vrot.slane %v443, 1
      %v505 = vsel %vm490, %v502, %v504
      %v506 = vrot.slane %v427, 1
      %v507 = vrot.slane %v335, 1
      %v508 = vsel %vm490, %v506, %v507
      %v509 = vrot.slane %v444, 1
      %v510 = vsel %vm490, %v507, %v509
      %v511 = vrot.slane %v428, 1
      %v512 = vrot.slane %v338, 1
      %v513 = vsel %vm490, %v511, %v512
      %v514 = vrot.slane %v445, 1
      %v515 = vsel %vm490, %v512, %v514
      %v516 = vrot.slane %v429, 1
      %v517 = vrot.slane %v341, 1
      %v518 = vsel %vm490, %v516, %v517
      %v519 = vrot.slane %v446, 1
      %v520 = vsel %vm490, %v517, %v519
      %v521 = vrot.slane %v430, 1
      %v522 = vrot.slane %v344, 1
      %v523 = vsel %vm490, %v521, %v522
      %v524 = vrot.slane %v447, 1
      %v525 = vsel %vm490, %v522, %v524
      %v526 = vrot.slane %v431, 1
      %v527 = vrot.slane %v347, 1
      %v528 = vsel %vm490, %v526, %v527
      %v529 = vrot.slane %v448, 1
      %v530 = vsel %vm490, %v527, %v529
      %v531 = vrot.slane %v432, 1
      %v532 = vrot.slane %v350, 1
      %v533 = vsel %vm490, %v531, %v532
      %v534 = vrot.slane %v449, 1
      %v535 = vsel %vm490, %v532, %v534
      %v536 = vrot.slane %v433, 1
      %v537 = vrot.slane %v353, 1
      %v538 = vsel %vm490, %v536, %v537
      %v539 = vrot.slane %v450, 1
      %v540 = vsel %vm490, %v537, %v539
      %v541 = vrot.slane %v434, 1
      %v542 = vrot.slane %v356, 1
      %v543 = vsel %vm490, %v541, %v542
      %v544 = vrot.slane %v451, 1
      %v545 = vsel %vm490, %v542, %v544
      %v546 = vrot.slane %v435, 1
      %v547 = vrot.slane %v359, 1
      %v548 = vsel %vm490, %v546, %v547
      %v549 = vrot.slane %v452, 1
      %v550 = vsel %vm490, %v547, %v549
      %v551 = vrot.slane %v436, 1
      %v552 = vrot.slane %v362, 1
      %v553 = vsel %vm490, %v551, %v552
      %v554 = vrot.slane %v453, 1
      %v555 = vsel %vm490, %v552, %v554
      %v556 = vrot.slane %v437, 1
      %v557 = vrot.slane %v365, 1
      %v558 = vsel %vm490, %v556, %v557
      %v559 = vrot.slane %v454, 1
      %v560 = vsel %vm490, %v557, %v559
      %v561 = vrot.slane %v438, 1
      %v562 = vrot.slane %v368, 1
      %v563 = vsel %vm490, %v561, %v562
      %v564 = vrot.slane %v455, 1
      %v565 = vsel %vm490, %v562, %v564
      %v566 = vrot.slane %v439, 1
      %v567 = vrot.slane %v371, 1
      %v568 = vsel %vm490, %v566, %v567
      %v569 = vrot.slane %v456, 1
      %v570 = vsel %vm490, %v567, %v569
      %571 = vrot.lane.b32.xlu0 %v493, 4
      %v572 = vpop.permute.xlu0 %571
      %573 = vrot.lane.b32.xlu0 %v495, 4
      %v574 = vpop.permute.xlu0 %573
      %575 = vrot.lane.b32.xlu0 %v498, 4
      %v576 = vpop.permute.xlu0 %575
      %577 = vrot.lane.b32.xlu0 %v500, 4
      %v578 = vpop.permute.xlu0 %577
      %579 = vrot.lane.b32.xlu0 %v503, 4
      %v580 = vpop.permute.xlu0 %579
      %581 = vrot.lane.b32.xlu0 %v505, 4
      %v582 = vpop.permute.xlu0 %581
      %583 = vrot.lane.b32.xlu0 %v508, 4
      %v584 = vpop.permute.xlu0 %583
      %585 = vrot.lane.b32.xlu0 %v510, 4
      %v586 = vpop.permute.xlu0 %585
      %587 = vrot.lane.b32.xlu0 %v513, 4
      %v588 = vpop.permute.xlu0 %587
      %589 = vrot.lane.b32.xlu0 %v515, 4
      %v590 = vpop.permute.xlu0 %589
      %591 = vrot.lane.b32.xlu0 %v518, 4
      %v592 = vpop.permute.xlu0 %591
      %593 = vrot.lane.b32.xlu0 %v520, 4
      %v594 = vpop.permute.xlu0 %593
      %595 = vrot.lane.b32.xlu0 %v523, 4
      %v596 = vpop.permute.xlu0 %595
      %597 = vrot.lane.b32.xlu0 %v525, 4
      %v598 = vpop.permute.xlu0 %597
      %599 = vrot.lane.b32.xlu0 %v528, 4
      %v600 = vpop.permute.xlu0 %599
      %601 = vrot.lane.b32.xlu0 %v530, 4
      %v602 = vpop.permute.xlu0 %601
      %603 = vrot.lane.b32.xlu0 %v533, 4
      %v604 = vpop.permute.xlu0 %603
      %605 = vrot.lane.b32.xlu0 %v535, 4
      %v606 = vpop.permute.xlu0 %605
      %607 = vrot.lane.b32.xlu0 %v538, 4
      %v608 = vpop.permute.xlu0 %607
      %609 = vrot.lane.b32.xlu0 %v540, 4
      %v610 = vpop.permute.xlu0 %609
      %611 = vrot.lane.b32.xlu0 %v543, 4
      %v612 = vpop.permute.xlu0 %611
      %613 = vrot.lane.b32.xlu0 %v545, 4
      %v614 = vpop.permute.xlu0 %613
      %615 = vrot.lane.b32.xlu0 %v548, 4
      %v616 = vpop.permute.xlu0 %615
      %617 = vrot.lane.b32.xlu0 %v550, 4
      %v618 = vpop.permute.xlu0 %617
      %619 = vrot.lane.b32.xlu0 %v553, 4
      %v620 = vpop.permute.xlu0 %619
      %621 = vrot.lane.b32.xlu0 %v555, 4
      %v622 = vpop.permute.xlu0 %621
      %623 = vrot.lane.b32.xlu0 %v558, 4
      %v624 = vpop.permute.xlu0 %623
      %625 = vrot.lane.b32.xlu0 %v560, 4
      %v626 = vpop.permute.xlu0 %625
      %627 = vrot.lane.b32.xlu0 %v563, 4
      %v628 = vpop.permute.xlu0 %627
      %629 = vrot.lane.b32.xlu0 %v565, 4
      %v630 = vpop.permute.xlu0 %629
      %631 = vrot.lane.b32.xlu0 %v568, 4
      %v632 = vpop.permute.xlu0 %631
      %633 = vrot.lane.b32.xlu0 %v570, 4
      %v634 = vpop.permute.xlu0 %633
      %vm667 = vcmask 1045504
      %v668 = vrot.slane %v424, 2
      %v669 = vrot.slane %v326, 2
      %v670 = vsel %vm667, %v668, %v669
      %v671 = vrot.slane %v441, 2
      %v672 = vsel %vm667, %v669, %v671
      %v673 = vrot.slane %v425, 2
      %v674 = vrot.slane %v329, 2
      %v675 = vsel %vm667, %v673, %v674
      %v676 = vrot.slane %v442, 2
      %v677 = vsel %vm667, %v674, %v676
      %v678 = vrot.slane %v426, 2
      %v679 = vrot.slane %v332, 2
      %v680 = vsel %vm667, %v678, %v679
      %v681 = vrot.slane %v443, 2
      %v682 = vsel %vm667, %v679, %v681
      %v683 = vrot.slane %v427, 2
      %v684 = vrot.slane %v335, 2
      %v685 = vsel %vm667, %v683, %v684
      %v686 = vrot.slane %v444, 2
      %v687 = vsel %vm667, %v684, %v686
      %v688 = vrot.slane %v428, 2
      %v689 = vrot.slane %v338, 2
      %v690 = vsel %vm667, %v688, %v689
      %v691 = vrot.slane %v445, 2
      %v692 = vsel %vm667, %v689, %v691
      %v693 = vrot.slane %v429, 2
      %v694 = vrot.slane %v341, 2
      %v695 = vsel %vm667, %v693, %v694
      %v696 = vrot.slane %v446, 2
      %v697 = vsel %vm667, %v694, %v696
      %v698 = vrot.slane %v430, 2
      %v699 = vrot.slane %v344, 2
      %v700 = vsel %vm667, %v698, %v699
      %v701 = vrot.slane %v447, 2
      %v702 = vsel %vm667, %v699, %v701
      %v703 = vrot.slane %v431, 2
      %v704 = vrot.slane %v347, 2
      %v705 = vsel %vm667, %v703, %v704
      %v706 = vrot.slane %v448, 2
      %v707 = vsel %vm667, %v704, %v706
      %v708 = vrot.slane %v432, 2
      %v709 = vrot.slane %v350, 2
      %v710 = vsel %vm667, %v708, %v709
      %v711 = vrot.slane %v449, 2
      %v712 = vsel %vm667, %v709, %v711
      %v713 = vrot.slane %v433, 2
      %v714 = vrot.slane %v353, 2
      %v715 = vsel %vm667, %v713, %v714
      %v716 = vrot.slane %v450, 2
      %v717 = vsel %vm667, %v714, %v716
      %v718 = vrot.slane %v434, 2
      %v719 = vrot.slane %v356, 2
      %v720 = vsel %vm667, %v718, %v719
      %v721 = vrot.slane %v451, 2
      %v722 = vsel %vm667, %v719, %v721
      %v723 = vrot.slane %v435, 2
      %v724 = vrot.slane %v359, 2
      %v725 = vsel %vm667, %v723, %v724
      %v726 = vrot.slane %v452, 2
      %v727 = vsel %vm667, %v724, %v726
      %v728 = vrot.slane %v436, 2
      %v729 = vrot.slane %v362, 2
      %v730 = vsel %vm667, %v728, %v729
      %v731 = vrot.slane %v453, 2
      %v732 = vsel %vm667, %v729, %v731
      %v733 = vrot.slane %v437, 2
      %v734 = vrot.slane %v365, 2
      %v735 = vsel %vm667, %v733, %v734
      %v736 = vrot.slane %v454, 2
      %v737 = vsel %vm667, %v734, %v736
      %v738 = vrot.slane %v438, 2
      %v739 = vrot.slane %v368, 2
      %v740 = vsel %vm667, %v738, %v739
      %v741 = vrot.slane %v455, 2
      %v742 = vsel %vm667, %v739, %v741
      %v743 = vrot.slane %v439, 2
      %v744 = vrot.slane %v371, 2
      %v745 = vsel %vm667, %v743, %v744
      %v746 = vrot.slane %v456, 2
      %v747 = vsel %vm667, %v744, %v746
      %748 = vrot.lane.b32.xlu0 %v670, 8
      %v749 = vpop.permute.xlu0 %748
      %750 = vrot.lane.b32.xlu0 %v672, 8
      %v751 = vpop.permute.xlu0 %750
      %752 = vrot.lane.b32.xlu0 %v675, 8
      %v753 = vpop.permute.xlu0 %752
      %754 = vrot.lane.b32.xlu0 %v677, 8
      %v755 = vpop.permute.xlu0 %754
      %756 = vrot.lane.b32.xlu0 %v680, 8
      %v757 = vpop.permute.xlu0 %756
      %758 = vrot.lane.b32.xlu0 %v682, 8
      %v759 = vpop.permute.xlu0 %758
      %760 = vrot.lane.b32.xlu0 %v685, 8
      %v761 = vpop.permute.xlu0 %760
      %762 = vrot.lane.b32.xlu0 %v687, 8
      %v763 = vpop.permute.xlu0 %762
      %764 = vrot.lane.b32.xlu0 %v690, 8
      %v765 = vpop.permute.xlu0 %764
      %766 = vrot.lane.b32.xlu0 %v692, 8
      %v767 = vpop.permute.xlu0 %766
      %768 = vrot.lane.b32.xlu0 %v695, 8
      %v769 = vpop.permute.xlu0 %768
      %770 = vrot.lane.b32.xlu0 %v697, 8
      %v771 = vpop.permute.xlu0 %770
      %772 = vrot.lane.b32.xlu0 %v700, 8
      %v773 = vpop.permute.xlu0 %772
      %774 = vrot.lane.b32.xlu0 %v702, 8
      %v775 = vpop.permute.xlu0 %774
      %776 = vrot.lane.b32.xlu0 %v705, 8
      %v777 = vpop.permute.xlu0 %776
      %778 = vrot.lane.b32.xlu0 %v707, 8
      %v779 = vpop.permute.xlu0 %778
      %780 = vrot.lane.b32.xlu0 %v710, 8
      %v781 = vpop.permute.xlu0 %780
      %782 = vrot.lane.b32.xlu0 %v712, 8
      %v783 = vpop.permute.xlu0 %782
      %784 = vrot.lane.b32.xlu0 %v715, 8
      %v785 = vpop.permute.xlu0 %784
      %786 = vrot.lane.b32.xlu0 %v717, 8
      %v787 = vpop.permute.xlu0 %786
      %788 = vrot.lane.b32.xlu0 %v720, 8
      %v789 = vpop.permute.xlu0 %788
      %790 = vrot.lane.b32.xlu0 %v722, 8
      %v791 = vpop.permute.xlu0 %790
      %792 = vrot.lane.b32.xlu0 %v725, 8
      %v793 = vpop.permute.xlu0 %792
      %794 = vrot.lane.b32.xlu0 %v727, 8
      %v795 = vpop.permute.xlu0 %794
      %796 = vrot.lane.b32.xlu0 %v730, 8
      %v797 = vpop.permute.xlu0 %796
      %798 = vrot.lane.b32.xlu0 %v732, 8
      %v799 = vpop.permute.xlu0 %798
      %800 = vrot.lane.b32.xlu0 %v735, 8
      %v801 = vpop.permute.xlu0 %800
      %802 = vrot.lane.b32.xlu0 %v737, 8
      %v803 = vpop.permute.xlu0 %802
      %804 = vrot.lane.b32.xlu0 %v740, 8
      %v805 = vpop.permute.xlu0 %804
      %806 = vrot.lane.b32.xlu0 %v742, 8
      %v807 = vpop.permute.xlu0 %806
      %808 = vrot.lane.b32.xlu0 %v745, 8
      %v809 = vpop.permute.xlu0 %808
      %810 = vrot.lane.b32.xlu0 %v747, 8
      %v811 = vpop.permute.xlu0 %810
      %845 = vrot.lane.b32.xlu0 %v425, 12
      %v846 = vpop.permute.xlu0 %845
      %847 = vrot.lane.b32.xlu0 %v329, 12
      %v848 = vpop.permute.xlu0 %847
      %849 = vrot.lane.b32.xlu0 %v426, 12
      %v850 = vpop.permute.xlu0 %849
      %851 = vrot.lane.b32.xlu0 %v332, 12
      %v852 = vpop.permute.xlu0 %851
      %853 = vrot.lane.b32.xlu0 %v427, 12
      %v854 = vpop.permute.xlu0 %853
      %855 = vrot.lane.b32.xlu0 %v335, 12
      %v856 = vpop.permute.xlu0 %855
      %857 = vrot.lane.b32.xlu0 %v428, 12
      %v858 = vpop.permute.xlu0 %857
      %859 = vrot.lane.b32.xlu0 %v338, 12
      %v860 = vpop.permute.xlu0 %859
      %861 = vrot.lane.b32.xlu0 %v429, 12
      %v862 = vpop.permute.xlu0 %861
      %863 = vrot.lane.b32.xlu0 %v341, 12
      %v864 = vpop.permute.xlu0 %863
      %865 = vrot.lane.b32.xlu0 %v430, 12
      %v866 = vpop.permute.xlu0 %865
      %867 = vrot.lane.b32.xlu0 %v344, 12
      %v868 = vpop.permute.xlu0 %867
      %869 = vrot.lane.b32.xlu0 %v431, 12
      %v870 = vpop.permute.xlu0 %869
      %871 = vrot.lane.b32.xlu0 %v347, 12
      %v872 = vpop.permute.xlu0 %871
      %873 = vrot.lane.b32.xlu0 %v432, 12
      %v874 = vpop.permute.xlu0 %873
      %875 = vrot.lane.b32.xlu0 %v350, 12
      %v876 = vpop.permute.xlu0 %875
      %877 = vrot.lane.b32.xlu0 %v433, 12
      %v878 = vpop.permute.xlu0 %877
      %879 = vrot.lane.b32.xlu0 %v353, 12
      %v880 = vpop.permute.xlu0 %879
      %881 = vrot.lane.b32.xlu0 %v434, 12
      %v882 = vpop.permute.xlu0 %881
      %883 = vrot.lane.b32.xlu0 %v356, 12
      %v884 = vpop.permute.xlu0 %883
      %885 = vrot.lane.b32.xlu0 %v435, 12
      %v886 = vpop.permute.xlu0 %885
      %887 = vrot.lane.b32.xlu0 %v359, 12
      %v888 = vpop.permute.xlu0 %887
      %889 = vrot.lane.b32.xlu0 %v436, 12
      %v890 = vpop.permute.xlu0 %889
      %891 = vrot.lane.b32.xlu0 %v362, 12
      %v892 = vpop.permute.xlu0 %891
      %893 = vrot.lane.b32.xlu0 %v437, 12
      %v894 = vpop.permute.xlu0 %893
      %895 = vrot.lane.b32.xlu0 %v365, 12
      %v896 = vpop.permute.xlu0 %895
      %897 = vrot.lane.b32.xlu0 %v438, 12
      %v898 = vpop.permute.xlu0 %897
      %899 = vrot.lane.b32.xlu0 %v368, 12
      %v900 = vpop.permute.xlu0 %899
      %901 = vrot.lane.b32.xlu0 %v439, 12
      %v902 = vpop.permute.xlu0 %901
      %903 = vrot.lane.b32.xlu0 %v371, 12
      %v904 = vpop.permute.xlu0 %903
      %905 = vrot.lane.b32.xlu0 %v440, 12
      %v906 = vpop.permute.xlu0 %905
      %907 = vrot.lane.b32.xlu0 %v374, 12
      %v908 = vpop.permute.xlu0 %907
      %v942 = vrot.slane %v440, 1
      %v943 = vrot.slane %v374, 1
      %v944 = vsel %vm490, %v942, %v943
      %v945 = vrot.slane %v457, 1
      %v946 = vsel %vm490, %v943, %v945
      %947 = vrot.lane.b32.xlu0 %v498, 16
      %v948 = vpop.permute.xlu0 %947
      %949 = vrot.lane.b32.xlu0 %v500, 16
      %v950 = vpop.permute.xlu0 %949
      %951 = vrot.lane.b32.xlu0 %v503, 16
      %v952 = vpop.permute.xlu0 %951
      %953 = vrot.lane.b32.xlu0 %v505, 16
      %v954 = vpop.permute.xlu0 %953
      %955 = vrot.lane.b32.xlu0 %v508, 16
      %v956 = vpop.permute.xlu0 %955
      %957 = vrot.lane.b32.xlu0 %v510, 16
      %v958 = vpop.permute.xlu0 %957
      %959 = vrot.lane.b32.xlu0 %v513, 16
      %v960 = vpop.permute.xlu0 %959
      %961 = vrot.lane.b32.xlu0 %v515, 16
      %v962 = vpop.permute.xlu0 %961
      %963 = vrot.lane.b32.xlu0 %v518, 16
      %v964 = vpop.permute.xlu0 %963
      %965 = vrot.lane.b32.xlu0 %v520, 16
      %v966 = vpop.permute.xlu0 %965
      %967 = vrot.lane.b32.xlu0 %v523, 16
      %v968 = vpop.permute.xlu0 %967
      %969 = vrot.lane.b32.xlu0 %v525, 16
      %v970 = vpop.permute.xlu0 %969
      %971 = vrot.lane.b32.xlu0 %v528, 16
      %v972 = vpop.permute.xlu0 %971
      %973 = vrot.lane.b32.xlu0 %v530, 16
      %v974 = vpop.permute.xlu0 %973
      %975 = vrot.lane.b32.xlu0 %v533, 16
      %v976 = vpop.permute.xlu0 %975
      %977 = vrot.lane.b32.xlu0 %v535, 16
      %v978 = vpop.permute.xlu0 %977
      %979 = vrot.lane.b32.xlu0 %v538, 16
      %v980 = vpop.permute.xlu0 %979
      %981 = vrot.lane.b32.xlu0 %v540, 16
      %v982 = vpop.permute.xlu0 %981
      %983 = vrot.lane.b32.xlu0 %v543, 16
      %v984 = vpop.permute.xlu0 %983
      %985 = vrot.lane.b32.xlu0 %v545, 16
      %v986 = vpop.permute.xlu0 %985
      %987 = vrot.lane.b32.xlu0 %v548, 16
      %v988 = vpop.permute.xlu0 %987
      %989 = vrot.lane.b32.xlu0 %v550, 16
      %v990 = vpop.permute.xlu0 %989
      %991 = vrot.lane.b32.xlu0 %v553, 16
      %v992 = vpop.permute.xlu0 %991
      %993 = vrot.lane.b32.xlu0 %v555, 16
      %v994 = vpop.permute.xlu0 %993
      %995 = vrot.lane.b32.xlu0 %v558, 16
      %v996 = vpop.permute.xlu0 %995
      %997 = vrot.lane.b32.xlu0 %v560, 16
      %v998 = vpop.permute.xlu0 %997
      %999 = vrot.lane.b32.xlu0 %v563, 16
      %v1000 = vpop.permute.xlu0 %999
      %1001 = vrot.lane.b32.xlu0 %v565, 16
      %v1002 = vpop.permute.xlu0 %1001
      %1003 = vrot.lane.b32.xlu0 %v568, 16
      %v1004 = vpop.permute.xlu0 %1003
      %1005 = vrot.lane.b32.xlu0 %v570, 16
      %v1006 = vpop.permute.xlu0 %1005
      %1007 = vrot.lane.b32.xlu0 %v944, 16
      %v1008 = vpop.permute.xlu0 %1007
      %1009 = vrot.lane.b32.xlu0 %v946, 16
      %v1010 = vpop.permute.xlu0 %1009
      %v1043 = vrot.slane %v440, 2
      %v1044 = vrot.slane %v374, 2
      %v1045 = vsel %vm667, %v1043, %v1044
      %v1046 = vrot.slane %v457, 2
      %v1047 = vsel %vm667, %v1044, %v1046
      %1048 = vrot.lane.b32.xlu0 %v675, 20
      %v1049 = vpop.permute.xlu0 %1048
      %1050 = vrot.lane.b32.xlu0 %v677, 20
      %v1051 = vpop.permute.xlu0 %1050
      %1052 = vrot.lane.b32.xlu0 %v680, 20
      %v1053 = vpop.permute.xlu0 %1052
      %1054 = vrot.lane.b32.xlu0 %v682, 20
      %v1055 = vpop.permute.xlu0 %1054
      %1056 = vrot.lane.b32.xlu0 %v685, 20
      %v1057 = vpop.permute.xlu0 %1056
      %1058 = vrot.lane.b32.xlu0 %v687, 20
      %v1059 = vpop.permute.xlu0 %1058
      %1060 = vrot.lane.b32.xlu0 %v690, 20
      %v1061 = vpop.permute.xlu0 %1060
      %1062 = vrot.lane.b32.xlu0 %v692, 20
      %v1063 = vpop.permute.xlu0 %1062
      %1064 = vrot.lane.b32.xlu0 %v695, 20
      %v1065 = vpop.permute.xlu0 %1064
      %1066 = vrot.lane.b32.xlu0 %v697, 20
      %v1067 = vpop.permute.xlu0 %1066
      %1068 = vrot.lane.b32.xlu0 %v700, 20
      %v1069 = vpop.permute.xlu0 %1068
      %1070 = vrot.lane.b32.xlu0 %v702, 20
      %v1071 = vpop.permute.xlu0 %1070
      %1072 = vrot.lane.b32.xlu0 %v705, 20
      %v1073 = vpop.permute.xlu0 %1072
      %1074 = vrot.lane.b32.xlu0 %v707, 20
      %v1075 = vpop.permute.xlu0 %1074
      %1076 = vrot.lane.b32.xlu0 %v710, 20
      %v1077 = vpop.permute.xlu0 %1076
      %1078 = vrot.lane.b32.xlu0 %v712, 20
      %v1079 = vpop.permute.xlu0 %1078
      %1080 = vrot.lane.b32.xlu0 %v715, 20
      %v1081 = vpop.permute.xlu0 %1080
      %1082 = vrot.lane.b32.xlu0 %v717, 20
      %v1083 = vpop.permute.xlu0 %1082
      %1084 = vrot.lane.b32.xlu0 %v720, 20
      %v1085 = vpop.permute.xlu0 %1084
      %1086 = vrot.lane.b32.xlu0 %v722, 20
      %v1087 = vpop.permute.xlu0 %1086
      %1088 = vrot.lane.b32.xlu0 %v725, 20
      %v1089 = vpop.permute.xlu0 %1088
      %1090 = vrot.lane.b32.xlu0 %v727, 20
      %v1091 = vpop.permute.xlu0 %1090
      %1092 = vrot.lane.b32.xlu0 %v730, 20
      %v1093 = vpop.permute.xlu0 %1092
      %1094 = vrot.lane.b32.xlu0 %v732, 20
      %v1095 = vpop.permute.xlu0 %1094
      %1096 = vrot.lane.b32.xlu0 %v735, 20
      %v1097 = vpop.permute.xlu0 %1096
      %1098 = vrot.lane.b32.xlu0 %v737, 20
      %v1099 = vpop.permute.xlu0 %1098
      %1100 = vrot.lane.b32.xlu0 %v740, 20
      %v1101 = vpop.permute.xlu0 %1100
      %1102 = vrot.lane.b32.xlu0 %v742, 20
      %v1103 = vpop.permute.xlu0 %1102
      %1104 = vrot.lane.b32.xlu0 %v745, 20
      %v1105 = vpop.permute.xlu0 %1104
      %1106 = vrot.lane.b32.xlu0 %v747, 20
      %v1107 = vpop.permute.xlu0 %1106
      %1108 = vrot.lane.b32.xlu0 %v1045, 20
      %v1109 = vpop.permute.xlu0 %1108
      %1110 = vrot.lane.b32.xlu0 %v1047, 20
      %v1111 = vpop.permute.xlu0 %1110
      %1144 = vrot.lane.b32.xlu0 %v426, 24
      %v1145 = vpop.permute.xlu0 %1144
      %1146 = vrot.lane.b32.xlu0 %v332, 24
      %v1147 = vpop.permute.xlu0 %1146
      %1148 = vrot.lane.b32.xlu0 %v427, 24
      %v1149 = vpop.permute.xlu0 %1148
      %1150 = vrot.lane.b32.xlu0 %v335, 24
      %v1151 = vpop.permute.xlu0 %1150
      %1152 = vrot.lane.b32.xlu0 %v428, 24
      %v1153 = vpop.permute.xlu0 %1152
      %1154 = vrot.lane.b32.xlu0 %v338, 24
      %v1155 = vpop.permute.xlu0 %1154
      %1156 = vrot.lane.b32.xlu0 %v429, 24
      %v1157 = vpop.permute.xlu0 %1156
      %1158 = vrot.lane.b32.xlu0 %v341, 24
      %v1159 = vpop.permute.xlu0 %1158
      %1160 = vrot.lane.b32.xlu0 %v430, 24
      %v1161 = vpop.permute.xlu0 %1160
      %1162 = vrot.lane.b32.xlu0 %v344, 24
      %v1163 = vpop.permute.xlu0 %1162
      %1164 = vrot.lane.b32.xlu0 %v431, 24
      %v1165 = vpop.permute.xlu0 %1164
      %1166 = vrot.lane.b32.xlu0 %v347, 24
      %v1167 = vpop.permute.xlu0 %1166
      %1168 = vrot.lane.b32.xlu0 %v432, 24
      %v1169 = vpop.permute.xlu0 %1168
      %1170 = vrot.lane.b32.xlu0 %v350, 24
      %v1171 = vpop.permute.xlu0 %1170
      %1172 = vrot.lane.b32.xlu0 %v433, 24
      %v1173 = vpop.permute.xlu0 %1172
      %1174 = vrot.lane.b32.xlu0 %v353, 24
      %v1175 = vpop.permute.xlu0 %1174
      %1176 = vrot.lane.b32.xlu0 %v434, 24
      %v1177 = vpop.permute.xlu0 %1176
      %1178 = vrot.lane.b32.xlu0 %v356, 24
      %v1179 = vpop.permute.xlu0 %1178
      %1180 = vrot.lane.b32.xlu0 %v435, 24
      %v1181 = vpop.permute.xlu0 %1180
      %1182 = vrot.lane.b32.xlu0 %v359, 24
      %v1183 = vpop.permute.xlu0 %1182
      %1184 = vrot.lane.b32.xlu0 %v436, 24
      %v1185 = vpop.permute.xlu0 %1184
      %1186 = vrot.lane.b32.xlu0 %v362, 24
      %v1187 = vpop.permute.xlu0 %1186
      %1188 = vrot.lane.b32.xlu0 %v437, 24
      %v1189 = vpop.permute.xlu0 %1188
      %1190 = vrot.lane.b32.xlu0 %v365, 24
      %v1191 = vpop.permute.xlu0 %1190
      %1192 = vrot.lane.b32.xlu0 %v438, 24
      %v1193 = vpop.permute.xlu0 %1192
      %1194 = vrot.lane.b32.xlu0 %v368, 24
      %v1195 = vpop.permute.xlu0 %1194
      %1196 = vrot.lane.b32.xlu0 %v439, 24
      %v1197 = vpop.permute.xlu0 %1196
      %1198 = vrot.lane.b32.xlu0 %v371, 24
      %v1199 = vpop.permute.xlu0 %1198
      %1200 = vrot.lane.b32.xlu0 %v440, 24
      %v1201 = vpop.permute.xlu0 %1200
      %1202 = vrot.lane.b32.xlu0 %v374, 24
      %v1203 = vpop.permute.xlu0 %1202
      %1204 = vrot.lane.b32.xlu0 %v424, 24
      %v1205 = vpop.permute.xlu0 %1204
      %1206 = vrot.lane.b32.xlu0 %v326, 24
      %v1207 = vpop.permute.xlu0 %1206
      %1240 = vrot.lane.b32.xlu0 %v503, 28
      %v1241 = vpop.permute.xlu0 %1240
      %1242 = vrot.lane.b32.xlu0 %v505, 28
      %v1243 = vpop.permute.xlu0 %1242
      %1244 = vrot.lane.b32.xlu0 %v508, 28
      %v1245 = vpop.permute.xlu0 %1244
      %1246 = vrot.lane.b32.xlu0 %v510, 28
      %v1247 = vpop.permute.xlu0 %1246
      %1248 = vrot.lane.b32.xlu0 %v513, 28
      %v1249 = vpop.permute.xlu0 %1248
      %1250 = vrot.lane.b32.xlu0 %v515, 28
      %v1251 = vpop.permute.xlu0 %1250
      %1252 = vrot.lane.b32.xlu0 %v518, 28
      %v1253 = vpop.permute.xlu0 %1252
      %1254 = vrot.lane.b32.xlu0 %v520, 28
      %v1255 = vpop.permute.xlu0 %1254
      %1256 = vrot.lane.b32.xlu0 %v523, 28
      %v1257 = vpop.permute.xlu0 %1256
      %1258 = vrot.lane.b32.xlu0 %v525, 28
      %v1259 = vpop.permute.xlu0 %1258
      %1260 = vrot.lane.b32.xlu0 %v528, 28
      %v1261 = vpop.permute.xlu0 %1260
      %1262 = vrot.lane.b32.xlu0 %v530, 28
      %v1263 = vpop.permute.xlu0 %1262
      %1264 = vrot.lane.b32.xlu0 %v533, 28
      %v1265 = vpop.permute.xlu0 %1264
      %1266 = vrot.lane.b32.xlu0 %v535, 28
      %v1267 = vpop.permute.xlu0 %1266
      %1268 = vrot.lane.b32.xlu0 %v538, 28
      %v1269 = vpop.permute.xlu0 %1268
      %1270 = vrot.lane.b32.xlu0 %v540, 28
      %v1271 = vpop.permute.xlu0 %1270
      %1272 = vrot.lane.b32.xlu0 %v543, 28
      %v1273 = vpop.permute.xlu0 %1272
      %1274 = vrot.lane.b32.xlu0 %v545, 28
      %v1275 = vpop.permute.xlu0 %1274
      %1276 = vrot.lane.b32.xlu0 %v548, 28
      %v1277 = vpop.permute.xlu0 %1276
      %1278 = vrot.lane.b32.xlu0 %v550, 28
      %v1279 = vpop.permute.xlu0 %1278
      %1280 = vrot.lane.b32.xlu0 %v553, 28
      %v1281 = vpop.permute.xlu0 %1280
      %1282 = vrot.lane.b32.xlu0 %v555, 28
      %v1283 = vpop.permute.xlu0 %1282
      %1284 = vrot.lane.b32.xlu0 %v558, 28
      %v1285 = vpop.permute.xlu0 %1284
      %1286 = vrot.lane.b32.xlu0 %v560, 28
      %v1287 = vpop.permute.xlu0 %1286
      %1288 = vrot.lane.b32.xlu0 %v563, 28
      %v1289 = vpop.permute.xlu0 %1288
      %1290 = vrot.lane.b32.xlu0 %v565, 28
      %v1291 = vpop.permute.xlu0 %1290
      %1292 = vrot.lane.b32.xlu0 %v568, 28
      %v1293 = vpop.permute.xlu0 %1292
      %1294 = vrot.lane.b32.xlu0 %v570, 28
      %v1295 = vpop.permute.xlu0 %1294
      %1296 = vrot.lane.b32.xlu0 %v944, 28
      %v1297 = vpop.permute.xlu0 %1296
      %1298 = vrot.lane.b32.xlu0 %v946, 28
      %v1299 = vpop.permute.xlu0 %1298
      %1300 = vrot.lane.b32.xlu0 %v493, 28
      %v1301 = vpop.permute.xlu0 %1300
      %1302 = vrot.lane.b32.xlu0 %v495, 28
      %v1303 = vpop.permute.xlu0 %1302
      %1336 = vrot.lane.b32.xlu0 %v680, 32
      %v1337 = vpop.permute.xlu0 %1336
      %1338 = vrot.lane.b32.xlu0 %v682, 32
      %v1339 = vpop.permute.xlu0 %1338
      %1340 = vrot.lane.b32.xlu0 %v685, 32
      %v1341 = vpop.permute.xlu0 %1340
      %1342 = vrot.lane.b32.xlu0 %v687, 32
      %v1343 = vpop.permute.xlu0 %1342
      %1344 = vrot.lane.b32.xlu0 %v690, 32
      %v1345 = vpop.permute.xlu0 %1344
      %1346 = vrot.lane.b32.xlu0 %v692, 32
      %v1347 = vpop.permute.xlu0 %1346
      %1348 = vrot.lane.b32.xlu0 %v695, 32
      %v1349 = vpop.permute.xlu0 %1348
      %1350 = vrot.lane.b32.xlu0 %v697, 32
      %v1351 = vpop.permute.xlu0 %1350
      %1352 = vrot.lane.b32.xlu0 %v700, 32
      %v1353 = vpop.permute.xlu0 %1352
      %1354 = vrot.lane.b32.xlu0 %v702, 32
      %v1355 = vpop.permute.xlu0 %1354
      %1356 = vrot.lane.b32.xlu0 %v705, 32
      %v1357 = vpop.permute.xlu0 %1356
      %1358 = vrot.lane.b32.xlu0 %v707, 32
      %v1359 = vpop.permute.xlu0 %1358
      %1360 = vrot.lane.b32.xlu0 %v710, 32
      %v1361 = vpop.permute.xlu0 %1360
      %1362 = vrot.lane.b32.xlu0 %v712, 32
      %v1363 = vpop.permute.xlu0 %1362
      %1364 = vrot.lane.b32.xlu0 %v715, 32
      %v1365 = vpop.permute.xlu0 %1364
      %1366 = vrot.lane.b32.xlu0 %v717, 32
      %v1367 = vpop.permute.xlu0 %1366
      %1368 = vrot.lane.b32.xlu0 %v720, 32
      %v1369 = vpop.permute.xlu0 %1368
      %1370 = vrot.lane.b32.xlu0 %v722, 32
      %v1371 = vpop.permute.xlu0 %1370
      %1372 = vrot.lane.b32.xlu0 %v725, 32
      %v1373 = vpop.permute.xlu0 %1372
      %1374 = vrot.lane.b32.xlu0 %v727, 32
      %v1375 = vpop.permute.xlu0 %1374
      %1376 = vrot.lane.b32.xlu0 %v730, 32
      %v1377 = vpop.permute.xlu0 %1376
      %1378 = vrot.lane.b32.xlu0 %v732, 32
      %v1379 = vpop.permute.xlu0 %1378
      %1380 = vrot.lane.b32.xlu0 %v735, 32
      %v1381 = vpop.permute.xlu0 %1380
      %1382 = vrot.lane.b32.xlu0 %v737, 32
      %v1383 = vpop.permute.xlu0 %1382
      %1384 = vrot.lane.b32.xlu0 %v740, 32
      %v1385 = vpop.permute.xlu0 %1384
      %1386 = vrot.lane.b32.xlu0 %v742, 32
      %v1387 = vpop.permute.xlu0 %1386
      %1388 = vrot.lane.b32.xlu0 %v745, 32
      %v1389 = vpop.permute.xlu0 %1388
      %1390 = vrot.lane.b32.xlu0 %v747, 32
      %v1391 = vpop.permute.xlu0 %1390
      %1392 = vrot.lane.b32.xlu0 %v1045, 32
      %v1393 = vpop.permute.xlu0 %1392
      %1394 = vrot.lane.b32.xlu0 %v1047, 32
      %v1395 = vpop.permute.xlu0 %1394
      %1396 = vrot.lane.b32.xlu0 %v670, 32
      %v1397 = vpop.permute.xlu0 %1396
      %1398 = vrot.lane.b32.xlu0 %v672, 32
      %v1399 = vpop.permute.xlu0 %1398
      %vm1432 = vcmask 31744
      %v1433 = vsel %vm1432, %v424, %v572
      %v1434 = vsel %vm1432, %v326, %v574
      %v1435 = vsel %vm1432, %v425, %v576
      %v1436 = vsel %vm1432, %v329, %v578
      %v1437 = vsel %vm1432, %v426, %v580
      %v1438 = vsel %vm1432, %v332, %v582
      %v1439 = vsel %vm1432, %v427, %v584
      %v1440 = vsel %vm1432, %v335, %v586
      %v1441 = vsel %vm1432, %v428, %v588
      %v1442 = vsel %vm1432, %v338, %v590
      %v1443 = vsel %vm1432, %v429, %v592
      %v1444 = vsel %vm1432, %v341, %v594
      %v1445 = vsel %vm1432, %v430, %v596
      %v1446 = vsel %vm1432, %v344, %v598
      %v1447 = vsel %vm1432, %v431, %v600
      %v1448 = vsel %vm1432, %v347, %v602
      %v1449 = vsel %vm1432, %v432, %v604
      %v1450 = vsel %vm1432, %v350, %v606
      %v1451 = vsel %vm1432, %v433, %v608
      %v1452 = vsel %vm1432, %v353, %v610
      %v1453 = vsel %vm1432, %v434, %v612
      %v1454 = vsel %vm1432, %v356, %v614
      %v1455 = vsel %vm1432, %v435, %v616
      %v1456 = vsel %vm1432, %v359, %v618
      %v1457 = vsel %vm1432, %v436, %v620
      %v1458 = vsel %vm1432, %v362, %v622
      %v1459 = vsel %vm1432, %v437, %v624
      %v1460 = vsel %vm1432, %v365, %v626
      %v1461 = vsel %vm1432, %v438, %v628
      %v1462 = vsel %vm1432, %v368, %v630
      %v1463 = vsel %vm1432, %v439, %v632
      %v1464 = vsel %vm1432, %v371, %v634
      %vm1465 = vcmask 64512
      %v1466 = vsel %vm1465, %v1433, %v749
      %v1467 = vsel %vm1465, %v1434, %v751
      %v1468 = vsel %vm1465, %v1435, %v753
      %v1469 = vsel %vm1465, %v1436, %v755
      %v1470 = vsel %vm1465, %v1437, %v757
      %v1471 = vsel %vm1465, %v1438, %v759
      %v1472 = vsel %vm1465, %v1439, %v761
      %v1473 = vsel %vm1465, %v1440, %v763
      %v1474 = vsel %vm1465, %v1441, %v765
      %v1475 = vsel %vm1465, %v1442, %v767
      %v1476 = vsel %vm1465, %v1443, %v769
      %v1477 = vsel %vm1465, %v1444, %v771
      %v1478 = vsel %vm1465, %v1445, %v773
      %v1479 = vsel %vm1465, %v1446, %v775
      %v1480 = vsel %vm1465, %v1447, %v777
      %v1481 = vsel %vm1465, %v1448, %v779
      %v1482 = vsel %vm1465, %v1449, %v781
      %v1483 = vsel %vm1465, %v1450, %v783
      %v1484 = vsel %vm1465, %v1451, %v785
      %v1485 = vsel %vm1465, %v1452, %v787
      %v1486 = vsel %vm1465, %v1453, %v789
      %v1487 = vsel %vm1465, %v1454, %v791
      %v1488 = vsel %vm1465, %v1455, %v793
      %v1489 = vsel %vm1465, %v1456, %v795
      %v1490 = vsel %vm1465, %v1457, %v797
      %v1491 = vsel %vm1465, %v1458, %v799
      %v1492 = vsel %vm1465, %v1459, %v801
      %v1493 = vsel %vm1465, %v1460, %v803
      %v1494 = vsel %vm1465, %v1461, %v805
      %v1495 = vsel %vm1465, %v1462, %v807
      %v1496 = vsel %vm1465, %v1463, %v809
      %v1497 = vsel %vm1465, %v1464, %v811
      %vm1498 = vcmask 97280
      %v1499 = vsel %vm1498, %v1466, %v846
      %v1500 = vsel %vm1498, %v1467, %v848
      %v1501 = vsel %vm1498, %v1468, %v850
      %v1502 = vsel %vm1498, %v1469, %v852
      %v1503 = vsel %vm1498, %v1470, %v854
      %v1504 = vsel %vm1498, %v1471, %v856
      %v1505 = vsel %vm1498, %v1472, %v858
      %v1506 = vsel %vm1498, %v1473, %v860
      %v1507 = vsel %vm1498, %v1474, %v862
      %v1508 = vsel %vm1498, %v1475, %v864
      %v1509 = vsel %vm1498, %v1476, %v866
      %v1510 = vsel %vm1498, %v1477, %v868
      %v1511 = vsel %vm1498, %v1478, %v870
      %v1512 = vsel %vm1498, %v1479, %v872
      %v1513 = vsel %vm1498, %v1480, %v874
      %v1514 = vsel %vm1498, %v1481, %v876
      %v1515 = vsel %vm1498, %v1482, %v878
      %v1516 = vsel %vm1498, %v1483, %v880
      %v1517 = vsel %vm1498, %v1484, %v882
      %v1518 = vsel %vm1498, %v1485, %v884
      %v1519 = vsel %vm1498, %v1486, %v886
      %v1520 = vsel %vm1498, %v1487, %v888
      %v1521 = vsel %vm1498, %v1488, %v890
      %v1522 = vsel %vm1498, %v1489, %v892
      %v1523 = vsel %vm1498, %v1490, %v894
      %v1524 = vsel %vm1498, %v1491, %v896
      %v1525 = vsel %vm1498, %v1492, %v898
      %v1526 = vsel %vm1498, %v1493, %v900
      %v1527 = vsel %vm1498, %v1494, %v902
      %v1528 = vsel %vm1498, %v1495, %v904
      %v1529 = vsel %vm1498, %v1496, %v906
      %v1530 = vsel %vm1498, %v1497, %v908
      %vm1531 = vcmask 130048
      %v1532 = vsel %vm1531, %v1499, %v948
      %v1533 = vsel %vm1531, %v1500, %v950
      %v1534 = vsel %vm1531, %v1501, %v952
      %v1535 = vsel %vm1531, %v1502, %v954
      %v1536 = vsel %vm1531, %v1503, %v956
      %v1537 = vsel %vm1531, %v1504, %v958
      %v1538 = vsel %vm1531, %v1505, %v960
      %v1539 = vsel %vm1531, %v1506, %v962
      %v1540 = vsel %vm1531, %v1507, %v964
      %v1541 = vsel %vm1531, %v1508, %v966
      %v1542 = vsel %vm1531, %v1509, %v968
      %v1543 = vsel %vm1531, %v1510, %v970
      %v1544 = vsel %vm1531, %v1511, %v972
      %v1545 = vsel %vm1531, %v1512, %v974
      %v1546 = vsel %vm1531, %v1513, %v976
      %v1547 = vsel %vm1531, %v1514, %v978
      %v1548 = vsel %vm1531, %v1515, %v980
      %v1549 = vsel %vm1531, %v1516, %v982
      %v1550 = vsel %vm1531, %v1517, %v984
      %v1551 = vsel %vm1531, %v1518, %v986
      %v1552 = vsel %vm1531, %v1519, %v988
      %v1553 = vsel %vm1531, %v1520, %v990
      %v1554 = vsel %vm1531, %v1521, %v992
      %v1555 = vsel %vm1531, %v1522, %v994
      %v1556 = vsel %vm1531, %v1523, %v996
      %v1557 = vsel %vm1531, %v1524, %v998
      %v1558 = vsel %vm1531, %v1525, %v1000
      %v1559 = vsel %vm1531, %v1526, %v1002
      %v1560 = vsel %vm1531, %v1527, %v1004
      %v1561 = vsel %vm1531, %v1528, %v1006
      %v1562 = vsel %vm1531, %v1529, %v1008
      %v1563 = vsel %vm1531, %v1530, %v1010
      %vm1564 = vcmask 162816
      %v1565 = vsel %vm1564, %v1532, %v1049
      %v1566 = vsel %vm1564, %v1533, %v1051
      %v1567 = vsel %vm1564, %v1534, %v1053
      %v1568 = vsel %vm1564, %v1535, %v1055
      %v1569 = vsel %vm1564, %v1536, %v1057
      %v1570 = vsel %vm1564, %v1537, %v1059
      %v1571 = vsel %vm1564, %v1538, %v1061
      %v1572 = vsel %vm1564, %v1539, %v1063
      %v1573 = vsel %vm1564, %v1540, %v1065
      %v1574 = vsel %vm1564, %v1541, %v1067
      %v1575 = vsel %vm1564, %v1542, %v1069
      %v1576 = vsel %vm1564, %v1543, %v1071
      %v1577 = vsel %vm1564, %v1544, %v1073
      %v1578 = vsel %vm1564, %v1545, %v1075
      %v1579 = vsel %vm1564, %v1546, %v1077
      %v1580 = vsel %vm1564, %v1547, %v1079
      %v1581 = vsel %vm1564, %v1548, %v1081
      %v1582 = vsel %vm1564, %v1549, %v1083
      %v1583 = vsel %vm1564, %v1550, %v1085
      %v1584 = vsel %vm1564, %v1551, %v1087
      %v1585 = vsel %vm1564, %v1552, %v1089
      %v1586 = vsel %vm1564, %v1553, %v1091
      %v1587 = vsel %vm1564, %v1554, %v1093
      %v1588 = vsel %vm1564, %v1555, %v1095
      %v1589 = vsel %vm1564, %v1556, %v1097
      %v1590 = vsel %vm1564, %v1557, %v1099
      %v1591 = vsel %vm1564, %v1558, %v1101
      %v1592 = vsel %vm1564, %v1559, %v1103
      %v1593 = vsel %vm1564, %v1560, %v1105
      %v1594 = vsel %vm1564, %v1561, %v1107
      %v1595 = vsel %vm1564, %v1562, %v1109
      %v1596 = vsel %vm1564, %v1563, %v1111
      %vm1597 = vcmask 195584
      %v1598 = vsel %vm1597, %v1565, %v1145
      %v1599 = vsel %vm1597, %v1566, %v1147
      %v1600 = vsel %vm1597, %v1567, %v1149
      %v1601 = vsel %vm1597, %v1568, %v1151
      %v1602 = vsel %vm1597, %v1569, %v1153
      %v1603 = vsel %vm1597, %v1570, %v1155
      %v1604 = vsel %vm1597, %v1571, %v1157
      %v1605 = vsel %vm1597, %v1572, %v1159
      %v1606 = vsel %vm1597, %v1573, %v1161
      %v1607 = vsel %vm1597, %v1574, %v1163
      %v1608 = vsel %vm1597, %v1575, %v1165
      %v1609 = vsel %vm1597, %v1576, %v1167
      %v1610 = vsel %vm1597, %v1577, %v1169
      %v1611 = vsel %vm1597, %v1578, %v1171
      %v1612 = vsel %vm1597, %v1579, %v1173
      %v1613 = vsel %vm1597, %v1580, %v1175
      %v1614 = vsel %vm1597, %v1581, %v1177
      %v1615 = vsel %vm1597, %v1582, %v1179
      %v1616 = vsel %vm1597, %v1583, %v1181
      %v1617 = vsel %vm1597, %v1584, %v1183
      %v1618 = vsel %vm1597, %v1585, %v1185
      %v1619 = vsel %vm1597, %v1586, %v1187
      %v1620 = vsel %vm1597, %v1587, %v1189
      %v1621 = vsel %vm1597, %v1588, %v1191
      %v1622 = vsel %vm1597, %v1589, %v1193
      %v1623 = vsel %vm1597, %v1590, %v1195
      %v1624 = vsel %vm1597, %v1591, %v1197
      %v1625 = vsel %vm1597, %v1592, %v1199
      %v1626 = vsel %vm1597, %v1593, %v1201
      %v1627 = vsel %vm1597, %v1594, %v1203
      %v1628 = vsel %vm1597, %v1595, %v1205
      %v1629 = vsel %vm1597, %v1596, %v1207
      %vm1630 = vcmask 228352
      %v1631 = vsel %vm1630, %v1598, %v1241
      %v1632 = vsel %vm1630, %v1599, %v1243
      %v1633 = vsel %vm1630, %v1600, %v1245
      %v1634 = vsel %vm1630, %v1601, %v1247
      %v1635 = vsel %vm1630, %v1602, %v1249
      %v1636 = vsel %vm1630, %v1603, %v1251
      %v1637 = vsel %vm1630, %v1604, %v1253
      %v1638 = vsel %vm1630, %v1605, %v1255
      %v1639 = vsel %vm1630, %v1606, %v1257
      %v1640 = vsel %vm1630, %v1607, %v1259
      %v1641 = vsel %vm1630, %v1608, %v1261
      %v1642 = vsel %vm1630, %v1609, %v1263
      %v1643 = vsel %vm1630, %v1610, %v1265
      %v1644 = vsel %vm1630, %v1611, %v1267
      %v1645 = vsel %vm1630, %v1612, %v1269
      %v1646 = vsel %vm1630, %v1613, %v1271
      %v1647 = vsel %vm1630, %v1614, %v1273
      %v1648 = vsel %vm1630, %v1615, %v1275
      %v1649 = vsel %vm1630, %v1616, %v1277
      %v1650 = vsel %vm1630, %v1617, %v1279
      %v1651 = vsel %vm1630, %v1618, %v1281
      %v1652 = vsel %vm1630, %v1619, %v1283
      %v1653 = vsel %vm1630, %v1620, %v1285
      %v1654 = vsel %vm1630, %v1621, %v1287
      %v1655 = vsel %vm1630, %v1622, %v1289
      %v1656 = vsel %vm1630, %v1623, %v1291
      %v1657 = vsel %vm1630, %v1624, %v1293
      %v1658 = vsel %vm1630, %v1625, %v1295
      %v1659 = vsel %vm1630, %v1626, %v1297
      %v1660 = vsel %vm1630, %v1627, %v1299
      %v1661 = vsel %vm1630, %v1628, %v1301
      %v1662 = vsel %vm1630, %v1629, %v1303
      %vm1663 = vcmask 261120
      %v1664 = vsel %vm1663, %v1631, %v1337
      %v1665 = vsel %vm1663, %v1632, %v1339
      %v1666 = vsel %vm1663, %v1633, %v1341
      %v1667 = vsel %vm1663, %v1634, %v1343
      %v1668 = vsel %vm1663, %v1635, %v1345
      %v1669 = vsel %vm1663, %v1636, %v1347
      %v1670 = vsel %vm1663, %v1637, %v1349
      %v1671 = vsel %vm1663, %v1638, %v1351
      %v1672 = vsel %vm1663, %v1639, %v1353
      %v1673 = vsel %vm1663, %v1640, %v1355
      %v1674 = vsel %vm1663, %v1641, %v1357
      %v1675 = vsel %vm1663, %v1642, %v1359
      %v1676 = vsel %vm1663, %v1643, %v1361
      %v1677 = vsel %vm1663, %v1644, %v1363
      %v1678 = vsel %vm1663, %v1645, %v1365
      %v1679 = vsel %vm1663, %v1646, %v1367
      %v1680 = vsel %vm1663, %v1647, %v1369
      %v1681 = vsel %vm1663, %v1648, %v1371
      %v1682 = vsel %vm1663, %v1649, %v1373
      %v1683 = vsel %vm1663, %v1650, %v1375
      %v1684 = vsel %vm1663, %v1651, %v1377
      %v1685 = vsel %vm1663, %v1652, %v1379
      %v1686 = vsel %vm1663, %v1653, %v1381
      %v1687 = vsel %vm1663, %v1654, %v1383
      %v1688 = vsel %vm1663, %v1655, %v1385
      %v1689 = vsel %vm1663, %v1656, %v1387
      %v1690 = vsel %vm1663, %v1657, %v1389
      %v1691 = vsel %vm1663, %v1658, %v1391
      %v1692 = vsel %vm1663, %v1659, %v1393
      %v1693 = vsel %vm1663, %v1660, %v1395
      %v1694 = vsel %vm1663, %v1661, %v1397
      %v1695 = vsel %vm1663, %v1662, %v1399
      %v1696 = vpack.c.bf16 %v1665, %v1664
      %v1697 = vpack.c.bf16 %v1667, %v1666
      %v1698 = vpack.c.bf16 %v1669, %v1668
      %v1699 = vpack.c.bf16 %v1671, %v1670
      %v1700 = vpack.c.bf16 %v1673, %v1672
      %v1701 = vpack.c.bf16 %v1675, %v1674
      %v1702 = vpack.c.bf16 %v1677, %v1676
      %v1703 = vpack.c.bf16 %v1679, %v1678
      %v1704 = vpack.c.bf16 %v1681, %v1680
      %v1705 = vpack.c.bf16 %v1683, %v1682
      %v1706 = vpack.c.bf16 %v1685, %v1684
      %v1707 = vpack.c.bf16 %v1687, %v1686
      %v1708 = vpack.c.bf16 %v1689, %v1688
      %v1709 = vpack.c.bf16 %v1691, %v1690
      %v1710 = vpack.c.bf16 %v1693, %v1692
      %v1711 = vpack.c.bf16 %v1695, %v1694
      %v1712 = vld [vmem:[%s1] sm:$0xf]
      %v1713 = vld [vmem:[%s1 + $0x4] sm:$0xf]
      %v1714 = vld [vmem:[%s1 + $0x8] sm:$0xf]
      %v1715 = vld [vmem:[%s1 + $0xc] sm:$0xf]
      %v1716 = vld [vmem:[%s1 + $0x10] sm:$0x3]
      %v1722 = vunpack.c.l.b16 %v1712
      %v1723 = vunpack.c.l.b16 %v1713
      %v1724 = vunpack.c.l.b16 %v1714
      %v1725 = vunpack.c.l.b16 %v1715
      %v1726 = vunpack.c.l.b16 %v1716
      %v1727 = vpack.c.b16 %v1723, %v1722
      %v1728 = vpack.c.b16 %v1725, %v1724
      %v1729 = vpack.c.b16 %v1726, %v1726
      %vm1732 = vcmask 293888
      %v1734 = vsel %vm1732, %v1696, 0
      %v1737 = vsel %vm1732, %v1697, 0
      %v1740 = vsel %vm1732, %v1698, 0
      %v1743 = vsel %vm1732, %v1699, 0
      %v1746 = vsel %vm1732, %v1700, 0
      %v1749 = vsel %vm1732, %v1701, 0
      %v1752 = vsel %vm1732, %v1702, 0
      %v1755 = vsel %vm1732, %v1703, 0
      %v1758 = vsel %vm1732, %v1704, 0
      %v1761 = vsel %vm1732, %v1705, 0
      %v1764 = vsel %vm1732, %v1706, 0
      %v1767 = vsel %vm1732, %v1707, 0
      %v1770 = vsel %vm1732, %v1708, 0
      %v1773 = vsel %vm1732, %v1709, 0
      %v1776 = vsel %vm1732, %v1710, 0
      %v1779 = vsel %vm1732, %v1711, 0
      %vm1781 = vcmask 1041408
      %v1783 = vsel %vm1781, %v1729, 0
      %1785 = vmatprep.subr.bf16.mxu0 0
      %1786 = vmatpush1.bf16.msra.mxu0 %v1727
      %1787 = vmatprep.subr.bf16.mxu0 0
      %1788 = vmatpush1.bf16.msra.mxu0 %v1728
      %1789 = vmatprep.subr.bf16.mxu0 0
      %1790 = vmatpush1.bf16.msra.mxu0 %v1783
      %1791 = vmatprep.subr.bf16.mxu0 0
      %1792 = vmatpush1.bf16.msra.mxu0 0
      %1793 = vmatprep.subr.bf16.mxu0 0
      %1794 = vmatpush1.bf16.msra.mxu0 0
      %1795 = vmatprep.subr.bf16.mxu0 0
      %1796 = vmatpush1.bf16.msra.mxu0 0
      %1797 = vmatprep.subr.bf16.mxu0 0
      %1798 = vmatpush1.bf16.msra.mxu0 0
      %1799 = vmatprep.subr.bf16.mxu0 0
      %1800 = vmatpush1.bf16.msra.mxu0 0
      %1801 = vmatprep.subr.bf16.mxu0 0
      %1802 = vmatpush1.bf16.msra.mxu0 0
      %1803 = vmatprep.subr.bf16.mxu0 0
      %1804 = vmatpush1.bf16.msra.mxu0 0
      %1805 = vmatprep.subr.bf16.mxu0 0
      %1806 = vmatpush1.bf16.msra.mxu0 0
      %1807 = vmatprep.subr.bf16.mxu0 0
      %1808 = vmatpush1.bf16.msra.mxu0 0
      %1809 = vmatprep.subr.bf16.mxu0 0
      %1810 = vmatpush1.bf16.msra.mxu0 0
      %1811 = vmatprep.subr.bf16.mxu0 0
      %1812 = vmatpush1.bf16.msra.mxu0 0
      %1813 = vmatprep.subr.bf16.mxu0 0
      %1814 = vmatpush1.bf16.msra.mxu0 0
      %1815 = vmatprep.subr.bf16.mxu0 0
      %1816 = vmatpush1.bf16.msra.mxu0 0
      %1817 = vmatprep.mubr.bf16.mxu0 0
      %1818 = vmatmul.mubr.bf16.gmra.mrb[0].mxu0 %v1734
      %v1819 = vpop.f32.mrb[0].mxu0
      %v1820 = vadd.f32 0.0, %v1819
      %v1821 = vpop.f32.mrb[0].mxu0
      %v1822 = vpop.f32.mrb[0].mxu0
      %v1823 = vadd.f32 0.0, %v1822
      %v1824 = vpop.f32.mrb[0].mxu0
      %1825 = vmatprep.mubr.bf16.mxu0 0
      %1826 = vmatmul.mubr.bf16.gmra.mrb[0].mxu0 %v1737
      %v1827 = vpop.f32.mrb[0].mxu0
      %v1828 = vadd.f32 0.0, %v1827
      %v1829 = vpop.f32.mrb[0].mxu0
      %v1830 = vpop.f32.mrb[0].mxu0
      %v1831 = vadd.f32 0.0, %v1830
      %v1832 = vpop.f32.mrb[0].mxu0
      %1833 = vmatprep.mubr.bf16.mxu0 0
      %1834 = vmatmul.mubr.bf16.gmra.mrb[0].mxu0 %v1740
      %v1835 = vpop.f32.mrb[0].mxu0
      %v1836 = vadd.f32 0.0, %v1835
      %v1837 = vpop.f32.mrb[0].mxu0
      %v1838 = vpop.f32.mrb[0].mxu0
      %v1839 = vadd.f32 0.0, %v1838
      %v1840 = vpop.f32.mrb[0].mxu0
      %1841 = vmatprep.mubr.bf16.mxu0 0
      %1842 = vmatmul.mubr.bf16.gmra.mrb[0].mxu0 %v1743
      %v1843 = vpop.f32.mrb[0].mxu0
      %v1844 = vadd.f32 0.0, %v1843
      %v1845 = vpop.f32.mrb[0].mxu0
      %v1846 = vpop.f32.mrb[0].mxu0
      %v1847 = vadd.f32 0.0, %v1846
      %v1848 = vpop.f32.mrb[0].mxu0
      %1849 = vmatprep.mubr.bf16.mxu0 0
      %1850 = vmatmul.mubr.bf16.gmra.mrb[0].mxu0 %v1746
      %v1851 = vpop.f32.mrb[0].mxu0
      %v1852 = vadd.f32 0.0, %v1851
      %v1853 = vpop.f32.mrb[0].mxu0
      %v1854 = vpop.f32.mrb[0].mxu0
      %v1855 = vadd.f32 0.0, %v1854
      %v1856 = vpop.f32.mrb[0].mxu0
      %1857 = vmatprep.mubr.bf16.mxu0 0
      %1858 = vmatmul.mubr.bf16.gmra.mrb[0].mxu0 %v1749
      %v1859 = vpop.f32.mrb[0].mxu0
      %v1860 = vadd.f32 0.0, %v1859
      %v1861 = vpop.f32.mrb[0].mxu0
      %v1862 = vpop.f32.mrb[0].mxu0
      %v1863 = vadd.f32 0.0, %v1862
      %v1864 = vpop.f32.mrb[0].mxu0
      %1865 = vmatprep.mubr.bf16.mxu0 0
      %1866 = vmatmul.mubr.bf16.gmra.mrb[0].mxu0 %v1752
      %v1867 = vpop.f32.mrb[0].mxu0
      %v1868 = vadd.f32 0.0, %v1867
      %v1869 = vpop.f32.mrb[0].mxu0
      %v1870 = vpop.f32.mrb[0].mxu0
      %v1871 = vadd.f32 0.0, %v1870
      %v1872 = vpop.f32.mrb[0].mxu0
      %1873 = vmatprep.mubr.bf16.mxu0 0
      %1874 = vmatmul.mubr.bf16.gmra.mrb[0].mxu0 %v1755
      %v1875 = vpop.f32.mrb[0].mxu0
      %v1876 = vadd.f32 0.0, %v1875
      %v1877 = vpop.f32.mrb[0].mxu0
      %v1878 = vpop.f32.mrb[0].mxu0
      %v1879 = vadd.f32 0.0, %v1878
      %v1880 = vpop.f32.mrb[0].mxu0
      %1881 = vmatprep.mubr.bf16.mxu0 0
      %1882 = vmatmul.mubr.bf16.gmra.mrb[0].mxu0 %v1758
      %v1883 = vpop.f32.mrb[0].mxu0
      %v1884 = vadd.f32 0.0, %v1883
      %v1885 = vpop.f32.mrb[0].mxu0
      %v1886 = vpop.f32.mrb[0].mxu0
      %v1887 = vadd.f32 0.0, %v1886
      %v1888 = vpop.f32.mrb[0].mxu0
      %1889 = vmatprep.mubr.bf16.mxu0 0
      %1890 = vmatmul.mubr.bf16.gmra.mrb[0].mxu0 %v1761
      %v1891 = vpop.f32.mrb[0].mxu0
      %v1892 = vadd.f32 0.0, %v1891
      %v1893 = vpop.f32.mrb[0].mxu0
      %v1894 = vpop.f32.mrb[0].mxu0
      %v1895 = vadd.f32 0.0, %v1894
      %v1896 = vpop.f32.mrb[0].mxu0
      %1897 = vmatprep.mubr.bf16.mxu0 0
      %1898 = vmatmul.mubr.bf16.gmra.mrb[0].mxu0 %v1764
      %v1899 = vpop.f32.mrb[0].mxu0
      %v1900 = vadd.f32 0.0, %v1899
      %v1901 = vpop.f32.mrb[0].mxu0
      %v1902 = vpop.f32.mrb[0].mxu0
      %v1903 = vadd.f32 0.0, %v1902
      %v1904 = vpop.f32.mrb[0].mxu0
      %1905 = vmatprep.mubr.bf16.mxu0 0
      %1906 = vmatmul.mubr.bf16.gmra.mrb[0].mxu0 %v1767
      %v1907 = vpop.f32.mrb[0].mxu0
      %v1908 = vadd.f32 0.0, %v1907
      %v1909 = vpop.f32.mrb[0].mxu0
      %v1910 = vpop.f32.mrb[0].mxu0
      %v1911 = vadd.f32 0.0, %v1910
      %v1912 = vpop.f32.mrb[0].mxu0
      %1913 = vmatprep.mubr.bf16.mxu0 0
      %1914 = vmatmul.mubr.bf16.gmra.mrb[0].mxu0 %v1770
      %v1915 = vpop.f32.mrb[0].mxu0
      %v1916 = vadd.f32 0.0, %v1915
      %v1917 = vpop.f32.mrb[0].mxu0
      %v1918 = vpop.f32.mrb[0].mxu0
      %v1919 = vadd.f32 0.0, %v1918
      %v1920 = vpop.f32.mrb[0].mxu0
      %1921 = vmatprep.mubr.bf16.mxu0 0
      %1922 = vmatmul.mubr.bf16.gmra.mrb[0].mxu0 %v1773
      %v1923 = vpop.f32.mrb[0].mxu0
      %v1924 = vadd.f32 0.0, %v1923
      %v1925 = vpop.f32.mrb[0].mxu0
      %v1926 = vpop.f32.mrb[0].mxu0
      %v1927 = vadd.f32 0.0, %v1926
      %v1928 = vpop.f32.mrb[0].mxu0
      %1929 = vmatprep.mubr.bf16.mxu0 0
      %1930 = vmatmul.mubr.bf16.gmra.mrb[0].mxu0 %v1776
      %v1931 = vpop.f32.mrb[0].mxu0
      %v1932 = vadd.f32 0.0, %v1931
      %v1933 = vpop.f32.mrb[0].mxu0
      %v1934 = vpop.f32.mrb[0].mxu0
      %v1935 = vadd.f32 0.0, %v1934
      %v1936 = vpop.f32.mrb[0].mxu0
      %1937 = vmatprep.mubr.bf16.mxu0 0
      %1938 = vmatmul.mubr.bf16.gmra.mrb[0].mxu0 %v1779
      %v1939 = vpop.f32.mrb[0].mxu0
      %v1940 = vadd.f32 0.0, %v1939
      %v1941 = vpop.f32.mrb[0].mxu0
      %v1942 = vpop.f32.mrb[0].mxu0
      %v1943 = vadd.f32 0.0, %v1942
      %v1944 = vpop.f32.mrb[0].mxu0
      %1945 = vdwg.mxu0
      %1946 = vst.msk [vmem:[%s244] sm:$0xff] %vm1465, %v1820
      %1947 = vst.msk [vmem:[%s244 + $0x8] sm:$0xff] %vm1465, %v1823
      %1948 = vst.msk [vmem:[%s244 + $0x10] sm:$0xff] %vm1465, %v1828
      %1949 = vst.msk [vmem:[%s244 + $0x18] sm:$0xff] %vm1465, %v1831
      %1950 = vst.msk [vmem:[%s244 + $0x20] sm:$0xff] %vm1465, %v1836
      %1951 = vst.msk [vmem:[%s244 + $0x28] sm:$0xff] %vm1465, %v1839
      %1952 = vst.msk [vmem:[%s244 + $0x30] sm:$0xff] %vm1465, %v1844
      %1953 = vst.msk [vmem:[%s244 + $0x38] sm:$0xff] %vm1465, %v1847
      %1954 = vst.msk [vmem:[%s244 + $0x40] sm:$0xff] %vm1465, %v1852
      %1955 = vst.msk [vmem:[%s244 + $0x48] sm:$0xff] %vm1465, %v1855
      %1956 = vst.msk [vmem:[%s244 + $0x50] sm:$0xff] %vm1465, %v1860
      %1957 = vst.msk [vmem:[%s244 + $0x58] sm:$0xff] %vm1465, %v1863
      %1958 = vst.msk [vmem:[%s244 + $0x60] sm:$0xff] %vm1465, %v1868
      %1959 = vst.msk [vmem:[%s244 + $0x68] sm:$0xff] %vm1465, %v1871
      %1960 = vst.msk [vmem:[%s244 + $0x70] sm:$0xff] %vm1465, %v1876
      %1961 = vst.msk [vmem:[%s244 + $0x78] sm:$0xff] %vm1465, %v1879
      %1962 = vst.msk [vmem:[%s244 + $0x80] sm:$0xff] %vm1465, %v1884
      %1963 = vst.msk [vmem:[%s244 + $0x88] sm:$0xff] %vm1465, %v1887
      %1964 = vst.msk [vmem:[%s244 + $0x90] sm:$0xff] %vm1465, %v1892
      %1965 = vst.msk [vmem:[%s244 + $0x98] sm:$0xff] %vm1465, %v1895
      %1966 = vst.msk [vmem:[%s244 + $0xa0] sm:$0xff] %vm1465, %v1900
      %1967 = vst.msk [vmem:[%s244 + $0xa8] sm:$0xff] %vm1465, %v1903
      %1968 = vst.msk [vmem:[%s244 + $0xb0] sm:$0xff] %vm1465, %v1908
      %1969 = vst.msk [vmem:[%s244 + $0xb8] sm:$0xff] %vm1465, %v1911
      %1970 = vst.msk [vmem:[%s244 + $0xc0] sm:$0xff] %vm1465, %v1916
      %1971 = vst.msk [vmem:[%s244 + $0xc8] sm:$0xff] %vm1465, %v1919
      %1972 = vst.msk [vmem:[%s244 + $0xd0] sm:$0xff] %vm1465, %v1924
      %1973 = vst.msk [vmem:[%s244 + $0xd8] sm:$0xff] %vm1465, %v1927
      %1974 = vst.msk [vmem:[%s244 + $0xe0] sm:$0xff] %vm1465, %v1932
      %1975 = vst.msk [vmem:[%s244 + $0xe8] sm:$0xff] %vm1465, %v1935
      %1976 = vst.msk [vmem:[%s244 + $0xf0] sm:$0xff] %vm1465, %v1940
      %1977 = vst.msk [vmem:[%s244 + $0xf8] sm:$0xff] %vm1465, %v1943
      %2010 = vrot.lane.b32.xlu0 %v1820, 120
      %v2011 = vpop.permute.xlu0 %2010
      %2012 = vrot.lane.b32.xlu0 %v1823, 120
      %v2013 = vpop.permute.xlu0 %2012
      %2014 = vrot.lane.b32.xlu0 %v1828, 120
      %v2015 = vpop.permute.xlu0 %2014
      %2016 = vrot.lane.b32.xlu0 %v1831, 120
      %v2017 = vpop.permute.xlu0 %2016
      %2018 = vrot.lane.b32.xlu0 %v1836, 120
      %v2019 = vpop.permute.xlu0 %2018
      %2020 = vrot.lane.b32.xlu0 %v1839, 120
      %v2021 = vpop.permute.xlu0 %2020
      %2022 = vrot.lane.b32.xlu0 %v1844, 120
      %v2023 = vpop.permute.xlu0 %2022
      %2024 = vrot.lane.b32.xlu0 %v1847, 120
      %v2025 = vpop.permute.xlu0 %2024
      %2026 = vrot.lane.b32.xlu0 %v1852, 120
      %v2027 = vpop.permute.xlu0 %2026
      %2028 = vrot.lane.b32.xlu0 %v1855, 120
      %v2029 = vpop.permute.xlu0 %2028
      %2030 = vrot.lane.b32.xlu0 %v1860, 120
      %v2031 = vpop.permute.xlu0 %2030
      %2032 = vrot.lane.b32.xlu0 %v1863, 120
      %v2033 = vpop.permute.xlu0 %2032
      %2034 = vrot.lane.b32.xlu0 %v1868, 120
      %v2035 = vpop.permute.xlu0 %2034
      %2036 = vrot.lane.b32.xlu0 %v1871, 120
      %v2037 = vpop.permute.xlu0 %2036
      %2038 = vrot.lane.b32.xlu0 %v1876, 120
      %v2039 = vpop.permute.xlu0 %2038
      %2040 = vrot.lane.b32.xlu0 %v1879, 120
      %v2041 = vpop.permute.xlu0 %2040
      %2042 = vrot.lane.b32.xlu0 %v1884, 120
      %v2043 = vpop.permute.xlu0 %2042
      %2044 = vrot.lane.b32.xlu0 %v1887, 120
      %v2045 = vpop.permute.xlu0 %2044
      %2046 = vrot.lane.b32.xlu0 %v1892, 120
      %v2047 = vpop.permute.xlu0 %2046
      %2048 = vrot.lane.b32.xlu0 %v1895, 120
      %v2049 = vpop.permute.xlu0 %2048
      %2050 = vrot.lane.b32.xlu0 %v1900, 120
      %v2051 = vpop.permute.xlu0 %2050
      %2052 = vrot.lane.b32.xlu0 %v1903, 120
      %v2053 = vpop.permute.xlu0 %2052
      %2054 = vrot.lane.b32.xlu0 %v1908, 120
      %v2055 = vpop.permute.xlu0 %2054
      %2056 = vrot.lane.b32.xlu0 %v1911, 120
      %v2057 = vpop.permute.xlu0 %2056
      %2058 = vrot.lane.b32.xlu0 %v1916, 120
      %v2059 = vpop.permute.xlu0 %2058
      %2060 = vrot.lane.b32.xlu0 %v1919, 120
      %v2061 = vpop.permute.xlu0 %2060
      %2062 = vrot.lane.b32.xlu0 %v1924, 120
      %v2063 = vpop.permute.xlu0 %2062
      %2064 = vrot.lane.b32.xlu0 %v1927, 120
      %v2065 = vpop.permute.xlu0 %2064
      %2066 = vrot.lane.b32.xlu0 %v1932, 120
      %v2067 = vpop.permute.xlu0 %2066
      %2068 = vrot.lane.b32.xlu0 %v1935, 120
      %v2069 = vpop.permute.xlu0 %2068
      %2070 = vrot.lane.b32.xlu0 %v1940, 120
      %v2071 = vpop.permute.xlu0 %2070
      %2072 = vrot.lane.b32.xlu0 %v1943, 120
      %v2073 = vpop.permute.xlu0 %2072
      %2106 = vst.msk [vmem:[%s249] sm:$0xff] %vm1465, %v2011
      %2107 = vst.msk [vmem:[%s249 + $0x8] sm:$0xff] %vm1465, %v2013
      %2108 = vst.msk [vmem:[%s249 + $0x10] sm:$0xff] %vm1465, %v2015
      %2109 = vst.msk [vmem:[%s249 + $0x18] sm:$0xff] %vm1465, %v2017
      %2110 = vst.msk [vmem:[%s249 + $0x20] sm:$0xff] %vm1465, %v2019
      %2111 = vst.msk [vmem:[%s249 + $0x28] sm:$0xff] %vm1465, %v2021
      %2112 = vst.msk [vmem:[%s249 + $0x30] sm:$0xff] %vm1465, %v2023
      %2113 = vst.msk [vmem:[%s249 + $0x38] sm:$0xff] %vm1465, %v2025
      %2114 = vst.msk [vmem:[%s249 + $0x40] sm:$0xff] %vm1465, %v2027
      %2115 = vst.msk [vmem:[%s249 + $0x48] sm:$0xff] %vm1465, %v2029
      %2116 = vst.msk [vmem:[%s249 + $0x50] sm:$0xff] %vm1465, %v2031
      %2117 = vst.msk [vmem:[%s249 + $0x58] sm:$0xff] %vm1465, %v2033
      %2118 = vst.msk [vmem:[%s249 + $0x60] sm:$0xff] %vm1465, %v2035
      %2119 = vst.msk [vmem:[%s249 + $0x68] sm:$0xff] %vm1465, %v2037
      %2120 = vst.msk [vmem:[%s249 + $0x70] sm:$0xff] %vm1465, %v2039
      %2121 = vst.msk [vmem:[%s249 + $0x78] sm:$0xff] %vm1465, %v2041
      %2122 = vst.msk [vmem:[%s249 + $0x80] sm:$0xff] %vm1465, %v2043
      %2123 = vst.msk [vmem:[%s249 + $0x88] sm:$0xff] %vm1465, %v2045
      %2124 = vst.msk [vmem:[%s249 + $0x90] sm:$0xff] %vm1465, %v2047
      %2125 = vst.msk [vmem:[%s249 + $0x98] sm:$0xff] %vm1465, %v2049
      %2126 = vst.msk [vmem:[%s249 + $0xa0] sm:$0xff] %vm1465, %v2051
      %2127 = vst.msk [vmem:[%s249 + $0xa8] sm:$0xff] %vm1465, %v2053
      %2128 = vst.msk [vmem:[%s249 + $0xb0] sm:$0xff] %vm1465, %v2055
      %2129 = vst.msk [vmem:[%s249 + $0xb8] sm:$0xff] %vm1465, %v2057
      %2130 = vst.msk [vmem:[%s249 + $0xc0] sm:$0xff] %vm1465, %v2059
      %2131 = vst.msk [vmem:[%s249 + $0xc8] sm:$0xff] %vm1465, %v2061
      %2132 = vst.msk [vmem:[%s249 + $0xd0] sm:$0xff] %vm1465, %v2063
      %2133 = vst.msk [vmem:[%s249 + $0xd8] sm:$0xff] %vm1465, %v2065
      %2134 = vst.msk [vmem:[%s249 + $0xe0] sm:$0xff] %vm1465, %v2067
      %2135 = vst.msk [vmem:[%s249 + $0xe8] sm:$0xff] %vm1465, %v2069
      %2136 = vst.msk [vmem:[%s249 + $0xf0] sm:$0xff] %vm1465, %v2071
      %2137 = vst.msk [vmem:[%s249 + $0xf8] sm:$0xff] %vm1465, %v2073
      %v2138 = vsel %vm1465, %v1820, 0.0
      %v2139 = vsel %vm1465, %v1823, 0.0
      %v2140 = vadd.f32 %v2138, %v2139
      %v2141 = vsel %vm1465, %v1828, 0.0
      %v2142 = vadd.f32 %v2140, %v2141
      %v2143 = vsel %vm1465, %v1831, 0.0
      %v2144 = vadd.f32 %v2142, %v2143
      %v2145 = vsel %vm1465, %v1836, 0.0
      %v2146 = vadd.f32 %v2144, %v2145
      %v2147 = vsel %vm1465, %v1839, 0.0
      %v2148 = vadd.f32 %v2146, %v2147
      %v2149 = vsel %vm1465, %v1844, 0.0
      %v2150 = vadd.f32 %v2148, %v2149
      %v2151 = vsel %vm1465, %v1847, 0.0
      %v2152 = vadd.f32 %v2150, %v2151
      %v2153 = vsel %vm1465, %v1852, 0.0
      %v2154 = vadd.f32 %v2152, %v2153
      %v2155 = vsel %vm1465, %v1855, 0.0
      %v2156 = vadd.f32 %v2154, %v2155
      %v2157 = vsel %vm1465, %v1860, 0.0
      %v2158 = vadd.f32 %v2156, %v2157
      %v2159 = vsel %vm1465, %v1863, 0.0
      %v2160 = vadd.f32 %v2158, %v2159
      %v2161 = vsel %vm1465, %v1868, 0.0
      %v2162 = vadd.f32 %v2160, %v2161
      %v2163 = vsel %vm1465, %v1871, 0.0
      %v2164 = vadd.f32 %v2162, %v2163
      %v2165 = vsel %vm1465, %v1876, 0.0
      %v2166 = vadd.f32 %v2164, %v2165
      %v2167 = vsel %vm1465, %v1879, 0.0
      %v2168 = vadd.f32 %v2166, %v2167
      %v2169 = vsel %vm1465, %v1884, 0.0
      %v2170 = vadd.f32 %v2168, %v2169
      %v2171 = vsel %vm1465, %v1887, 0.0
      %v2172 = vadd.f32 %v2170, %v2171
      %v2173 = vsel %vm1465, %v1892, 0.0
      %v2174 = vadd.f32 %v2172, %v2173
      %v2175 = vsel %vm1465, %v1895, 0.0
      %v2176 = vadd.f32 %v2174, %v2175
      %v2177 = vsel %vm1465, %v1900, 0.0
      %v2178 = vadd.f32 %v2176, %v2177
      %v2179 = vsel %vm1465, %v1903, 0.0
      %v2180 = vadd.f32 %v2178, %v2179
      %v2181 = vsel %vm1465, %v1908, 0.0
      %v2182 = vadd.f32 %v2180, %v2181
      %v2183 = vsel %vm1465, %v1911, 0.0
      %v2184 = vadd.f32 %v2182, %v2183
      %v2185 = vsel %vm1465, %v1916, 0.0
      %v2186 = vadd.f32 %v2184, %v2185
      %v2187 = vsel %vm1465, %v1919, 0.0
      %v2188 = vadd.f32 %v2186, %v2187
      %v2189 = vsel %vm1465, %v1924, 0.0
      %v2190 = vadd.f32 %v2188, %v2189
      %v2191 = vsel %vm1465, %v1927, 0.0
      %v2192 = vadd.f32 %v2190, %v2191
      %v2193 = vsel %vm1465, %v1932, 0.0
      %v2194 = vadd.f32 %v2192, %v2193
      %v2195 = vsel %vm1465, %v1935, 0.0
      %v2196 = vadd.f32 %v2194, %v2195
      %v2197 = vsel %vm1465, %v1940, 0.0
      %v2198 = vadd.f32 %v2196, %v2197
      %v2199 = vsel %vm1465, %v1943, 0.0
      %v2200 = vadd.f32 %v2198, %v2199
      %v2201 = vrot.slane %v2200, 4
      %v2202 = vadd.f32 %v2200, %v2201
      %v2203 = vrot.slane %v2202, 2
      %v2204 = vadd.f32 %v2202, %v2203
      %v2205 = vrot.slane %v2204, 1
      %v2206 = vadd.f32 %v2204, %v2205
      %v2207 = vmul.f32 %v1820, %v1820
      %v2208 = vmul.f32 %v1823, %v1823
      %v2209 = vmul.f32 %v1828, %v1828
      %v2210 = vmul.f32 %v1831, %v1831
      %v2211 = vmul.f32 %v1836, %v1836
      %v2212 = vmul.f32 %v1839, %v1839
      %v2213 = vmul.f32 %v1844, %v1844
      %v2214 = vmul.f32 %v1847, %v1847
      %v2215 = vmul.f32 %v1852, %v1852
      %v2216 = vmul.f32 %v1855, %v1855
      %v2217 = vmul.f32 %v1860, %v1860
      %v2218 = vmul.f32 %v1863, %v1863
      %v2219 = vmul.f32 %v1868, %v1868
      %v2220 = vmul.f32 %v1871, %v1871
      %v2221 = vmul.f32 %v1876, %v1876
      %v2222 = vmul.f32 %v1879, %v1879
      %v2223 = vmul.f32 %v1884, %v1884
      %v2224 = vmul.f32 %v1887, %v1887
      %v2225 = vmul.f32 %v1892, %v1892
      %v2226 = vmul.f32 %v1895, %v1895
      %v2227 = vmul.f32 %v1900, %v1900
      %v2228 = vmul.f32 %v1903, %v1903
      %v2229 = vmul.f32 %v1908, %v1908
      %v2230 = vmul.f32 %v1911, %v1911
      %v2231 = vmul.f32 %v1916, %v1916
      %v2232 = vmul.f32 %v1919, %v1919
      %v2233 = vmul.f32 %v1924, %v1924
      %v2234 = vmul.f32 %v1927, %v1927
      %v2235 = vmul.f32 %v1932, %v1932
      %v2236 = vmul.f32 %v1935, %v1935
      %v2237 = vmul.f32 %v1940, %v1940
      %v2238 = vmul.f32 %v1943, %v1943
      %v2239 = vsel %vm1465, %v2207, 0.0
      %v2240 = vsel %vm1465, %v2208, 0.0
      %v2241 = vadd.f32 %v2239, %v2240
      %v2242 = vsel %vm1465, %v2209, 0.0
      %v2243 = vadd.f32 %v2241, %v2242
      %v2244 = vsel %vm1465, %v2210, 0.0
      %v2245 = vadd.f32 %v2243, %v2244
      %v2246 = vsel %vm1465, %v2211, 0.0
      %v2247 = vadd.f32 %v2245, %v2246
      %v2248 = vsel %vm1465, %v2212, 0.0
      %v2249 = vadd.f32 %v2247, %v2248
      %v2250 = vsel %vm1465, %v2213, 0.0
      %v2251 = vadd.f32 %v2249, %v2250
      %v2252 = vsel %vm1465, %v2214, 0.0
      %v2253 = vadd.f32 %v2251, %v2252
      %v2254 = vsel %vm1465, %v2215, 0.0
      %v2255 = vadd.f32 %v2253, %v2254
      %v2256 = vsel %vm1465, %v2216, 0.0
      %v2257 = vadd.f32 %v2255, %v2256
      %v2258 = vsel %vm1465, %v2217, 0.0
      %v2259 = vadd.f32 %v2257, %v2258
      %v2260 = vsel %vm1465, %v2218, 0.0
      %v2261 = vadd.f32 %v2259, %v2260
      %v2262 = vsel %vm1465, %v2219, 0.0
      %v2263 = vadd.f32 %v2261, %v2262
      %v2264 = vsel %vm1465, %v2220, 0.0
      %v2265 = vadd.f32 %v2263, %v2264
      %v2266 = vsel %vm1465, %v2221, 0.0
      %v2267 = vadd.f32 %v2265, %v2266
      %v2268 = vsel %vm1465, %v2222, 0.0
      %v2269 = vadd.f32 %v2267, %v2268
      %v2270 = vsel %vm1465, %v2223, 0.0
      %v2271 = vadd.f32 %v2269, %v2270
      %v2272 = vsel %vm1465, %v2224, 0.0
      %v2273 = vadd.f32 %v2271, %v2272
      %v2274 = vsel %vm1465, %v2225, 0.0
      %v2275 = vadd.f32 %v2273, %v2274
      %v2276 = vsel %vm1465, %v2226, 0.0
      %v2277 = vadd.f32 %v2275, %v2276
      %v2278 = vsel %vm1465, %v2227, 0.0
      %v2279 = vadd.f32 %v2277, %v2278
      %v2280 = vsel %vm1465, %v2228, 0.0
      %v2281 = vadd.f32 %v2279, %v2280
      %v2282 = vsel %vm1465, %v2229, 0.0
      %v2283 = vadd.f32 %v2281, %v2282
      %v2284 = vsel %vm1465, %v2230, 0.0
      %v2285 = vadd.f32 %v2283, %v2284
      %v2286 = vsel %vm1465, %v2231, 0.0
      %v2287 = vadd.f32 %v2285, %v2286
      %v2288 = vsel %vm1465, %v2232, 0.0
      %v2289 = vadd.f32 %v2287, %v2288
      %v2290 = vsel %vm1465, %v2233, 0.0
      %v2291 = vadd.f32 %v2289, %v2290
      %v2292 = vsel %vm1465, %v2234, 0.0
      %v2293 = vadd.f32 %v2291, %v2292
      %v2294 = vsel %vm1465, %v2235, 0.0
      %v2295 = vadd.f32 %v2293, %v2294
      %v2296 = vsel %vm1465, %v2236, 0.0
      %v2297 = vadd.f32 %v2295, %v2296
      %v2298 = vsel %vm1465, %v2237, 0.0
      %v2299 = vadd.f32 %v2297, %v2298
      %v2300 = vsel %vm1465, %v2238, 0.0
      %v2301 = vadd.f32 %v2299, %v2300
      %v2302 = vrot.slane %v2301, 4
      %v2303 = vadd.f32 %v2301, %v2302
      %v2304 = vrot.slane %v2303, 2
      %v2305 = vadd.f32 %v2303, %v2304
      %v2306 = vrot.slane %v2305, 1
      %v2307 = vadd.f32 %v2305, %v2306
      %v2308 = vsel %vm324, %v2206, %v2307
      %vm2309 = vcmask 58368
      %2310 = vst.msk [vmem:[%s253] sm:$0x3] %vm2309, %v2308
      %vm2311 = vcmask 130112
      %v2312 = vsel %vm2311, %v1820, 0.0
      %v2313 = vsel %vm2311, %v1823, 0.0
      %v2314 = vadd.f32 %v2312, %v2313
      %v2315 = vsel %vm2311, %v1828, 0.0
      %v2316 = vadd.f32 %v2314, %v2315
      %v2317 = vsel %vm2311, %v1831, 0.0
      %v2318 = vadd.f32 %v2316, %v2317
      %v2319 = vsel %vm2311, %v1836, 0.0
      %v2320 = vadd.f32 %v2318, %v2319
      %v2321 = vsel %vm2311, %v1839, 0.0
      %v2322 = vadd.f32 %v2320, %v2321
      %v2323 = vsel %vm2311, %v1844, 0.0
      %v2324 = vadd.f32 %v2322, %v2323
      %v2325 = vsel %vm2311, %v1847, 0.0
      %v2326 = vadd.f32 %v2324, %v2325
      %v2327 = vsel %vm2311, %v1852, 0.0
      %v2328 = vadd.f32 %v2326, %v2327
      %v2329 = vsel %vm2311, %v1855, 0.0
      %v2330 = vadd.f32 %v2328, %v2329
      %v2331 = vsel %vm2311, %v1860, 0.0
      %v2332 = vadd.f32 %v2330, %v2331
      %v2333 = vsel %vm2311, %v1863, 0.0
      %v2334 = vadd.f32 %v2332, %v2333
      %v2335 = vsel %vm2311, %v1868, 0.0
      %v2336 = vadd.f32 %v2334, %v2335
      %v2337 = vsel %vm2311, %v1871, 0.0
      %v2338 = vadd.f32 %v2336, %v2337
      %v2339 = vsel %vm2311, %v1876, 0.0
      %v2340 = vadd.f32 %v2338, %v2339
      %v2341 = vsel %vm2311, %v1879, 0.0
      %v2342 = vadd.f32 %v2340, %v2341
      %v2343 = vsel %vm2311, %v1884, 0.0
      %v2344 = vadd.f32 %v2342, %v2343
      %v2345 = vsel %vm2311, %v1887, 0.0
      %v2346 = vadd.f32 %v2344, %v2345
      %v2347 = vsel %vm2311, %v1892, 0.0
      %v2348 = vadd.f32 %v2346, %v2347
      %v2349 = vsel %vm2311, %v1895, 0.0
      %v2350 = vadd.f32 %v2348, %v2349
      %v2351 = vsel %vm2311, %v1900, 0.0
      %v2352 = vadd.f32 %v2350, %v2351
      %v2353 = vsel %vm2311, %v1903, 0.0
      %v2354 = vadd.f32 %v2352, %v2353
      %v2355 = vsel %vm2311, %v1908, 0.0
      %v2356 = vadd.f32 %v2354, %v2355
      %v2357 = vsel %vm2311, %v1911, 0.0
      %v2358 = vadd.f32 %v2356, %v2357
      %v2359 = vsel %vm2311, %v1916, 0.0
      %v2360 = vadd.f32 %v2358, %v2359
      %v2361 = vsel %vm2311, %v1919, 0.0
      %v2362 = vadd.f32 %v2360, %v2361
      %v2363 = vsel %vm2311, %v1924, 0.0
      %v2364 = vadd.f32 %v2362, %v2363
      %v2365 = vsel %vm2311, %v1927, 0.0
      %v2366 = vadd.f32 %v2364, %v2365
      %v2367 = vsel %vm2311, %v1932, 0.0
      %v2368 = vadd.f32 %v2366, %v2367
      %v2369 = vsel %vm2311, %v1935, 0.0
      %v2370 = vadd.f32 %v2368, %v2369
      %v2371 = vsel %vm2311, %v1940, 0.0
      %v2372 = vadd.f32 %v2370, %v2371
      %v2373 = vsel %vm2311, %v1943, 0.0
      %v2374 = vadd.f32 %v2372, %v2373
      %v2375 = vrot.slane %v2374, 4
      %v2376 = vadd.f32 %v2374, %v2375
      %v2377 = vrot.slane %v2376, 2
      %v2378 = vadd.f32 %v2376, %v2377
      %v2379 = vrot.slane %v2378, 1
      %v2380 = vadd.f32 %v2378, %v2379
      %v2381 = vsel %vm2311, %v2207, 0.0
      %v2382 = vsel %vm2311, %v2208, 0.0
      %v2383 = vadd.f32 %v2381, %v2382
      %v2384 = vsel %vm2311, %v2209, 0.0
      %v2385 = vadd.f32 %v2383, %v2384
      %v2386 = vsel %vm2311, %v2210, 0.0
      %v2387 = vadd.f32 %v2385, %v2386
      %v2388 = vsel %vm2311, %v2211, 0.0
      %v2389 = vadd.f32 %v2387, %v2388
      %v2390 = vsel %vm2311, %v2212, 0.0
      %v2391 = vadd.f32 %v2389, %v2390
      %v2392 = vsel %vm2311, %v2213, 0.0
      %v2393 = vadd.f32 %v2391, %v2392
      %v2394 = vsel %vm2311, %v2214, 0.0
      %v2395 = vadd.f32 %v2393, %v2394
      %v2396 = vsel %vm2311, %v2215, 0.0
      %v2397 = vadd.f32 %v2395, %v2396
      %v2398 = vsel %vm2311, %v2216, 0.0
      %v2399 = vadd.f32 %v2397, %v2398
      %v2400 = vsel %vm2311, %v2217, 0.0
      %v2401 = vadd.f32 %v2399, %v2400
      %v2402 = vsel %vm2311, %v2218, 0.0
      %v2403 = vadd.f32 %v2401, %v2402
      %v2404 = vsel %vm2311, %v2219, 0.0
      %v2405 = vadd.f32 %v2403, %v2404
      %v2406 = vsel %vm2311, %v2220, 0.0
      %v2407 = vadd.f32 %v2405, %v2406
      %v2408 = vsel %vm2311, %v2221, 0.0
      %v2409 = vadd.f32 %v2407, %v2408
      %v2410 = vsel %vm2311, %v2222, 0.0
      %v2411 = vadd.f32 %v2409, %v2410
      %v2412 = vsel %vm2311, %v2223, 0.0
      %v2413 = vadd.f32 %v2411, %v2412
      %v2414 = vsel %vm2311, %v2224, 0.0
      %v2415 = vadd.f32 %v2413, %v2414
      %v2416 = vsel %vm2311, %v2225, 0.0
      %v2417 = vadd.f32 %v2415, %v2416
      %v2418 = vsel %vm2311, %v2226, 0.0
      %v2419 = vadd.f32 %v2417, %v2418
      %v2420 = vsel %vm2311, %v2227, 0.0
      %v2421 = vadd.f32 %v2419, %v2420
      %v2422 = vsel %vm2311, %v2228, 0.0
      %v2423 = vadd.f32 %v2421, %v2422
      %v2424 = vsel %vm2311, %v2229, 0.0
      %v2425 = vadd.f32 %v2423, %v2424
      %v2426 = vsel %vm2311, %v2230, 0.0
      %v2427 = vadd.f32 %v2425, %v2426
      %v2428 = vsel %vm2311, %v2231, 0.0
      %v2429 = vadd.f32 %v2427, %v2428
      %v2430 = vsel %vm2311, %v2232, 0.0
      %v2431 = vadd.f32 %v2429, %v2430
      %v2432 = vsel %vm2311, %v2233, 0.0
      %v2433 = vadd.f32 %v2431, %v2432
      %v2434 = vsel %vm2311, %v2234, 0.0
      %v2435 = vadd.f32 %v2433, %v2434
      %v2436 = vsel %vm2311, %v2235, 0.0
      %v2437 = vadd.f32 %v2435, %v2436
      %v2438 = vsel %vm2311, %v2236, 0.0
      %v2439 = vadd.f32 %v2437, %v2438
      %v2440 = vsel %vm2311, %v2237, 0.0
      %v2441 = vadd.f32 %v2439, %v2440
      %v2442 = vsel %vm2311, %v2238, 0.0
      %v2443 = vadd.f32 %v2441, %v2442
      %v2444 = vrot.slane %v2443, 4
      %v2445 = vadd.f32 %v2443, %v2444
      %v2446 = vrot.slane %v2445, 2
      %v2447 = vadd.f32 %v2445, %v2446
      %v2448 = vrot.slane %v2447, 1
      %v2449 = vadd.f32 %v2447, %v2448
      %v2450 = vsel %vm324, %v2380, %v2449
      %2452 = vrot.lane.b32.xlu0 %v2450, 120
      %v2453 = vpop.permute.xlu0 %2452
      %2455 = vst.msk [vmem:[%s257] sm:$0x3] %vm2309, %v2453
      %p2456 = scmp.lt.s32.totalorder %s17, 1
      %s2457 = scalar_select %p2456, %s17, 1
      %s2458 = smul.addr %s2457, 32
      %s2459 = smul.addr %s2458, 8
      %s2460 = scalar_lea.vmem %s2, %s2459
      %p2461 = scmp.lt.s32.totalorder %s17, 1
      %s2462 = scalar_select %p2461, %s17, 1
      %s2463 = smul.addr %s2462, 32
      %s2464 = smul.addr %s2463, 8
      %s2465 = scalar_lea.vmem %s3, %s2464
      %p2466 = scmp.lt.s32.totalorder %s17, 1
      %s2467 = scalar_select %p2466, %s17, 1
      %s2468 = smul.addr %s2467, 2
      %s2469 = scalar_lea.vmem %s4, %s2468
      %p2470 = scmp.lt.s32.totalorder %s17, 1
      %s2471 = scalar_select %p2470, %s17, 1
      %s2472 = smul.addr %s2471, 2
      %s2473 = scalar_lea.vmem %s5, %s2472
      // Predicated region
      $region29: #{resblk_forward.4} parent=27 // pred_check
        %p2474 = pneg %p82
      $region30: #{resblk_forward.4} parent=27 // pred_check_branch
        %2476 = sbr.rel (%p2474) target = $region32
      $region31: #{resblk_forward.4} parent=27 // pred_region
        _
      $region32: #{resblk_forward.4} parent=27 // pred_fallthru
        _
      // Predicated region
      $region33: #{resblk_forward.4} parent=27 // pred_check
        %p2477 = pneg %p108
      $region34: #{resblk_forward.4} parent=27 // pred_check_branch
        %2479 = sbr.rel (%p2477) target = $region36
      $region35: #{resblk_forward.4} parent=27 // pred_region
        _
      $region36: #{resblk_forward.4} parent=27 // pred_fallthru
        _
      // Predicated region
      $region37: #{resblk_forward.4} parent=27 // pred_check
        %p2480 = pneg %p134
      $region38: #{resblk_forward.4} parent=27 // pred_check_branch
        %2482 = sbr.rel (%p2480) target = $region40
      $region39: #{resblk_forward.4} parent=27 // pred_region
        _
      $region40: #{resblk_forward.4} parent=27 // pred_fallthru
        _
      // Predicated region
      $region41: #{resblk_forward.4} parent=27 // pred_check
        %p2483 = pneg %p160
      $region42: #{resblk_forward.4} parent=27 // pred_check_branch
        %2485 = sbr.rel (%p2483) target = $region44
      $region43: #{resblk_forward.4} parent=27 // pred_region
        _
      $region44: #{resblk_forward.4} parent=27 // pred_fallthru
        _
    $region28: #{resblk_forward.4} parent=5 // pred_fallthru
      _
    %p2486 = scmp.le.s32.totalorder 2, %s12
    // Predicated region
    $region45: #{resblk_forward.4} parent=5 // pred_check
      %p2487 = pneg %p2486
    $region46: #{resblk_forward.4} parent=5 // pred_check_branch
      %2489 = sbr.rel (%p2487) target = $region48
    $region47: #{resblk_forward.4} parent=5 // pred_region
      %s2490 = ssub.s32 %s12, 2
      // Predicated region
      $region49: #{resblk_forward.4} parent=47 // pred_check
        %p2491 = pneg %p88
      $region50: #{resblk_forward.4} parent=47 // pred_check_branch
        %2493 = sbr.rel (%p2491) target = $region52
      $region51: #{resblk_forward.4} parent=47 // pred_region
        %p2494 = scmp.lt.s32.totalorder %s18, 1
        %s2495 = scalar_select %p2494, %s18, 1
        %s2496 = smul.addr %s2495, 32
        %s2497 = smul.addr %s2496, 8
        %s2498 = scalar_lea.vmem %s2, %s2497
      $region52: #{resblk_forward.4} parent=47 // pred_fallthru
        _
      // Predicated region
      $region53: #{resblk_forward.4} parent=47 // pred_check
        %p2499 = pneg %p114
      $region54: #{resblk_forward.4} parent=47 // pred_check_branch
        %2501 = sbr.rel (%p2499) target = $region56
      $region55: #{resblk_forward.4} parent=47 // pred_region
        %p2502 = scmp.lt.s32.totalorder %s18, 1
        %s2503 = scalar_select %p2502, %s18, 1
        %s2504 = smul.addr %s2503, 32
        %s2505 = smul.addr %s2504, 8
        %s2506 = scalar_lea.vmem %s3, %s2505
      $region56: #{resblk_forward.4} parent=47 // pred_fallthru
        _
      // Predicated region
      $region57: #{resblk_forward.4} parent=47 // pred_check
        %p2507 = pneg %p140
      $region58: #{resblk_forward.4} parent=47 // pred_check_branch
        %2509 = sbr.rel (%p2507) target = $region60
      $region59: #{resblk_forward.4} parent=47 // pred_region
        %p2510 = scmp.lt.s32.totalorder %s18, 1
        %s2511 = scalar_select %p2510, %s18, 1
        %s2512 = smul.addr %s2511, 2
        %s2513 = scalar_lea.vmem %s4, %s2512
      $region60: #{resblk_forward.4} parent=47 // pred_fallthru
        _
      // Predicated region
      $region61: #{resblk_forward.4} parent=47 // pred_check
        %p2514 = pneg %p166
      $region62: #{resblk_forward.4} parent=47 // pred_check_branch
        %2516 = sbr.rel (%p2514) target = $region64
      $region63: #{resblk_forward.4} parent=47 // pred_region
        %p2517 = scmp.lt.s32.totalorder %s18, 1
        %s2518 = scalar_select %p2517, %s18, 1
        %s2519 = smul.addr %s2518, 2
        %s2520 = scalar_lea.vmem %s5, %s2519
      $region64: #{resblk_forward.4} parent=47 // pred_fallthru
        _
    $region48: #{resblk_forward.4} parent=5 // pred_fallthru
      _
  $region6: #{resblk_forward.4} parent=0 // loop_footer
    %s16 = sadd.s32 1, %s12
  $region7: #{resblk_forward.4} parent=0 // loop_footer_branch
    %11 = sbr.rel target = $region3
  $region8: #{resblk_forward.4} parent=0 // loop_exit
    _

</llo_original>
